<compile_context>
chip_gen: v7x
topology: tpu7x:2x2x1
jax: 0.10.0
libtpu: 0.0.40
codegen_flags: <defaults>
</compile_context>

<pallas_src>
import functools

import jax
import jax.numpy as jnp
from jax.experimental import pallas as pl
from jax.experimental.pallas import tpu as pltpu


# ----------------------------------------------------------------------------
# Kernel 1: fused SA level (gather + edge features + 3-layer MLP + max).
# Rows are neighbour-major: row s*P + p == neighbour s of centroid p.
# ----------------------------------------------------------------------------
def _sa_fused_kernel(P, S, edge, use_feat, *refs):
    it = iter(refs)
    idx_ref = next(it)                     # (1, S*P, 1) int32
    xyz_ref = next(it)                     # (1, N, 3)   f32
    feat_ref = next(it) if use_feat else None
    w1x = next(it)                         # (3, Cm)  bf16
    w1f = next(it) if use_feat else None   # (C, Cm)  bf16
    w1c = next(it) if edge else None       # (C, Cm)  bf16
    b1 = next(it)                          # (1, Cm)  f32
    w2 = next(it); b2 = next(it)
    w3 = next(it); b3 = next(it)
    o_ref = next(it)                       # (1, P, Cout)

    f32, bf16 = jnp.float32, jnp.bfloat16
    N = xyz_ref.shape[1]
    SP = S * P

    idx = idx_ref[0]                                             # (SP, 1)
    xyz = xyz_ref[0]                                             # (N, 3)
    cols = jax.lax.broadcasted_iota(jnp.int32, (SP, N), 1)
    onehot = (idx == cols).astype(f32)                           # (SP, N) gather matrix

    def tile_rows(a):
        # (P, C) -> (S*P, C): one copy of the centroid rows per neighbour slab.
        return jnp.concatenate([a] * S, axis=0)

    # xyz branch of layer 1: project first (K=3 matmul), then gather with the
    # one-hot matmul, so every matmul output is >= Cm lanes wide.
    #   dxyz @ w1x == gather(xyz @ w1x) - tile(centroid(xyz @ w1x))
    xyz_p = jnp.dot(xyz.astype(bf16), w1x[...], preferred_element_type=f32)   # (N, Cm)
    acc1 = (jnp.dot(onehot, xyz_p, preferred_element_type=f32)
            - tile_rows(xyz_p[0:P, :]))

    if use_feat:
        feat = feat_ref[0]                                                    # (N, C)
        if edge:
            g_feat = jnp.dot(onehot, feat, preferred_element_type=f32)        # (SP, C)
            c_feat = tile_rows(feat[0:P, :])                                  # (SP, C)
            acc1 = acc1 + jnp.dot((g_feat - c_feat).astype(bf16), w1f[...],
                                  preferred_element_type=f32)
            acc1 = acc1 + jnp.dot(c_feat.astype(bf16), w1c[...],
                                  preferred_element_type=f32)
        else:
            # g_feat @ w1f == gather(feat @ w1f)
            feat_p = jnp.dot(feat.astype(bf16), w1f[...], preferred_element_type=f32)
            acc1 = acc1 + jnp.dot(onehot, feat_p, preferred_element_type=f32)

    h = jnp.maximum(acc1 + b1[...], 0.0)
    h = jnp.maximum(jnp.dot(h.astype(bf16), w2[...], preferred_element_type=f32) + b2[...], 0.0)
    h = jnp.maximum(jnp.dot(h.astype(bf16), w3[...], preferred_element_type=f32) + b3[...], 0.0)

    acc = h[0:P, :]
    for s in range(1, S):                  # static unroll over neighbour slabs
        acc = jnp.maximum(acc, h[s * P:(s + 1) * P, :])
    o_ref[0] = acc


def sa_fused(idx_nm, xyz, features, P, S, sa_params, edge):
    """idx_nm: (B, S*P, 1) int32 neighbour-major kNN indices -> (B, P, Cout)."""
    B, N, _ = xyz.shape
    use_feat = features is not None
    assert use_feat or not edge
    (w1, b1), (w2, b2), (w3, b3) = sa_params
    bf16 = jnp.bfloat16
    Cout = w3.shape[1]

    inputs = [idx_nm, xyz]
    if use_feat:
        inputs.append(features)
        C = features.shape[-1]

    # first-layer weight is pre-split so the kernel needs no lane-dim concat.
    weight_args = [w1[0:3, :].astype(bf16)]
    if use_feat:
        if edge:
            weight_args += [w1[3:3 + C, :].astype(bf16), w1[3 + C:, :].astype(bf16)]
        else:
            weight_args += [w1[3:, :].astype(bf16)]
    weight_args += [b1, w2.astype(bf16), b2, w3.astype(bf16), b3]

    def batch_spec(a):
        nd = a.ndim
        return pl.BlockSpec((1,) + tuple(a.shape[1:]), lambda b: (b,) + (0,) * (nd - 1))

    def full_spec(a):
        nd = a.ndim
        return pl.BlockSpec(tuple(a.shape), lambda b: (0,) * nd)

    in_specs = [batch_spec(a) for a in inputs] + [full_spec(w) for w in weight_args]
    kernel = functools.partial(_sa_fused_kernel, P, S, edge, use_feat)

    return pl.pallas_call(
        kernel,
        out_shape=jax.ShapeDtypeStruct((B, P, Cout), jnp.float32),
        grid=(B,),
        in_specs=in_specs,
        out_specs=pl.BlockSpec((1, P, Cout), lambda b: (b, 0, 0)),
        compiler_params=pltpu.CompilerParams(dimension_semantics=("parallel",)),
    )(*(inputs + weight_args))


# ----------------------------------------------------------------------------
# Kernel 2: row-tiled 2-layer pointwise MLP (FP levels 1 and 2).
# Batch folded into the M dimension; 2 "parallel" row tiles for v7x.
# ----------------------------------------------------------------------------
def _mlp2_rows_kernel(x_ref, w1, b1, w2, b2, o_ref):
    f32, bf16 = jnp.float32, jnp.bfloat16
    x = x_ref[...]
    h = jnp.maximum(jnp.dot(x.astype(bf16), w1[...], preferred_element_type=f32) + b1[...], 0.0)
    o_ref[...] = jnp.maximum(
        jnp.dot(h.astype(bf16), w2[...], preferred_element_type=f32) + b2[...], 0.0)


def pointwise_mlp2(x, w1, b1, w2, b2, row_tiles=2):
    """x: (B, N, Cin) -> (B, N, Cout). Fused 2-layer pointwise (1x1 conv) MLP."""
    B, N, Cin = x.shape
    R = B * N
    while row_tiles > 1 and R % (row_tiles * 8) != 0:
        row_tiles -= 1
    Rt = R // row_tiles
    Cout = w2.shape[1]
    xf = x.reshape(R, Cin)
    bf16 = jnp.bfloat16

    out = pl.pallas_call(
        _mlp2_rows_kernel,
        out_shape=jax.ShapeDtypeStruct((R, Cout), jnp.float32),
        grid=(row_tiles,),
        in_specs=[pl.BlockSpec((Rt, Cin), lambda r: (r, 0)),
                  pl.BlockSpec(w1.shape, lambda r: (0, 0)),
                  pl.BlockSpec(b1.shape, lambda r: (0, 0)),
                  pl.BlockSpec(w2.shape, lambda r: (0, 0)),
                  pl.BlockSpec(b2.shape, lambda r: (0, 0))],
        out_specs=pl.BlockSpec((Rt, Cout), lambda r: (r, 0)),
        compiler_params=pltpu.CompilerParams(dimension_semantics=("parallel",)),
    )(xf, w1.astype(bf16), b1, w2.astype(bf16), b2)
    return out.reshape(B, N, Cout)


# ----------------------------------------------------------------------------
# Kernel 3: FP level 0 fused with cov_final.  Emits (B, conv_out, N) directly
# (lane dim = N), so no XLA transpose of the final feature map is needed.
# ----------------------------------------------------------------------------
def _fp0_cov_kernel(x_ref, w1, b1, w2, b2, wcT, bc, o_ref):
    f32, bf16 = jnp.float32, jnp.bfloat16
    x = x_ref[0]                                                   # (N, Cin)
    h = jnp.maximum(jnp.dot(x.astype(bf16), w1[...], preferred_element_type=f32) + b1[...], 0.0)
    h = jnp.maximum(jnp.dot(h.astype(bf16), w2[...], preferred_element_type=f32) + b2[...], 0.0)
    # final 1x1 conv written channels-first: (Cout, Cm) @ (Cm, N) -> (Cout, N)
    o_ref[0] = jnp.dot(wcT[...], h.astype(bf16).T, preferred_element_type=f32) + bc[...]


def fp0_cov_final(x, fp_params, cov_params):
    """x: (B, N, Cin) -> (B, conv_out, N)."""
    B, N, Cin = x.shape
    (w1, b1), (w2, b2) = fp_params
    wc, bc = cov_params
    conv_out = wc.shape[1]
    bf16 = jnp.bfloat16
    wcT = jnp.transpose(wc).astype(bf16)            # (conv_out, Cm)
    bc_col = bc.reshape(conv_out, 1)                # (conv_out, 1)

    return pl.pallas_call(
        _fp0_cov_kernel,
        out_shape=jax.ShapeDtypeStruct((B, conv_out, N), jnp.float32),
        grid=(B,),
        in_specs=[pl.BlockSpec((1, N, Cin), lambda b: (b, 0, 0)),
                  pl.BlockSpec(w1.shape, lambda b: (0, 0)),
                  pl.BlockSpec(b1.shape, lambda b: (0, 0)),
                  pl.BlockSpec(w2.shape, lambda b: (0, 0)),
                  pl.BlockSpec(b2.shape, lambda b: (0, 0)),
                  pl.BlockSpec(wcT.shape, lambda b: (0, 0)),
                  pl.BlockSpec(bc_col.shape, lambda b: (0, 0))],
        out_specs=pl.BlockSpec((1, conv_out, N), lambda b: (b, 0, 0)),
        compiler_params=pltpu.CompilerParams(dimension_semantics=("parallel",)),
    )(x, w1.astype(bf16), b1, w2.astype(bf16), b2, wcT, bc_col)


# ----------------------------------------------------------------------------
# JAX glue: kNN, 3-NN interpolation, module composition
# ----------------------------------------------------------------------------
def _gather_points(arr, idx):
    # arr: (B, M, C), idx: (B, N, K) -> (B, N, K, C)
    return jax.vmap(lambda a, ix: a[ix])(arr, idx)


def sa_module(xyz, features, npoint, nsample, sa_params, edge):
    """PointNetSetAbstractionEdgeSA: sample -> kNN -> fused edge-MLP-max kernel."""
    B, N, _ = xyz.shape
    # TODO(synk): reference uses 'RANDOM' sampling (random permutation); we take
    # the first `npoint` points deterministically so the kernel is reproducible.
    new_xyz = xyz[:, :npoint, :]                                           # (B, P, 3)
    d = jnp.sum((new_xyz[:, :, None, :] - xyz[:, None, :, :]) ** 2, -1)    # (B, P, N)
    _, idx = jax.lax.top_k(-d, nsample)                                    # kNN (use_knn=True)
    # neighbour-major row order (row = s*P + p) for the fused kernel
    idx_nm = jnp.transpose(idx, (0, 2, 1)).reshape(B, nsample * npoint, 1).astype(jnp.int32)
    new_feat = sa_fused(idx_nm, xyz, features, npoint, nsample, sa_params, edge)
    return new_xyz, new_feat


def three_interpolate(unknown_xyz, known_xyz, known_feat):
    """Inverse-distance weighted 3-NN interpolation. Returns (B, N, C)."""
    d = jnp.sum((unknown_xyz[:, :, None, :] - known_xyz[:, None, :, :]) ** 2, -1)  # (B, N, M)
    neg_d, idx = jax.lax.top_k(-d, 3)
    dist = jnp.maximum(-neg_d, 0.0)
    w = 1.0 / (dist + 1e-8)
    w = w / jnp.sum(w, axis=-1, keepdims=True)
    gathered = _gather_points(known_feat, idx)                                     # (B, N, 3, C)
    return jnp.sum(gathered * w[..., None], axis=2)


def pointnet_backbone_forward(params, pointcloud, numpoints, nsample=(8, 8, 8)):
    """pointcloud: (B, N, 3 + input_channels) -> (xyz (B,N,3), feats (B,conv_out,N))."""
    xyz = pointcloud[..., 0:3]
    features = pointcloud[..., 3:] if pointcloud.shape[-1] > 3 else None   # channels-last

    l_xyz, l_features = [xyz], [features]
    for i in range(3):
        li_xyz, li_feat = sa_module(l_xyz[i], l_features[i], numpoints[i], nsample[i],
                                    params["sa"][i], edge=(i > 0))
        l_xyz.append(li_xyz)
        l_features.append(li_feat)

    l_features[0] = xyz  # PyTorch: xyz.transpose(1, 2); here already channels-last

    # TODO(synk): the reference's extra `mlp_inte` interpolation branch is not public;
    # standard PointNet++ FP (matching the declared mlp channel counts) is used.
    for i in (2, 1):
        interp = three_interpolate(l_xyz[i], l_xyz[i + 1], l_features[i + 1])
        x = jnp.concatenate([interp, l_features[i]], axis=-1)
        (w1, b1), (w2, b2) = params["fp"][i]
        l_features[i] = pointwise_mlp2(x, w1, b1, w2, b2)

    # FP level 0 fused with cov_final (kernel emits (B, conv_out, N) directly).
    interp0 = three_interpolate(l_xyz[0], l_xyz[1], l_features[1])
    x0 = jnp.concatenate([interp0, l_features[0]], axis=-1)
    out = fp0_cov_final(x0, params["fp"][0], params["cov_final"])
    return l_xyz[0], out


# ----------------------------------------------------------------------------
# Deterministic synthetic parameters (shapes from the module's __init__)
# ----------------------------------------------------------------------------
def _init_linear(key, cin, cout):
    kw, kb = jax.random.split(key)
    w = jax.random.normal(kw, (cin, cout), jnp.float32) * (1.0 / jnp.sqrt(cin))
    b = 0.01 * jax.random.normal(kb, (1, cout), jnp.float32)
    return w, b


def init_params(key, input_channels=3, conv_out=32, mul=1):
    sa1, sa2, sa3 = 32 * mul, 64 * mul, 128 * mul
    keys = jax.random.split(key, 16)
    ki = iter(range(16))

    # SA shared MLPs (use_xyz adds 3; edge levels see 2*C incoming features)
    sa_specs = [(3 + input_channels, sa1), (3 + 2 * sa1, sa2), (3 + 2 * sa2, sa3)]
    sa_params = []
    for cin, c in sa_specs:
        layers, prev = [], cin
        for _ in range(3):
            layers.append(_init_linear(keys[next(ki)], prev, c))
            prev = c
        sa_params.append(layers)

    # FP MLPs: mlp=[67, sa1, sa1], [160, sa3, sa2], [192, sa3, sa3]
    fp_specs = [(sa2 + 3, sa1, sa1), (sa3 + sa1, sa3, sa2), (sa3 + sa2, sa3, sa3)]
    fp_params = []
    for cin, c1, c2 in fp_specs:
        fp_params.append([_init_linear(keys[next(ki)], cin, c1),
                          _init_linear(keys[next(ki)], c1, c2)])

    cov_final = _init_linear(keys[next(ki)], sa1, conv_out)
    return {"sa": sa_params, "fp": fp_params, "cov_final": cov_final}


# ----------------------------------------------------------------------------
if __name__ == "__main__":
    key = jax.random.PRNGKey(0)
    k_pc, k_param = jax.random.split(key)

    B, N = 2, 64
    pointcloud = jax.random.normal(k_pc, (B, N, 6), jnp.float32)  # (B, N, 3 + input_channels)
    numpoints = (32, 16, 8)

    params = init_params(k_param, input_channels=3, conv_out=32, mul=1)

    fwd = jax.jit(pointnet_backbone_forward, static_argnums=(2,))
    xyz_out, feat_out = fwd(params, pointcloud, numpoints)
    jax.block_until_ready((xyz_out, feat_out))

    assert xyz_out.shape == (B, N, 3)
    assert feat_out.shape == (B, 32, N)
    print("KERNEL_OK")
</pallas_src>

<mosaic_0001>
module attributes {stable_mosaic.version = 11 : i64} {
  func.func @_sa_fused_kernel(%arg0: i32, %arg1: memref<1x256x1xi32, #tpu.memory_space<vmem>>, %arg2: memref<1x64x3xf32, #tpu.memory_space<vmem>>, %arg3: memref<1x64x3xf32, #tpu.memory_space<vmem>>, %arg4: memref<3x32xbf16, #tpu.memory_space<vmem>>, %arg5: memref<3x32xbf16, #tpu.memory_space<vmem>>, %arg6: memref<1x32xf32, #tpu.memory_space<vmem>>, %arg7: memref<32x32xbf16, #tpu.memory_space<vmem>>, %arg8: memref<1x32xf32, #tpu.memory_space<vmem>>, %arg9: memref<32x32xbf16, #tpu.memory_space<vmem>>, %arg10: memref<1x32xf32, #tpu.memory_space<vmem>>, %arg11: memref<1x32x32xf32, #tpu.memory_space<vmem>>) attributes {dimension_semantics = [#tpu.dimension_semantics<parallel>], iteration_bounds = array<i64: 2>, scalar_prefetch = 0 : i64, scratch_operands = 0 : i64, tpu.core_type = #tpu.core_type<tc>, window_params = [{transform_indices = @transform_0, window_bounds = array<i64: 1, 256, 1>}, {transform_indices = @transform_1, window_bounds = array<i64: 1, 64, 3>}, {transform_indices = @transform_2, window_bounds = array<i64: 1, 64, 3>}, {pipeline_mode = #tpu.pipeline_mode<synchronous>, transform_indices = @transform_3, window_bounds = array<i64: 3, 32>}, {pipeline_mode = #tpu.pipeline_mode<synchronous>, transform_indices = @transform_4, window_bounds = array<i64: 3, 32>}, {pipeline_mode = #tpu.pipeline_mode<synchronous>, transform_indices = @transform_5, window_bounds = array<i64: 1, 32>}, {pipeline_mode = #tpu.pipeline_mode<synchronous>, transform_indices = @transform_6, window_bounds = array<i64: 32, 32>}, {pipeline_mode = #tpu.pipeline_mode<synchronous>, transform_indices = @transform_7, window_bounds = array<i64: 1, 32>}, {pipeline_mode = #tpu.pipeline_mode<synchronous>, transform_indices = @transform_8, window_bounds = array<i64: 32, 32>}, {pipeline_mode = #tpu.pipeline_mode<synchronous>, transform_indices = @transform_9, window_bounds = array<i64: 1, 32>}, {transform_indices = @transform_10, window_bounds = array<i64: 1, 32, 32>}]} {
    %c0 = arith.constant 0 : index
    %c0_0 = arith.constant 0 : index
    %c0_1 = arith.constant 0 : index
    %0 = vector.load %arg1[%c0, %c0_0, %c0_1] : memref<1x256x1xi32, #tpu.memory_space<vmem>>, vector<1x256x1xi32>
    %1 = vector.shape_cast %0 : vector<1x256x1xi32> to vector<256x1xi32>
    %c0_2 = arith.constant 0 : index
    %c0_3 = arith.constant 0 : index
    %c0_4 = arith.constant 0 : index
    %2 = vector.load %arg2[%c0_2, %c0_3, %c0_4] : memref<1x64x3xf32, #tpu.memory_space<vmem>>, vector<1x64x3xf32>
    %3 = vector.shape_cast %2 : vector<1x64x3xf32> to vector<64x3xf32>
    %4 = tpu.iota {dimensions = array<i32: 1>} : vector<256x64xi32>
    %5 = vector.broadcast %1 : vector<256x1xi32> to vector<256x64xi32>
    %6 = arith.cmpi eq, %5, %4 : vector<256x64xi32>
    %7 = arith.extui %6 : vector<256x64xi1> to vector<256x64xi32>
    %8 = arith.sitofp %7 : vector<256x64xi32> to vector<256x64xf32>
    %9 = arith.truncf %3 : vector<64x3xf32> to vector<64x3xbf16>
    %c0_5 = arith.constant 0 : index
    %c0_6 = arith.constant 0 : index
    %10 = vector.load %arg4[%c0_5, %c0_6] : memref<3x32xbf16, #tpu.memory_space<vmem>>, vector<3x32xbf16>
    %cst = arith.constant dense<0.000000e+00> : vector<64x32xf32>
    %11 = tpu.matmul %9, %10, %cst {dimension_numbers = #tpu.dot_dimension_numbers<[1], [0], [0], [1], [0, 0, 1, 1], [], []>} : vector<64x3xbf16>, vector<3x32xbf16>, vector<64x32xf32> -> vector<64x32xf32>
    %cst_7 = arith.constant dense<0.000000e+00> : vector<256x32xf32>
    %12 = tpu.matmul %8, %11, %cst_7 {dimension_numbers = #tpu.dot_dimension_numbers<[1], [0], [0], [1], [0, 0, 1, 1], [], []>} : vector<256x64xf32>, vector<64x32xf32>, vector<256x32xf32> -> vector<256x32xf32>
    %13 = vector.extract_strided_slice %11 {offsets = [0, 0], sizes = [32, 32], strides = [1, 1]} : vector<64x32xf32> to vector<32x32xf32>
    %14 = tpu.concatenate %13, %13, %13, %13, %13, %13, %13, %13 in 0 : vector<32x32xf32>, vector<32x32xf32>, vector<32x32xf32>, vector<32x32xf32>, vector<32x32xf32>, vector<32x32xf32>, vector<32x32xf32>, vector<32x32xf32> -> vector<256x32xf32>
    %15 = arith.subf %12, %14 : vector<256x32xf32>
    %c0_8 = arith.constant 0 : index
    %c0_9 = arith.constant 0 : index
    %c0_10 = arith.constant 0 : index
    %16 = vector.load %arg3[%c0_8, %c0_9, %c0_10] : memref<1x64x3xf32, #tpu.memory_space<vmem>>, vector<1x64x3xf32>
    %17 = vector.shape_cast %16 : vector<1x64x3xf32> to vector<64x3xf32>
    %18 = arith.truncf %17 : vector<64x3xf32> to vector<64x3xbf16>
    %c0_11 = arith.constant 0 : index
    %c0_12 = arith.constant 0 : index
    %19 = vector.load %arg5[%c0_11, %c0_12] : memref<3x32xbf16, #tpu.memory_space<vmem>>, vector<3x32xbf16>
    %cst_13 = arith.constant dense<0.000000e+00> : vector<64x32xf32>
    %20 = tpu.matmul %18, %19, %cst_13 {dimension_numbers = #tpu.dot_dimension_numbers<[1], [0], [0], [1], [0, 0, 1, 1], [], []>} : vector<64x3xbf16>, vector<3x32xbf16>, vector<64x32xf32> -> vector<64x32xf32>
    %cst_14 = arith.constant dense<0.000000e+00> : vector<256x32xf32>
    %21 = tpu.matmul %8, %20, %cst_14 {dimension_numbers = #tpu.dot_dimension_numbers<[1], [0], [0], [1], [0, 0, 1, 1], [], []>} : vector<256x64xf32>, vector<64x32xf32>, vector<256x32xf32> -> vector<256x32xf32>
    %22 = arith.addf %15, %21 : vector<256x32xf32>
    %c0_15 = arith.constant 0 : index
    %c0_16 = arith.constant 0 : index
    %23 = vector.load %arg6[%c0_15, %c0_16] : memref<1x32xf32, #tpu.memory_space<vmem>>, vector<1x32xf32>
    %24 = vector.broadcast %23 : vector<1x32xf32> to vector<256x32xf32>
    %25 = arith.addf %22, %24 : vector<256x32xf32>
    %cst_17 = arith.constant 0.000000e+00 : f32
    %26 = vector.broadcast %cst_17 : f32 to vector<256x32xf32>
    %27 = arith.maximumf %25, %26 : vector<256x32xf32>
    %28 = arith.truncf %27 : vector<256x32xf32> to vector<256x32xbf16>
    %c0_18 = arith.constant 0 : index
    %c0_19 = arith.constant 0 : index
    %29 = vector.load %arg7[%c0_18, %c0_19] : memref<32x32xbf16, #tpu.memory_space<vmem>>, vector<32x32xbf16>
    %cst_20 = arith.constant dense<0.000000e+00> : vector<256x32xf32>
    %30 = tpu.matmul %28, %29, %cst_20 {dimension_numbers = #tpu.dot_dimension_numbers<[1], [0], [0], [1], [0, 0, 1, 1], [], []>} : vector<256x32xbf16>, vector<32x32xbf16>, vector<256x32xf32> -> vector<256x32xf32>
    %c0_21 = arith.constant 0 : index
    %c0_22 = arith.constant 0 : index
    %31 = vector.load %arg8[%c0_21, %c0_22] : memref<1x32xf32, #tpu.memory_space<vmem>>, vector<1x32xf32>
    %32 = vector.broadcast %31 : vector<1x32xf32> to vector<256x32xf32>
    %33 = arith.addf %30, %32 : vector<256x32xf32>
    %cst_23 = arith.constant 0.000000e+00 : f32
    %34 = vector.broadcast %cst_23 : f32 to vector<256x32xf32>
    %35 = arith.maximumf %33, %34 : vector<256x32xf32>
    %36 = arith.truncf %35 : vector<256x32xf32> to vector<256x32xbf16>
    %c0_24 = arith.constant 0 : index
    %c0_25 = arith.constant 0 : index
    %37 = vector.load %arg9[%c0_24, %c0_25] : memref<32x32xbf16, #tpu.memory_space<vmem>>, vector<32x32xbf16>
    %cst_26 = arith.constant dense<0.000000e+00> : vector<256x32xf32>
    %38 = tpu.matmul %36, %37, %cst_26 {dimension_numbers = #tpu.dot_dimension_numbers<[1], [0], [0], [1], [0, 0, 1, 1], [], []>} : vector<256x32xbf16>, vector<32x32xbf16>, vector<256x32xf32> -> vector<256x32xf32>
    %c0_27 = arith.constant 0 : index
    %c0_28 = arith.constant 0 : index
    %39 = vector.load %arg10[%c0_27, %c0_28] : memref<1x32xf32, #tpu.memory_space<vmem>>, vector<1x32xf32>
    %40 = vector.broadcast %39 : vector<1x32xf32> to vector<256x32xf32>
    %41 = arith.addf %38, %40 : vector<256x32xf32>
    %cst_29 = arith.constant 0.000000e+00 : f32
    %42 = vector.broadcast %cst_29 : f32 to vector<256x32xf32>
    %43 = arith.maximumf %41, %42 : vector<256x32xf32>
    %44 = vector.extract_strided_slice %43 {offsets = [0, 0], sizes = [32, 32], strides = [1, 1]} : vector<256x32xf32> to vector<32x32xf32>
    %45 = vector.extract_strided_slice %43 {offsets = [32, 0], sizes = [32, 32], strides = [1, 1]} : vector<256x32xf32> to vector<32x32xf32>
    %46 = arith.maximumf %44, %45 : vector<32x32xf32>
    %47 = vector.extract_strided_slice %43 {offsets = [64, 0], sizes = [32, 32], strides = [1, 1]} : vector<256x32xf32> to vector<32x32xf32>
    %48 = arith.maximumf %46, %47 : vector<32x32xf32>
    %49 = vector.extract_strided_slice %43 {offsets = [96, 0], sizes = [32, 32], strides = [1, 1]} : vector<256x32xf32> to vector<32x32xf32>
    %50 = arith.maximumf %48, %49 : vector<32x32xf32>
    %51 = vector.extract_strided_slice %43 {offsets = [128, 0], sizes = [32, 32], strides = [1, 1]} : vector<256x32xf32> to vector<32x32xf32>
    %52 = arith.maximumf %50, %51 : vector<32x32xf32>
    %53 = vector.extract_strided_slice %43 {offsets = [160, 0], sizes = [32, 32], strides = [1, 1]} : vector<256x32xf32> to vector<32x32xf32>
    %54 = arith.maximumf %52, %53 : vector<32x32xf32>
    %55 = vector.extract_strided_slice %43 {offsets = [192, 0], sizes = [32, 32], strides = [1, 1]} : vector<256x32xf32> to vector<32x32xf32>
    %56 = arith.maximumf %54, %55 : vector<32x32xf32>
    %57 = vector.extract_strided_slice %43 {offsets = [224, 0], sizes = [32, 32], strides = [1, 1]} : vector<256x32xf32> to vector<32x32xf32>
    %58 = arith.maximumf %56, %57 : vector<32x32xf32>
    %c0_30 = arith.constant 0 : index
    %c0_31 = arith.constant 0 : index
    %c0_32 = arith.constant 0 : index
    %59 = vector.load %arg11[%c0_30, %c0_31, %c0_32] : memref<1x32x32xf32, #tpu.memory_space<vmem>>, vector<1x32x32xf32>
    %60 = vector.shape_cast %59 : vector<1x32x32xf32> to vector<32x32xf32>
    %61 = vector.shape_cast %58 : vector<32x32xf32> to vector<1x32x32xf32>
    tpu.vector_store %arg11[%c0_30, %c0_31, %c0_32], %61 {strides = array<i32>} : memref<1x32x32xf32, #tpu.memory_space<vmem>>, vector<1x32x32xf32>,
    return
  }
  func.func @transform_0(%arg0: i32) -> (i32, i32, i32) {
    %c0_i32 = arith.constant 0 : i32
    %c0_i32_0 = arith.constant 0 : i32
    %c0_i32_1 = arith.constant 0 : i32
    return %arg0, %c0_i32, %c0_i32_0 : i32, i32, i32
  }
  func.func @transform_1(%arg0: i32) -> (i32, i32, i32) {
    %c0_i32 = arith.constant 0 : i32
    %c0_i32_0 = arith.constant 0 : i32
    %c0_i32_1 = arith.constant 0 : i32
    return %arg0, %c0_i32, %c0_i32_0 : i32, i32, i32
  }
  func.func @transform_2(%arg0: i32) -> (i32, i32, i32) {
    %c0_i32 = arith.constant 0 : i32
    %c0_i32_0 = arith.constant 0 : i32
    %c0_i32_1 = arith.constant 0 : i32
    return %arg0, %c0_i32, %c0_i32_0 : i32, i32, i32
  }
  func.func @transform_3(%arg0: i32) -> (i32, i32) {
    %c0_i32 = arith.constant 0 : i32
    %c0_i32_0 = arith.constant 0 : i32
    %c0_i32_1 = arith.constant 0 : i32
    return %c0_i32, %c0_i32_0 : i32, i32
  }
  func.func @transform_4(%arg0: i32) -> (i32, i32) {
    %c0_i32 = arith.constant 0 : i32
    %c0_i32_0 = arith.constant 0 : i32
    %c0_i32_1 = arith.constant 0 : i32
    return %c0_i32, %c0_i32_0 : i32, i32
  }
  func.func @transform_5(%arg0: i32) -> (i32, i32) {
    %c0_i32 = arith.constant 0 : i32
    %c0_i32_0 = arith.constant 0 : i32
    %c0_i32_1 = arith.constant 0 : i32
    return %c0_i32, %c0_i32_0 : i32, i32
  }
  func.func @transform_6(%arg0: i32) -> (i32, i32) {
    %c0_i32 = arith.constant 0 : i32
    %c0_i32_0 = arith.constant 0 : i32
    %c0_i32_1 = arith.constant 0 : i32
    return %c0_i32, %c0_i32_0 : i32, i32
  }
  func.func @transform_7(%arg0: i32) -> (i32, i32) {
    %c0_i32 = arith.constant 0 : i32
    %c0_i32_0 = arith.constant 0 : i32
    %c0_i32_1 = arith.constant 0 : i32
    return %c0_i32, %c0_i32_0 : i32, i32
  }
  func.func @transform_8(%arg0: i32) -> (i32, i32) {
    %c0_i32 = arith.constant 0 : i32
    %c0_i32_0 = arith.constant 0 : i32
    %c0_i32_1 = arith.constant 0 : i32
    return %c0_i32, %c0_i32_0 : i32, i32
  }
  func.func @transform_9(%arg0: i32) -> (i32, i32) {
    %c0_i32 = arith.constant 0 : i32
    %c0_i32_0 = arith.constant 0 : i32
    %c0_i32_1 = arith.constant 0 : i32
    return %c0_i32, %c0_i32_0 : i32, i32
  }
  func.func @transform_10(%arg0: i32) -> (i32, i32, i32) {
    %c0_i32 = arith.constant 0 : i32
    %c0_i32_0 = arith.constant 0 : i32
    %c0_i32_1 = arith.constant 0 : i32
    return %arg0, %c0_i32, %c0_i32_0 : i32, i32, i32
  }
}

module attributes {stable_mosaic.version = 11 : i64} {
  func.func @_sa_fused_kernel(%arg0: i32, %arg1: memref<1x128x1xi32, #tpu.memory_space<vmem>>, %arg2: memref<1x32x3xf32, #tpu.memory_space<vmem>>, %arg3: memref<1x32x32xf32, #tpu.memory_space<vmem>>, %arg4: memref<3x64xbf16, #tpu.memory_space<vmem>>, %arg5: memref<32x64xbf16, #tpu.memory_space<vmem>>, %arg6: memref<32x64xbf16, #tpu.memory_space<vmem>>, %arg7: memref<1x64xf32, #tpu.memory_space<vmem>>, %arg8: memref<64x64xbf16, #tpu.memory_space<vmem>>, %arg9: memref<1x64xf32, #tpu.memory_space<vmem>>, %arg10: memref<64x64xbf16, #tpu.memory_space<vmem>>, %arg11: memref<1x64xf32, #tpu.memory_space<vmem>>, %arg12: memref<1x16x64xf32, #tpu.memory_space<vmem>>) attributes {dimension_semantics = [#tpu.dimension_semantics<parallel>], iteration_bounds = array<i64: 2>, scalar_prefetch = 0 : i64, scratch_operands = 0 : i64, tpu.core_type = #tpu.core_type<tc>, window_params = [{transform_indices = @transform_0, window_bounds = array<i64: 1, 128, 1>}, {transform_indices = @transform_1, window_bounds = array<i64: 1, 32, 3>}, {transform_indices = @transform_2, window_bounds = array<i64: 1, 32, 32>}, {pipeline_mode = #tpu.pipeline_mode<synchronous>, transform_indices = @transform_3, window_bounds = array<i64: 3, 64>}, {pipeline_mode = #tpu.pipeline_mode<synchronous>, transform_indices = @transform_4, window_bounds = array<i64: 32, 64>}, {pipeline_mode = #tpu.pipeline_mode<synchronous>, transform_indices = @transform_5, window_bounds = array<i64: 32, 64>}, {pipeline_mode = #tpu.pipeline_mode<synchronous>, transform_indices = @transform_6, window_bounds = array<i64: 1, 64>}, {pipeline_mode = #tpu.pipeline_mode<synchronous>, transform_indices = @transform_7, window_bounds = array<i64: 64, 64>}, {pipeline_mode = #tpu.pipeline_mode<synchronous>, transform_indices = @transform_8, window_bounds = array<i64: 1, 64>}, {pipeline_mode = #tpu.pipeline_mode<synchronous>, transform_indices = @transform_9, window_bounds = array<i64: 64, 64>}, {pipeline_mode = #tpu.pipeline_mode<synchronous>, transform_indices = @transform_10, window_bounds = array<i64: 1, 64>}, {transform_indices = @transform_11, window_bounds = array<i64: 1, 16, 64>}]} {
    %c0 = arith.constant 0 : index
    %c0_0 = arith.constant 0 : index
    %c0_1 = arith.constant 0 : index
    %0 = vector.load %arg1[%c0, %c0_0, %c0_1] : memref<1x128x1xi32, #tpu.memory_space<vmem>>, vector<1x128x1xi32>
    %1 = vector.shape_cast %0 : vector<1x128x1xi32> to vector<128x1xi32>
    %c0_2 = arith.constant 0 : index
    %c0_3 = arith.constant 0 : index
    %c0_4 = arith.constant 0 : index
    %2 = vector.load %arg2[%c0_2, %c0_3, %c0_4] : memref<1x32x3xf32, #tpu.memory_space<vmem>>, vector<1x32x3xf32>
    %3 = vector.shape_cast %2 : vector<1x32x3xf32> to vector<32x3xf32>
    %4 = tpu.iota {dimensions = array<i32: 1>} : vector<128x32xi32>
    %5 = vector.broadcast %1 : vector<128x1xi32> to vector<128x32xi32>
    %6 = arith.cmpi eq, %5, %4 : vector<128x32xi32>
    %7 = arith.extui %6 : vector<128x32xi1> to vector<128x32xi32>
    %8 = arith.sitofp %7 : vector<128x32xi32> to vector<128x32xf32>
    %9 = arith.truncf %3 : vector<32x3xf32> to vector<32x3xbf16>
    %c0_5 = arith.constant 0 : index
    %c0_6 = arith.constant 0 : index
    %10 = vector.load %arg4[%c0_5, %c0_6] : memref<3x64xbf16, #tpu.memory_space<vmem>>, vector<3x64xbf16>
    %cst = arith.constant dense<0.000000e+00> : vector<32x64xf32>
    %11 = tpu.matmul %9, %10, %cst {dimension_numbers = #tpu.dot_dimension_numbers<[1], [0], [0], [1], [0, 0, 1, 1], [], []>} : vector<32x3xbf16>, vector<3x64xbf16>, vector<32x64xf32> -> vector<32x64xf32>
    %cst_7 = arith.constant dense<0.000000e+00> : vector<128x64xf32>
    %12 = tpu.matmul %8, %11, %cst_7 {dimension_numbers = #tpu.dot_dimension_numbers<[1], [0], [0], [1], [0, 0, 1, 1], [], []>} : vector<128x32xf32>, vector<32x64xf32>, vector<128x64xf32> -> vector<128x64xf32>
    %13 = vector.extract_strided_slice %11 {offsets = [0, 0], sizes = [16, 64], strides = [1, 1]} : vector<32x64xf32> to vector<16x64xf32>
    %14 = tpu.concatenate %13, %13, %13, %13, %13, %13, %13, %13 in 0 : vector<16x64xf32>, vector<16x64xf32>, vector<16x64xf32>, vector<16x64xf32>, vector<16x64xf32>, vector<16x64xf32>, vector<16x64xf32>, vector<16x64xf32> -> vector<128x64xf32>
    %15 = arith.subf %12, %14 : vector<128x64xf32>
    %c0_8 = arith.constant 0 : index
    %c0_9 = arith.constant 0 : index
    %c0_10 = arith.constant 0 : index
    %16 = vector.load %arg3[%c0_8, %c0_9, %c0_10] : memref<1x32x32xf32, #tpu.memory_space<vmem>>, vector<1x32x32xf32>
    %17 = vector.shape_cast %16 : vector<1x32x32xf32> to vector<32x32xf32>
    %cst_11 = arith.constant dense<0.000000e+00> : vector<128x32xf32>
    %18 = tpu.matmul %8, %17, %cst_11 {dimension_numbers = #tpu.dot_dimension_numbers<[1], [0], [0], [1], [0, 0, 1, 1], [], []>} : vector<128x32xf32>, vector<32x32xf32>, vector<128x32xf32> -> vector<128x32xf32>
    %19 = vector.extract_strided_slice %17 {offsets = [0, 0], sizes = [16, 32], strides = [1, 1]} : vector<32x32xf32> to vector<16x32xf32>
    %20 = tpu.concatenate %19, %19, %19, %19, %19, %19, %19, %19 in 0 : vector<16x32xf32>, vector<16x32xf32>, vector<16x32xf32>, vector<16x32xf32>, vector<16x32xf32>, vector<16x32xf32>, vector<16x32xf32>, vector<16x32xf32> -> vector<128x32xf32>
    %21 = arith.subf %18, %20 : vector<128x32xf32>
    %22 = arith.truncf %21 : vector<128x32xf32> to vector<128x32xbf16>
    %c0_12 = arith.constant 0 : index
    %c0_13 = arith.constant 0 : index
    %23 = vector.load %arg5[%c0_12, %c0_13] : memref<32x64xbf16, #tpu.memory_space<vmem>>, vector<32x64xbf16>
    %cst_14 = arith.constant dense<0.000000e+00> : vector<128x64xf32>
    %24 = tpu.matmul %22, %23, %cst_14 {dimension_numbers = #tpu.dot_dimension_numbers<[1], [0], [0], [1], [0, 0, 1, 1], [], []>} : vector<128x32xbf16>, vector<32x64xbf16>, vector<128x64xf32> -> vector<128x64xf32>
    %25 = arith.addf %15, %24 : vector<128x64xf32>
    %26 = arith.truncf %20 : vector<128x32xf32> to vector<128x32xbf16>
    %c0_15 = arith.constant 0 : index
    %c0_16 = arith.constant 0 : index
    %27 = vector.load %arg6[%c0_15, %c0_16] : memref<32x64xbf16, #tpu.memory_space<vmem>>, vector<32x64xbf16>
    %cst_17 = arith.constant dense<0.000000e+00> : vector<128x64xf32>
    %28 = tpu.matmul %26, %27, %cst_17 {dimension_numbers = #tpu.dot_dimension_numbers<[1], [0], [0], [1], [0, 0, 1, 1], [], []>} : vector<128x32xbf16>, vector<32x64xbf16>, vector<128x64xf32> -> vector<128x64xf32>
    %29 = arith.addf %25, %28 : vector<128x64xf32>
    %c0_18 = arith.constant 0 : index
    %c0_19 = arith.constant 0 : index
    %30 = vector.load %arg7[%c0_18, %c0_19] : memref<1x64xf32, #tpu.memory_space<vmem>>, vector<1x64xf32>
    %31 = vector.broadcast %30 : vector<1x64xf32> to vector<128x64xf32>
    %32 = arith.addf %29, %31 : vector<128x64xf32>
    %cst_20 = arith.constant 0.000000e+00 : f32
    %33 = vector.broadcast %cst_20 : f32 to vector<128x64xf32>
    %34 = arith.maximumf %32, %33 : vector<128x64xf32>
    %35 = arith.truncf %34 : vector<128x64xf32> to vector<128x64xbf16>
    %c0_21 = arith.constant 0 : index
    %c0_22 = arith.constant 0 : index
    %36 = vector.load %arg8[%c0_21, %c0_22] : memref<64x64xbf16, #tpu.memory_space<vmem>>, vector<64x64xbf16>
    %cst_23 = arith.constant dense<0.000000e+00> : vector<128x64xf32>
    %37 = tpu.matmul %35, %36, %cst_23 {dimension_numbers = #tpu.dot_dimension_numbers<[1], [0], [0], [1], [0, 0, 1, 1], [], []>} : vector<128x64xbf16>, vector<64x64xbf16>, vector<128x64xf32> -> vector<128x64xf32>
    %c0_24 = arith.constant 0 : index
    %c0_25 = arith.constant 0 : index
    %38 = vector.load %arg9[%c0_24, %c0_25] : memref<1x64xf32, #tpu.memory_space<vmem>>, vector<1x64xf32>
    %39 = vector.broadcast %38 : vector<1x64xf32> to vector<128x64xf32>
    %40 = arith.addf %37, %39 : vector<128x64xf32>
    %cst_26 = arith.constant 0.000000e+00 : f32
    %41 = vector.broadcast %cst_26 : f32 to vector<128x64xf32>
    %42 = arith.maximumf %40, %41 : vector<128x64xf32>
    %43 = arith.truncf %42 : vector<128x64xf32> to vector<128x64xbf16>
    %c0_27 = arith.constant 0 : index
    %c0_28 = arith.constant 0 : index
    %44 = vector.load %arg10[%c0_27, %c0_28] : memref<64x64xbf16, #tpu.memory_space<vmem>>, vector<64x64xbf16>
    %cst_29 = arith.constant dense<0.000000e+00> : vector<128x64xf32>
    %45 = tpu.matmul %43, %44, %cst_29 {dimension_numbers = #tpu.dot_dimension_numbers<[1], [0], [0], [1], [0, 0, 1, 1], [], []>} : vector<128x64xbf16>, vector<64x64xbf16>, vector<128x64xf32> -> vector<128x64xf32>
    %c0_30 = arith.constant 0 : index
    %c0_31 = arith.constant 0 : index
    %46 = vector.load %arg11[%c0_30, %c0_31] : memref<1x64xf32, #tpu.memory_space<vmem>>, vector<1x64xf32>
    %47 = vector.broadcast %46 : vector<1x64xf32> to vector<128x64xf32>
    %48 = arith.addf %45, %47 : vector<128x64xf32>
    %cst_32 = arith.constant 0.000000e+00 : f32
    %49 = vector.broadcast %cst_32 : f32 to vector<128x64xf32>
    %50 = arith.maximumf %48, %49 : vector<128x64xf32>
    %51 = vector.extract_strided_slice %50 {offsets = [0, 0], sizes = [16, 64], strides = [1, 1]} : vector<128x64xf32> to vector<16x64xf32>
    %52 = vector.extract_strided_slice %50 {offsets = [16, 0], sizes = [16, 64], strides = [1, 1]} : vector<128x64xf32> to vector<16x64xf32>
    %53 = arith.maximumf %51, %52 : vector<16x64xf32>
    %54 = vector.extract_strided_slice %50 {offsets = [32, 0], sizes = [16, 64], strides = [1, 1]} : vector<128x64xf32> to vector<16x64xf32>
    %55 = arith.maximumf %53, %54 : vector<16x64xf32>
    %56 = vector.extract_strided_slice %50 {offsets = [48, 0], sizes = [16, 64], strides = [1, 1]} : vector<128x64xf32> to vector<16x64xf32>
    %57 = arith.maximumf %55, %56 : vector<16x64xf32>
    %58 = vector.extract_strided_slice %50 {offsets = [64, 0], sizes = [16, 64], strides = [1, 1]} : vector<128x64xf32> to vector<16x64xf32>
    %59 = arith.maximumf %57, %58 : vector<16x64xf32>
    %60 = vector.extract_strided_slice %50 {offsets = [80, 0], sizes = [16, 64], strides = [1, 1]} : vector<128x64xf32> to vector<16x64xf32>
    %61 = arith.maximumf %59, %60 : vector<16x64xf32>
    %62 = vector.extract_strided_slice %50 {offsets = [96, 0], sizes = [16, 64], strides = [1, 1]} : vector<128x64xf32> to vector<16x64xf32>
    %63 = arith.maximumf %61, %62 : vector<16x64xf32>
    %64 = vector.extract_strided_slice %50 {offsets = [112, 0], sizes = [16, 64], strides = [1, 1]} : vector<128x64xf32> to vector<16x64xf32>
    %65 = arith.maximumf %63, %64 : vector<16x64xf32>
    %c0_33 = arith.constant 0 : index
    %c0_34 = arith.constant 0 : index
    %c0_35 = arith.constant 0 : index
    %66 = vector.load %arg12[%c0_33, %c0_34, %c0_35] : memref<1x16x64xf32, #tpu.memory_space<vmem>>, vector<1x16x64xf32>
    %67 = vector.shape_cast %66 : vector<1x16x64xf32> to vector<16x64xf32>
    %68 = vector.shape_cast %65 : vector<16x64xf32> to vector<1x16x64xf32>
    tpu.vector_store %arg12[%c0_33, %c0_34, %c0_35], %68 {strides = array<i32>} : memref<1x16x64xf32, #tpu.memory_space<vmem>>, vector<1x16x64xf32>,
    return
  }
  func.func @transform_0(%arg0: i32) -> (i32, i32, i32) {
    %c0_i32 = arith.constant 0 : i32
    %c0_i32_0 = arith.constant 0 : i32
    %c0_i32_1 = arith.constant 0 : i32
    return %arg0, %c0_i32, %c0_i32_0 : i32, i32, i32
  }
  func.func @transform_1(%arg0: i32) -> (i32, i32, i32) {
    %c0_i32 = arith.constant 0 : i32
    %c0_i32_0 = arith.constant 0 : i32
    %c0_i32_1 = arith.constant 0 : i32
    return %arg0, %c0_i32, %c0_i32_0 : i32, i32, i32
  }
  func.func @transform_2(%arg0: i32) -> (i32, i32, i32) {
    %c0_i32 = arith.constant 0 : i32
    %c0_i32_0 = arith.constant 0 : i32
    %c0_i32_1 = arith.constant 0 : i32
    return %arg0, %c0_i32, %c0_i32_0 : i32, i32, i32
  }
  func.func @transform_3(%arg0: i32) -> (i32, i32) {
    %c0_i32 = arith.constant 0 : i32
    %c0_i32_0 = arith.constant 0 : i32
    %c0_i32_1 = arith.constant 0 : i32
    return %c0_i32, %c0_i32_0 : i32, i32
  }
  func.func @transform_4(%arg0: i32) -> (i32, i32) {
    %c0_i32 = arith.constant 0 : i32
    %c0_i32_0 = arith.constant 0 : i32
    %c0_i32_1 = arith.constant 0 : i32
    return %c0_i32, %c0_i32_0 : i32, i32
  }
  func.func @transform_5(%arg0: i32) -> (i32, i32) {
    %c0_i32 = arith.constant 0 : i32
    %c0_i32_0 = arith.constant 0 : i32
    %c0_i32_1 = arith.constant 0 : i32
    return %c0_i32, %c0_i32_0 : i32, i32
  }
  func.func @transform_6(%arg0: i32) -> (i32, i32) {
    %c0_i32 = arith.constant 0 : i32
    %c0_i32_0 = arith.constant 0 : i32
    %c0_i32_1 = arith.constant 0 : i32
    return %c0_i32, %c0_i32_0 : i32, i32
  }
  func.func @transform_7(%arg0: i32) -> (i32, i32) {
    %c0_i32 = arith.constant 0 : i32
    %c0_i32_0 = arith.constant 0 : i32
    %c0_i32_1 = arith.constant 0 : i32
    return %c0_i32, %c0_i32_0 : i32, i32
  }
  func.func @transform_8(%arg0: i32) -> (i32, i32) {
    %c0_i32 = arith.constant 0 : i32
    %c0_i32_0 = arith.constant 0 : i32
    %c0_i32_1 = arith.constant 0 : i32
    return %c0_i32, %c0_i32_0 : i32, i32
  }
  func.func @transform_9(%arg0: i32) -> (i32, i32) {
    %c0_i32 = arith.constant 0 : i32
    %c0_i32_0 = arith.constant 0 : i32
    %c0_i32_1 = arith.constant 0 : i32
    return %c0_i32, %c0_i32_0 : i32, i32
  }
  func.func @transform_10(%arg0: i32) -> (i32, i32) {
    %c0_i32 = arith.constant 0 : i32
    %c0_i32_0 = arith.constant 0 : i32
    %c0_i32_1 = arith.constant 0 : i32
    return %c0_i32, %c0_i32_0 : i32, i32
  }
  func.func @transform_11(%arg0: i32) -> (i32, i32, i32) {
    %c0_i32 = arith.constant 0 : i32
    %c0_i32_0 = arith.constant 0 : i32
    %c0_i32_1 = arith.constant 0 : i32
    return %arg0, %c0_i32, %c0_i32_0 : i32, i32, i32
  }
}

module attributes {stable_mosaic.version = 11 : i64} {
  func.func @_sa_fused_kernel(%arg0: i32, %arg1: memref<1x64x1xi32, #tpu.memory_space<vmem>>, %arg2: memref<1x16x3xf32, #tpu.memory_space<vmem>>, %arg3: memref<1x16x64xf32, #tpu.memory_space<vmem>>, %arg4: memref<3x128xbf16, #tpu.memory_space<vmem>>, %arg5: memref<64x128xbf16, #tpu.memory_space<vmem>>, %arg6: memref<64x128xbf16, #tpu.memory_space<vmem>>, %arg7: memref<1x128xf32, #tpu.memory_space<vmem>>, %arg8: memref<128x128xbf16, #tpu.memory_space<vmem>>, %arg9: memref<1x128xf32, #tpu.memory_space<vmem>>, %arg10: memref<128x128xbf16, #tpu.memory_space<vmem>>, %arg11: memref<1x128xf32, #tpu.memory_space<vmem>>, %arg12: memref<1x8x128xf32, #tpu.memory_space<vmem>>) attributes {dimension_semantics = [#tpu.dimension_semantics<parallel>], iteration_bounds = array<i64: 2>, scalar_prefetch = 0 : i64, scratch_operands = 0 : i64, tpu.core_type = #tpu.core_type<tc>, window_params = [{transform_indices = @transform_0, window_bounds = array<i64: 1, 64, 1>}, {transform_indices = @transform_1, window_bounds = array<i64: 1, 16, 3>}, {transform_indices = @transform_2, window_bounds = array<i64: 1, 16, 64>}, {pipeline_mode = #tpu.pipeline_mode<synchronous>, transform_indices = @transform_3, window_bounds = array<i64: 3, 128>}, {pipeline_mode = #tpu.pipeline_mode<synchronous>, transform_indices = @transform_4, window_bounds = array<i64: 64, 128>}, {pipeline_mode = #tpu.pipeline_mode<synchronous>, transform_indices = @transform_5, window_bounds = array<i64: 64, 128>}, {pipeline_mode = #tpu.pipeline_mode<synchronous>, transform_indices = @transform_6, window_bounds = array<i64: 1, 128>}, {pipeline_mode = #tpu.pipeline_mode<synchronous>, transform_indices = @transform_7, window_bounds = array<i64: 128, 128>}, {pipeline_mode = #tpu.pipeline_mode<synchronous>, transform_indices = @transform_8, window_bounds = array<i64: 1, 128>}, {pipeline_mode = #tpu.pipeline_mode<synchronous>, transform_indices = @transform_9, window_bounds = array<i64: 128, 128>}, {pipeline_mode = #tpu.pipeline_mode<synchronous>, transform_indices = @transform_10, window_bounds = array<i64: 1, 128>}, {transform_indices = @transform_11, window_bounds = array<i64: 1, 8, 128>}]} {
    %c0 = arith.constant 0 : index
    %c0_0 = arith.constant 0 : index
    %c0_1 = arith.constant 0 : index
    %0 = vector.load %arg1[%c0, %c0_0, %c0_1] : memref<1x64x1xi32, #tpu.memory_space<vmem>>, vector<1x64x1xi32>
    %1 = vector.shape_cast %0 : vector<1x64x1xi32> to vector<64x1xi32>
    %c0_2 = arith.constant 0 : index
    %c0_3 = arith.constant 0 : index
    %c0_4 = arith.constant 0 : index
    %2 = vector.load %arg2[%c0_2, %c0_3, %c0_4] : memref<1x16x3xf32, #tpu.memory_space<vmem>>, vector<1x16x3xf32>
    %3 = vector.shape_cast %2 : vector<1x16x3xf32> to vector<16x3xf32>
    %4 = tpu.iota {dimensions = array<i32: 1>} : vector<64x16xi32>
    %5 = vector.broadcast %1 : vector<64x1xi32> to vector<64x16xi32>
    %6 = arith.cmpi eq, %5, %4 : vector<64x16xi32>
    %7 = arith.extui %6 : vector<64x16xi1> to vector<64x16xi32>
    %8 = arith.sitofp %7 : vector<64x16xi32> to vector<64x16xf32>
    %9 = arith.truncf %3 : vector<16x3xf32> to vector<16x3xbf16>
    %c0_5 = arith.constant 0 : index
    %c0_6 = arith.constant 0 : index
    %10 = vector.load %arg4[%c0_5, %c0_6] : memref<3x128xbf16, #tpu.memory_space<vmem>>, vector<3x128xbf16>
    %cst = arith.constant dense<0.000000e+00> : vector<16x128xf32>
    %11 = tpu.matmul %9, %10, %cst {dimension_numbers = #tpu.dot_dimension_numbers<[1], [0], [0], [1], [0, 0, 1, 1], [], []>} : vector<16x3xbf16>, vector<3x128xbf16>, vector<16x128xf32> -> vector<16x128xf32>
    %cst_7 = arith.constant dense<0.000000e+00> : vector<64x128xf32>
    %12 = tpu.matmul %8, %11, %cst_7 {dimension_numbers = #tpu.dot_dimension_numbers<[1], [0], [0], [1], [0, 0, 1, 1], [], []>} : vector<64x16xf32>, vector<16x128xf32>, vector<64x128xf32> -> vector<64x128xf32>
    %13 = vector.extract_strided_slice %11 {offsets = [0, 0], sizes = [8, 128], strides = [1, 1]} : vector<16x128xf32> to vector<8x128xf32>
    %14 = tpu.concatenate %13, %13, %13, %13, %13, %13, %13, %13 in 0 : vector<8x128xf32>, vector<8x128xf32>, vector<8x128xf32>, vector<8x128xf32>, vector<8x128xf32>, vector<8x128xf32>, vector<8x128xf32>, vector<8x128xf32> -> vector<64x128xf32>
    %15 = arith.subf %12, %14 : vector<64x128xf32>
    %c0_8 = arith.constant 0 : index
    %c0_9 = arith.constant 0 : index
    %c0_10 = arith.constant 0 : index
    %16 = vector.load %arg3[%c0_8, %c0_9, %c0_10] : memref<1x16x64xf32, #tpu.memory_space<vmem>>, vector<1x16x64xf32>
    %17 = vector.shape_cast %16 : vector<1x16x64xf32> to vector<16x64xf32>
    %cst_11 = arith.constant dense<0.000000e+00> : vector<64x64xf32>
    %18 = tpu.matmul %8, %17, %cst_11 {dimension_numbers = #tpu.dot_dimension_numbers<[1], [0], [0], [1], [0, 0, 1, 1], [], []>} : vector<64x16xf32>, vector<16x64xf32>, vector<64x64xf32> -> vector<64x64xf32>
    %19 = vector.extract_strided_slice %17 {offsets = [0, 0], sizes = [8, 64], strides = [1, 1]} : vector<16x64xf32> to vector<8x64xf32>
    %20 = tpu.concatenate %19, %19, %19, %19, %19, %19, %19, %19 in 0 : vector<8x64xf32>, vector<8x64xf32>, vector<8x64xf32>, vector<8x64xf32>, vector<8x64xf32>, vector<8x64xf32>, vector<8x64xf32>, vector<8x64xf32> -> vector<64x64xf32>
    %21 = arith.subf %18, %20 : vector<64x64xf32>
    %22 = arith.truncf %21 : vector<64x64xf32> to vector<64x64xbf16>
    %c0_12 = arith.constant 0 : index
    %c0_13 = arith.constant 0 : index
    %23 = vector.load %arg5[%c0_12, %c0_13] : memref<64x128xbf16, #tpu.memory_space<vmem>>, vector<64x128xbf16>
    %cst_14 = arith.constant dense<0.000000e+00> : vector<64x128xf32>
    %24 = tpu.matmul %22, %23, %cst_14 {dimension_numbers = #tpu.dot_dimension_numbers<[1], [0], [0], [1], [0, 0, 1, 1], [], []>} : vector<64x64xbf16>, vector<64x128xbf16>, vector<64x128xf32> -> vector<64x128xf32>
    %25 = arith.addf %15, %24 : vector<64x128xf32>
    %26 = arith.truncf %20 : vector<64x64xf32> to vector<64x64xbf16>
    %c0_15 = arith.constant 0 : index
    %c0_16 = arith.constant 0 : index
    %27 = vector.load %arg6[%c0_15, %c0_16] : memref<64x128xbf16, #tpu.memory_space<vmem>>, vector<64x128xbf16>
    %cst_17 = arith.constant dense<0.000000e+00> : vector<64x128xf32>
    %28 = tpu.matmul %26, %27, %cst_17 {dimension_numbers = #tpu.dot_dimension_numbers<[1], [0], [0], [1], [0, 0, 1, 1], [], []>} : vector<64x64xbf16>, vector<64x128xbf16>, vector<64x128xf32> -> vector<64x128xf32>
    %29 = arith.addf %25, %28 : vector<64x128xf32>
    %c0_18 = arith.constant 0 : index
    %c0_19 = arith.constant 0 : index
    %30 = vector.load %arg7[%c0_18, %c0_19] : memref<1x128xf32, #tpu.memory_space<vmem>>, vector<1x128xf32>
    %31 = vector.broadcast %30 : vector<1x128xf32> to vector<64x128xf32>
    %32 = arith.addf %29, %31 : vector<64x128xf32>
    %cst_20 = arith.constant 0.000000e+00 : f32
    %33 = vector.broadcast %cst_20 : f32 to vector<64x128xf32>
    %34 = arith.maximumf %32, %33 : vector<64x128xf32>
    %35 = arith.truncf %34 : vector<64x128xf32> to vector<64x128xbf16>
    %c0_21 = arith.constant 0 : index
    %c0_22 = arith.constant 0 : index
    %36 = vector.load %arg8[%c0_21, %c0_22] : memref<128x128xbf16, #tpu.memory_space<vmem>>, vector<128x128xbf16>
    %cst_23 = arith.constant dense<0.000000e+00> : vector<64x128xf32>
    %37 = tpu.matmul %35, %36, %cst_23 {dimension_numbers = #tpu.dot_dimension_numbers<[1], [0], [0], [1], [0, 0, 1, 1], [], []>} : vector<64x128xbf16>, vector<128x128xbf16>, vector<64x128xf32> -> vector<64x128xf32>
    %c0_24 = arith.constant 0 : index
    %c0_25 = arith.constant 0 : index
    %38 = vector.load %arg9[%c0_24, %c0_25] : memref<1x128xf32, #tpu.memory_space<vmem>>, vector<1x128xf32>
    %39 = vector.broadcast %38 : vector<1x128xf32> to vector<64x128xf32>
    %40 = arith.addf %37, %39 : vector<64x128xf32>
    %cst_26 = arith.constant 0.000000e+00 : f32
    %41 = vector.broadcast %cst_26 : f32 to vector<64x128xf32>
    %42 = arith.maximumf %40, %41 : vector<64x128xf32>
    %43 = arith.truncf %42 : vector<64x128xf32> to vector<64x128xbf16>
    %c0_27 = arith.constant 0 : index
    %c0_28 = arith.constant 0 : index
    %44 = vector.load %arg10[%c0_27, %c0_28] : memref<128x128xbf16, #tpu.memory_space<vmem>>, vector<128x128xbf16>
    %cst_29 = arith.constant dense<0.000000e+00> : vector<64x128xf32>
    %45 = tpu.matmul %43, %44, %cst_29 {dimension_numbers = #tpu.dot_dimension_numbers<[1], [0], [0], [1], [0, 0, 1, 1], [], []>} : vector<64x128xbf16>, vector<128x128xbf16>, vector<64x128xf32> -> vector<64x128xf32>
    %c0_30 = arith.constant 0 : index
    %c0_31 = arith.constant 0 : index
    %46 = vector.load %arg11[%c0_30, %c0_31] : memref<1x128xf32, #tpu.memory_space<vmem>>, vector<1x128xf32>
    %47 = vector.broadcast %46 : vector<1x128xf32> to vector<64x128xf32>
    %48 = arith.addf %45, %47 : vector<64x128xf32>
    %cst_32 = arith.constant 0.000000e+00 : f32
    %49 = vector.broadcast %cst_32 : f32 to vector<64x128xf32>
    %50 = arith.maximumf %48, %49 : vector<64x128xf32>
    %51 = vector.extract_strided_slice %50 {offsets = [0, 0], sizes = [8, 128], strides = [1, 1]} : vector<64x128xf32> to vector<8x128xf32>
    %52 = vector.extract_strided_slice %50 {offsets = [8, 0], sizes = [8, 128], strides = [1, 1]} : vector<64x128xf32> to vector<8x128xf32>
    %53 = arith.maximumf %51, %52 : vector<8x128xf32>
    %54 = vector.extract_strided_slice %50 {offsets = [16, 0], sizes = [8, 128], strides = [1, 1]} : vector<64x128xf32> to vector<8x128xf32>
    %55 = arith.maximumf %53, %54 : vector<8x128xf32>
    %56 = vector.extract_strided_slice %50 {offsets = [24, 0], sizes = [8, 128], strides = [1, 1]} : vector<64x128xf32> to vector<8x128xf32>
    %57 = arith.maximumf %55, %56 : vector<8x128xf32>
    %58 = vector.extract_strided_slice %50 {offsets = [32, 0], sizes = [8, 128], strides = [1, 1]} : vector<64x128xf32> to vector<8x128xf32>
    %59 = arith.maximumf %57, %58 : vector<8x128xf32>
    %60 = vector.extract_strided_slice %50 {offsets = [40, 0], sizes = [8, 128], strides = [1, 1]} : vector<64x128xf32> to vector<8x128xf32>
    %61 = arith.maximumf %59, %60 : vector<8x128xf32>
    %62 = vector.extract_strided_slice %50 {offsets = [48, 0], sizes = [8, 128], strides = [1, 1]} : vector<64x128xf32> to vector<8x128xf32>
    %63 = arith.maximumf %61, %62 : vector<8x128xf32>
    %64 = vector.extract_strided_slice %50 {offsets = [56, 0], sizes = [8, 128], strides = [1, 1]} : vector<64x128xf32> to vector<8x128xf32>
    %65 = arith.maximumf %63, %64 : vector<8x128xf32>
    %c0_33 = arith.constant 0 : index
    %c0_34 = arith.constant 0 : index
    %c0_35 = arith.constant 0 : index
    %66 = vector.load %arg12[%c0_33, %c0_34, %c0_35] : memref<1x8x128xf32, #tpu.memory_space<vmem>>, vector<1x8x128xf32>
    %67 = vector.shape_cast %66 : vector<1x8x128xf32> to vector<8x128xf32>
    %68 = vector.shape_cast %65 : vector<8x128xf32> to vector<1x8x128xf32>
    tpu.vector_store %arg12[%c0_33, %c0_34, %c0_35], %68 {strides = array<i32>} : memref<1x8x128xf32, #tpu.memory_space<vmem>>, vector<1x8x128xf32>,
    return
  }
  func.func @transform_0(%arg0: i32) -> (i32, i32, i32) {
    %c0_i32 = arith.constant 0 : i32
    %c0_i32_0 = arith.constant 0 : i32
    %c0_i32_1 = arith.constant 0 : i32
    return %arg0, %c0_i32, %c0_i32_0 : i32, i32, i32
  }
  func.func @transform_1(%arg0: i32) -> (i32, i32, i32) {
    %c0_i32 = arith.constant 0 : i32
    %c0_i32_0 = arith.constant 0 : i32
    %c0_i32_1 = arith.constant 0 : i32
    return %arg0, %c0_i32, %c0_i32_0 : i32, i32, i32
  }
  func.func @transform_2(%arg0: i32) -> (i32, i32, i32) {
    %c0_i32 = arith.constant 0 : i32
    %c0_i32_0 = arith.constant 0 : i32
    %c0_i32_1 = arith.constant 0 : i32
    return %arg0, %c0_i32, %c0_i32_0 : i32, i32, i32
  }
  func.func @transform_3(%arg0: i32) -> (i32, i32) {
    %c0_i32 = arith.constant 0 : i32
    %c0_i32_0 = arith.constant 0 : i32
    %c0_i32_1 = arith.constant 0 : i32
    return %c0_i32, %c0_i32_0 : i32, i32
  }
  func.func @transform_4(%arg0: i32) -> (i32, i32) {
    %c0_i32 = arith.constant 0 : i32
    %c0_i32_0 = arith.constant 0 : i32
    %c0_i32_1 = arith.constant 0 : i32
    return %c0_i32, %c0_i32_0 : i32, i32
  }
  func.func @transform_5(%arg0: i32) -> (i32, i32) {
    %c0_i32 = arith.constant 0 : i32
    %c0_i32_0 = arith.constant 0 : i32
    %c0_i32_1 = arith.constant 0 : i32
    return %c0_i32, %c0_i32_0 : i32, i32
  }
  func.func @transform_6(%arg0: i32) -> (i32, i32) {
    %c0_i32 = arith.constant 0 : i32
    %c0_i32_0 = arith.constant 0 : i32
    %c0_i32_1 = arith.constant 0 : i32
    return %c0_i32, %c0_i32_0 : i32, i32
  }
  func.func @transform_7(%arg0: i32) -> (i32, i32) {
    %c0_i32 = arith.constant 0 : i32
    %c0_i32_0 = arith.constant 0 : i32
    %c0_i32_1 = arith.constant 0 : i32
    return %c0_i32, %c0_i32_0 : i32, i32
  }
  func.func @transform_8(%arg0: i32) -> (i32, i32) {
    %c0_i32 = arith.constant 0 : i32
    %c0_i32_0 = arith.constant 0 : i32
    %c0_i32_1 = arith.constant 0 : i32
    return %c0_i32, %c0_i32_0 : i32, i32
  }
  func.func @transform_9(%arg0: i32) -> (i32, i32) {
    %c0_i32 = arith.constant 0 : i32
    %c0_i32_0 = arith.constant 0 : i32
    %c0_i32_1 = arith.constant 0 : i32
    return %c0_i32, %c0_i32_0 : i32, i32
  }
  func.func @transform_10(%arg0: i32) -> (i32, i32) {
    %c0_i32 = arith.constant 0 : i32
    %c0_i32_0 = arith.constant 0 : i32
    %c0_i32_1 = arith.constant 0 : i32
    return %c0_i32, %c0_i32_0 : i32, i32
  }
  func.func @transform_11(%arg0: i32) -> (i32, i32, i32) {
    %c0_i32 = arith.constant 0 : i32
    %c0_i32_0 = arith.constant 0 : i32
    %c0_i32_1 = arith.constant 0 : i32
    return %arg0, %c0_i32, %c0_i32_0 : i32, i32, i32
  }
}

module attributes {stable_mosaic.version = 11 : i64} {
  func.func @_mlp2_rows_kernel(%arg0: i32, %arg1: memref<16x192xf32, #tpu.memory_space<vmem>>, %arg2: memref<192x128xbf16, #tpu.memory_space<vmem>>, %arg3: memref<1x128xf32, #tpu.memory_space<vmem>>, %arg4: memref<128x128xbf16, #tpu.memory_space<vmem>>, %arg5: memref<1x128xf32, #tpu.memory_space<vmem>>, %arg6: memref<16x128xf32, #tpu.memory_space<vmem>>) attributes {dimension_semantics = [#tpu.dimension_semantics<parallel>], iteration_bounds = array<i64: 2>, scalar_prefetch = 0 : i64, scratch_operands = 0 : i64, tpu.core_type = #tpu.core_type<tc>, window_params = [{transform_indices = @transform_0, window_bounds = array<i64: 16, 192>}, {pipeline_mode = #tpu.pipeline_mode<synchronous>, transform_indices = @transform_1, window_bounds = array<i64: 192, 128>}, {pipeline_mode = #tpu.pipeline_mode<synchronous>, transform_indices = @transform_2, window_bounds = array<i64: 1, 128>}, {pipeline_mode = #tpu.pipeline_mode<synchronous>, transform_indices = @transform_3, window_bounds = array<i64: 128, 128>}, {pipeline_mode = #tpu.pipeline_mode<synchronous>, transform_indices = @transform_4, window_bounds = array<i64: 1, 128>}, {transform_indices = @transform_5, window_bounds = array<i64: 16, 128>}]} {
    %c0 = arith.constant 0 : index
    %c0_0 = arith.constant 0 : index
    %0 = vector.load %arg1[%c0, %c0_0] : memref<16x192xf32, #tpu.memory_space<vmem>>, vector<16x192xf32>
    %1 = arith.truncf %0 : vector<16x192xf32> to vector<16x192xbf16>
    %c0_1 = arith.constant 0 : index
    %c0_2 = arith.constant 0 : index
    %2 = vector.load %arg2[%c0_1, %c0_2] : memref<192x128xbf16, #tpu.memory_space<vmem>>, vector<192x128xbf16>
    %cst = arith.constant dense<0.000000e+00> : vector<16x128xf32>
    %3 = tpu.matmul %1, %2, %cst {dimension_numbers = #tpu.dot_dimension_numbers<[1], [0], [0], [1], [0, 0, 1, 1], [], []>} : vector<16x192xbf16>, vector<192x128xbf16>, vector<16x128xf32> -> vector<16x128xf32>
    %c0_3 = arith.constant 0 : index
    %c0_4 = arith.constant 0 : index
    %4 = vector.load %arg3[%c0_3, %c0_4] : memref<1x128xf32, #tpu.memory_space<vmem>>, vector<1x128xf32>
    %5 = vector.broadcast %4 : vector<1x128xf32> to vector<16x128xf32>
    %6 = arith.addf %3, %5 : vector<16x128xf32>
    %cst_5 = arith.constant 0.000000e+00 : f32
    %7 = vector.broadcast %cst_5 : f32 to vector<16x128xf32>
    %8 = arith.maximumf %6, %7 : vector<16x128xf32>
    %9 = arith.truncf %8 : vector<16x128xf32> to vector<16x128xbf16>
    %c0_6 = arith.constant 0 : index
    %c0_7 = arith.constant 0 : index
    %10 = vector.load %arg4[%c0_6, %c0_7] : memref<128x128xbf16, #tpu.memory_space<vmem>>, vector<128x128xbf16>
    %cst_8 = arith.constant dense<0.000000e+00> : vector<16x128xf32>
    %11 = tpu.matmul %9, %10, %cst_8 {dimension_numbers = #tpu.dot_dimension_numbers<[1], [0], [0], [1], [0, 0, 1, 1], [], []>} : vector<16x128xbf16>, vector<128x128xbf16>, vector<16x128xf32> -> vector<16x128xf32>
    %c0_9 = arith.constant 0 : index
    %c0_10 = arith.constant 0 : index
    %12 = vector.load %arg5[%c0_9, %c0_10] : memref<1x128xf32, #tpu.memory_space<vmem>>, vector<1x128xf32>
    %13 = vector.broadcast %12 : vector<1x128xf32> to vector<16x128xf32>
    %14 = arith.addf %11, %13 : vector<16x128xf32>
    %cst_11 = arith.constant 0.000000e+00 : f32
    %15 = vector.broadcast %cst_11 : f32 to vector<16x128xf32>
    %16 = arith.maximumf %14, %15 : vector<16x128xf32>
    %c0_12 = arith.constant 0 : index
    %c0_13 = arith.constant 0 : index
    %17 = vector.load %arg6[%c0_12, %c0_13] : memref<16x128xf32, #tpu.memory_space<vmem>>, vector<16x128xf32>
    tpu.vector_store %arg6[%c0_12, %c0_13], %16 {strides = array<i32>} : memref<16x128xf32, #tpu.memory_space<vmem>>, vector<16x128xf32>,
    return
  }
  func.func @transform_0(%arg0: i32) -> (i32, i32) {
    %c0_i32 = arith.constant 0 : i32
    %c0_i32_0 = arith.constant 0 : i32
    return %arg0, %c0_i32 : i32, i32
  }
  func.func @transform_1(%arg0: i32) -> (i32, i32) {
    %c0_i32 = arith.constant 0 : i32
    %c0_i32_0 = arith.constant 0 : i32
    %c0_i32_1 = arith.constant 0 : i32
    return %c0_i32, %c0_i32_0 : i32, i32
  }
  func.func @transform_2(%arg0: i32) -> (i32, i32) {
    %c0_i32 = arith.constant 0 : i32
    %c0_i32_0 = arith.constant 0 : i32
    %c0_i32_1 = arith.constant 0 : i32
    return %c0_i32, %c0_i32_0 : i32, i32
  }
  func.func @transform_3(%arg0: i32) -> (i32, i32) {
    %c0_i32 = arith.constant 0 : i32
    %c0_i32_0 = arith.constant 0 : i32
    %c0_i32_1 = arith.constant 0 : i32
    return %c0_i32, %c0_i32_0 : i32, i32
  }
  func.func @transform_4(%arg0: i32) -> (i32, i32) {
    %c0_i32 = arith.constant 0 : i32
    %c0_i32_0 = arith.constant 0 : i32
    %c0_i32_1 = arith.constant 0 : i32
    return %c0_i32, %c0_i32_0 : i32, i32
  }
  func.func @transform_5(%arg0: i32) -> (i32, i32) {
    %c0_i32 = arith.constant 0 : i32
    %c0_i32_0 = arith.constant 0 : i32
    return %arg0, %c0_i32 : i32, i32
  }
}

module attributes {stable_mosaic.version = 11 : i64} {
  func.func @_mlp2_rows_kernel(%arg0: i32, %arg1: memref<32x160xf32, #tpu.memory_space<vmem>>, %arg2: memref<160x128xbf16, #tpu.memory_space<vmem>>, %arg3: memref<1x128xf32, #tpu.memory_space<vmem>>, %arg4: memref<128x64xbf16, #tpu.memory_space<vmem>>, %arg5: memref<1x64xf32, #tpu.memory_space<vmem>>, %arg6: memref<32x64xf32, #tpu.memory_space<vmem>>) attributes {dimension_semantics = [#tpu.dimension_semantics<parallel>], iteration_bounds = array<i64: 2>, scalar_prefetch = 0 : i64, scratch_operands = 0 : i64, tpu.core_type = #tpu.core_type<tc>, window_params = [{transform_indices = @transform_0, window_bounds = array<i64: 32, 160>}, {pipeline_mode = #tpu.pipeline_mode<synchronous>, transform_indices = @transform_1, window_bounds = array<i64: 160, 128>}, {pipeline_mode = #tpu.pipeline_mode<synchronous>, transform_indices = @transform_2, window_bounds = array<i64: 1, 128>}, {pipeline_mode = #tpu.pipeline_mode<synchronous>, transform_indices = @transform_3, window_bounds = array<i64: 128, 64>}, {pipeline_mode = #tpu.pipeline_mode<synchronous>, transform_indices = @transform_4, window_bounds = array<i64: 1, 64>}, {transform_indices = @transform_5, window_bounds = array<i64: 32, 64>}]} {
    %c0 = arith.constant 0 : index
    %c0_0 = arith.constant 0 : index
    %0 = vector.load %arg1[%c0, %c0_0] : memref<32x160xf32, #tpu.memory_space<vmem>>, vector<32x160xf32>
    %1 = arith.truncf %0 : vector<32x160xf32> to vector<32x160xbf16>
    %c0_1 = arith.constant 0 : index
    %c0_2 = arith.constant 0 : index
    %2 = vector.load %arg2[%c0_1, %c0_2] : memref<160x128xbf16, #tpu.memory_space<vmem>>, vector<160x128xbf16>
    %cst = arith.constant dense<0.000000e+00> : vector<32x128xf32>
    %3 = tpu.matmul %1, %2, %cst {dimension_numbers = #tpu.dot_dimension_numbers<[1], [0], [0], [1], [0, 0, 1, 1], [], []>} : vector<32x160xbf16>, vector<160x128xbf16>, vector<32x128xf32> -> vector<32x128xf32>
    %c0_3 = arith.constant 0 : index
    %c0_4 = arith.constant 0 : index
    %4 = vector.load %arg3[%c0_3, %c0_4] : memref<1x128xf32, #tpu.memory_space<vmem>>, vector<1x128xf32>
    %5 = vector.broadcast %4 : vector<1x128xf32> to vector<32x128xf32>
    %6 = arith.addf %3, %5 : vector<32x128xf32>
    %cst_5 = arith.constant 0.000000e+00 : f32
    %7 = vector.broadcast %cst_5 : f32 to vector<32x128xf32>
    %8 = arith.maximumf %6, %7 : vector<32x128xf32>
    %9 = arith.truncf %8 : vector<32x128xf32> to vector<32x128xbf16>
    %c0_6 = arith.constant 0 : index
    %c0_7 = arith.constant 0 : index
    %10 = vector.load %arg4[%c0_6, %c0_7] : memref<128x64xbf16, #tpu.memory_space<vmem>>, vector<128x64xbf16>
    %cst_8 = arith.constant dense<0.000000e+00> : vector<32x64xf32>
    %11 = tpu.matmul %9, %10, %cst_8 {dimension_numbers = #tpu.dot_dimension_numbers<[1], [0], [0], [1], [0, 0, 1, 1], [], []>} : vector<32x128xbf16>, vector<128x64xbf16>, vector<32x64xf32> -> vector<32x64xf32>
    %c0_9 = arith.constant 0 : index
    %c0_10 = arith.constant 0 : index
    %12 = vector.load %arg5[%c0_9, %c0_10] : memref<1x64xf32, #tpu.memory_space<vmem>>, vector<1x64xf32>
    %13 = vector.broadcast %12 : vector<1x64xf32> to vector<32x64xf32>
    %14 = arith.addf %11, %13 : vector<32x64xf32>
    %cst_11 = arith.constant 0.000000e+00 : f32
    %15 = vector.broadcast %cst_11 : f32 to vector<32x64xf32>
    %16 = arith.maximumf %14, %15 : vector<32x64xf32>
    %c0_12 = arith.constant 0 : index
    %c0_13 = arith.constant 0 : index
    %17 = vector.load %arg6[%c0_12, %c0_13] : memref<32x64xf32, #tpu.memory_space<vmem>>, vector<32x64xf32>
    tpu.vector_store %arg6[%c0_12, %c0_13], %16 {strides = array<i32>} : memref<32x64xf32, #tpu.memory_space<vmem>>, vector<32x64xf32>,
    return
  }
  func.func @transform_0(%arg0: i32) -> (i32, i32) {
    %c0_i32 = arith.constant 0 : i32
    %c0_i32_0 = arith.constant 0 : i32
    return %arg0, %c0_i32 : i32, i32
  }
  func.func @transform_1(%arg0: i32) -> (i32, i32) {
    %c0_i32 = arith.constant 0 : i32
    %c0_i32_0 = arith.constant 0 : i32
    %c0_i32_1 = arith.constant 0 : i32
    return %c0_i32, %c0_i32_0 : i32, i32
  }
  func.func @transform_2(%arg0: i32) -> (i32, i32) {
    %c0_i32 = arith.constant 0 : i32
    %c0_i32_0 = arith.constant 0 : i32
    %c0_i32_1 = arith.constant 0 : i32
    return %c0_i32, %c0_i32_0 : i32, i32
  }
  func.func @transform_3(%arg0: i32) -> (i32, i32) {
    %c0_i32 = arith.constant 0 : i32
    %c0_i32_0 = arith.constant 0 : i32
    %c0_i32_1 = arith.constant 0 : i32
    return %c0_i32, %c0_i32_0 : i32, i32
  }
  func.func @transform_4(%arg0: i32) -> (i32, i32) {
    %c0_i32 = arith.constant 0 : i32
    %c0_i32_0 = arith.constant 0 : i32
    %c0_i32_1 = arith.constant 0 : i32
    return %c0_i32, %c0_i32_0 : i32, i32
  }
  func.func @transform_5(%arg0: i32) -> (i32, i32) {
    %c0_i32 = arith.constant 0 : i32
    %c0_i32_0 = arith.constant 0 : i32
    return %arg0, %c0_i32 : i32, i32
  }
}

module attributes {stable_mosaic.version = 11 : i64} {
  func.func @_fp0_cov_kernel(%arg0: i32, %arg1: memref<1x64x67xf32, #tpu.memory_space<vmem>>, %arg2: memref<67x32xbf16, #tpu.memory_space<vmem>>, %arg3: memref<1x32xf32, #tpu.memory_space<vmem>>, %arg4: memref<32x32xbf16, #tpu.memory_space<vmem>>, %arg5: memref<1x32xf32, #tpu.memory_space<vmem>>, %arg6: memref<32x32xbf16, #tpu.memory_space<vmem>>, %arg7: memref<32x1xf32, #tpu.memory_space<vmem>>, %arg8: memref<1x32x64xf32, #tpu.memory_space<vmem>>) attributes {dimension_semantics = [#tpu.dimension_semantics<parallel>], iteration_bounds = array<i64: 2>, scalar_prefetch = 0 : i64, scratch_operands = 0 : i64, tpu.core_type = #tpu.core_type<tc>, window_params = [{transform_indices = @transform_0, window_bounds = array<i64: 1, 64, 67>}, {pipeline_mode = #tpu.pipeline_mode<synchronous>, transform_indices = @transform_1, window_bounds = array<i64: 67, 32>}, {pipeline_mode = #tpu.pipeline_mode<synchronous>, transform_indices = @transform_2, window_bounds = array<i64: 1, 32>}, {pipeline_mode = #tpu.pipeline_mode<synchronous>, transform_indices = @transform_3, window_bounds = array<i64: 32, 32>}, {pipeline_mode = #tpu.pipeline_mode<synchronous>, transform_indices = @transform_4, window_bounds = array<i64: 1, 32>}, {pipeline_mode = #tpu.pipeline_mode<synchronous>, transform_indices = @transform_5, window_bounds = array<i64: 32, 32>}, {pipeline_mode = #tpu.pipeline_mode<synchronous>, transform_indices = @transform_6, window_bounds = array<i64: 32, 1>}, {transform_indices = @transform_7, window_bounds = array<i64: 1, 32, 64>}]} {
    %c0 = arith.constant 0 : index
    %c0_0 = arith.constant 0 : index
    %c0_1 = arith.constant 0 : index
    %0 = vector.load %arg1[%c0, %c0_0, %c0_1] : memref<1x64x67xf32, #tpu.memory_space<vmem>>, vector<1x64x67xf32>
    %1 = vector.shape_cast %0 : vector<1x64x67xf32> to vector<64x67xf32>
    %2 = arith.truncf %1 : vector<64x67xf32> to vector<64x67xbf16>
    %c0_2 = arith.constant 0 : index
    %c0_3 = arith.constant 0 : index
    %3 = vector.load %arg2[%c0_2, %c0_3] : memref<67x32xbf16, #tpu.memory_space<vmem>>, vector<67x32xbf16>
    %cst = arith.constant dense<0.000000e+00> : vector<64x32xf32>
    %4 = tpu.matmul %2, %3, %cst {dimension_numbers = #tpu.dot_dimension_numbers<[1], [0], [0], [1], [0, 0, 1, 1], [], []>} : vector<64x67xbf16>, vector<67x32xbf16>, vector<64x32xf32> -> vector<64x32xf32>
    %c0_4 = arith.constant 0 : index
    %c0_5 = arith.constant 0 : index
    %5 = vector.load %arg3[%c0_4, %c0_5] : memref<1x32xf32, #tpu.memory_space<vmem>>, vector<1x32xf32>
    %6 = vector.broadcast %5 : vector<1x32xf32> to vector<64x32xf32>
    %7 = arith.addf %4, %6 : vector<64x32xf32>
    %cst_6 = arith.constant 0.000000e+00 : f32
    %8 = vector.broadcast %cst_6 : f32 to vector<64x32xf32>
    %9 = arith.maximumf %7, %8 : vector<64x32xf32>
    %10 = arith.truncf %9 : vector<64x32xf32> to vector<64x32xbf16>
    %c0_7 = arith.constant 0 : index
    %c0_8 = arith.constant 0 : index
    %11 = vector.load %arg4[%c0_7, %c0_8] : memref<32x32xbf16, #tpu.memory_space<vmem>>, vector<32x32xbf16>
    %cst_9 = arith.constant dense<0.000000e+00> : vector<64x32xf32>
    %12 = tpu.matmul %10, %11, %cst_9 {dimension_numbers = #tpu.dot_dimension_numbers<[1], [0], [0], [1], [0, 0, 1, 1], [], []>} : vector<64x32xbf16>, vector<32x32xbf16>, vector<64x32xf32> -> vector<64x32xf32>
    %c0_10 = arith.constant 0 : index
    %c0_11 = arith.constant 0 : index
    %13 = vector.load %arg5[%c0_10, %c0_11] : memref<1x32xf32, #tpu.memory_space<vmem>>, vector<1x32xf32>
    %14 = vector.broadcast %13 : vector<1x32xf32> to vector<64x32xf32>
    %15 = arith.addf %12, %14 : vector<64x32xf32>
    %cst_12 = arith.constant 0.000000e+00 : f32
    %16 = vector.broadcast %cst_12 : f32 to vector<64x32xf32>
    %17 = arith.maximumf %15, %16 : vector<64x32xf32>
    %c0_13 = arith.constant 0 : index
    %c0_14 = arith.constant 0 : index
    %18 = vector.load %arg6[%c0_13, %c0_14] : memref<32x32xbf16, #tpu.memory_space<vmem>>, vector<32x32xbf16>
    %19 = arith.truncf %17 : vector<64x32xf32> to vector<64x32xbf16>
    %20 = tpu.transpose %19, [1, 0] : vector<64x32xbf16> -> vector<32x64xbf16>
    %cst_15 = arith.constant dense<0.000000e+00> : vector<32x64xf32>
    %21 = tpu.matmul %18, %20, %cst_15 {dimension_numbers = #tpu.dot_dimension_numbers<[1], [0], [0], [1], [0, 0, 1, 1], [], []>} : vector<32x32xbf16>, vector<32x64xbf16>, vector<32x64xf32> -> vector<32x64xf32>
    %c0_16 = arith.constant 0 : index
    %c0_17 = arith.constant 0 : index
    %22 = vector.load %arg7[%c0_16, %c0_17] : memref<32x1xf32, #tpu.memory_space<vmem>>, vector<32x1xf32>
    %23 = vector.broadcast %22 : vector<32x1xf32> to vector<32x64xf32>
    %24 = arith.addf %21, %23 : vector<32x64xf32>
    %c0_18 = arith.constant 0 : index
    %c0_19 = arith.constant 0 : index
    %c0_20 = arith.constant 0 : index
    %25 = vector.load %arg8[%c0_18, %c0_19, %c0_20] : memref<1x32x64xf32, #tpu.memory_space<vmem>>, vector<1x32x64xf32>
    %26 = vector.shape_cast %25 : vector<1x32x64xf32> to vector<32x64xf32>
    %27 = vector.shape_cast %24 : vector<32x64xf32> to vector<1x32x64xf32>
    tpu.vector_store %arg8[%c0_18, %c0_19, %c0_20], %27 {strides = array<i32>} : memref<1x32x64xf32, #tpu.memory_space<vmem>>, vector<1x32x64xf32>,
    return
  }
  func.func @transform_0(%arg0: i32) -> (i32, i32, i32) {
    %c0_i32 = arith.constant 0 : i32
    %c0_i32_0 = arith.constant 0 : i32
    %c0_i32_1 = arith.constant 0 : i32
    return %arg0, %c0_i32, %c0_i32_0 : i32, i32, i32
  }
  func.func @transform_1(%arg0: i32) -> (i32, i32) {
    %c0_i32 = arith.constant 0 : i32
    %c0_i32_0 = arith.constant 0 : i32
    %c0_i32_1 = arith.constant 0 : i32
    return %c0_i32, %c0_i32_0 : i32, i32
  }
  func.func @transform_2(%arg0: i32) -> (i32, i32) {
    %c0_i32 = arith.constant 0 : i32
    %c0_i32_0 = arith.constant 0 : i32
    %c0_i32_1 = arith.constant 0 : i32
    return %c0_i32, %c0_i32_0 : i32, i32
  }
  func.func @transform_3(%arg0: i32) -> (i32, i32) {
    %c0_i32 = arith.constant 0 : i32
    %c0_i32_0 = arith.constant 0 : i32
    %c0_i32_1 = arith.constant 0 : i32
    return %c0_i32, %c0_i32_0 : i32, i32
  }
  func.func @transform_4(%arg0: i32) -> (i32, i32) {
    %c0_i32 = arith.constant 0 : i32
    %c0_i32_0 = arith.constant 0 : i32
    %c0_i32_1 = arith.constant 0 : i32
    return %c0_i32, %c0_i32_0 : i32, i32
  }
  func.func @transform_5(%arg0: i32) -> (i32, i32) {
    %c0_i32 = arith.constant 0 : i32
    %c0_i32_0 = arith.constant 0 : i32
    %c0_i32_1 = arith.constant 0 : i32
    return %c0_i32, %c0_i32_0 : i32, i32
  }
  func.func @transform_6(%arg0: i32) -> (i32, i32) {
    %c0_i32 = arith.constant 0 : i32
    %c0_i32_0 = arith.constant 0 : i32
    %c0_i32_1 = arith.constant 0 : i32
    return %c0_i32, %c0_i32_0 : i32, i32
  }
  func.func @transform_7(%arg0: i32) -> (i32, i32, i32) {
    %c0_i32 = arith.constant 0 : i32
    %c0_i32_0 = arith.constant 0 : i32
    %c0_i32_1 = arith.constant 0 : i32
    return %arg0, %c0_i32, %c0_i32_0 : i32, i32, i32
  }
}

</mosaic_0001>

<llo_original>
// kernel: neg.9
$region0: #{neg.9}
  #allocation0 [shape = 's32[1]{0}', space=sflag, size = 0x4, scoped, tag = 'scoped memory for neg.9']
  %s0 = inlined_call_operand.vmem [shape: f32[2,32,64], index: 0, kind: input, shape index: {}]
  %s1 = inlined_call_operand.vmem [shape: f32[2,32,64], index: 1, kind: output, shape index: {}]
  %v2 = vld [vmem:[%s0] sm:$0xff]
  %3 = xla_tuple %v2
  %4 = xla_tuple %3
  %v5 = vxor.u32 %v2, 2147483648
  %6 = xla_tuple %v5
  %7 = vst [vmem:[%s1] sm:$0xff] %v5
  %s8 = scalar_lea.vmem %s0, 32
  %v9 = vld [vmem:[%s8] sm:$0xff]
  %10 = xla_tuple %v9
  %11 = xla_tuple %10
  %v12 = vxor.u32 %v9, 2147483648
  %13 = xla_tuple %v12
  %s14 = scalar_lea.vmem %s1, 32
  %15 = vst [vmem:[%s14] sm:$0xff] %v12
  %s16 = scalar_lea.vmem %s0, 8
  %v17 = vld [vmem:[%s16] sm:$0xff]
  %18 = xla_tuple %v17
  %19 = xla_tuple %18
  %v20 = vxor.u32 %v17, 2147483648
  %21 = xla_tuple %v20
  %s22 = scalar_lea.vmem %s1, 8
  %23 = vst [vmem:[%s22] sm:$0xff] %v20
  %s24 = scalar_lea.vmem %s0, 40
  %v25 = vld [vmem:[%s24] sm:$0xff]
  %26 = xla_tuple %v25
  %27 = xla_tuple %26
  %v28 = vxor.u32 %v25, 2147483648
  %29 = xla_tuple %v28
  %s30 = scalar_lea.vmem %s1, 40
  %31 = vst [vmem:[%s30] sm:$0xff] %v28
  %s32 = scalar_lea.vmem %s0, 16
  %v33 = vld [vmem:[%s32] sm:$0xff]
  %34 = xla_tuple %v33
  %35 = xla_tuple %34
  %v36 = vxor.u32 %v33, 2147483648
  %37 = xla_tuple %v36
  %s38 = scalar_lea.vmem %s1, 16
  %39 = vst [vmem:[%s38] sm:$0xff] %v36
  %s40 = scalar_lea.vmem %s0, 48
  %v41 = vld [vmem:[%s40] sm:$0xff]
  %42 = xla_tuple %v41
  %43 = xla_tuple %42
  %v44 = vxor.u32 %v41, 2147483648
  %45 = xla_tuple %v44
  %s46 = scalar_lea.vmem %s1, 48
  %47 = vst [vmem:[%s46] sm:$0xff] %v44
  %s48 = scalar_lea.vmem %s0, 24
  %v49 = vld [vmem:[%s48] sm:$0xff]
  %50 = xla_tuple %v49
  %51 = xla_tuple %50
  %v52 = vxor.u32 %v49, 2147483648
  %53 = xla_tuple %v52
  %s54 = scalar_lea.vmem %s1, 24
  %55 = vst [vmem:[%s54] sm:$0xff] %v52
  %s56 = scalar_lea.vmem %s0, 56
  %v57 = vld [vmem:[%s56] sm:$0xff]
  %58 = xla_tuple %v57
  %59 = xla_tuple %58
  %v60 = vxor.u32 %v57, 2147483648
  %61 = xla_tuple %v60
  %s62 = scalar_lea.vmem %s1, 56
  %63 = vst [vmem:[%s62] sm:$0xff] %v60

// kernel: neg.10
$region0: #{neg.10}
  #allocation0 [shape = 's32[1]{0}', space=sflag, size = 0x4, scoped, tag = 'scoped memory for neg.10']
  %s0 = inlined_call_operand.vmem [shape: f32[2,16,32], index: 0, kind: input, shape index: {}]
  %s1 = inlined_call_operand.vmem [shape: f32[2,16,32], index: 1, kind: output, shape index: {}]
  %v2 = vld [vmem:[%s0] sm:$0xff]
  %3 = xla_tuple %v2
  %4 = xla_tuple %3
  %v5 = vxor.u32 %v2, 2147483648
  %6 = xla_tuple %v5
  %7 = vst [vmem:[%s1] sm:$0xff] %v5
  %s8 = scalar_lea.vmem %s0, 16
  %v9 = vld [vmem:[%s8] sm:$0xff]
  %10 = xla_tuple %v9
  %11 = xla_tuple %10
  %v12 = vxor.u32 %v9, 2147483648
  %13 = xla_tuple %v12
  %s14 = scalar_lea.vmem %s1, 16
  %15 = vst [vmem:[%s14] sm:$0xff] %v12
  %s16 = scalar_lea.vmem %s0, 8
  %v17 = vld [vmem:[%s16] sm:$0xff]
  %18 = xla_tuple %v17
  %19 = xla_tuple %18
  %v20 = vxor.u32 %v17, 2147483648
  %21 = xla_tuple %v20
  %s22 = scalar_lea.vmem %s1, 8
  %23 = vst [vmem:[%s22] sm:$0xff] %v20
  %s24 = scalar_lea.vmem %s0, 24
  %v25 = vld [vmem:[%s24] sm:$0xff]
  %26 = xla_tuple %v25
  %27 = xla_tuple %26
  %v28 = vxor.u32 %v25, 2147483648
  %29 = xla_tuple %v28
  %s30 = scalar_lea.vmem %s1, 24
  %31 = vst [vmem:[%s30] sm:$0xff] %v28

// kernel: neg.11
$region0: #{neg.11}
  #allocation0 [shape = 's32[1]{0}', space=sflag, size = 0x4, scoped, tag = 'scoped memory for neg.11']
  %s0 = inlined_call_operand.vmem [shape: f32[2,8,16], index: 0, kind: input, shape index: {}]
  %s1 = inlined_call_operand.vmem [shape: f32[2,8,16], index: 1, kind: output, shape index: {}]
  %v2 = vld [vmem:[%s0] sm:$0xff]
  %3 = xla_tuple %v2
  %4 = xla_tuple %3
  %v5 = vxor.u32 %v2, 2147483648
  %6 = xla_tuple %v5
  %7 = vst [vmem:[%s1] sm:$0xff] %v5
  %s8 = scalar_lea.vmem %s0, 8
  %v9 = vld [vmem:[%s8] sm:$0xff]
  %10 = xla_tuple %v9
  %11 = xla_tuple %10
  %v12 = vxor.u32 %v9, 2147483648
  %13 = xla_tuple %v12
  %s14 = scalar_lea.vmem %s1, 8
  %15 = vst [vmem:[%s14] sm:$0xff] %v12

// kernel: pointnet_backbone_forward.7
$region0: #{pointnet_backbone_forward.7}
  #allocation0 [shape = 'u32[]', space=smem, size = 0x4, offset = 0x4, fixed_abs, tag = 'smem constant byte address 0x4 - core index']
  #allocation1 [shape = 'u32[144,128]{1,0:T(1,128)}', space=vmem, size = 0x12000, scoped, tag = 'internal scratch']
  %s0 = inlined_call_operand.vmem [shape: s32[2,128,1], index: 0, kind: input, shape index: {}]
  %s1 = inlined_call_operand.vmem [shape: f32[2,32,3], index: 1, kind: input, shape index: {}]
  %s2 = inlined_call_operand.vmem [shape: f32[2,32,32], index: 2, kind: input, shape index: {}]
  %s3 = inlined_call_operand.vmem [shape: bf16[3,64], index: 3, kind: input, shape index: {}]
  %s4 = inlined_call_operand.vmem [shape: bf16[32,64], index: 4, kind: input, shape index: {}]
  %s5 = inlined_call_operand.vmem [shape: bf16[32,64], index: 5, kind: input, shape index: {}]
  %s6 = inlined_call_operand.vmem [shape: f32[1,64], index: 6, kind: input, shape index: {}]
  %s7 = inlined_call_operand.vmem [shape: bf16[64,64], index: 7, kind: input, shape index: {}]
  %s8 = inlined_call_operand.vmem [shape: f32[1,64], index: 8, kind: input, shape index: {}]
  %s9 = inlined_call_operand.vmem [shape: bf16[64,64], index: 9, kind: input, shape index: {}]
  %s10 = inlined_call_operand.vmem [shape: f32[1,64], index: 10, kind: input, shape index: {}]
  %s11 = inlined_call_operand.vmem [shape: f32[2,16,64], index: 11, kind: output, shape index: {}]
  %s12 = sld [smem:[#allocation0]]
  $region77: #{pointnet_backbone_forward.7} parent=0
    _
  %s14 = ssub.s32 1, %s12
  %s15 = scalar_select 0, %s14, %s12
  loop: start=0, step=1, limit=4
  $region2: #{pointnet_backbone_forward.7} parent=0 // loop_pre_header
    _
  $region3: #{pointnet_backbone_forward.7} parent=0 // loop_header
    %s17 = sphi 0, %s21
    %p18 = scmp.ge.s32.totalorder %s17, 4
    %s27 = sphi 0, %s29
    %s30 = sphi 0, %s27
    %s31 = sphi 0, %s30
    %s47 = sphi 0, %s31
    %s53 = sphi 0, %s55
    %s56 = sphi 0, %s53
    %s57 = sphi 0, %s56
    %s73 = sphi 0, %s57
    %s79 = sphi 0, %s81
    %s82 = sphi 0, %s79
    %s83 = sphi 0, %s82
    %s99 = sphi 0, %s83
    %s103 = sphi 0, %s103
    %s105 = sphi 0, %s103
    %s106 = sphi 0, %s105
    %s120 = sphi 0, %s106
    %s124 = sphi 0, %s124
    %s126 = sphi 0, %s124
    %s127 = sphi 0, %s126
    %s141 = sphi 0, %s127
    %s145 = sphi 0, %s145
    %s147 = sphi 0, %s145
    %s148 = sphi 0, %s147
    %s162 = sphi 0, %s148
    %s166 = sphi 0, %s166
    %s168 = sphi 0, %s166
    %s169 = sphi 0, %s168
    %s183 = sphi 0, %s169
    %s187 = sphi 0, %s187
    %s189 = sphi 0, %s187
    %s190 = sphi 0, %s189
    %s204 = sphi 0, %s190
    %s208 = sphi 0, %s208
    %s210 = sphi 0, %s208
    %s211 = sphi 0, %s210
    %s225 = sphi 0, %s211
    %s229 = sphi 0, %s229
    %s231 = sphi 0, %s229
    %s232 = sphi 0, %s231
    %s246 = sphi 0, %s232
    %s250 = sphi 0, %s250
    %s252 = sphi 0, %s250
    %s253 = sphi 0, %s252
    %s267 = sphi 0, %s253
    %s273 = sphi 0, %s275
    %s276 = sphi 0, %s273
    %s277 = sphi 0, %s276
    %s293 = sphi 0, %s277
  $region4: #{pointnet_backbone_forward.7} parent=0 // loop_header_branch
    %20 = sbr.rel (%p18) target = $region8
  $region5: #{pointnet_backbone_forward.7} parent=0 // loop_body
    %s22 = ssub.s32 %s17, 1
    %s23 = ssub.s32 %s17, 2
    %s24 = sadd.s32 %s17, 1
    %s25 = ssub.s32 %s17, %s24
    %p26 = scmp.eq.s32.totalorder %s25, 0
    %s28 = sadd.s32 %s27, 1
    %s29 = scalar_select %p26, %s27, %s28
    %p32 = pneg %p26
    %p33 = scmp.eq.s32.totalorder %s17, 1
    %p34 = por %p32, %p33
    %p35 = scmp.ne.s32.totalorder %s27, %s30
    %p36 = scmp.eq.s32.totalorder %s17, 0
    %p37 = por %p35, %p36
    %p38 = scmp.ne.s32.totalorder %s27, %s30
    %p39 = scmp.eq.s32.totalorder %s22, 1
    %p40 = por %p38, %p39
    %p41 = scmp.ne.s32.totalorder %s30, %s31
    %p42 = scmp.eq.s32.totalorder %s22, 0
    %p43 = por %p41, %p42
    %p44 = scmp.ne.s32.totalorder %s30, %s31
    %p45 = scmp.eq.s32.totalorder %s23, 1
    %p46 = por %p44, %p45
    %p48 = scmp.ne.s32.totalorder %s31, %s47
    %p49 = scmp.eq.s32.totalorder %s23, 0
    %p50 = por %p48, %p49
    %s51 = ssub.s32 %s17, %s24
    %p52 = scmp.eq.s32.totalorder %s51, 0
    %s54 = sadd.s32 %s53, 1
    %s55 = scalar_select %p52, %s53, %s54
    %p58 = pneg %p52
    %p59 = scmp.eq.s32.totalorder %s17, 1
    %p60 = por %p58, %p59
    %p61 = scmp.ne.s32.totalorder %s53, %s56
    %p62 = scmp.eq.s32.totalorder %s17, 0
    %p63 = por %p61, %p62
    %p64 = scmp.ne.s32.totalorder %s53, %s56
    %p65 = scmp.eq.s32.totalorder %s22, 1
    %p66 = por %p64, %p65
    %p67 = scmp.ne.s32.totalorder %s56, %s57
    %p68 = scmp.eq.s32.totalorder %s22, 0
    %p69 = por %p67, %p68
    %p70 = scmp.ne.s32.totalorder %s56, %s57
    %p71 = scmp.eq.s32.totalorder %s23, 1
    %p72 = por %p70, %p71
    %p74 = scmp.ne.s32.totalorder %s57, %s73
    %p75 = scmp.eq.s32.totalorder %s23, 0
    %p76 = por %p74, %p75
    %s77 = ssub.s32 %s17, %s24
    %p78 = scmp.eq.s32.totalorder %s77, 0
    %s80 = sadd.s32 %s79, 1
    %s81 = scalar_select %p78, %s79, %s80
    %p84 = pneg %p78
    %p85 = scmp.eq.s32.totalorder %s17, 1
    %p86 = por %p84, %p85
    %p87 = scmp.ne.s32.totalorder %s79, %s82
    %p88 = scmp.eq.s32.totalorder %s17, 0
    %p89 = por %p87, %p88
    %p90 = scmp.ne.s32.totalorder %s79, %s82
    %p91 = scmp.eq.s32.totalorder %s22, 1
    %p92 = por %p90, %p91
    %p93 = scmp.ne.s32.totalorder %s82, %s83
    %p94 = scmp.eq.s32.totalorder %s22, 0
    %p95 = por %p93, %p94
    %p96 = scmp.ne.s32.totalorder %s82, %s83
    %p97 = scmp.eq.s32.totalorder %s23, 1
    %p98 = por %p96, %p97
    %p100 = scmp.ne.s32.totalorder %s83, %s99
    %p101 = scmp.eq.s32.totalorder %s23, 0
    %p102 = por %p100, %p101
    %s104 = sadd.s32 %s103, 1
    %p107 = scmp.eq.s32.totalorder %s17, 1
    %p108 = scmp.ne.s32.totalorder %s103, %s105
    %p109 = scmp.eq.s32.totalorder %s17, 0
    %p110 = por %p108, %p109
    %p111 = scmp.ne.s32.totalorder %s103, %s105
    %p112 = scmp.eq.s32.totalorder %s22, 1
    %p113 = por %p111, %p112
    %p114 = scmp.ne.s32.totalorder %s105, %s106
    %p115 = scmp.eq.s32.totalorder %s22, 0
    %p116 = por %p114, %p115
    %p117 = scmp.ne.s32.totalorder %s105, %s106
    %p118 = scmp.eq.s32.totalorder %s23, 1
    %p119 = por %p117, %p118
    %p121 = scmp.ne.s32.totalorder %s106, %s120
    %p122 = scmp.eq.s32.totalorder %s23, 0
    %p123 = por %p121, %p122
    %s125 = sadd.s32 %s124, 1
    %p128 = scmp.eq.s32.totalorder %s17, 1
    %p129 = scmp.ne.s32.totalorder %s124, %s126
    %p130 = scmp.eq.s32.totalorder %s17, 0
    %p131 = por %p129, %p130
    %p132 = scmp.ne.s32.totalorder %s124, %s126
    %p133 = scmp.eq.s32.totalorder %s22, 1
    %p134 = por %p132, %p133
    %p135 = scmp.ne.s32.totalorder %s126, %s127
    %p136 = scmp.eq.s32.totalorder %s22, 0
    %p137 = por %p135, %p136
    %p138 = scmp.ne.s32.totalorder %s126, %s127
    %p139 = scmp.eq.s32.totalorder %s23, 1
    %p140 = por %p138, %p139
    %p142 = scmp.ne.s32.totalorder %s127, %s141
    %p143 = scmp.eq.s32.totalorder %s23, 0
    %p144 = por %p142, %p143
    %s146 = sadd.s32 %s145, 1
    %p149 = scmp.eq.s32.totalorder %s17, 1
    %p150 = scmp.ne.s32.totalorder %s145, %s147
    %p151 = scmp.eq.s32.totalorder %s17, 0
    %p152 = por %p150, %p151
    %p153 = scmp.ne.s32.totalorder %s145, %s147
    %p154 = scmp.eq.s32.totalorder %s22, 1
    %p155 = por %p153, %p154
    %p156 = scmp.ne.s32.totalorder %s147, %s148
    %p157 = scmp.eq.s32.totalorder %s22, 0
    %p158 = por %p156, %p157
    %p159 = scmp.ne.s32.totalorder %s147, %s148
    %p160 = scmp.eq.s32.totalorder %s23, 1
    %p161 = por %p159, %p160
    %p163 = scmp.ne.s32.totalorder %s148, %s162
    %p164 = scmp.eq.s32.totalorder %s23, 0
    %p165 = por %p163, %p164
    %s167 = sadd.s32 %s166, 1
    %p170 = scmp.eq.s32.totalorder %s17, 1
    %p171 = scmp.ne.s32.totalorder %s166, %s168
    %p172 = scmp.eq.s32.totalorder %s17, 0
    %p173 = por %p171, %p172
    %p174 = scmp.ne.s32.totalorder %s166, %s168
    %p175 = scmp.eq.s32.totalorder %s22, 1
    %p176 = por %p174, %p175
    %p177 = scmp.ne.s32.totalorder %s168, %s169
    %p178 = scmp.eq.s32.totalorder %s22, 0
    %p179 = por %p177, %p178
    %p180 = scmp.ne.s32.totalorder %s168, %s169
    %p181 = scmp.eq.s32.totalorder %s23, 1
    %p182 = por %p180, %p181
    %p184 = scmp.ne.s32.totalorder %s169, %s183
    %p185 = scmp.eq.s32.totalorder %s23, 0
    %p186 = por %p184, %p185
    %s188 = sadd.s32 %s187, 1
    %p191 = scmp.eq.s32.totalorder %s17, 1
    %p192 = scmp.ne.s32.totalorder %s187, %s189
    %p193 = scmp.eq.s32.totalorder %s17, 0
    %p194 = por %p192, %p193
    %p195 = scmp.ne.s32.totalorder %s187, %s189
    %p196 = scmp.eq.s32.totalorder %s22, 1
    %p197 = por %p195, %p196
    %p198 = scmp.ne.s32.totalorder %s189, %s190
    %p199 = scmp.eq.s32.totalorder %s22, 0
    %p200 = por %p198, %p199
    %p201 = scmp.ne.s32.totalorder %s189, %s190
    %p202 = scmp.eq.s32.totalorder %s23, 1
    %p203 = por %p201, %p202
    %p205 = scmp.ne.s32.totalorder %s190, %s204
    %p206 = scmp.eq.s32.totalorder %s23, 0
    %p207 = por %p205, %p206
    %s209 = sadd.s32 %s208, 1
    %p212 = scmp.eq.s32.totalorder %s17, 1
    %p213 = scmp.ne.s32.totalorder %s208, %s210
    %p214 = scmp.eq.s32.totalorder %s17, 0
    %p215 = por %p213, %p214
    %p216 = scmp.ne.s32.totalorder %s208, %s210
    %p217 = scmp.eq.s32.totalorder %s22, 1
    %p218 = por %p216, %p217
    %p219 = scmp.ne.s32.totalorder %s210, %s211
    %p220 = scmp.eq.s32.totalorder %s22, 0
    %p221 = por %p219, %p220
    %p222 = scmp.ne.s32.totalorder %s210, %s211
    %p223 = scmp.eq.s32.totalorder %s23, 1
    %p224 = por %p222, %p223
    %p226 = scmp.ne.s32.totalorder %s211, %s225
    %p227 = scmp.eq.s32.totalorder %s23, 0
    %p228 = por %p226, %p227
    %s230 = sadd.s32 %s229, 1
    %p233 = scmp.eq.s32.totalorder %s17, 1
    %p234 = scmp.ne.s32.totalorder %s229, %s231
    %p235 = scmp.eq.s32.totalorder %s17, 0
    %p236 = por %p234, %p235
    %p237 = scmp.ne.s32.totalorder %s229, %s231
    %p238 = scmp.eq.s32.totalorder %s22, 1
    %p239 = por %p237, %p238
    %p240 = scmp.ne.s32.totalorder %s231, %s232
    %p241 = scmp.eq.s32.totalorder %s22, 0
    %p242 = por %p240, %p241
    %p243 = scmp.ne.s32.totalorder %s231, %s232
    %p244 = scmp.eq.s32.totalorder %s23, 1
    %p245 = por %p243, %p244
    %p247 = scmp.ne.s32.totalorder %s232, %s246
    %p248 = scmp.eq.s32.totalorder %s23, 0
    %p249 = por %p247, %p248
    %s251 = sadd.s32 %s250, 1
    %p254 = scmp.eq.s32.totalorder %s17, 1
    %p255 = scmp.ne.s32.totalorder %s250, %s252
    %p256 = scmp.eq.s32.totalorder %s17, 0
    %p257 = por %p255, %p256
    %p258 = scmp.ne.s32.totalorder %s250, %s252
    %p259 = scmp.eq.s32.totalorder %s22, 1
    %p260 = por %p258, %p259
    %p261 = scmp.ne.s32.totalorder %s252, %s253
    %p262 = scmp.eq.s32.totalorder %s22, 0
    %p263 = por %p261, %p262
    %p264 = scmp.ne.s32.totalorder %s252, %s253
    %p265 = scmp.eq.s32.totalorder %s23, 1
    %p266 = por %p264, %p265
    %p268 = scmp.ne.s32.totalorder %s253, %s267
    %p269 = scmp.eq.s32.totalorder %s23, 0
    %p270 = por %p268, %p269
    %s271 = ssub.s32 %s17, %s24
    %p272 = scmp.eq.s32.totalorder %s271, 0
    %s274 = sadd.s32 %s273, 1
    %s275 = scalar_select %p272, %s273, %s274
    %p278 = pneg %p272
    %p279 = scmp.eq.s32.totalorder %s17, 1
    %p280 = por %p278, %p279
    %p281 = scmp.ne.s32.totalorder %s273, %s276
    %p282 = scmp.eq.s32.totalorder %s17, 0
    %p283 = por %p281, %p282
    %p284 = scmp.ne.s32.totalorder %s273, %s276
    %p285 = scmp.eq.s32.totalorder %s22, 1
    %p286 = por %p284, %p285
    %p287 = scmp.ne.s32.totalorder %s276, %s277
    %p288 = scmp.eq.s32.totalorder %s22, 0
    %p289 = por %p287, %p288
    %p290 = scmp.ne.s32.totalorder %s276, %s277
    %p291 = scmp.eq.s32.totalorder %s23, 1
    %p292 = por %p290, %p291
    %p294 = scmp.ne.s32.totalorder %s277, %s293
    %p295 = scmp.eq.s32.totalorder %s23, 0
    %p296 = por %p294, %p295
    %p297 = scmp.le.s32.totalorder 1, %s17
    %p298 = scmp.lt.s32.totalorder %s17, 3
    %p299 = pnand %p297, %p298
    %p300 = pneg %p299
    // Predicated region
    $region9: #{pointnet_backbone_forward.7} parent=5 // pred_check
      _
    $region10: #{pointnet_backbone_forward.7} parent=5 // pred_check_branch
      %302 = sbr.rel (%p299) target = $region12
    $region11: #{pointnet_backbone_forward.7} parent=5 // pred_region
      %s303 = ssub.s32 %s17, 1
      // Predicated region
      $region13: #{pointnet_backbone_forward.7} parent=11 // pred_check
        %p304 = pneg %p116
      $region14: #{pointnet_backbone_forward.7} parent=11 // pred_check_branch
        %306 = sbr.rel (%p304) target = $region16
      $region15: #{pointnet_backbone_forward.7} parent=11 // pred_region
        _
      $region16: #{pointnet_backbone_forward.7} parent=11 // pred_fallthru
        _
      // Predicated region
      $region17: #{pointnet_backbone_forward.7} parent=11 // pred_check
        %p307 = pneg %p137
      $region18: #{pointnet_backbone_forward.7} parent=11 // pred_check_branch
        %309 = sbr.rel (%p307) target = $region20
      $region19: #{pointnet_backbone_forward.7} parent=11 // pred_region
        _
      $region20: #{pointnet_backbone_forward.7} parent=11 // pred_fallthru
        _
      // Predicated region
      $region21: #{pointnet_backbone_forward.7} parent=11 // pred_check
        %p310 = pneg %p158
      $region22: #{pointnet_backbone_forward.7} parent=11 // pred_check_branch
        %312 = sbr.rel (%p310) target = $region24
      $region23: #{pointnet_backbone_forward.7} parent=11 // pred_region
        _
      $region24: #{pointnet_backbone_forward.7} parent=11 // pred_fallthru
        _
      // Predicated region
      $region25: #{pointnet_backbone_forward.7} parent=11 // pred_check
        %p313 = pneg %p179
      $region26: #{pointnet_backbone_forward.7} parent=11 // pred_check_branch
        %315 = sbr.rel (%p313) target = $region28
      $region27: #{pointnet_backbone_forward.7} parent=11 // pred_region
        _
      $region28: #{pointnet_backbone_forward.7} parent=11 // pred_fallthru
        _
      // Predicated region
      $region29: #{pointnet_backbone_forward.7} parent=11 // pred_check
        %p316 = pneg %p200
      $region30: #{pointnet_backbone_forward.7} parent=11 // pred_check_branch
        %318 = sbr.rel (%p316) target = $region32
      $region31: #{pointnet_backbone_forward.7} parent=11 // pred_region
        _
      $region32: #{pointnet_backbone_forward.7} parent=11 // pred_fallthru
        _
      // Predicated region
      $region33: #{pointnet_backbone_forward.7} parent=11 // pred_check
        %p319 = pneg %p221
      $region34: #{pointnet_backbone_forward.7} parent=11 // pred_check_branch
        %321 = sbr.rel (%p319) target = $region36
      $region35: #{pointnet_backbone_forward.7} parent=11 // pred_region
        _
      $region36: #{pointnet_backbone_forward.7} parent=11 // pred_fallthru
        _
      // Predicated region
      $region37: #{pointnet_backbone_forward.7} parent=11 // pred_check
        %p322 = pneg %p242
      $region38: #{pointnet_backbone_forward.7} parent=11 // pred_check_branch
        %324 = sbr.rel (%p322) target = $region40
      $region39: #{pointnet_backbone_forward.7} parent=11 // pred_region
        _
      $region40: #{pointnet_backbone_forward.7} parent=11 // pred_fallthru
        _
      // Predicated region
      $region41: #{pointnet_backbone_forward.7} parent=11 // pred_check
        %p325 = pneg %p263
      $region42: #{pointnet_backbone_forward.7} parent=11 // pred_check_branch
        %327 = sbr.rel (%p325) target = $region44
      $region43: #{pointnet_backbone_forward.7} parent=11 // pred_region
        _
      $region44: #{pointnet_backbone_forward.7} parent=11 // pred_fallthru
        _
    $region12: #{pointnet_backbone_forward.7} parent=5 // pred_fallthru
      _
    %p328 = scmp.lt.s32.totalorder %s17, 2
    // Predicated region
    $region45: #{pointnet_backbone_forward.7} parent=5 // pred_check
      %p329 = pneg %p328
    $region46: #{pointnet_backbone_forward.7} parent=5 // pred_check_branch
      %331 = sbr.rel (%p329) target = $region48
    $region47: #{pointnet_backbone_forward.7} parent=5 // pred_region
      // Predicated region
      $region49: #{pointnet_backbone_forward.7} parent=47 // pred_check
        %p332 = pneg %p37
      $region50: #{pointnet_backbone_forward.7} parent=47 // pred_check_branch
        %334 = sbr.rel (%p332) target = $region52
      $region51: #{pointnet_backbone_forward.7} parent=47 // pred_region
        %p335 = scmp.lt.s32.totalorder %s17, 1
        %s336 = scalar_select %p335, %s17, 1
        %s337 = smul.addr %s336, 16
        %s338 = smul.addr %s337, 8
        %s339 = scalar_lea.vmem %s0, %s338
      $region52: #{pointnet_backbone_forward.7} parent=47 // pred_fallthru
        _
      // Predicated region
      $region53: #{pointnet_backbone_forward.7} parent=47 // pred_check
        %p340 = pneg %p63
      $region54: #{pointnet_backbone_forward.7} parent=47 // pred_check_branch
        %342 = sbr.rel (%p340) target = $region56
      $region55: #{pointnet_backbone_forward.7} parent=47 // pred_region
        %p343 = scmp.lt.s32.totalorder %s17, 1
        %s344 = scalar_select %p343, %s17, 1
        %s345 = smul.addr %s344, 4
        %s346 = smul.addr %s345, 8
        %s347 = scalar_lea.vmem %s1, %s346
      $region56: #{pointnet_backbone_forward.7} parent=47 // pred_fallthru
        _
      // Predicated region
      $region57: #{pointnet_backbone_forward.7} parent=47 // pred_check
        %p348 = pneg %p89
      $region58: #{pointnet_backbone_forward.7} parent=47 // pred_check_branch
        %350 = sbr.rel (%p348) target = $region60
      $region59: #{pointnet_backbone_forward.7} parent=47 // pred_region
        %p351 = scmp.lt.s32.totalorder %s17, 1
        %s352 = scalar_select %p351, %s17, 1
        %s353 = smul.addr %s352, 4
        %s354 = smul.addr %s353, 8
        %s355 = scalar_lea.vmem %s2, %s354
      $region60: #{pointnet_backbone_forward.7} parent=47 // pred_fallthru
        _
    $region48: #{pointnet_backbone_forward.7} parent=5 // pred_fallthru
      _
    %p356 = scmp.le.s32.totalorder 1, %s17
    %p357 = scmp.lt.s32.totalorder %s17, 3
    %p358 = pnand %p356, %p357
    %p359 = pneg %p358
    // Predicated region
    $region61: #{pointnet_backbone_forward.7} parent=5 // pred_check
      _
    $region62: #{pointnet_backbone_forward.7} parent=5 // pred_check_branch
      %361 = sbr.rel (%p358) target = $region64
    $region63: #{pointnet_backbone_forward.7} parent=5 // pred_region
      %s362 = ssub.s32 %s17, 1
      %p363 = scmp.lt.s32.totalorder %s22, 1
      %s364 = scalar_select %p363, %s22, 1
      %s365 = smul.addr %s364, 16
      %s366 = smul.addr %s365, 8
      %s367 = scalar_lea.vmem %s0, %s366
      %p368 = pneg %p43
      %p369 = pneg %p40
      %p370 = scmp.lt.s32.totalorder %s22, 1
      %s371 = scalar_select %p370, %s22, 1
      %s372 = smul.addr %s371, 4
      %s373 = smul.addr %s372, 8
      %s374 = scalar_lea.vmem %s1, %s373
      %p375 = pneg %p69
      %p376 = pneg %p66
      %p377 = scmp.lt.s32.totalorder %s22, 1
      %s378 = scalar_select %p377, %s22, 1
      %s379 = smul.addr %s378, 4
      %s380 = smul.addr %s379, 8
      %s381 = scalar_lea.vmem %s2, %s380
      %p382 = pneg %p95
      %p383 = pneg %p92
      %p384 = pneg %p116
      %p385 = pneg %p113
      %p386 = pneg %p137
      %p387 = pneg %p134
      %p388 = pneg %p158
      %p389 = pneg %p155
      %p390 = pneg %p179
      %p391 = pneg %p176
      %p392 = pneg %p200
      %p393 = pneg %p197
      %p394 = pneg %p221
      %p395 = pneg %p218
      %p396 = pneg %p242
      %p397 = pneg %p239
      %p398 = pneg %p263
      %p399 = pneg %p260
      %p400 = pneg %p289
      %p401 = pneg %p286
      %p402 = scmp.lt.s32.totalorder %s22, 1
      %s403 = scalar_select %p402, %s22, 1
      %s404 = smul.addr %s403, 2
      %s405 = smul.addr %s404, 8
      %s406 = scalar_lea.vmem %s11, %s405
      %p407 = scmp.lt.s32.totalorder %s22, 1
      %s408 = scalar_select %p407, %s22, 1
      %s409 = smul.addr %s408, 16
      %s410 = smul.addr %s409, 8
      %s411 = scalar_lea.vmem %s0, %s410
      %p412 = scmp.lt.s32.totalorder %s22, 1
      %s413 = scalar_select %p412, %s22, 1
      %s414 = smul.addr %s413, 4
      %s415 = smul.addr %s414, 8
      %s416 = scalar_lea.vmem %s1, %s415
      %p417 = scmp.lt.s32.totalorder %s22, 1
      %s418 = scalar_select %p417, %s22, 1
      %s419 = smul.addr %s418, 4
      %s420 = smul.addr %s419, 8
      %s421 = scalar_lea.vmem %s2, %s420
      %p422 = scmp.lt.s32.totalorder %s22, 1
      %s423 = scalar_select %p422, %s22, 1
      %s424 = smul.addr %s423, 2
      %s425 = smul.addr %s424, 8
      %s426 = scalar_lea.vmem %s11, %s425
      %v428 = vld [vmem:[%s411] sm:$0xff]
      %v429 = vld [vmem:[%s411 + $0x8] sm:$0xff]
      %v430 = vld [vmem:[%s411 + $0x10] sm:$0xff]
      %v431 = vld [vmem:[%s411 + $0x18] sm:$0xff]
      %v432 = vld [vmem:[%s411 + $0x20] sm:$0xff]
      %v433 = vld [vmem:[%s411 + $0x28] sm:$0xff]
      %v434 = vld [vmem:[%s411 + $0x30] sm:$0xff]
      %v435 = vld [vmem:[%s411 + $0x38] sm:$0xff]
      %v436 = vld [vmem:[%s411 + $0x40] sm:$0xff]
      %v437 = vld [vmem:[%s411 + $0x48] sm:$0xff]
      %v438 = vld [vmem:[%s411 + $0x50] sm:$0xff]
      %v439 = vld [vmem:[%s411 + $0x58] sm:$0xff]
      %v440 = vld [vmem:[%s411 + $0x60] sm:$0xff]
      %v441 = vld [vmem:[%s411 + $0x68] sm:$0xff]
      %v442 = vld [vmem:[%s411 + $0x70] sm:$0xff]
      %v443 = vld [vmem:[%s411 + $0x78] sm:$0xff]
      %v444 = vld [vmem:[%s416] sm:$0xff]
      %v445 = vld [vmem:[%s416 + $0x8] sm:$0xff]
      %v446 = vld [vmem:[%s416 + $0x10] sm:$0xff]
      %v447 = vld [vmem:[%s416 + $0x18] sm:$0xff]
      %v448 = vlaneseq
      %v449 = vand.u32 %v448, 127
      %450 = vset.pattern.permute.xlu0 0
      %451 = vperm.xlu0 %450, %v428
      %v452 = vpop.permute.xlu0 %451
      %453 = vset.pattern.permute.xlu0 0
      %454 = vperm.xlu0 %453, %v429
      %v455 = vpop.permute.xlu0 %454
      %456 = vset.pattern.permute.xlu0 0
      %457 = vperm.xlu0 %456, %v430
      %v458 = vpop.permute.xlu0 %457
      %459 = vset.pattern.permute.xlu0 0
      %460 = vperm.xlu0 %459, %v431
      %v461 = vpop.permute.xlu0 %460
      %462 = vset.pattern.permute.xlu0 0
      %463 = vperm.xlu0 %462, %v432
      %v464 = vpop.permute.xlu0 %463
      %465 = vset.pattern.permute.xlu0 0
      %466 = vperm.xlu0 %465, %v433
      %v467 = vpop.permute.xlu0 %466
      %468 = vset.pattern.permute.xlu0 0
      %469 = vperm.xlu0 %468, %v434
      %v470 = vpop.permute.xlu0 %469
      %471 = vset.pattern.permute.xlu0 0
      %472 = vperm.xlu0 %471, %v435
      %v473 = vpop.permute.xlu0 %472
      %474 = vset.pattern.permute.xlu0 0
      %475 = vperm.xlu0 %474, %v436
      %v476 = vpop.permute.xlu0 %475
      %477 = vset.pattern.permute.xlu0 0
      %478 = vperm.xlu0 %477, %v437
      %v479 = vpop.permute.xlu0 %478
      %480 = vset.pattern.permute.xlu0 0
      %481 = vperm.xlu0 %480, %v438
      %v482 = vpop.permute.xlu0 %481
      %483 = vset.pattern.permute.xlu0 0
      %484 = vperm.xlu0 %483, %v439
      %v485 = vpop.permute.xlu0 %484
      %486 = vset.pattern.permute.xlu0 0
      %487 = vperm.xlu0 %486, %v440
      %v488 = vpop.permute.xlu0 %487
      %489 = vset.pattern.permute.xlu0 0
      %490 = vperm.xlu0 %489, %v441
      %v491 = vpop.permute.xlu0 %490
      %492 = vset.pattern.permute.xlu0 0
      %493 = vperm.xlu0 %492, %v442
      %v494 = vpop.permute.xlu0 %493
      %495 = vset.pattern.permute.xlu0 0
      %496 = vperm.xlu0 %495, %v443
      %v497 = vpop.permute.xlu0 %496
      %vm498 = vcmp.eq.s32.totalorder %v452, %v449
      %vm499 = vcmp.eq.s32.totalorder %v455, %v449
      %vm500 = vcmp.eq.s32.totalorder %v458, %v449
      %vm501 = vcmp.eq.s32.totalorder %v461, %v449
      %vm502 = vcmp.eq.s32.totalorder %v464, %v449
      %vm503 = vcmp.eq.s32.totalorder %v467, %v449
      %vm504 = vcmp.eq.s32.totalorder %v470, %v449
      %vm505 = vcmp.eq.s32.totalorder %v473, %v449
      %vm506 = vcmp.eq.s32.totalorder %v476, %v449
      %vm507 = vcmp.eq.s32.totalorder %v479, %v449
      %vm508 = vcmp.eq.s32.totalorder %v482, %v449
      %vm509 = vcmp.eq.s32.totalorder %v485, %v449
      %vm510 = vcmp.eq.s32.totalorder %v488, %v449
      %vm511 = vcmp.eq.s32.totalorder %v491, %v449
      %vm512 = vcmp.eq.s32.totalorder %v494, %v449
      %vm513 = vcmp.eq.s32.totalorder %v497, %v449
      %v514 = vsel %vm498, 1, 0
      %v515 = vsel %vm499, 1, 0
      %v516 = vsel %vm500, 1, 0
      %v517 = vsel %vm501, 1, 0
      %v518 = vsel %vm502, 1, 0
      %v519 = vsel %vm503, 1, 0
      %v520 = vsel %vm504, 1, 0
      %v521 = vsel %vm505, 1, 0
      %v522 = vsel %vm506, 1, 0
      %v523 = vsel %vm507, 1, 0
      %v524 = vsel %vm508, 1, 0
      %v525 = vsel %vm509, 1, 0
      %v526 = vsel %vm510, 1, 0
      %v527 = vsel %vm511, 1, 0
      %v528 = vsel %vm512, 1, 0
      %v529 = vsel %vm513, 1, 0
      %v530 = vcvt.s32.f32 %v514
      %v531 = vcvt.s32.f32 %v515
      %v532 = vcvt.s32.f32 %v516
      %v533 = vcvt.s32.f32 %v517
      %v534 = vcvt.s32.f32 %v518
      %v535 = vcvt.s32.f32 %v519
      %v536 = vcvt.s32.f32 %v520
      %v537 = vcvt.s32.f32 %v521
      %v538 = vcvt.s32.f32 %v522
      %v539 = vcvt.s32.f32 %v523
      %v540 = vcvt.s32.f32 %v524
      %v541 = vcvt.s32.f32 %v525
      %v542 = vcvt.s32.f32 %v526
      %v543 = vcvt.s32.f32 %v527
      %v544 = vcvt.s32.f32 %v528
      %v545 = vcvt.s32.f32 %v529
      %v546 = vpack.c.bf16 %v445, %v444
      %v547 = vpack.c.bf16 %v447, %v446
      %v548 = vld [vmem:[%s3] sm:$0x3]
      %vm549 = vcmask 23552
      %v551 = vsel %vm549, %v546, 0
      %v554 = vsel %vm549, %v547, 0
      %vm556 = vcmask 1040384
      %vm557 = vcmask 1041408
      %v558 = vsel %vm556, 4294967295, 65535
      %v559 = vsel %vm557, %v558, 0
      %v561 = vand.u32 %v548, %v559
      %563 = vmatprep.subr.bf16.mxu0 0
      %564 = vmatpush1.bf16.msra.mxu0 %v561
      %565 = vmatprep.subr.bf16.mxu0 0
      %566 = vmatpush1.bf16.msra.mxu0 0
      %567 = vmatprep.subr.bf16.mxu0 0
      %568 = vmatpush1.bf16.msra.mxu0 0
      %569 = vmatprep.subr.bf16.mxu0 0
      %570 = vmatpush1.bf16.msra.mxu0 0
      %571 = vmatprep.subr.bf16.mxu0 0
      %572 = vmatpush1.bf16.msra.mxu0 0
      %573 = vmatprep.subr.bf16.mxu0 0
      %574 = vmatpush1.bf16.msra.mxu0 0
      %575 = vmatprep.subr.bf16.mxu0 0
      %576 = vmatpush1.bf16.msra.mxu0 0
      %577 = vmatprep.subr.bf16.mxu0 0
      %578 = vmatpush1.bf16.msra.mxu0 0
      %579 = vmatprep.subr.bf16.mxu0 0
      %580 = vmatpush1.bf16.msra.mxu0 0
      %581 = vmatprep.subr.bf16.mxu0 0
      %582 = vmatpush1.bf16.msra.mxu0 0
      %583 = vmatprep.subr.bf16.mxu0 0
      %584 = vmatpush1.bf16.msra.mxu0 0
      %585 = vmatprep.subr.bf16.mxu0 0
      %586 = vmatpush1.bf16.msra.mxu0 0
      %587 = vmatprep.subr.bf16.mxu0 0
      %588 = vmatpush1.bf16.msra.mxu0 0
      %589 = vmatprep.subr.bf16.mxu0 0
      %590 = vmatpush1.bf16.msra.mxu0 0
      %591 = vmatprep.subr.bf16.mxu0 0
      %592 = vmatpush1.bf16.msra.mxu0 0
      %593 = vmatprep.subr.bf16.mxu0 0
      %594 = vmatpush1.bf16.msra.mxu0 0
      %595 = vmatprep.mubr.bf16.mxu0 0
      %596 = vmatmul.mubr.bf16.gmra.mrb[0].mxu0 %v551
      %v597 = vpop.f32.mrb[0].mxu0
      %v598 = vadd.f32 0.0, %v597
      %v599 = vpop.f32.mrb[0].mxu0
      %v600 = vpop.f32.mrb[0].mxu0
      %v601 = vadd.f32 0.0, %v600
      %v602 = vpop.f32.mrb[0].mxu0
      %603 = vmatprep.mubr.bf16.mxu0 0
      %604 = vmatmul.mubr.bf16.gmra.mrb[0].mxu0 %v554
      %v605 = vpop.f32.mrb[0].mxu0
      %v606 = vadd.f32 0.0, %v605
      %v607 = vpop.f32.mrb[0].mxu0
      %v608 = vpop.f32.mrb[0].mxu0
      %v609 = vadd.f32 0.0, %v608
      %v610 = vpop.f32.mrb[0].mxu0
      %611 = vdwg.mxu0
      %vm612 = vcmask 261120
      %v614 = vsel %vm612, %v530, 0
      %v617 = vsel %vm612, %v531, 0
      %v620 = vsel %vm612, %v532, 0
      %v623 = vsel %vm612, %v533, 0
      %v626 = vsel %vm612, %v534, 0
      %v629 = vsel %vm612, %v535, 0
      %v632 = vsel %vm612, %v536, 0
      %v635 = vsel %vm612, %v537, 0
      %v638 = vsel %vm612, %v538, 0
      %v641 = vsel %vm612, %v539, 0
      %v644 = vsel %vm612, %v540, 0
      %v647 = vsel %vm612, %v541, 0
      %v650 = vsel %vm612, %v542, 0
      %v653 = vsel %vm612, %v543, 0
      %v656 = vsel %vm612, %v544, 0
      %v659 = vsel %vm612, %v545, 0
      %661 = vmatprep.subr.mxu0 0.0
      %662 = vmatpush1.msra.mxu0 %v598
      %663 = vmatprep.subr.mxu0 0.0
      %664 = vmatpush1.msra.mxu0 %v601
      %665 = vmatprep.subr.mxu0 0.0
      %666 = vmatpush1.msra.mxu0 %v606
      %667 = vmatprep.subr.mxu0 0.0
      %668 = vmatpush1.msra.mxu0 %v609
      %669 = vmatprep.subr.mxu0 0.0
      %670 = vmatpush1.msra.mxu0 0.0
      %671 = vmatprep.subr.mxu0 0.0
      %672 = vmatpush1.msra.mxu0 0.0
      %673 = vmatprep.subr.mxu0 0.0
      %674 = vmatpush1.msra.mxu0 0.0
      %675 = vmatprep.subr.mxu0 0.0
      %676 = vmatpush1.msra.mxu0 0.0
      %677 = vmatprep.subr.mxu0 0.0
      %678 = vmatpush1.msra.mxu0 0.0
      %679 = vmatprep.subr.mxu0 0.0
      %680 = vmatpush1.msra.mxu0 0.0
      %681 = vmatprep.subr.mxu0 0.0
      %682 = vmatpush1.msra.mxu0 0.0
      %683 = vmatprep.subr.mxu0 0.0
      %684 = vmatpush1.msra.mxu0 0.0
      %685 = vmatprep.subr.mxu0 0.0
      %686 = vmatpush1.msra.mxu0 0.0
      %687 = vmatprep.subr.mxu0 0.0
      %688 = vmatpush1.msra.mxu0 0.0
      %689 = vmatprep.subr.mxu0 0.0
      %690 = vmatpush1.msra.mxu0 0.0
      %691 = vmatprep.subr.mxu0 0.0
      %692 = vmatpush1.msra.mxu0 0.0
      %693 = vmatprep.subr.mxu0 0.0
      %694 = vmatpush1.msra.mxu0 0.0
      %695 = vmatprep.subr.mxu0 0.0
      %696 = vmatpush1.msra.mxu0 0.0
      %697 = vmatprep.subr.mxu0 0.0
      %698 = vmatpush1.msra.mxu0 0.0
      %699 = vmatprep.subr.mxu0 0.0
      %700 = vmatpush1.msra.mxu0 0.0
      %701 = vmatprep.subr.mxu0 0.0
      %702 = vmatpush1.msra.mxu0 0.0
      %703 = vmatprep.subr.mxu0 0.0
      %704 = vmatpush1.msra.mxu0 0.0
      %705 = vmatprep.subr.mxu0 0.0
      %706 = vmatpush1.msra.mxu0 0.0
      %707 = vmatprep.subr.mxu0 0.0
      %708 = vmatpush1.msra.mxu0 0.0
      %709 = vmatprep.subr.mxu0 0.0
      %710 = vmatpush1.msra.mxu0 0.0
      %711 = vmatprep.subr.mxu0 0.0
      %712 = vmatpush1.msra.mxu0 0.0
      %713 = vmatprep.subr.mxu0 0.0
      %714 = vmatpush1.msra.mxu0 0.0
      %715 = vmatprep.subr.mxu0 0.0
      %716 = vmatpush1.msra.mxu0 0.0
      %717 = vmatprep.subr.mxu0 0.0
      %718 = vmatpush1.msra.mxu0 0.0
      %719 = vmatprep.subr.mxu0 0.0
      %720 = vmatpush1.msra.mxu0 0.0
      %721 = vmatprep.subr.mxu0 0.0
      %722 = vmatpush1.msra.mxu0 0.0
      %723 = vmatprep.subr.mxu0 0.0
      %724 = vmatpush1.msra.mxu0 0.0
      %725 = vmatprep.mubr.f32.mxu0 0.0
      %726 = vmatmul.mubr.f32.gmra.mrb[0].mxu0 %v614
      %v727 = vpop.f32.mrb[0].mxu0
      %v728 = vadd.f32 0.0, %v727
      %v729 = vpop.f32.mrb[0].mxu0
      %730 = vmatprep.mubr.f32.mxu0 0.0
      %731 = vmatmul.mubr.f32.gmra.mrb[0].mxu0 %v617
      %v732 = vpop.f32.mrb[0].mxu0
      %v733 = vadd.f32 0.0, %v732
      %v734 = vpop.f32.mrb[0].mxu0
      %735 = vmatprep.mubr.f32.mxu0 0.0
      %736 = vmatmul.mubr.f32.gmra.mrb[0].mxu0 %v620
      %v737 = vpop.f32.mrb[0].mxu0
      %v738 = vadd.f32 0.0, %v737
      %v739 = vpop.f32.mrb[0].mxu0
      %740 = vmatprep.mubr.f32.mxu0 0.0
      %741 = vmatmul.mubr.f32.gmra.mrb[0].mxu0 %v623
      %v742 = vpop.f32.mrb[0].mxu0
      %v743 = vadd.f32 0.0, %v742
      %v744 = vpop.f32.mrb[0].mxu0
      %745 = vmatprep.mubr.f32.mxu0 0.0
      %746 = vmatmul.mubr.f32.gmra.mrb[0].mxu0 %v626
      %v747 = vpop.f32.mrb[0].mxu0
      %v748 = vadd.f32 0.0, %v747
      %v749 = vpop.f32.mrb[0].mxu0
      %750 = vmatprep.mubr.f32.mxu0 0.0
      %751 = vmatmul.mubr.f32.gmra.mrb[0].mxu0 %v629
      %v752 = vpop.f32.mrb[0].mxu0
      %v753 = vadd.f32 0.0, %v752
      %v754 = vpop.f32.mrb[0].mxu0
      %755 = vmatprep.mubr.f32.mxu0 0.0
      %756 = vmatmul.mubr.f32.gmra.mrb[0].mxu0 %v632
      %v757 = vpop.f32.mrb[0].mxu0
      %v758 = vadd.f32 0.0, %v757
      %v759 = vpop.f32.mrb[0].mxu0
      %760 = vmatprep.mubr.f32.mxu0 0.0
      %761 = vmatmul.mubr.f32.gmra.mrb[0].mxu0 %v635
      %v762 = vpop.f32.mrb[0].mxu0
      %v763 = vadd.f32 0.0, %v762
      %v764 = vpop.f32.mrb[0].mxu0
      %765 = vmatprep.mubr.f32.mxu0 0.0
      %766 = vmatmul.mubr.f32.gmra.mrb[0].mxu0 %v638
      %v767 = vpop.f32.mrb[0].mxu0
      %v768 = vadd.f32 0.0, %v767
      %v769 = vpop.f32.mrb[0].mxu0
      %770 = vmatprep.mubr.f32.mxu0 0.0
      %771 = vmatmul.mubr.f32.gmra.mrb[0].mxu0 %v641
      %v772 = vpop.f32.mrb[0].mxu0
      %v773 = vadd.f32 0.0, %v772
      %v774 = vpop.f32.mrb[0].mxu0
      %775 = vmatprep.mubr.f32.mxu0 0.0
      %776 = vmatmul.mubr.f32.gmra.mrb[0].mxu0 %v644
      %v777 = vpop.f32.mrb[0].mxu0
      %v778 = vadd.f32 0.0, %v777
      %v779 = vpop.f32.mrb[0].mxu0
      %780 = vmatprep.mubr.f32.mxu0 0.0
      %781 = vmatmul.mubr.f32.gmra.mrb[0].mxu0 %v647
      %v782 = vpop.f32.mrb[0].mxu0
      %v783 = vadd.f32 0.0, %v782
      %v784 = vpop.f32.mrb[0].mxu0
      %785 = vmatprep.mubr.f32.mxu0 0.0
      %786 = vmatmul.mubr.f32.gmra.mrb[0].mxu0 %v650
      %v787 = vpop.f32.mrb[0].mxu0
      %v788 = vadd.f32 0.0, %v787
      %v789 = vpop.f32.mrb[0].mxu0
      %790 = vmatprep.mubr.f32.mxu0 0.0
      %791 = vmatmul.mubr.f32.gmra.mrb[0].mxu0 %v653
      %v792 = vpop.f32.mrb[0].mxu0
      %v793 = vadd.f32 0.0, %v792
      %v794 = vpop.f32.mrb[0].mxu0
      %795 = vmatprep.mubr.f32.mxu0 0.0
      %796 = vmatmul.mubr.f32.gmra.mrb[0].mxu0 %v656
      %v797 = vpop.f32.mrb[0].mxu0
      %v798 = vadd.f32 0.0, %v797
      %v799 = vpop.f32.mrb[0].mxu0
      %800 = vmatprep.mubr.f32.mxu0 0.0
      %801 = vmatmul.mubr.f32.gmra.mrb[0].mxu0 %v659
      %v802 = vpop.f32.mrb[0].mxu0
      %v803 = vadd.f32 0.0, %v802
      %v804 = vpop.f32.mrb[0].mxu0
      %805 = vdwg.mxu0
      %v806 = vsub.f32 %v728, %v598
      %v807 = vsub.f32 %v733, %v601
      %v808 = vsub.f32 %v738, %v598
      %v809 = vsub.f32 %v743, %v601
      %v810 = vsub.f32 %v748, %v598
      %v811 = vsub.f32 %v753, %v601
      %v812 = vsub.f32 %v758, %v598
      %v813 = vsub.f32 %v763, %v601
      %v814 = vsub.f32 %v768, %v598
      %v815 = vsub.f32 %v773, %v601
      %v816 = vsub.f32 %v778, %v598
      %v817 = vsub.f32 %v783, %v601
      %v818 = vsub.f32 %v788, %v598
      %v819 = vsub.f32 %v793, %v601
      %v820 = vsub.f32 %v798, %v598
      %v821 = vsub.f32 %v803, %v601
      %v822 = vld [vmem:[%s421] sm:$0xff]
      %v823 = vld [vmem:[%s421 + $0x8] sm:$0xff]
      %v824 = vld [vmem:[%s421 + $0x10] sm:$0xff]
      %v825 = vld [vmem:[%s421 + $0x18] sm:$0xff]
      %826 = vmatprep.subr.mxu0 0.0
      %827 = vmatpush1.msra.mxu0 %v822
      %828 = vmatprep.subr.mxu0 0.0
      %829 = vmatpush1.msra.mxu0 %v823
      %830 = vmatprep.subr.mxu0 0.0
      %831 = vmatpush1.msra.mxu0 %v824
      %832 = vmatprep.subr.mxu0 0.0
      %833 = vmatpush1.msra.mxu0 %v825
      %834 = vmatprep.subr.mxu0 0.0
      %835 = vmatpush1.msra.mxu0 0.0
      %836 = vmatprep.subr.mxu0 0.0
      %837 = vmatpush1.msra.mxu0 0.0
      %838 = vmatprep.subr.mxu0 0.0
      %839 = vmatpush1.msra.mxu0 0.0
      %840 = vmatprep.subr.mxu0 0.0
      %841 = vmatpush1.msra.mxu0 0.0
      %842 = vmatprep.subr.mxu0 0.0
      %843 = vmatpush1.msra.mxu0 0.0
      %844 = vmatprep.subr.mxu0 0.0
      %845 = vmatpush1.msra.mxu0 0.0
      %846 = vmatprep.subr.mxu0 0.0
      %847 = vmatpush1.msra.mxu0 0.0
      %848 = vmatprep.subr.mxu0 0.0
      %849 = vmatpush1.msra.mxu0 0.0
      %850 = vmatprep.subr.mxu0 0.0
      %851 = vmatpush1.msra.mxu0 0.0
      %852 = vmatprep.subr.mxu0 0.0
      %853 = vmatpush1.msra.mxu0 0.0
      %854 = vmatprep.subr.mxu0 0.0
      %855 = vmatpush1.msra.mxu0 0.0
      %856 = vmatprep.subr.mxu0 0.0
      %857 = vmatpush1.msra.mxu0 0.0
      %858 = vmatprep.subr.mxu0 0.0
      %859 = vmatpush1.msra.mxu0 0.0
      %860 = vmatprep.subr.mxu0 0.0
      %861 = vmatpush1.msra.mxu0 0.0
      %862 = vmatprep.subr.mxu0 0.0
      %863 = vmatpush1.msra.mxu0 0.0
      %864 = vmatprep.subr.mxu0 0.0
      %865 = vmatpush1.msra.mxu0 0.0
      %866 = vmatprep.subr.mxu0 0.0
      %867 = vmatpush1.msra.mxu0 0.0
      %868 = vmatprep.subr.mxu0 0.0
      %869 = vmatpush1.msra.mxu0 0.0
      %870 = vmatprep.subr.mxu0 0.0
      %871 = vmatpush1.msra.mxu0 0.0
      %872 = vmatprep.subr.mxu0 0.0
      %873 = vmatpush1.msra.mxu0 0.0
      %874 = vmatprep.subr.mxu0 0.0
      %875 = vmatpush1.msra.mxu0 0.0
      %876 = vmatprep.subr.mxu0 0.0
      %877 = vmatpush1.msra.mxu0 0.0
      %878 = vmatprep.subr.mxu0 0.0
      %879 = vmatpush1.msra.mxu0 0.0
      %880 = vmatprep.subr.mxu0 0.0
      %881 = vmatpush1.msra.mxu0 0.0
      %882 = vmatprep.subr.mxu0 0.0
      %883 = vmatpush1.msra.mxu0 0.0
      %884 = vmatprep.subr.mxu0 0.0
      %885 = vmatpush1.msra.mxu0 0.0
      %886 = vmatprep.subr.mxu0 0.0
      %887 = vmatpush1.msra.mxu0 0.0
      %888 = vmatprep.subr.mxu0 0.0
      %889 = vmatpush1.msra.mxu0 0.0
      %890 = vmatprep.mubr.f32.mxu0 0.0
      %891 = vmatmul.mubr.f32.gmra.mrb[0].mxu0 %v614
      %v892 = vpop.f32.mrb[0].mxu0
      %v893 = vadd.f32 0.0, %v892
      %v894 = vpop.f32.mrb[0].mxu0
      %895 = vmatprep.mubr.f32.mxu0 0.0
      %896 = vmatmul.mubr.f32.gmra.mrb[0].mxu0 %v617
      %v897 = vpop.f32.mrb[0].mxu0
      %v898 = vadd.f32 0.0, %v897
      %v899 = vpop.f32.mrb[0].mxu0
      %900 = vmatprep.mubr.f32.mxu0 0.0
      %901 = vmatmul.mubr.f32.gmra.mrb[0].mxu0 %v620
      %v902 = vpop.f32.mrb[0].mxu0
      %v903 = vadd.f32 0.0, %v902
      %v904 = vpop.f32.mrb[0].mxu0
      %905 = vmatprep.mubr.f32.mxu0 0.0
      %906 = vmatmul.mubr.f32.gmra.mrb[0].mxu0 %v623
      %v907 = vpop.f32.mrb[0].mxu0
      %v908 = vadd.f32 0.0, %v907
      %v909 = vpop.f32.mrb[0].mxu0
      %910 = vmatprep.mubr.f32.mxu0 0.0
      %911 = vmatmul.mubr.f32.gmra.mrb[0].mxu0 %v626
      %v912 = vpop.f32.mrb[0].mxu0
      %v913 = vadd.f32 0.0, %v912
      %v914 = vpop.f32.mrb[0].mxu0
      %915 = vmatprep.mubr.f32.mxu0 0.0
      %916 = vmatmul.mubr.f32.gmra.mrb[0].mxu0 %v629
      %v917 = vpop.f32.mrb[0].mxu0
      %v918 = vadd.f32 0.0, %v917
      %v919 = vpop.f32.mrb[0].mxu0
      %920 = vmatprep.mubr.f32.mxu0 0.0
      %921 = vmatmul.mubr.f32.gmra.mrb[0].mxu0 %v632
      %v922 = vpop.f32.mrb[0].mxu0
      %v923 = vadd.f32 0.0, %v922
      %v924 = vpop.f32.mrb[0].mxu0
      %925 = vmatprep.mubr.f32.mxu0 0.0
      %926 = vmatmul.mubr.f32.gmra.mrb[0].mxu0 %v635
      %v927 = vpop.f32.mrb[0].mxu0
      %v928 = vadd.f32 0.0, %v927
      %v929 = vpop.f32.mrb[0].mxu0
      %930 = vmatprep.mubr.f32.mxu0 0.0
      %931 = vmatmul.mubr.f32.gmra.mrb[0].mxu0 %v638
      %v932 = vpop.f32.mrb[0].mxu0
      %v933 = vadd.f32 0.0, %v932
      %v934 = vpop.f32.mrb[0].mxu0
      %935 = vmatprep.mubr.f32.mxu0 0.0
      %936 = vmatmul.mubr.f32.gmra.mrb[0].mxu0 %v641
      %v937 = vpop.f32.mrb[0].mxu0
      %v938 = vadd.f32 0.0, %v937
      %v939 = vpop.f32.mrb[0].mxu0
      %940 = vmatprep.mubr.f32.mxu0 0.0
      %941 = vmatmul.mubr.f32.gmra.mrb[0].mxu0 %v644
      %v942 = vpop.f32.mrb[0].mxu0
      %v943 = vadd.f32 0.0, %v942
      %v944 = vpop.f32.mrb[0].mxu0
      %945 = vmatprep.mubr.f32.mxu0 0.0
      %946 = vmatmul.mubr.f32.gmra.mrb[0].mxu0 %v647
      %v947 = vpop.f32.mrb[0].mxu0
      %v948 = vadd.f32 0.0, %v947
      %v949 = vpop.f32.mrb[0].mxu0
      %950 = vmatprep.mubr.f32.mxu0 0.0
      %951 = vmatmul.mubr.f32.gmra.mrb[0].mxu0 %v650
      %v952 = vpop.f32.mrb[0].mxu0
      %v953 = vadd.f32 0.0, %v952
      %v954 = vpop.f32.mrb[0].mxu0
      %955 = vmatprep.mubr.f32.mxu0 0.0
      %956 = vmatmul.mubr.f32.gmra.mrb[0].mxu0 %v653
      %v957 = vpop.f32.mrb[0].mxu0
      %v958 = vadd.f32 0.0, %v957
      %v959 = vpop.f32.mrb[0].mxu0
      %960 = vmatprep.mubr.f32.mxu0 0.0
      %961 = vmatmul.mubr.f32.gmra.mrb[0].mxu0 %v656
      %v962 = vpop.f32.mrb[0].mxu0
      %v963 = vadd.f32 0.0, %v962
      %v964 = vpop.f32.mrb[0].mxu0
      %965 = vmatprep.mubr.f32.mxu0 0.0
      %966 = vmatmul.mubr.f32.gmra.mrb[0].mxu0 %v659
      %v967 = vpop.f32.mrb[0].mxu0
      %v968 = vadd.f32 0.0, %v967
      %v969 = vpop.f32.mrb[0].mxu0
      %970 = vdwg.mxu0
      %v971 = vsub.f32 %v893, %v822
      %v972 = vsub.f32 %v898, %v823
      %v973 = vsub.f32 %v903, %v822
      %v974 = vsub.f32 %v908, %v823
      %v975 = vsub.f32 %v913, %v822
      %v976 = vsub.f32 %v918, %v823
      %v977 = vsub.f32 %v923, %v822
      %v978 = vsub.f32 %v928, %v823
      %v979 = vsub.f32 %v933, %v822
      %v980 = vsub.f32 %v938, %v823
      %v981 = vsub.f32 %v943, %v822
      %v982 = vsub.f32 %v948, %v823
      %v983 = vsub.f32 %v953, %v822
      %v984 = vsub.f32 %v958, %v823
      %v985 = vsub.f32 %v963, %v822
      %v986 = vsub.f32 %v968, %v823
      %v987 = vpack.c.bf16 %v972, %v971
      %v988 = vpack.c.bf16 %v974, %v973
      %v989 = vpack.c.bf16 %v976, %v975
      %v990 = vpack.c.bf16 %v978, %v977
      %v991 = vpack.c.bf16 %v980, %v979
      %v992 = vpack.c.bf16 %v982, %v981
      %v993 = vpack.c.bf16 %v984, %v983
      %v994 = vpack.c.bf16 %v986, %v985
      %v995 = vld [vmem:[%s4] sm:$0xf]
      %v996 = vld [vmem:[%s4 + $0x4] sm:$0xf]
      %v997 = vld [vmem:[%s4 + $0x8] sm:$0xf]
      %v998 = vld [vmem:[%s4 + $0xc] sm:$0xf]
      %v1003 = vunpack.c.l.b16 %v995
      %v1004 = vunpack.c.l.b16 %v996
      %v1005 = vunpack.c.l.b16 %v997
      %v1006 = vunpack.c.l.b16 %v998
      %v1007 = vpack.c.b16 %v1004, %v1003
      %v1008 = vpack.c.b16 %v1006, %v1005
      %v1012 = vsel %vm612, %v987, 0
      %v1015 = vsel %vm612, %v988, 0
      %v1018 = vsel %vm612, %v989, 0
      %v1021 = vsel %vm612, %v990, 0
      %v1024 = vsel %vm612, %v991, 0
      %v1027 = vsel %vm612, %v992, 0
      %v1030 = vsel %vm612, %v993, 0
      %v1033 = vsel %vm612, %v994, 0
      %1035 = vmatprep.subr.bf16.mxu0 0
      %1036 = vmatpush1.bf16.msra.mxu0 %v1007
      %1037 = vmatprep.subr.bf16.mxu0 0
      %1038 = vmatpush1.bf16.msra.mxu0 %v1008
      %1039 = vmatprep.subr.bf16.mxu0 0
      %1040 = vmatpush1.bf16.msra.mxu0 0
      %1041 = vmatprep.subr.bf16.mxu0 0
      %1042 = vmatpush1.bf16.msra.mxu0 0
      %1043 = vmatprep.subr.bf16.mxu0 0
      %1044 = vmatpush1.bf16.msra.mxu0 0
      %1045 = vmatprep.subr.bf16.mxu0 0
      %1046 = vmatpush1.bf16.msra.mxu0 0
      %1047 = vmatprep.subr.bf16.mxu0 0
      %1048 = vmatpush1.bf16.msra.mxu0 0
      %1049 = vmatprep.subr.bf16.mxu0 0
      %1050 = vmatpush1.bf16.msra.mxu0 0
      %1051 = vmatprep.subr.bf16.mxu0 0
      %1052 = vmatpush1.bf16.msra.mxu0 0
      %1053 = vmatprep.subr.bf16.mxu0 0
      %1054 = vmatpush1.bf16.msra.mxu0 0
      %1055 = vmatprep.subr.bf16.mxu0 0
      %1056 = vmatpush1.bf16.msra.mxu0 0
      %1057 = vmatprep.subr.bf16.mxu0 0
      %1058 = vmatpush1.bf16.msra.mxu0 0
      %1059 = vmatprep.subr.bf16.mxu0 0
      %1060 = vmatpush1.bf16.msra.mxu0 0
      %1061 = vmatprep.subr.bf16.mxu0 0
      %1062 = vmatpush1.bf16.msra.mxu0 0
      %1063 = vmatprep.subr.bf16.mxu0 0
      %1064 = vmatpush1.bf16.msra.mxu0 0
      %1065 = vmatprep.subr.bf16.mxu0 0
      %1066 = vmatpush1.bf16.msra.mxu0 0
      %1067 = vmatprep.mubr.bf16.mxu0 0
      %1068 = vmatmul.mubr.bf16.gmra.mrb[0].mxu0 %v1012
      %v1069 = vpop.f32.mrb[0].mxu0
      %v1070 = vadd.f32 0.0, %v1069
      %v1071 = vpop.f32.mrb[0].mxu0
      %v1072 = vpop.f32.mrb[0].mxu0
      %v1073 = vadd.f32 0.0, %v1072
      %v1074 = vpop.f32.mrb[0].mxu0
      %1075 = vmatprep.mubr.bf16.mxu0 0
      %1076 = vmatmul.mubr.bf16.gmra.mrb[0].mxu0 %v1015
      %v1077 = vpop.f32.mrb[0].mxu0
      %v1078 = vadd.f32 0.0, %v1077
      %v1079 = vpop.f32.mrb[0].mxu0
      %v1080 = vpop.f32.mrb[0].mxu0
      %v1081 = vadd.f32 0.0, %v1080
      %v1082 = vpop.f32.mrb[0].mxu0
      %1083 = vmatprep.mubr.bf16.mxu0 0
      %1084 = vmatmul.mubr.bf16.gmra.mrb[0].mxu0 %v1018
      %v1085 = vpop.f32.mrb[0].mxu0
      %v1086 = vadd.f32 0.0, %v1085
      %v1087 = vpop.f32.mrb[0].mxu0
      %v1088 = vpop.f32.mrb[0].mxu0
      %v1089 = vadd.f32 0.0, %v1088
      %v1090 = vpop.f32.mrb[0].mxu0
      %1091 = vmatprep.mubr.bf16.mxu0 0
      %1092 = vmatmul.mubr.bf16.gmra.mrb[0].mxu0 %v1021
      %v1093 = vpop.f32.mrb[0].mxu0
      %v1094 = vadd.f32 0.0, %v1093
      %v1095 = vpop.f32.mrb[0].mxu0
      %v1096 = vpop.f32.mrb[0].mxu0
      %v1097 = vadd.f32 0.0, %v1096
      %v1098 = vpop.f32.mrb[0].mxu0
      %1099 = vmatprep.mubr.bf16.mxu0 0
      %1100 = vmatmul.mubr.bf16.gmra.mrb[0].mxu0 %v1024
      %v1101 = vpop.f32.mrb[0].mxu0
      %v1102 = vadd.f32 0.0, %v1101
      %v1103 = vpop.f32.mrb[0].mxu0
      %v1104 = vpop.f32.mrb[0].mxu0
      %v1105 = vadd.f32 0.0, %v1104
      %v1106 = vpop.f32.mrb[0].mxu0
      %1107 = vmatprep.mubr.bf16.mxu0 0
      %1108 = vmatmul.mubr.bf16.gmra.mrb[0].mxu0 %v1027
      %v1109 = vpop.f32.mrb[0].mxu0
      %v1110 = vadd.f32 0.0, %v1109
      %v1111 = vpop.f32.mrb[0].mxu0
      %v1112 = vpop.f32.mrb[0].mxu0
      %v1113 = vadd.f32 0.0, %v1112
      %v1114 = vpop.f32.mrb[0].mxu0
      %1115 = vmatprep.mubr.bf16.mxu0 0
      %1116 = vmatmul.mubr.bf16.gmra.mrb[0].mxu0 %v1030
      %v1117 = vpop.f32.mrb[0].mxu0
      %v1118 = vadd.f32 0.0, %v1117
      %v1119 = vpop.f32.mrb[0].mxu0
      %v1120 = vpop.f32.mrb[0].mxu0
      %v1121 = vadd.f32 0.0, %v1120
      %v1122 = vpop.f32.mrb[0].mxu0
      %1123 = vmatprep.mubr.bf16.mxu0 0
      %1124 = vmatmul.mubr.bf16.gmra.mrb[0].mxu0 %v1033
      %v1125 = vpop.f32.mrb[0].mxu0
      %v1126 = vadd.f32 0.0, %v1125
      %v1127 = vpop.f32.mrb[0].mxu0
      %v1128 = vpop.f32.mrb[0].mxu0
      %v1129 = vadd.f32 0.0, %v1128
      %v1130 = vpop.f32.mrb[0].mxu0
      %1131 = vdwg.mxu0
      %v1132 = vadd.f32 %v806, %v1070
      %v1133 = vadd.f32 %v807, %v1073
      %v1134 = vadd.f32 %v808, %v1078
      %v1135 = vadd.f32 %v809, %v1081
      %v1136 = vadd.f32 %v810, %v1086
      %v1137 = vadd.f32 %v811, %v1089
      %v1138 = vadd.f32 %v812, %v1094
      %v1139 = vadd.f32 %v813, %v1097
      %v1140 = vadd.f32 %v814, %v1102
      %v1141 = vadd.f32 %v815, %v1105
      %v1142 = vadd.f32 %v816, %v1110
      %v1143 = vadd.f32 %v817, %v1113
      %v1144 = vadd.f32 %v818, %v1118
      %v1145 = vadd.f32 %v819, %v1121
      %v1146 = vadd.f32 %v820, %v1126
      %v1147 = vadd.f32 %v821, %v1129
      %v1148 = vpack.c.bf16 %v823, %v822
      %v1149 = vld [vmem:[%s5] sm:$0xf]
      %v1150 = vld [vmem:[%s5 + $0x4] sm:$0xf]
      %v1151 = vld [vmem:[%s5 + $0x8] sm:$0xf]
      %v1152 = vld [vmem:[%s5 + $0xc] sm:$0xf]
      %v1157 = vunpack.c.l.b16 %v1149
      %v1158 = vunpack.c.l.b16 %v1150
      %v1159 = vunpack.c.l.b16 %v1151
      %v1160 = vunpack.c.l.b16 %v1152
      %v1161 = vpack.c.b16 %v1158, %v1157
      %v1162 = vpack.c.b16 %v1160, %v1159
      %v1166 = vsel %vm612, %v1148, 0
      %1168 = vmatprep.subr.bf16.mxu0 0
      %1169 = vmatpush1.bf16.msra.mxu0 %v1161
      %1170 = vmatprep.subr.bf16.mxu0 0
      %1171 = vmatpush1.bf16.msra.mxu0 %v1162
      %1172 = vmatprep.subr.bf16.mxu0 0
      %1173 = vmatpush1.bf16.msra.mxu0 0
      %1174 = vmatprep.subr.bf16.mxu0 0
      %1175 = vmatpush1.bf16.msra.mxu0 0
      %1176 = vmatprep.subr.bf16.mxu0 0
      %1177 = vmatpush1.bf16.msra.mxu0 0
      %1178 = vmatprep.subr.bf16.mxu0 0
      %1179 = vmatpush1.bf16.msra.mxu0 0
      %1180 = vmatprep.subr.bf16.mxu0 0
      %1181 = vmatpush1.bf16.msra.mxu0 0
      %1182 = vmatprep.subr.bf16.mxu0 0
      %1183 = vmatpush1.bf16.msra.mxu0 0
      %1184 = vmatprep.subr.bf16.mxu0 0
      %1185 = vmatpush1.bf16.msra.mxu0 0
      %1186 = vmatprep.subr.bf16.mxu0 0
      %1187 = vmatpush1.bf16.msra.mxu0 0
      %1188 = vmatprep.subr.bf16.mxu0 0
      %1189 = vmatpush1.bf16.msra.mxu0 0
      %1190 = vmatprep.subr.bf16.mxu0 0
      %1191 = vmatpush1.bf16.msra.mxu0 0
      %1192 = vmatprep.subr.bf16.mxu0 0
      %1193 = vmatpush1.bf16.msra.mxu0 0
      %1194 = vmatprep.subr.bf16.mxu0 0
      %1195 = vmatpush1.bf16.msra.mxu0 0
      %1196 = vmatprep.subr.bf16.mxu0 0
      %1197 = vmatpush1.bf16.msra.mxu0 0
      %1198 = vmatprep.subr.bf16.mxu0 0
      %1199 = vmatpush1.bf16.msra.mxu0 0
      %1200 = vmatprep.mubr.bf16.mxu0 0
      %1201 = vmatmul.mubr.bf16.gmra.mrb[0].mxu0 %v1166
      %v1202 = vpop.f32.mrb[0].mxu0
      %v1203 = vadd.f32 0.0, %v1202
      %v1204 = vpop.f32.mrb[0].mxu0
      %v1205 = vpop.f32.mrb[0].mxu0
      %v1206 = vadd.f32 0.0, %v1205
      %v1207 = vpop.f32.mrb[0].mxu0
      %1208 = vmatprep.mubr.bf16.mxu0 0
      %1209 = vmatmul.mubr.bf16.gmra.mrb[0].mxu0 %v1166
      %v1210 = vpop.f32.mrb[0].mxu0
      %v1211 = vadd.f32 0.0, %v1210
      %v1212 = vpop.f32.mrb[0].mxu0
      %v1213 = vpop.f32.mrb[0].mxu0
      %v1214 = vadd.f32 0.0, %v1213
      %v1215 = vpop.f32.mrb[0].mxu0
      %1216 = vmatprep.mubr.bf16.mxu0 0
      %1217 = vmatmul.mubr.bf16.gmra.mrb[0].mxu0 %v1166
      %v1218 = vpop.f32.mrb[0].mxu0
      %v1219 = vadd.f32 0.0, %v1218
      %v1220 = vpop.f32.mrb[0].mxu0
      %v1221 = vpop.f32.mrb[0].mxu0
      %v1222 = vadd.f32 0.0, %v1221
      %v1223 = vpop.f32.mrb[0].mxu0
      %1224 = vmatprep.mubr.bf16.mxu0 0
      %1225 = vmatmul.mubr.bf16.gmra.mrb[0].mxu0 %v1166
      %v1226 = vpop.f32.mrb[0].mxu0
      %v1227 = vadd.f32 0.0, %v1226
      %v1228 = vpop.f32.mrb[0].mxu0
      %v1229 = vpop.f32.mrb[0].mxu0
      %v1230 = vadd.f32 0.0, %v1229
      %v1231 = vpop.f32.mrb[0].mxu0
      %1232 = vmatprep.mubr.bf16.mxu0 0
      %1233 = vmatmul.mubr.bf16.gmra.mrb[0].mxu0 %v1166
      %v1234 = vpop.f32.mrb[0].mxu0
      %v1235 = vadd.f32 0.0, %v1234
      %v1236 = vpop.f32.mrb[0].mxu0
      %v1237 = vpop.f32.mrb[0].mxu0
      %v1238 = vadd.f32 0.0, %v1237
      %v1239 = vpop.f32.mrb[0].mxu0
      %1240 = vmatprep.mubr.bf16.mxu0 0
      %1241 = vmatmul.mubr.bf16.gmra.mrb[0].mxu0 %v1166
      %v1242 = vpop.f32.mrb[0].mxu0
      %v1243 = vadd.f32 0.0, %v1242
      %v1244 = vpop.f32.mrb[0].mxu0
      %v1245 = vpop.f32.mrb[0].mxu0
      %v1246 = vadd.f32 0.0, %v1245
      %v1247 = vpop.f32.mrb[0].mxu0
      %1248 = vmatprep.mubr.bf16.mxu0 0
      %1249 = vmatmul.mubr.bf16.gmra.mrb[0].mxu0 %v1166
      %v1250 = vpop.f32.mrb[0].mxu0
      %v1251 = vadd.f32 0.0, %v1250
      %v1252 = vpop.f32.mrb[0].mxu0
      %v1253 = vpop.f32.mrb[0].mxu0
      %v1254 = vadd.f32 0.0, %v1253
      %v1255 = vpop.f32.mrb[0].mxu0
      %1256 = vmatprep.mubr.bf16.mxu0 0
      %1257 = vmatmul.mubr.bf16.gmra.mrb[0].mxu0 %v1166
      %v1258 = vpop.f32.mrb[0].mxu0
      %v1259 = vadd.f32 0.0, %v1258
      %v1260 = vpop.f32.mrb[0].mxu0
      %v1261 = vpop.f32.mrb[0].mxu0
      %v1262 = vadd.f32 0.0, %v1261
      %v1263 = vpop.f32.mrb[0].mxu0
      %1264 = vdwg.mxu0
      %v1265 = vadd.f32 %v1132, %v1203
      %v1266 = vadd.f32 %v1133, %v1206
      %v1267 = vadd.f32 %v1134, %v1211
      %v1268 = vadd.f32 %v1135, %v1214
      %v1269 = vadd.f32 %v1136, %v1219
      %v1270 = vadd.f32 %v1137, %v1222
      %v1271 = vadd.f32 %v1138, %v1227
      %v1272 = vadd.f32 %v1139, %v1230
      %v1273 = vadd.f32 %v1140, %v1235
      %v1274 = vadd.f32 %v1141, %v1238
      %v1275 = vadd.f32 %v1142, %v1243
      %v1276 = vadd.f32 %v1143, %v1246
      %v1277 = vadd.f32 %v1144, %v1251
      %v1278 = vadd.f32 %v1145, %v1254
      %v1279 = vadd.f32 %v1146, %v1259
      %v1280 = vadd.f32 %v1147, %v1262
      %v1281 = vld [vmem:[%s6] sm:$0x1]
      %v1283 = vlaneseq
      %v1284 = vshrl.u32 %v1283, 7
      %v1285 = vsub.s32 0, %v1284
      %v1286 = vrot.slane %v1281, %v1285
      %v1288 = vadd.f32 %v1265, %v1286
      %v1289 = vadd.f32 %v1266, %v1286
      %v1290 = vadd.f32 %v1267, %v1286
      %v1291 = vadd.f32 %v1268, %v1286
      %v1292 = vadd.f32 %v1269, %v1286
      %v1293 = vadd.f32 %v1270, %v1286
      %v1294 = vadd.f32 %v1271, %v1286
      %v1295 = vadd.f32 %v1272, %v1286
      %v1296 = vadd.f32 %v1273, %v1286
      %v1297 = vadd.f32 %v1274, %v1286
      %v1298 = vadd.f32 %v1275, %v1286
      %v1299 = vadd.f32 %v1276, %v1286
      %v1300 = vadd.f32 %v1277, %v1286
      %v1301 = vadd.f32 %v1278, %v1286
      %v1302 = vadd.f32 %v1279, %v1286
      %v1303 = vadd.f32 %v1280, %v1286
      %v1304 = vmax.f32 %v1288, 0.0
      %v1305 = vmax.f32 %v1289, 0.0
      %v1306 = vmax.f32 %v1290, 0.0
      %v1307 = vmax.f32 %v1291, 0.0
      %v1308 = vmax.f32 %v1292, 0.0
      %v1309 = vmax.f32 %v1293, 0.0
      %v1310 = vmax.f32 %v1294, 0.0
      %v1311 = vmax.f32 %v1295, 0.0
      %v1312 = vmax.f32 %v1296, 0.0
      %v1313 = vmax.f32 %v1297, 0.0
      %v1314 = vmax.f32 %v1298, 0.0
      %v1315 = vmax.f32 %v1299, 0.0
      %v1316 = vmax.f32 %v1300, 0.0
      %v1317 = vmax.f32 %v1301, 0.0
      %v1318 = vmax.f32 %v1302, 0.0
      %v1319 = vmax.f32 %v1303, 0.0
      %v1320 = vpack.c.bf16 %v1305, %v1304
      %v1321 = vpack.c.bf16 %v1307, %v1306
      %v1322 = vpack.c.bf16 %v1309, %v1308
      %v1323 = vpack.c.bf16 %v1311, %v1310
      %v1324 = vpack.c.bf16 %v1313, %v1312
      %v1325 = vpack.c.bf16 %v1315, %v1314
      %v1326 = vpack.c.bf16 %v1317, %v1316
      %v1327 = vpack.c.bf16 %v1319, %v1318
      %v1328 = vld [vmem:[%s7] sm:$0xf]
      %v1329 = vld [vmem:[%s7 + $0x4] sm:$0xf]
      %v1330 = vld [vmem:[%s7 + $0x8] sm:$0xf]
      %v1331 = vld [vmem:[%s7 + $0xc] sm:$0xf]
      %v1332 = vld [vmem:[%s7 + $0x10] sm:$0xf]
      %v1333 = vld [vmem:[%s7 + $0x14] sm:$0xf]
      %v1334 = vld [vmem:[%s7 + $0x18] sm:$0xf]
      %v1335 = vld [vmem:[%s7 + $0x1c] sm:$0xf]
      %v1336 = vld [vmem:[%s8] sm:$0x1]
      %v1338 = vlaneseq
      %v1339 = vshrl.u32 %v1338, 7
      %v1340 = vsub.s32 0, %v1339
      %v1341 = vrot.slane %v1336, %v1340
      %v1351 = vunpack.c.l.b16 %v1328
      %v1352 = vunpack.c.l.b16 %v1329
      %v1353 = vunpack.c.l.b16 %v1330
      %v1354 = vunpack.c.l.b16 %v1331
      %v1355 = vunpack.c.l.b16 %v1332
      %v1356 = vunpack.c.l.b16 %v1333
      %v1357 = vunpack.c.l.b16 %v1334
      %v1358 = vunpack.c.l.b16 %v1335
      %v1359 = vpack.c.b16 %v1352, %v1351
      %v1360 = vpack.c.b16 %v1354, %v1353
      %v1361 = vpack.c.b16 %v1356, %v1355
      %v1362 = vpack.c.b16 %v1358, %v1357
      %vm1367 = vcmask 523264
      %v1369 = vsel %vm1367, %v1320, 0
      %v1372 = vsel %vm1367, %v1321, 0
      %v1375 = vsel %vm1367, %v1322, 0
      %v1378 = vsel %vm1367, %v1323, 0
      %v1381 = vsel %vm1367, %v1324, 0
      %v1384 = vsel %vm1367, %v1325, 0
      %v1387 = vsel %vm1367, %v1326, 0
      %v1390 = vsel %vm1367, %v1327, 0
      %1392 = vmatprep.subr.bf16.mxu0 0
      %1393 = vmatpush1.bf16.msra.mxu0 %v1359
      %1394 = vmatprep.subr.bf16.mxu0 0
      %1395 = vmatpush1.bf16.msra.mxu0 %v1360
      %1396 = vmatprep.subr.bf16.mxu0 0
      %1397 = vmatpush1.bf16.msra.mxu0 %v1361
      %1398 = vmatprep.subr.bf16.mxu0 0
      %1399 = vmatpush1.bf16.msra.mxu0 %v1362
      %1400 = vmatprep.subr.bf16.mxu0 0
      %1401 = vmatpush1.bf16.msra.mxu0 0
      %1402 = vmatprep.subr.bf16.mxu0 0
      %1403 = vmatpush1.bf16.msra.mxu0 0
      %1404 = vmatprep.subr.bf16.mxu0 0
      %1405 = vmatpush1.bf16.msra.mxu0 0
      %1406 = vmatprep.subr.bf16.mxu0 0
      %1407 = vmatpush1.bf16.msra.mxu0 0
      %1408 = vmatprep.subr.bf16.mxu0 0
      %1409 = vmatpush1.bf16.msra.mxu0 0
      %1410 = vmatprep.subr.bf16.mxu0 0
      %1411 = vmatpush1.bf16.msra.mxu0 0
      %1412 = vmatprep.subr.bf16.mxu0 0
      %1413 = vmatpush1.bf16.msra.mxu0 0
      %1414 = vmatprep.subr.bf16.mxu0 0
      %1415 = vmatpush1.bf16.msra.mxu0 0
      %1416 = vmatprep.subr.bf16.mxu0 0
      %1417 = vmatpush1.bf16.msra.mxu0 0
      %1418 = vmatprep.subr.bf16.mxu0 0
      %1419 = vmatpush1.bf16.msra.mxu0 0
      %1420 = vmatprep.subr.bf16.mxu0 0
      %1421 = vmatpush1.bf16.msra.mxu0 0
      %1422 = vmatprep.subr.bf16.mxu0 0
      %1423 = vmatpush1.bf16.msra.mxu0 0
      %1424 = vmatprep.mubr.bf16.mxu0 0
      %1425 = vmatmul.mubr.bf16.gmra.mrb[0].mxu0 %v1369
      %v1426 = vpop.f32.mrb[0].mxu0
      %v1427 = vadd.f32 %v1341, %v1426
      %v1428 = vpop.f32.mrb[0].mxu0
      %v1429 = vpop.f32.mrb[0].mxu0
      %v1430 = vadd.f32 %v1341, %v1429
      %v1431 = vpop.f32.mrb[0].mxu0
      %1432 = vmatprep.mubr.bf16.mxu0 0
      %1433 = vmatmul.mubr.bf16.gmra.mrb[0].mxu0 %v1372
      %v1434 = vpop.f32.mrb[0].mxu0
      %v1435 = vadd.f32 %v1341, %v1434
      %v1436 = vpop.f32.mrb[0].mxu0
      %v1437 = vpop.f32.mrb[0].mxu0
      %v1438 = vadd.f32 %v1341, %v1437
      %v1439 = vpop.f32.mrb[0].mxu0
      %1440 = vmatprep.mubr.bf16.mxu0 0
      %1441 = vmatmul.mubr.bf16.gmra.mrb[0].mxu0 %v1375
      %v1442 = vpop.f32.mrb[0].mxu0
      %v1443 = vadd.f32 %v1341, %v1442
      %v1444 = vpop.f32.mrb[0].mxu0
      %v1445 = vpop.f32.mrb[0].mxu0
      %v1446 = vadd.f32 %v1341, %v1445
      %v1447 = vpop.f32.mrb[0].mxu0
      %1448 = vmatprep.mubr.bf16.mxu0 0
      %1449 = vmatmul.mubr.bf16.gmra.mrb[0].mxu0 %v1378
      %v1450 = vpop.f32.mrb[0].mxu0
      %v1451 = vadd.f32 %v1341, %v1450
      %v1452 = vpop.f32.mrb[0].mxu0
      %v1453 = vpop.f32.mrb[0].mxu0
      %v1454 = vadd.f32 %v1341, %v1453
      %v1455 = vpop.f32.mrb[0].mxu0
      %1456 = vmatprep.mubr.bf16.mxu0 0
      %1457 = vmatmul.mubr.bf16.gmra.mrb[0].mxu0 %v1381
      %v1458 = vpop.f32.mrb[0].mxu0
      %v1459 = vadd.f32 %v1341, %v1458
      %v1460 = vpop.f32.mrb[0].mxu0
      %v1461 = vpop.f32.mrb[0].mxu0
      %v1462 = vadd.f32 %v1341, %v1461
      %v1463 = vpop.f32.mrb[0].mxu0
      %1464 = vmatprep.mubr.bf16.mxu0 0
      %1465 = vmatmul.mubr.bf16.gmra.mrb[0].mxu0 %v1384
      %v1466 = vpop.f32.mrb[0].mxu0
      %v1467 = vadd.f32 %v1341, %v1466
      %v1468 = vpop.f32.mrb[0].mxu0
      %v1469 = vpop.f32.mrb[0].mxu0
      %v1470 = vadd.f32 %v1341, %v1469
      %v1471 = vpop.f32.mrb[0].mxu0
      %1472 = vmatprep.mubr.bf16.mxu0 0
      %1473 = vmatmul.mubr.bf16.gmra.mrb[0].mxu0 %v1387
      %v1474 = vpop.f32.mrb[0].mxu0
      %v1475 = vadd.f32 %v1341, %v1474
      %v1476 = vpop.f32.mrb[0].mxu0
      %v1477 = vpop.f32.mrb[0].mxu0
      %v1478 = vadd.f32 %v1341, %v1477
      %v1479 = vpop.f32.mrb[0].mxu0
      %1480 = vmatprep.mubr.bf16.mxu0 0
      %1481 = vmatmul.mubr.bf16.gmra.mrb[0].mxu0 %v1390
      %v1482 = vpop.f32.mrb[0].mxu0
      %v1483 = vadd.f32 %v1341, %v1482
      %v1484 = vpop.f32.mrb[0].mxu0
      %v1485 = vpop.f32.mrb[0].mxu0
      %v1486 = vadd.f32 %v1341, %v1485
      %v1487 = vpop.f32.mrb[0].mxu0
      %1488 = vdwg.mxu0
      %v1489 = vmax.f32 %v1427, 0.0
      %v1490 = vmax.f32 %v1430, 0.0
      %v1491 = vmax.f32 %v1435, 0.0
      %v1492 = vmax.f32 %v1438, 0.0
      %v1493 = vmax.f32 %v1443, 0.0
      %v1494 = vmax.f32 %v1446, 0.0
      %v1495 = vmax.f32 %v1451, 0.0
      %v1496 = vmax.f32 %v1454, 0.0
      %v1497 = vmax.f32 %v1459, 0.0
      %v1498 = vmax.f32 %v1462, 0.0
      %v1499 = vmax.f32 %v1467, 0.0
      %v1500 = vmax.f32 %v1470, 0.0
      %v1501 = vmax.f32 %v1475, 0.0
      %v1502 = vmax.f32 %v1478, 0.0
      %v1503 = vmax.f32 %v1483, 0.0
      %v1504 = vmax.f32 %v1486, 0.0
      %v1505 = vpack.c.bf16 %v1490, %v1489
      %v1506 = vpack.c.bf16 %v1492, %v1491
      %v1507 = vpack.c.bf16 %v1494, %v1493
      %v1508 = vpack.c.bf16 %v1496, %v1495
      %v1509 = vpack.c.bf16 %v1498, %v1497
      %v1510 = vpack.c.bf16 %v1500, %v1499
      %v1511 = vpack.c.bf16 %v1502, %v1501
      %v1512 = vpack.c.bf16 %v1504, %v1503
      %v1513 = vld [vmem:[%s9] sm:$0xf]
      %v1514 = vld [vmem:[%s9 + $0x4] sm:$0xf]
      %v1515 = vld [vmem:[%s9 + $0x8] sm:$0xf]
      %v1516 = vld [vmem:[%s9 + $0xc] sm:$0xf]
      %v1517 = vld [vmem:[%s9 + $0x10] sm:$0xf]
      %v1518 = vld [vmem:[%s9 + $0x14] sm:$0xf]
      %v1519 = vld [vmem:[%s9 + $0x18] sm:$0xf]
      %v1520 = vld [vmem:[%s9 + $0x1c] sm:$0xf]
      %v1521 = vld [vmem:[%s10] sm:$0x1]
      %v1523 = vlaneseq
      %v1524 = vshrl.u32 %v1523, 7
      %v1525 = vsub.s32 0, %v1524
      %v1526 = vrot.slane %v1521, %v1525
      %v1536 = vunpack.c.l.b16 %v1513
      %v1537 = vunpack.c.l.b16 %v1514
      %v1538 = vunpack.c.l.b16 %v1515
      %v1539 = vunpack.c.l.b16 %v1516
      %v1540 = vunpack.c.l.b16 %v1517
      %v1541 = vunpack.c.l.b16 %v1518
      %v1542 = vunpack.c.l.b16 %v1519
      %v1543 = vunpack.c.l.b16 %v1520
      %v1544 = vpack.c.b16 %v1537, %v1536
      %v1545 = vpack.c.b16 %v1539, %v1538
      %v1546 = vpack.c.b16 %v1541, %v1540
      %v1547 = vpack.c.b16 %v1543, %v1542
      %v1553 = vsel %vm1367, %v1505, 0
      %v1556 = vsel %vm1367, %v1506, 0
      %v1559 = vsel %vm1367, %v1507, 0
      %v1562 = vsel %vm1367, %v1508, 0
      %v1565 = vsel %vm1367, %v1509, 0
      %v1568 = vsel %vm1367, %v1510, 0
      %v1571 = vsel %vm1367, %v1511, 0
      %v1574 = vsel %vm1367, %v1512, 0
      %1576 = vmatprep.subr.bf16.mxu0 0
      %1577 = vmatpush1.bf16.msra.mxu0 %v1544
      %1578 = vmatprep.subr.bf16.mxu0 0
      %1579 = vmatpush1.bf16.msra.mxu0 %v1545
      %1580 = vmatprep.subr.bf16.mxu0 0
      %1581 = vmatpush1.bf16.msra.mxu0 %v1546
      %1582 = vmatprep.subr.bf16.mxu0 0
      %1583 = vmatpush1.bf16.msra.mxu0 %v1547
      %1584 = vmatprep.subr.bf16.mxu0 0
      %1585 = vmatpush1.bf16.msra.mxu0 0
      %1586 = vmatprep.subr.bf16.mxu0 0
      %1587 = vmatpush1.bf16.msra.mxu0 0
      %1588 = vmatprep.subr.bf16.mxu0 0
      %1589 = vmatpush1.bf16.msra.mxu0 0
      %1590 = vmatprep.subr.bf16.mxu0 0
      %1591 = vmatpush1.bf16.msra.mxu0 0
      %1592 = vmatprep.subr.bf16.mxu0 0
      %1593 = vmatpush1.bf16.msra.mxu0 0
      %1594 = vmatprep.subr.bf16.mxu0 0
      %1595 = vmatpush1.bf16.msra.mxu0 0
      %1596 = vmatprep.subr.bf16.mxu0 0
      %1597 = vmatpush1.bf16.msra.mxu0 0
      %1598 = vmatprep.subr.bf16.mxu0 0
      %1599 = vmatpush1.bf16.msra.mxu0 0
      %1600 = vmatprep.subr.bf16.mxu0 0
      %1601 = vmatpush1.bf16.msra.mxu0 0
      %1602 = vmatprep.subr.bf16.mxu0 0
      %1603 = vmatpush1.bf16.msra.mxu0 0
      %1604 = vmatprep.subr.bf16.mxu0 0
      %1605 = vmatpush1.bf16.msra.mxu0 0
      %1606 = vmatprep.subr.bf16.mxu0 0
      %1607 = vmatpush1.bf16.msra.mxu0 0
      %1608 = vmatprep.mubr.bf16.mxu0 0
      %1609 = vmatmul.mubr.bf16.gmra.mrb[0].mxu0 %v1553
      %v1610 = vpop.f32.mrb[0].mxu0
      %v1611 = vadd.f32 %v1526, %v1610
      %v1612 = vpop.f32.mrb[0].mxu0
      %v1613 = vpop.f32.mrb[0].mxu0
      %v1614 = vadd.f32 %v1526, %v1613
      %v1615 = vpop.f32.mrb[0].mxu0
      %1616 = vmatprep.mubr.bf16.mxu0 0
      %1617 = vmatmul.mubr.bf16.gmra.mrb[0].mxu0 %v1556
      %v1618 = vpop.f32.mrb[0].mxu0
      %v1619 = vadd.f32 %v1526, %v1618
      %v1620 = vpop.f32.mrb[0].mxu0
      %v1621 = vpop.f32.mrb[0].mxu0
      %v1622 = vadd.f32 %v1526, %v1621
      %v1623 = vpop.f32.mrb[0].mxu0
      %1624 = vmatprep.mubr.bf16.mxu0 0
      %1625 = vmatmul.mubr.bf16.gmra.mrb[0].mxu0 %v1559
      %v1626 = vpop.f32.mrb[0].mxu0
      %v1627 = vadd.f32 %v1526, %v1626
      %v1628 = vpop.f32.mrb[0].mxu0
      %v1629 = vpop.f32.mrb[0].mxu0
      %v1630 = vadd.f32 %v1526, %v1629
      %v1631 = vpop.f32.mrb[0].mxu0
      %1632 = vmatprep.mubr.bf16.mxu0 0
      %1633 = vmatmul.mubr.bf16.gmra.mrb[0].mxu0 %v1562
      %v1634 = vpop.f32.mrb[0].mxu0
      %v1635 = vadd.f32 %v1526, %v1634
      %v1636 = vpop.f32.mrb[0].mxu0
      %v1637 = vpop.f32.mrb[0].mxu0
      %v1638 = vadd.f32 %v1526, %v1637
      %v1639 = vpop.f32.mrb[0].mxu0
      %1640 = vmatprep.mubr.bf16.mxu0 0
      %1641 = vmatmul.mubr.bf16.gmra.mrb[0].mxu0 %v1565
      %v1642 = vpop.f32.mrb[0].mxu0
      %v1643 = vadd.f32 %v1526, %v1642
      %v1644 = vpop.f32.mrb[0].mxu0
      %v1645 = vpop.f32.mrb[0].mxu0
      %v1646 = vadd.f32 %v1526, %v1645
      %v1647 = vpop.f32.mrb[0].mxu0
      %1648 = vmatprep.mubr.bf16.mxu0 0
      %1649 = vmatmul.mubr.bf16.gmra.mrb[0].mxu0 %v1568
      %v1650 = vpop.f32.mrb[0].mxu0
      %v1651 = vadd.f32 %v1526, %v1650
      %v1652 = vpop.f32.mrb[0].mxu0
      %v1653 = vpop.f32.mrb[0].mxu0
      %v1654 = vadd.f32 %v1526, %v1653
      %v1655 = vpop.f32.mrb[0].mxu0
      %1656 = vmatprep.mubr.bf16.mxu0 0
      %1657 = vmatmul.mubr.bf16.gmra.mrb[0].mxu0 %v1571
      %v1658 = vpop.f32.mrb[0].mxu0
      %v1659 = vadd.f32 %v1526, %v1658
      %v1660 = vpop.f32.mrb[0].mxu0
      %v1661 = vpop.f32.mrb[0].mxu0
      %v1662 = vadd.f32 %v1526, %v1661
      %v1663 = vpop.f32.mrb[0].mxu0
      %1664 = vmatprep.mubr.bf16.mxu0 0
      %1665 = vmatmul.mubr.bf16.gmra.mrb[0].mxu0 %v1574
      %v1666 = vpop.f32.mrb[0].mxu0
      %v1667 = vadd.f32 %v1526, %v1666
      %v1668 = vpop.f32.mrb[0].mxu0
      %v1669 = vpop.f32.mrb[0].mxu0
      %v1670 = vadd.f32 %v1526, %v1669
      %v1671 = vpop.f32.mrb[0].mxu0
      %1672 = vdwg.mxu0
      %v1673 = vmax.f32 %v1611, 0.0
      %v1674 = vmax.f32 %v1614, 0.0
      %v1675 = vmax.f32 %v1619, 0.0
      %v1676 = vmax.f32 %v1622, 0.0
      %v1677 = vmax.f32 %v1627, 0.0
      %v1678 = vmax.f32 %v1630, 0.0
      %v1679 = vmax.f32 %v1635, 0.0
      %v1680 = vmax.f32 %v1638, 0.0
      %v1681 = vmax.f32 %v1643, 0.0
      %v1682 = vmax.f32 %v1646, 0.0
      %v1683 = vmax.f32 %v1651, 0.0
      %v1684 = vmax.f32 %v1654, 0.0
      %v1685 = vmax.f32 %v1659, 0.0
      %v1686 = vmax.f32 %v1662, 0.0
      %v1687 = vmax.f32 %v1667, 0.0
      %v1688 = vmax.f32 %v1670, 0.0
      %v1689 = vmax.f32 %v1673, %v1675
      %v1690 = vmax.f32 %v1674, %v1676
      %v1691 = vmax.f32 %v1689, %v1677
      %v1692 = vmax.f32 %v1690, %v1678
      %v1693 = vmax.f32 %v1691, %v1679
      %v1694 = vmax.f32 %v1692, %v1680
      %v1695 = vmax.f32 %v1693, %v1681
      %v1696 = vmax.f32 %v1694, %v1682
      %v1697 = vmax.f32 %v1695, %v1683
      %v1698 = vmax.f32 %v1696, %v1684
      %v1699 = vmax.f32 %v1697, %v1685
      %v1700 = vmax.f32 %v1698, %v1686
      %v1701 = vmax.f32 %v1699, %v1687
      %v1702 = vmax.f32 %v1700, %v1688
      %1703 = vst.msk [vmem:[%s426] sm:$0xff] %vm1367, %v1701
      %1704 = vst.msk [vmem:[%s426 + $0x8] sm:$0xff] %vm1367, %v1702
      %p1705 = scmp.lt.s32.totalorder %s22, 1
      %s1706 = scalar_select %p1705, %s22, 1
      %s1707 = smul.addr %s1706, 2
      %s1708 = smul.addr %s1707, 8
      %s1709 = scalar_lea.vmem %s11, %s1708
      // Predicated region
      $region65: #{pointnet_backbone_forward.7} parent=63 // pred_check
        %p1710 = pneg %p286
      $region66: #{pointnet_backbone_forward.7} parent=63 // pred_check_branch
        %1712 = sbr.rel (%p1710) target = $region68
      $region67: #{pointnet_backbone_forward.7} parent=63 // pred_region
        _
      $region68: #{pointnet_backbone_forward.7} parent=63 // pred_fallthru
        _
    $region64: #{pointnet_backbone_forward.7} parent=5 // pred_fallthru
      _
    %p1713 = scmp.le.s32.totalorder 2, %s17
    // Predicated region
    $region69: #{pointnet_backbone_forward.7} parent=5 // pred_check
      %p1714 = pneg %p1713
    $region70: #{pointnet_backbone_forward.7} parent=5 // pred_check_branch
      %1716 = sbr.rel (%p1714) target = $region72
    $region71: #{pointnet_backbone_forward.7} parent=5 // pred_region
      %s1717 = ssub.s32 %s17, 2
      // Predicated region
      $region73: #{pointnet_backbone_forward.7} parent=71 // pred_check
        %p1718 = pneg %p292
      $region74: #{pointnet_backbone_forward.7} parent=71 // pred_check_branch
        %1720 = sbr.rel (%p1718) target = $region76
      $region75: #{pointnet_backbone_forward.7} parent=71 // pred_region
        %p1721 = scmp.lt.s32.totalorder %s23, 1
        %s1722 = scalar_select %p1721, %s23, 1
        %s1723 = smul.addr %s1722, 2
        %s1724 = smul.addr %s1723, 8
        %s1725 = scalar_lea.vmem %s11, %s1724
      $region76: #{pointnet_backbone_forward.7} parent=71 // pred_fallthru
        _
    $region72: #{pointnet_backbone_forward.7} parent=5 // pred_fallthru
      _
  $region6: #{pointnet_backbone_forward.7} parent=0 // loop_footer
    %s21 = sadd.s32 1, %s17
  $region7: #{pointnet_backbone_forward.7} parent=0 // loop_footer_branch
    %16 = sbr.rel target = $region3
  $region8: #{pointnet_backbone_forward.7} parent=0 // loop_exit
    _

// kernel: pointnet_backbone_forward.6
$region0: #{pointnet_backbone_forward.6}
  #allocation0 [shape = 'u32[]', space=smem, size = 0x4, offset = 0x4, fixed_abs, tag = 'smem constant byte address 0x4 - core index']
  #allocation1 [shape = 'u32[144,128]{1,0:T(1,128)}', space=vmem, size = 0x12000, scoped, tag = 'internal scratch']
  %s0 = inlined_call_operand.vmem [shape: s32[2,256,1], index: 0, kind: input, shape index: {}]
  %s1 = inlined_call_operand.vmem [shape: f32[2,64,3], index: 1, kind: input, shape index: {}]
  %s2 = inlined_call_operand.vmem [shape: f32[2,64,3], index: 2, kind: input, shape index: {}]
  %s3 = inlined_call_operand.vmem [shape: bf16[3,32], index: 3, kind: input, shape index: {}]
  %s4 = inlined_call_operand.vmem [shape: bf16[3,32], index: 4, kind: input, shape index: {}]
  %s5 = inlined_call_operand.vmem [shape: f32[1,32], index: 5, kind: input, shape index: {}]
  %s6 = inlined_call_operand.vmem [shape: bf16[32,32], index: 6, kind: input, shape index: {}]
  %s7 = inlined_call_operand.vmem [shape: f32[1,32], index: 7, kind: input, shape index: {}]
  %s8 = inlined_call_operand.vmem [shape: bf16[32,32], index: 8, kind: input, shape index: {}]
  %s9 = inlined_call_operand.vmem [shape: f32[1,32], index: 9, kind: input, shape index: {}]
  %s10 = inlined_call_operand.vmem [shape: f32[2,32,32], index: 10, kind: output, shape index: {}]
  %s11 = sld [smem:[#allocation0]]
  $region73: #{pointnet_backbone_forward.6} parent=0
    _
  %s13 = ssub.s32 1, %s11
  %s14 = scalar_select 0, %s13, %s11
  loop: start=0, step=1, limit=4
  $region2: #{pointnet_backbone_forward.6} parent=0 // loop_pre_header
    _
  $region3: #{pointnet_backbone_forward.6} parent=0 // loop_header
    %s16 = sphi 0, %s20
    %p17 = scmp.ge.s32.totalorder %s16, 4
    %s26 = sphi 0, %s28
    %s29 = sphi 0, %s26
    %s30 = sphi 0, %s29
    %s46 = sphi 0, %s30
    %s52 = sphi 0, %s54
    %s55 = sphi 0, %s52
    %s56 = sphi 0, %s55
    %s72 = sphi 0, %s56
    %s78 = sphi 0, %s80
    %s81 = sphi 0, %s78
    %s82 = sphi 0, %s81
    %s98 = sphi 0, %s82
    %s102 = sphi 0, %s102
    %s104 = sphi 0, %s102
    %s105 = sphi 0, %s104
    %s119 = sphi 0, %s105
    %s123 = sphi 0, %s123
    %s125 = sphi 0, %s123
    %s126 = sphi 0, %s125
    %s140 = sphi 0, %s126
    %s144 = sphi 0, %s144
    %s146 = sphi 0, %s144
    %s147 = sphi 0, %s146
    %s161 = sphi 0, %s147
    %s165 = sphi 0, %s165
    %s167 = sphi 0, %s165
    %s168 = sphi 0, %s167
    %s182 = sphi 0, %s168
    %s186 = sphi 0, %s186
    %s188 = sphi 0, %s186
    %s189 = sphi 0, %s188
    %s203 = sphi 0, %s189
    %s207 = sphi 0, %s207
    %s209 = sphi 0, %s207
    %s210 = sphi 0, %s209
    %s224 = sphi 0, %s210
    %s228 = sphi 0, %s228
    %s230 = sphi 0, %s228
    %s231 = sphi 0, %s230
    %s245 = sphi 0, %s231
    %s251 = sphi 0, %s253
    %s254 = sphi 0, %s251
    %s255 = sphi 0, %s254
    %s271 = sphi 0, %s255
  $region4: #{pointnet_backbone_forward.6} parent=0 // loop_header_branch
    %19 = sbr.rel (%p17) target = $region8
  $region5: #{pointnet_backbone_forward.6} parent=0 // loop_body
    %s21 = ssub.s32 %s16, 1
    %s22 = ssub.s32 %s16, 2
    %s23 = sadd.s32 %s16, 1
    %s24 = ssub.s32 %s16, %s23
    %p25 = scmp.eq.s32.totalorder %s24, 0
    %s27 = sadd.s32 %s26, 1
    %s28 = scalar_select %p25, %s26, %s27
    %p31 = pneg %p25
    %p32 = scmp.eq.s32.totalorder %s16, 1
    %p33 = por %p31, %p32
    %p34 = scmp.ne.s32.totalorder %s26, %s29
    %p35 = scmp.eq.s32.totalorder %s16, 0
    %p36 = por %p34, %p35
    %p37 = scmp.ne.s32.totalorder %s26, %s29
    %p38 = scmp.eq.s32.totalorder %s21, 1
    %p39 = por %p37, %p38
    %p40 = scmp.ne.s32.totalorder %s29, %s30
    %p41 = scmp.eq.s32.totalorder %s21, 0
    %p42 = por %p40, %p41
    %p43 = scmp.ne.s32.totalorder %s29, %s30
    %p44 = scmp.eq.s32.totalorder %s22, 1
    %p45 = por %p43, %p44
    %p47 = scmp.ne.s32.totalorder %s30, %s46
    %p48 = scmp.eq.s32.totalorder %s22, 0
    %p49 = por %p47, %p48
    %s50 = ssub.s32 %s16, %s23
    %p51 = scmp.eq.s32.totalorder %s50, 0
    %s53 = sadd.s32 %s52, 1
    %s54 = scalar_select %p51, %s52, %s53
    %p57 = pneg %p51
    %p58 = scmp.eq.s32.totalorder %s16, 1
    %p59 = por %p57, %p58
    %p60 = scmp.ne.s32.totalorder %s52, %s55
    %p61 = scmp.eq.s32.totalorder %s16, 0
    %p62 = por %p60, %p61
    %p63 = scmp.ne.s32.totalorder %s52, %s55
    %p64 = scmp.eq.s32.totalorder %s21, 1
    %p65 = por %p63, %p64
    %p66 = scmp.ne.s32.totalorder %s55, %s56
    %p67 = scmp.eq.s32.totalorder %s21, 0
    %p68 = por %p66, %p67
    %p69 = scmp.ne.s32.totalorder %s55, %s56
    %p70 = scmp.eq.s32.totalorder %s22, 1
    %p71 = por %p69, %p70
    %p73 = scmp.ne.s32.totalorder %s56, %s72
    %p74 = scmp.eq.s32.totalorder %s22, 0
    %p75 = por %p73, %p74
    %s76 = ssub.s32 %s16, %s23
    %p77 = scmp.eq.s32.totalorder %s76, 0
    %s79 = sadd.s32 %s78, 1
    %s80 = scalar_select %p77, %s78, %s79
    %p83 = pneg %p77
    %p84 = scmp.eq.s32.totalorder %s16, 1
    %p85 = por %p83, %p84
    %p86 = scmp.ne.s32.totalorder %s78, %s81
    %p87 = scmp.eq.s32.totalorder %s16, 0
    %p88 = por %p86, %p87
    %p89 = scmp.ne.s32.totalorder %s78, %s81
    %p90 = scmp.eq.s32.totalorder %s21, 1
    %p91 = por %p89, %p90
    %p92 = scmp.ne.s32.totalorder %s81, %s82
    %p93 = scmp.eq.s32.totalorder %s21, 0
    %p94 = por %p92, %p93
    %p95 = scmp.ne.s32.totalorder %s81, %s82
    %p96 = scmp.eq.s32.totalorder %s22, 1
    %p97 = por %p95, %p96
    %p99 = scmp.ne.s32.totalorder %s82, %s98
    %p100 = scmp.eq.s32.totalorder %s22, 0
    %p101 = por %p99, %p100
    %s103 = sadd.s32 %s102, 1
    %p106 = scmp.eq.s32.totalorder %s16, 1
    %p107 = scmp.ne.s32.totalorder %s102, %s104
    %p108 = scmp.eq.s32.totalorder %s16, 0
    %p109 = por %p107, %p108
    %p110 = scmp.ne.s32.totalorder %s102, %s104
    %p111 = scmp.eq.s32.totalorder %s21, 1
    %p112 = por %p110, %p111
    %p113 = scmp.ne.s32.totalorder %s104, %s105
    %p114 = scmp.eq.s32.totalorder %s21, 0
    %p115 = por %p113, %p114
    %p116 = scmp.ne.s32.totalorder %s104, %s105
    %p117 = scmp.eq.s32.totalorder %s22, 1
    %p118 = por %p116, %p117
    %p120 = scmp.ne.s32.totalorder %s105, %s119
    %p121 = scmp.eq.s32.totalorder %s22, 0
    %p122 = por %p120, %p121
    %s124 = sadd.s32 %s123, 1
    %p127 = scmp.eq.s32.totalorder %s16, 1
    %p128 = scmp.ne.s32.totalorder %s123, %s125
    %p129 = scmp.eq.s32.totalorder %s16, 0
    %p130 = por %p128, %p129
    %p131 = scmp.ne.s32.totalorder %s123, %s125
    %p132 = scmp.eq.s32.totalorder %s21, 1
    %p133 = por %p131, %p132
    %p134 = scmp.ne.s32.totalorder %s125, %s126
    %p135 = scmp.eq.s32.totalorder %s21, 0
    %p136 = por %p134, %p135
    %p137 = scmp.ne.s32.totalorder %s125, %s126
    %p138 = scmp.eq.s32.totalorder %s22, 1
    %p139 = por %p137, %p138
    %p141 = scmp.ne.s32.totalorder %s126, %s140
    %p142 = scmp.eq.s32.totalorder %s22, 0
    %p143 = por %p141, %p142
    %s145 = sadd.s32 %s144, 1
    %p148 = scmp.eq.s32.totalorder %s16, 1
    %p149 = scmp.ne.s32.totalorder %s144, %s146
    %p150 = scmp.eq.s32.totalorder %s16, 0
    %p151 = por %p149, %p150
    %p152 = scmp.ne.s32.totalorder %s144, %s146
    %p153 = scmp.eq.s32.totalorder %s21, 1
    %p154 = por %p152, %p153
    %p155 = scmp.ne.s32.totalorder %s146, %s147
    %p156 = scmp.eq.s32.totalorder %s21, 0
    %p157 = por %p155, %p156
    %p158 = scmp.ne.s32.totalorder %s146, %s147
    %p159 = scmp.eq.s32.totalorder %s22, 1
    %p160 = por %p158, %p159
    %p162 = scmp.ne.s32.totalorder %s147, %s161
    %p163 = scmp.eq.s32.totalorder %s22, 0
    %p164 = por %p162, %p163
    %s166 = sadd.s32 %s165, 1
    %p169 = scmp.eq.s32.totalorder %s16, 1
    %p170 = scmp.ne.s32.totalorder %s165, %s167
    %p171 = scmp.eq.s32.totalorder %s16, 0
    %p172 = por %p170, %p171
    %p173 = scmp.ne.s32.totalorder %s165, %s167
    %p174 = scmp.eq.s32.totalorder %s21, 1
    %p175 = por %p173, %p174
    %p176 = scmp.ne.s32.totalorder %s167, %s168
    %p177 = scmp.eq.s32.totalorder %s21, 0
    %p178 = por %p176, %p177
    %p179 = scmp.ne.s32.totalorder %s167, %s168
    %p180 = scmp.eq.s32.totalorder %s22, 1
    %p181 = por %p179, %p180
    %p183 = scmp.ne.s32.totalorder %s168, %s182
    %p184 = scmp.eq.s32.totalorder %s22, 0
    %p185 = por %p183, %p184
    %s187 = sadd.s32 %s186, 1
    %p190 = scmp.eq.s32.totalorder %s16, 1
    %p191 = scmp.ne.s32.totalorder %s186, %s188
    %p192 = scmp.eq.s32.totalorder %s16, 0
    %p193 = por %p191, %p192
    %p194 = scmp.ne.s32.totalorder %s186, %s188
    %p195 = scmp.eq.s32.totalorder %s21, 1
    %p196 = por %p194, %p195
    %p197 = scmp.ne.s32.totalorder %s188, %s189
    %p198 = scmp.eq.s32.totalorder %s21, 0
    %p199 = por %p197, %p198
    %p200 = scmp.ne.s32.totalorder %s188, %s189
    %p201 = scmp.eq.s32.totalorder %s22, 1
    %p202 = por %p200, %p201
    %p204 = scmp.ne.s32.totalorder %s189, %s203
    %p205 = scmp.eq.s32.totalorder %s22, 0
    %p206 = por %p204, %p205
    %s208 = sadd.s32 %s207, 1
    %p211 = scmp.eq.s32.totalorder %s16, 1
    %p212 = scmp.ne.s32.totalorder %s207, %s209
    %p213 = scmp.eq.s32.totalorder %s16, 0
    %p214 = por %p212, %p213
    %p215 = scmp.ne.s32.totalorder %s207, %s209
    %p216 = scmp.eq.s32.totalorder %s21, 1
    %p217 = por %p215, %p216
    %p218 = scmp.ne.s32.totalorder %s209, %s210
    %p219 = scmp.eq.s32.totalorder %s21, 0
    %p220 = por %p218, %p219
    %p221 = scmp.ne.s32.totalorder %s209, %s210
    %p222 = scmp.eq.s32.totalorder %s22, 1
    %p223 = por %p221, %p222
    %p225 = scmp.ne.s32.totalorder %s210, %s224
    %p226 = scmp.eq.s32.totalorder %s22, 0
    %p227 = por %p225, %p226
    %s229 = sadd.s32 %s228, 1
    %p232 = scmp.eq.s32.totalorder %s16, 1
    %p233 = scmp.ne.s32.totalorder %s228, %s230
    %p234 = scmp.eq.s32.totalorder %s16, 0
    %p235 = por %p233, %p234
    %p236 = scmp.ne.s32.totalorder %s228, %s230
    %p237 = scmp.eq.s32.totalorder %s21, 1
    %p238 = por %p236, %p237
    %p239 = scmp.ne.s32.totalorder %s230, %s231
    %p240 = scmp.eq.s32.totalorder %s21, 0
    %p241 = por %p239, %p240
    %p242 = scmp.ne.s32.totalorder %s230, %s231
    %p243 = scmp.eq.s32.totalorder %s22, 1
    %p244 = por %p242, %p243
    %p246 = scmp.ne.s32.totalorder %s231, %s245
    %p247 = scmp.eq.s32.totalorder %s22, 0
    %p248 = por %p246, %p247
    %s249 = ssub.s32 %s16, %s23
    %p250 = scmp.eq.s32.totalorder %s249, 0
    %s252 = sadd.s32 %s251, 1
    %s253 = scalar_select %p250, %s251, %s252
    %p256 = pneg %p250
    %p257 = scmp.eq.s32.totalorder %s16, 1
    %p258 = por %p256, %p257
    %p259 = scmp.ne.s32.totalorder %s251, %s254
    %p260 = scmp.eq.s32.totalorder %s16, 0
    %p261 = por %p259, %p260
    %p262 = scmp.ne.s32.totalorder %s251, %s254
    %p263 = scmp.eq.s32.totalorder %s21, 1
    %p264 = por %p262, %p263
    %p265 = scmp.ne.s32.totalorder %s254, %s255
    %p266 = scmp.eq.s32.totalorder %s21, 0
    %p267 = por %p265, %p266
    %p268 = scmp.ne.s32.totalorder %s254, %s255
    %p269 = scmp.eq.s32.totalorder %s22, 1
    %p270 = por %p268, %p269
    %p272 = scmp.ne.s32.totalorder %s255, %s271
    %p273 = scmp.eq.s32.totalorder %s22, 0
    %p274 = por %p272, %p273
    %p275 = scmp.le.s32.totalorder 1, %s16
    %p276 = scmp.lt.s32.totalorder %s16, 3
    %p277 = pnand %p275, %p276
    %p278 = pneg %p277
    // Predicated region
    $region9: #{pointnet_backbone_forward.6} parent=5 // pred_check
      _
    $region10: #{pointnet_backbone_forward.6} parent=5 // pred_check_branch
      %280 = sbr.rel (%p277) target = $region12
    $region11: #{pointnet_backbone_forward.6} parent=5 // pred_region
      %s281 = ssub.s32 %s16, 1
      // Predicated region
      $region13: #{pointnet_backbone_forward.6} parent=11 // pred_check
        %p282 = pneg %p115
      $region14: #{pointnet_backbone_forward.6} parent=11 // pred_check_branch
        %284 = sbr.rel (%p282) target = $region16
      $region15: #{pointnet_backbone_forward.6} parent=11 // pred_region
        _
      $region16: #{pointnet_backbone_forward.6} parent=11 // pred_fallthru
        _
      // Predicated region
      $region17: #{pointnet_backbone_forward.6} parent=11 // pred_check
        %p285 = pneg %p136
      $region18: #{pointnet_backbone_forward.6} parent=11 // pred_check_branch
        %287 = sbr.rel (%p285) target = $region20
      $region19: #{pointnet_backbone_forward.6} parent=11 // pred_region
        _
      $region20: #{pointnet_backbone_forward.6} parent=11 // pred_fallthru
        _
      // Predicated region
      $region21: #{pointnet_backbone_forward.6} parent=11 // pred_check
        %p288 = pneg %p157
      $region22: #{pointnet_backbone_forward.6} parent=11 // pred_check_branch
        %290 = sbr.rel (%p288) target = $region24
      $region23: #{pointnet_backbone_forward.6} parent=11 // pred_region
        _
      $region24: #{pointnet_backbone_forward.6} parent=11 // pred_fallthru
        _
      // Predicated region
      $region25: #{pointnet_backbone_forward.6} parent=11 // pred_check
        %p291 = pneg %p178
      $region26: #{pointnet_backbone_forward.6} parent=11 // pred_check_branch
        %293 = sbr.rel (%p291) target = $region28
      $region27: #{pointnet_backbone_forward.6} parent=11 // pred_region
        _
      $region28: #{pointnet_backbone_forward.6} parent=11 // pred_fallthru
        _
      // Predicated region
      $region29: #{pointnet_backbone_forward.6} parent=11 // pred_check
        %p294 = pneg %p199
      $region30: #{pointnet_backbone_forward.6} parent=11 // pred_check_branch
        %296 = sbr.rel (%p294) target = $region32
      $region31: #{pointnet_backbone_forward.6} parent=11 // pred_region
        _
      $region32: #{pointnet_backbone_forward.6} parent=11 // pred_fallthru
        _
      // Predicated region
      $region33: #{pointnet_backbone_forward.6} parent=11 // pred_check
        %p297 = pneg %p220
      $region34: #{pointnet_backbone_forward.6} parent=11 // pred_check_branch
        %299 = sbr.rel (%p297) target = $region36
      $region35: #{pointnet_backbone_forward.6} parent=11 // pred_region
        _
      $region36: #{pointnet_backbone_forward.6} parent=11 // pred_fallthru
        _
      // Predicated region
      $region37: #{pointnet_backbone_forward.6} parent=11 // pred_check
        %p300 = pneg %p241
      $region38: #{pointnet_backbone_forward.6} parent=11 // pred_check_branch
        %302 = sbr.rel (%p300) target = $region40
      $region39: #{pointnet_backbone_forward.6} parent=11 // pred_region
        _
      $region40: #{pointnet_backbone_forward.6} parent=11 // pred_fallthru
        _
    $region12: #{pointnet_backbone_forward.6} parent=5 // pred_fallthru
      _
    %p303 = scmp.lt.s32.totalorder %s16, 2
    // Predicated region
    $region41: #{pointnet_backbone_forward.6} parent=5 // pred_check
      %p304 = pneg %p303
    $region42: #{pointnet_backbone_forward.6} parent=5 // pred_check_branch
      %306 = sbr.rel (%p304) target = $region44
    $region43: #{pointnet_backbone_forward.6} parent=5 // pred_region
      // Predicated region
      $region45: #{pointnet_backbone_forward.6} parent=43 // pred_check
        %p307 = pneg %p36
      $region46: #{pointnet_backbone_forward.6} parent=43 // pred_check_branch
        %309 = sbr.rel (%p307) target = $region48
      $region47: #{pointnet_backbone_forward.6} parent=43 // pred_region
        %p310 = scmp.lt.s32.totalorder %s16, 1
        %s311 = scalar_select %p310, %s16, 1
        %s312 = smul.addr %s311, 32
        %s313 = smul.addr %s312, 8
        %s314 = scalar_lea.vmem %s0, %s313
      $region48: #{pointnet_backbone_forward.6} parent=43 // pred_fallthru
        _
      // Predicated region
      $region49: #{pointnet_backbone_forward.6} parent=43 // pred_check
        %p315 = pneg %p62
      $region50: #{pointnet_backbone_forward.6} parent=43 // pred_check_branch
        %317 = sbr.rel (%p315) target = $region52
      $region51: #{pointnet_backbone_forward.6} parent=43 // pred_region
        %p318 = scmp.lt.s32.totalorder %s16, 1
        %s319 = scalar_select %p318, %s16, 1
        %s320 = smul.addr %s319, 8
        %s321 = smul.addr %s320, 8
        %s322 = scalar_lea.vmem %s1, %s321
      $region52: #{pointnet_backbone_forward.6} parent=43 // pred_fallthru
        _
      // Predicated region
      $region53: #{pointnet_backbone_forward.6} parent=43 // pred_check
        %p323 = pneg %p88
      $region54: #{pointnet_backbone_forward.6} parent=43 // pred_check_branch
        %325 = sbr.rel (%p323) target = $region56
      $region55: #{pointnet_backbone_forward.6} parent=43 // pred_region
        %p326 = scmp.lt.s32.totalorder %s16, 1
        %s327 = scalar_select %p326, %s16, 1
        %s328 = smul.addr %s327, 8
        %s329 = smul.addr %s328, 8
        %s330 = scalar_lea.vmem %s2, %s329
      $region56: #{pointnet_backbone_forward.6} parent=43 // pred_fallthru
        _
    $region44: #{pointnet_backbone_forward.6} parent=5 // pred_fallthru
      _
    %p331 = scmp.le.s32.totalorder 1, %s16
    %p332 = scmp.lt.s32.totalorder %s16, 3
    %p333 = pnand %p331, %p332
    %p334 = pneg %p333
    // Predicated region
    $region57: #{pointnet_backbone_forward.6} parent=5 // pred_check
      _
    $region58: #{pointnet_backbone_forward.6} parent=5 // pred_check_branch
      %336 = sbr.rel (%p333) target = $region60
    $region59: #{pointnet_backbone_forward.6} parent=5 // pred_region
      %s337 = ssub.s32 %s16, 1
      %p338 = scmp.lt.s32.totalorder %s21, 1
      %s339 = scalar_select %p338, %s21, 1
      %s340 = smul.addr %s339, 32
      %s341 = smul.addr %s340, 8
      %s342 = scalar_lea.vmem %s0, %s341
      %p343 = pneg %p42
      %p344 = pneg %p39
      %p345 = scmp.lt.s32.totalorder %s21, 1
      %s346 = scalar_select %p345, %s21, 1
      %s347 = smul.addr %s346, 8
      %s348 = smul.addr %s347, 8
      %s349 = scalar_lea.vmem %s1, %s348
      %p350 = pneg %p68
      %p351 = pneg %p65
      %p352 = scmp.lt.s32.totalorder %s21, 1
      %s353 = scalar_select %p352, %s21, 1
      %s354 = smul.addr %s353, 8
      %s355 = smul.addr %s354, 8
      %s356 = scalar_lea.vmem %s2, %s355
      %p357 = pneg %p94
      %p358 = pneg %p91
      %p359 = pneg %p115
      %p360 = pneg %p112
      %p361 = pneg %p136
      %p362 = pneg %p133
      %p363 = pneg %p157
      %p364 = pneg %p154
      %p365 = pneg %p178
      %p366 = pneg %p175
      %p367 = pneg %p199
      %p368 = pneg %p196
      %p369 = pneg %p220
      %p370 = pneg %p217
      %p371 = pneg %p241
      %p372 = pneg %p238
      %p373 = pneg %p267
      %p374 = pneg %p264
      %p375 = scmp.lt.s32.totalorder %s21, 1
      %s376 = scalar_select %p375, %s21, 1
      %s377 = smul.addr %s376, 4
      %s378 = smul.addr %s377, 8
      %s379 = scalar_lea.vmem %s10, %s378
      %p380 = scmp.lt.s32.totalorder %s21, 1
      %s381 = scalar_select %p380, %s21, 1
      %s382 = smul.addr %s381, 32
      %s383 = smul.addr %s382, 8
      %s384 = scalar_lea.vmem %s0, %s383
      %p385 = scmp.lt.s32.totalorder %s21, 1
      %s386 = scalar_select %p385, %s21, 1
      %s387 = smul.addr %s386, 8
      %s388 = smul.addr %s387, 8
      %s389 = scalar_lea.vmem %s1, %s388
      %p390 = scmp.lt.s32.totalorder %s21, 1
      %s391 = scalar_select %p390, %s21, 1
      %s392 = smul.addr %s391, 8
      %s393 = smul.addr %s392, 8
      %s394 = scalar_lea.vmem %s2, %s393
      %p395 = scmp.lt.s32.totalorder %s21, 1
      %s396 = scalar_select %p395, %s21, 1
      %s397 = smul.addr %s396, 4
      %s398 = smul.addr %s397, 8
      %s399 = scalar_lea.vmem %s10, %s398
      %v401 = vld [vmem:[%s384] sm:$0xff]
      %v402 = vld [vmem:[%s384 + $0x8] sm:$0xff]
      %v403 = vld [vmem:[%s384 + $0x10] sm:$0xff]
      %v404 = vld [vmem:[%s384 + $0x18] sm:$0xff]
      %v405 = vld [vmem:[%s384 + $0x20] sm:$0xff]
      %v406 = vld [vmem:[%s384 + $0x28] sm:$0xff]
      %v407 = vld [vmem:[%s384 + $0x30] sm:$0xff]
      %v408 = vld [vmem:[%s384 + $0x38] sm:$0xff]
      %v409 = vld [vmem:[%s384 + $0x40] sm:$0xff]
      %v410 = vld [vmem:[%s384 + $0x48] sm:$0xff]
      %v411 = vld [vmem:[%s384 + $0x50] sm:$0xff]
      %v412 = vld [vmem:[%s384 + $0x58] sm:$0xff]
      %v413 = vld [vmem:[%s384 + $0x60] sm:$0xff]
      %v414 = vld [vmem:[%s384 + $0x68] sm:$0xff]
      %v415 = vld [vmem:[%s384 + $0x70] sm:$0xff]
      %v416 = vld [vmem:[%s384 + $0x78] sm:$0xff]
      %v417 = vld [vmem:[%s384 + $0x80] sm:$0xff]
      %v418 = vld [vmem:[%s384 + $0x88] sm:$0xff]
      %v419 = vld [vmem:[%s384 + $0x90] sm:$0xff]
      %v420 = vld [vmem:[%s384 + $0x98] sm:$0xff]
      %v421 = vld [vmem:[%s384 + $0xa0] sm:$0xff]
      %v422 = vld [vmem:[%s384 + $0xa8] sm:$0xff]
      %v423 = vld [vmem:[%s384 + $0xb0] sm:$0xff]
      %v424 = vld [vmem:[%s384 + $0xb8] sm:$0xff]
      %v425 = vld [vmem:[%s384 + $0xc0] sm:$0xff]
      %v426 = vld [vmem:[%s384 + $0xc8] sm:$0xff]
      %v427 = vld [vmem:[%s384 + $0xd0] sm:$0xff]
      %v428 = vld [vmem:[%s384 + $0xd8] sm:$0xff]
      %v429 = vld [vmem:[%s384 + $0xe0] sm:$0xff]
      %v430 = vld [vmem:[%s384 + $0xe8] sm:$0xff]
      %v431 = vld [vmem:[%s384 + $0xf0] sm:$0xff]
      %v432 = vld [vmem:[%s384 + $0xf8] sm:$0xff]
      %v433 = vld [vmem:[%s389] sm:$0xff]
      %v434 = vld [vmem:[%s389 + $0x8] sm:$0xff]
      %v435 = vld [vmem:[%s389 + $0x10] sm:$0xff]
      %v436 = vld [vmem:[%s389 + $0x18] sm:$0xff]
      %v437 = vld [vmem:[%s389 + $0x20] sm:$0xff]
      %v438 = vld [vmem:[%s389 + $0x28] sm:$0xff]
      %v439 = vld [vmem:[%s389 + $0x30] sm:$0xff]
      %v440 = vld [vmem:[%s389 + $0x38] sm:$0xff]
      %v441 = vlaneseq
      %v442 = vand.u32 %v441, 127
      %443 = vset.pattern.permute.xlu0 0
      %444 = vperm.xlu0 %443, %v401
      %v445 = vpop.permute.xlu0 %444
      %446 = vset.pattern.permute.xlu0 0
      %447 = vperm.xlu0 %446, %v402
      %v448 = vpop.permute.xlu0 %447
      %449 = vset.pattern.permute.xlu0 0
      %450 = vperm.xlu0 %449, %v403
      %v451 = vpop.permute.xlu0 %450
      %452 = vset.pattern.permute.xlu0 0
      %453 = vperm.xlu0 %452, %v404
      %v454 = vpop.permute.xlu0 %453
      %455 = vset.pattern.permute.xlu0 0
      %456 = vperm.xlu0 %455, %v405
      %v457 = vpop.permute.xlu0 %456
      %458 = vset.pattern.permute.xlu0 0
      %459 = vperm.xlu0 %458, %v406
      %v460 = vpop.permute.xlu0 %459
      %461 = vset.pattern.permute.xlu0 0
      %462 = vperm.xlu0 %461, %v407
      %v463 = vpop.permute.xlu0 %462
      %464 = vset.pattern.permute.xlu0 0
      %465 = vperm.xlu0 %464, %v408
      %v466 = vpop.permute.xlu0 %465
      %467 = vset.pattern.permute.xlu0 0
      %468 = vperm.xlu0 %467, %v409
      %v469 = vpop.permute.xlu0 %468
      %470 = vset.pattern.permute.xlu0 0
      %471 = vperm.xlu0 %470, %v410
      %v472 = vpop.permute.xlu0 %471
      %473 = vset.pattern.permute.xlu0 0
      %474 = vperm.xlu0 %473, %v411
      %v475 = vpop.permute.xlu0 %474
      %476 = vset.pattern.permute.xlu0 0
      %477 = vperm.xlu0 %476, %v412
      %v478 = vpop.permute.xlu0 %477
      %479 = vset.pattern.permute.xlu0 0
      %480 = vperm.xlu0 %479, %v413
      %v481 = vpop.permute.xlu0 %480
      %482 = vset.pattern.permute.xlu0 0
      %483 = vperm.xlu0 %482, %v414
      %v484 = vpop.permute.xlu0 %483
      %485 = vset.pattern.permute.xlu0 0
      %486 = vperm.xlu0 %485, %v415
      %v487 = vpop.permute.xlu0 %486
      %488 = vset.pattern.permute.xlu0 0
      %489 = vperm.xlu0 %488, %v416
      %v490 = vpop.permute.xlu0 %489
      %491 = vset.pattern.permute.xlu0 0
      %492 = vperm.xlu0 %491, %v417
      %v493 = vpop.permute.xlu0 %492
      %494 = vset.pattern.permute.xlu0 0
      %495 = vperm.xlu0 %494, %v418
      %v496 = vpop.permute.xlu0 %495
      %497 = vset.pattern.permute.xlu0 0
      %498 = vperm.xlu0 %497, %v419
      %v499 = vpop.permute.xlu0 %498
      %500 = vset.pattern.permute.xlu0 0
      %501 = vperm.xlu0 %500, %v420
      %v502 = vpop.permute.xlu0 %501
      %503 = vset.pattern.permute.xlu0 0
      %504 = vperm.xlu0 %503, %v421
      %v505 = vpop.permute.xlu0 %504
      %506 = vset.pattern.permute.xlu0 0
      %507 = vperm.xlu0 %506, %v422
      %v508 = vpop.permute.xlu0 %507
      %509 = vset.pattern.permute.xlu0 0
      %510 = vperm.xlu0 %509, %v423
      %v511 = vpop.permute.xlu0 %510
      %512 = vset.pattern.permute.xlu0 0
      %513 = vperm.xlu0 %512, %v424
      %v514 = vpop.permute.xlu0 %513
      %515 = vset.pattern.permute.xlu0 0
      %516 = vperm.xlu0 %515, %v425
      %v517 = vpop.permute.xlu0 %516
      %518 = vset.pattern.permute.xlu0 0
      %519 = vperm.xlu0 %518, %v426
      %v520 = vpop.permute.xlu0 %519
      %521 = vset.pattern.permute.xlu0 0
      %522 = vperm.xlu0 %521, %v427
      %v523 = vpop.permute.xlu0 %522
      %524 = vset.pattern.permute.xlu0 0
      %525 = vperm.xlu0 %524, %v428
      %v526 = vpop.permute.xlu0 %525
      %527 = vset.pattern.permute.xlu0 0
      %528 = vperm.xlu0 %527, %v429
      %v529 = vpop.permute.xlu0 %528
      %530 = vset.pattern.permute.xlu0 0
      %531 = vperm.xlu0 %530, %v430
      %v532 = vpop.permute.xlu0 %531
      %533 = vset.pattern.permute.xlu0 0
      %534 = vperm.xlu0 %533, %v431
      %v535 = vpop.permute.xlu0 %534
      %536 = vset.pattern.permute.xlu0 0
      %537 = vperm.xlu0 %536, %v432
      %v538 = vpop.permute.xlu0 %537
      %vm539 = vcmp.eq.s32.totalorder %v445, %v442
      %vm540 = vcmp.eq.s32.totalorder %v448, %v442
      %vm541 = vcmp.eq.s32.totalorder %v451, %v442
      %vm542 = vcmp.eq.s32.totalorder %v454, %v442
      %vm543 = vcmp.eq.s32.totalorder %v457, %v442
      %vm544 = vcmp.eq.s32.totalorder %v460, %v442
      %vm545 = vcmp.eq.s32.totalorder %v463, %v442
      %vm546 = vcmp.eq.s32.totalorder %v466, %v442
      %vm547 = vcmp.eq.s32.totalorder %v469, %v442
      %vm548 = vcmp.eq.s32.totalorder %v472, %v442
      %vm549 = vcmp.eq.s32.totalorder %v475, %v442
      %vm550 = vcmp.eq.s32.totalorder %v478, %v442
      %vm551 = vcmp.eq.s32.totalorder %v481, %v442
      %vm552 = vcmp.eq.s32.totalorder %v484, %v442
      %vm553 = vcmp.eq.s32.totalorder %v487, %v442
      %vm554 = vcmp.eq.s32.totalorder %v490, %v442
      %vm555 = vcmp.eq.s32.totalorder %v493, %v442
      %vm556 = vcmp.eq.s32.totalorder %v496, %v442
      %vm557 = vcmp.eq.s32.totalorder %v499, %v442
      %vm558 = vcmp.eq.s32.totalorder %v502, %v442
      %vm559 = vcmp.eq.s32.totalorder %v505, %v442
      %vm560 = vcmp.eq.s32.totalorder %v508, %v442
      %vm561 = vcmp.eq.s32.totalorder %v511, %v442
      %vm562 = vcmp.eq.s32.totalorder %v514, %v442
      %vm563 = vcmp.eq.s32.totalorder %v517, %v442
      %vm564 = vcmp.eq.s32.totalorder %v520, %v442
      %vm565 = vcmp.eq.s32.totalorder %v523, %v442
      %vm566 = vcmp.eq.s32.totalorder %v526, %v442
      %vm567 = vcmp.eq.s32.totalorder %v529, %v442
      %vm568 = vcmp.eq.s32.totalorder %v532, %v442
      %vm569 = vcmp.eq.s32.totalorder %v535, %v442
      %vm570 = vcmp.eq.s32.totalorder %v538, %v442
      %v571 = vsel %vm539, 1, 0
      %v572 = vsel %vm540, 1, 0
      %v573 = vsel %vm541, 1, 0
      %v574 = vsel %vm542, 1, 0
      %v575 = vsel %vm543, 1, 0
      %v576 = vsel %vm544, 1, 0
      %v577 = vsel %vm545, 1, 0
      %v578 = vsel %vm546, 1, 0
      %v579 = vsel %vm547, 1, 0
      %v580 = vsel %vm548, 1, 0
      %v581 = vsel %vm549, 1, 0
      %v582 = vsel %vm550, 1, 0
      %v583 = vsel %vm551, 1, 0
      %v584 = vsel %vm552, 1, 0
      %v585 = vsel %vm553, 1, 0
      %v586 = vsel %vm554, 1, 0
      %v587 = vsel %vm555, 1, 0
      %v588 = vsel %vm556, 1, 0
      %v589 = vsel %vm557, 1, 0
      %v590 = vsel %vm558, 1, 0
      %v591 = vsel %vm559, 1, 0
      %v592 = vsel %vm560, 1, 0
      %v593 = vsel %vm561, 1, 0
      %v594 = vsel %vm562, 1, 0
      %v595 = vsel %vm563, 1, 0
      %v596 = vsel %vm564, 1, 0
      %v597 = vsel %vm565, 1, 0
      %v598 = vsel %vm566, 1, 0
      %v599 = vsel %vm567, 1, 0
      %v600 = vsel %vm568, 1, 0
      %v601 = vsel %vm569, 1, 0
      %v602 = vsel %vm570, 1, 0
      %v603 = vcvt.s32.f32 %v571
      %v604 = vcvt.s32.f32 %v572
      %v605 = vcvt.s32.f32 %v573
      %v606 = vcvt.s32.f32 %v574
      %v607 = vcvt.s32.f32 %v575
      %v608 = vcvt.s32.f32 %v576
      %v609 = vcvt.s32.f32 %v577
      %v610 = vcvt.s32.f32 %v578
      %v611 = vcvt.s32.f32 %v579
      %v612 = vcvt.s32.f32 %v580
      %v613 = vcvt.s32.f32 %v581
      %v614 = vcvt.s32.f32 %v582
      %v615 = vcvt.s32.f32 %v583
      %v616 = vcvt.s32.f32 %v584
      %v617 = vcvt.s32.f32 %v585
      %v618 = vcvt.s32.f32 %v586
      %v619 = vcvt.s32.f32 %v587
      %v620 = vcvt.s32.f32 %v588
      %v621 = vcvt.s32.f32 %v589
      %v622 = vcvt.s32.f32 %v590
      %v623 = vcvt.s32.f32 %v591
      %v624 = vcvt.s32.f32 %v592
      %v625 = vcvt.s32.f32 %v593
      %v626 = vcvt.s32.f32 %v594
      %v627 = vcvt.s32.f32 %v595
      %v628 = vcvt.s32.f32 %v596
      %v629 = vcvt.s32.f32 %v597
      %v630 = vcvt.s32.f32 %v598
      %v631 = vcvt.s32.f32 %v599
      %v632 = vcvt.s32.f32 %v600
      %v633 = vcvt.s32.f32 %v601
      %v634 = vcvt.s32.f32 %v602
      %v635 = vpack.c.bf16 %v434, %v433
      %v636 = vpack.c.bf16 %v436, %v435
      %v637 = vpack.c.bf16 %v438, %v437
      %v638 = vpack.c.bf16 %v440, %v439
      %v639 = vld [vmem:[%s3] sm:$0x3]
      %vm640 = vcmask 23552
      %v642 = vsel %vm640, %v635, 0
      %v645 = vsel %vm640, %v636, 0
      %v648 = vsel %vm640, %v637, 0
      %v651 = vsel %vm640, %v638, 0
      %vm653 = vcmask 1040384
      %vm654 = vcmask 1041408
      %v655 = vsel %vm653, 4294967295, 65535
      %v656 = vsel %vm654, %v655, 0
      %v658 = vand.u32 %v639, %v656
      %660 = vmatprep.subr.bf16.mxu0 0
      %661 = vmatpush1.bf16.msra.mxu0 %v658
      %662 = vmatprep.subr.bf16.mxu0 0
      %663 = vmatpush1.bf16.msra.mxu0 0
      %664 = vmatprep.subr.bf16.mxu0 0
      %665 = vmatpush1.bf16.msra.mxu0 0
      %666 = vmatprep.subr.bf16.mxu0 0
      %667 = vmatpush1.bf16.msra.mxu0 0
      %668 = vmatprep.subr.bf16.mxu0 0
      %669 = vmatpush1.bf16.msra.mxu0 0
      %670 = vmatprep.subr.bf16.mxu0 0
      %671 = vmatpush1.bf16.msra.mxu0 0
      %672 = vmatprep.subr.bf16.mxu0 0
      %673 = vmatpush1.bf16.msra.mxu0 0
      %674 = vmatprep.subr.bf16.mxu0 0
      %675 = vmatpush1.bf16.msra.mxu0 0
      %676 = vmatprep.subr.bf16.mxu0 0
      %677 = vmatpush1.bf16.msra.mxu0 0
      %678 = vmatprep.subr.bf16.mxu0 0
      %679 = vmatpush1.bf16.msra.mxu0 0
      %680 = vmatprep.subr.bf16.mxu0 0
      %681 = vmatpush1.bf16.msra.mxu0 0
      %682 = vmatprep.subr.bf16.mxu0 0
      %683 = vmatpush1.bf16.msra.mxu0 0
      %684 = vmatprep.subr.bf16.mxu0 0
      %685 = vmatpush1.bf16.msra.mxu0 0
      %686 = vmatprep.subr.bf16.mxu0 0
      %687 = vmatpush1.bf16.msra.mxu0 0
      %688 = vmatprep.subr.bf16.mxu0 0
      %689 = vmatpush1.bf16.msra.mxu0 0
      %690 = vmatprep.subr.bf16.mxu0 0
      %691 = vmatpush1.bf16.msra.mxu0 0
      %692 = vmatprep.mubr.bf16.mxu0 0
      %693 = vmatmul.mubr.bf16.gmra.mrb[0].mxu0 %v642
      %v694 = vpop.f32.mrb[0].mxu0
      %v695 = vadd.f32 0.0, %v694
      %v696 = vpop.f32.mrb[0].mxu0
      %v697 = vpop.f32.mrb[0].mxu0
      %v698 = vadd.f32 0.0, %v697
      %v699 = vpop.f32.mrb[0].mxu0
      %700 = vmatprep.mubr.bf16.mxu0 0
      %701 = vmatmul.mubr.bf16.gmra.mrb[0].mxu0 %v645
      %v702 = vpop.f32.mrb[0].mxu0
      %v703 = vadd.f32 0.0, %v702
      %v704 = vpop.f32.mrb[0].mxu0
      %v705 = vpop.f32.mrb[0].mxu0
      %v706 = vadd.f32 0.0, %v705
      %v707 = vpop.f32.mrb[0].mxu0
      %708 = vmatprep.mubr.bf16.mxu0 0
      %709 = vmatmul.mubr.bf16.gmra.mrb[0].mxu0 %v648
      %v710 = vpop.f32.mrb[0].mxu0
      %v711 = vadd.f32 0.0, %v710
      %v712 = vpop.f32.mrb[0].mxu0
      %v713 = vpop.f32.mrb[0].mxu0
      %v714 = vadd.f32 0.0, %v713
      %v715 = vpop.f32.mrb[0].mxu0
      %716 = vmatprep.mubr.bf16.mxu0 0
      %717 = vmatmul.mubr.bf16.gmra.mrb[0].mxu0 %v651
      %v718 = vpop.f32.mrb[0].mxu0
      %v719 = vadd.f32 0.0, %v718
      %v720 = vpop.f32.mrb[0].mxu0
      %v721 = vpop.f32.mrb[0].mxu0
      %v722 = vadd.f32 0.0, %v721
      %v723 = vpop.f32.mrb[0].mxu0
      %724 = vdwg.mxu0
      %vm725 = vcmask 523264
      %v727 = vsel %vm725, %v603, 0
      %v730 = vsel %vm725, %v604, 0
      %v733 = vsel %vm725, %v605, 0
      %v736 = vsel %vm725, %v606, 0
      %v739 = vsel %vm725, %v607, 0
      %v742 = vsel %vm725, %v608, 0
      %v745 = vsel %vm725, %v609, 0
      %v748 = vsel %vm725, %v610, 0
      %v751 = vsel %vm725, %v611, 0
      %v754 = vsel %vm725, %v612, 0
      %v757 = vsel %vm725, %v613, 0
      %v760 = vsel %vm725, %v614, 0
      %v763 = vsel %vm725, %v615, 0
      %v766 = vsel %vm725, %v616, 0
      %v769 = vsel %vm725, %v617, 0
      %v772 = vsel %vm725, %v618, 0
      %v775 = vsel %vm725, %v619, 0
      %v778 = vsel %vm725, %v620, 0
      %v781 = vsel %vm725, %v621, 0
      %v784 = vsel %vm725, %v622, 0
      %v787 = vsel %vm725, %v623, 0
      %v790 = vsel %vm725, %v624, 0
      %v793 = vsel %vm725, %v625, 0
      %v796 = vsel %vm725, %v626, 0
      %v799 = vsel %vm725, %v627, 0
      %v802 = vsel %vm725, %v628, 0
      %v805 = vsel %vm725, %v629, 0
      %v808 = vsel %vm725, %v630, 0
      %v811 = vsel %vm725, %v631, 0
      %v814 = vsel %vm725, %v632, 0
      %v817 = vsel %vm725, %v633, 0
      %v820 = vsel %vm725, %v634, 0
      %822 = vmatprep.subr.mxu0 0.0
      %823 = vmatpush1.msra.mxu0 %v695
      %824 = vmatprep.subr.mxu0 0.0
      %825 = vmatpush1.msra.mxu0 %v698
      %826 = vmatprep.subr.mxu0 0.0
      %827 = vmatpush1.msra.mxu0 %v703
      %828 = vmatprep.subr.mxu0 0.0
      %829 = vmatpush1.msra.mxu0 %v706
      %830 = vmatprep.subr.mxu0 0.0
      %831 = vmatpush1.msra.mxu0 %v711
      %832 = vmatprep.subr.mxu0 0.0
      %833 = vmatpush1.msra.mxu0 %v714
      %834 = vmatprep.subr.mxu0 0.0
      %835 = vmatpush1.msra.mxu0 %v719
      %836 = vmatprep.subr.mxu0 0.0
      %837 = vmatpush1.msra.mxu0 %v722
      %838 = vmatprep.subr.mxu0 0.0
      %839 = vmatpush1.msra.mxu0 0.0
      %840 = vmatprep.subr.mxu0 0.0
      %841 = vmatpush1.msra.mxu0 0.0
      %842 = vmatprep.subr.mxu0 0.0
      %843 = vmatpush1.msra.mxu0 0.0
      %844 = vmatprep.subr.mxu0 0.0
      %845 = vmatpush1.msra.mxu0 0.0
      %846 = vmatprep.subr.mxu0 0.0
      %847 = vmatpush1.msra.mxu0 0.0
      %848 = vmatprep.subr.mxu0 0.0
      %849 = vmatpush1.msra.mxu0 0.0
      %850 = vmatprep.subr.mxu0 0.0
      %851 = vmatpush1.msra.mxu0 0.0
      %852 = vmatprep.subr.mxu0 0.0
      %853 = vmatpush1.msra.mxu0 0.0
      %854 = vmatprep.subr.mxu0 0.0
      %855 = vmatpush1.msra.mxu0 0.0
      %856 = vmatprep.subr.mxu0 0.0
      %857 = vmatpush1.msra.mxu0 0.0
      %858 = vmatprep.subr.mxu0 0.0
      %859 = vmatpush1.msra.mxu0 0.0
      %860 = vmatprep.subr.mxu0 0.0
      %861 = vmatpush1.msra.mxu0 0.0
      %862 = vmatprep.subr.mxu0 0.0
      %863 = vmatpush1.msra.mxu0 0.0
      %864 = vmatprep.subr.mxu0 0.0
      %865 = vmatpush1.msra.mxu0 0.0
      %866 = vmatprep.subr.mxu0 0.0
      %867 = vmatpush1.msra.mxu0 0.0
      %868 = vmatprep.subr.mxu0 0.0
      %869 = vmatpush1.msra.mxu0 0.0
      %870 = vmatprep.subr.mxu0 0.0
      %871 = vmatpush1.msra.mxu0 0.0
      %872 = vmatprep.subr.mxu0 0.0
      %873 = vmatpush1.msra.mxu0 0.0
      %874 = vmatprep.subr.mxu0 0.0
      %875 = vmatpush1.msra.mxu0 0.0
      %876 = vmatprep.subr.mxu0 0.0
      %877 = vmatpush1.msra.mxu0 0.0
      %878 = vmatprep.subr.mxu0 0.0
      %879 = vmatpush1.msra.mxu0 0.0
      %880 = vmatprep.subr.mxu0 0.0
      %881 = vmatpush1.msra.mxu0 0.0
      %882 = vmatprep.subr.mxu0 0.0
      %883 = vmatpush1.msra.mxu0 0.0
      %884 = vmatprep.subr.mxu0 0.0
      %885 = vmatpush1.msra.mxu0 0.0
      %886 = vmatprep.mubr.f32.mxu0 0.0
      %887 = vmatmul.mubr.f32.gmra.mrb[0].mxu0 %v727
      %v888 = vpop.f32.mrb[0].mxu0
      %v889 = vadd.f32 0.0, %v888
      %v890 = vpop.f32.mrb[0].mxu0
      %891 = vmatprep.mubr.f32.mxu0 0.0
      %892 = vmatmul.mubr.f32.gmra.mrb[0].mxu0 %v730
      %v893 = vpop.f32.mrb[0].mxu0
      %v894 = vadd.f32 0.0, %v893
      %v895 = vpop.f32.mrb[0].mxu0
      %896 = vmatprep.mubr.f32.mxu0 0.0
      %897 = vmatmul.mubr.f32.gmra.mrb[0].mxu0 %v733
      %v898 = vpop.f32.mrb[0].mxu0
      %v899 = vadd.f32 0.0, %v898
      %v900 = vpop.f32.mrb[0].mxu0
      %901 = vmatprep.mubr.f32.mxu0 0.0
      %902 = vmatmul.mubr.f32.gmra.mrb[0].mxu0 %v736
      %v903 = vpop.f32.mrb[0].mxu0
      %v904 = vadd.f32 0.0, %v903
      %v905 = vpop.f32.mrb[0].mxu0
      %906 = vmatprep.mubr.f32.mxu0 0.0
      %907 = vmatmul.mubr.f32.gmra.mrb[0].mxu0 %v739
      %v908 = vpop.f32.mrb[0].mxu0
      %v909 = vadd.f32 0.0, %v908
      %v910 = vpop.f32.mrb[0].mxu0
      %911 = vmatprep.mubr.f32.mxu0 0.0
      %912 = vmatmul.mubr.f32.gmra.mrb[0].mxu0 %v742
      %v913 = vpop.f32.mrb[0].mxu0
      %v914 = vadd.f32 0.0, %v913
      %v915 = vpop.f32.mrb[0].mxu0
      %916 = vmatprep.mubr.f32.mxu0 0.0
      %917 = vmatmul.mubr.f32.gmra.mrb[0].mxu0 %v745
      %v918 = vpop.f32.mrb[0].mxu0
      %v919 = vadd.f32 0.0, %v918
      %v920 = vpop.f32.mrb[0].mxu0
      %921 = vmatprep.mubr.f32.mxu0 0.0
      %922 = vmatmul.mubr.f32.gmra.mrb[0].mxu0 %v748
      %v923 = vpop.f32.mrb[0].mxu0
      %v924 = vadd.f32 0.0, %v923
      %v925 = vpop.f32.mrb[0].mxu0
      %926 = vmatprep.mubr.f32.mxu0 0.0
      %927 = vmatmul.mubr.f32.gmra.mrb[0].mxu0 %v751
      %v928 = vpop.f32.mrb[0].mxu0
      %v929 = vadd.f32 0.0, %v928
      %v930 = vpop.f32.mrb[0].mxu0
      %931 = vmatprep.mubr.f32.mxu0 0.0
      %932 = vmatmul.mubr.f32.gmra.mrb[0].mxu0 %v754
      %v933 = vpop.f32.mrb[0].mxu0
      %v934 = vadd.f32 0.0, %v933
      %v935 = vpop.f32.mrb[0].mxu0
      %936 = vmatprep.mubr.f32.mxu0 0.0
      %937 = vmatmul.mubr.f32.gmra.mrb[0].mxu0 %v757
      %v938 = vpop.f32.mrb[0].mxu0
      %v939 = vadd.f32 0.0, %v938
      %v940 = vpop.f32.mrb[0].mxu0
      %941 = vmatprep.mubr.f32.mxu0 0.0
      %942 = vmatmul.mubr.f32.gmra.mrb[0].mxu0 %v760
      %v943 = vpop.f32.mrb[0].mxu0
      %v944 = vadd.f32 0.0, %v943
      %v945 = vpop.f32.mrb[0].mxu0
      %946 = vmatprep.mubr.f32.mxu0 0.0
      %947 = vmatmul.mubr.f32.gmra.mrb[0].mxu0 %v763
      %v948 = vpop.f32.mrb[0].mxu0
      %v949 = vadd.f32 0.0, %v948
      %v950 = vpop.f32.mrb[0].mxu0
      %951 = vmatprep.mubr.f32.mxu0 0.0
      %952 = vmatmul.mubr.f32.gmra.mrb[0].mxu0 %v766
      %v953 = vpop.f32.mrb[0].mxu0
      %v954 = vadd.f32 0.0, %v953
      %v955 = vpop.f32.mrb[0].mxu0
      %956 = vmatprep.mubr.f32.mxu0 0.0
      %957 = vmatmul.mubr.f32.gmra.mrb[0].mxu0 %v769
      %v958 = vpop.f32.mrb[0].mxu0
      %v959 = vadd.f32 0.0, %v958
      %v960 = vpop.f32.mrb[0].mxu0
      %961 = vmatprep.mubr.f32.mxu0 0.0
      %962 = vmatmul.mubr.f32.gmra.mrb[0].mxu0 %v772
      %v963 = vpop.f32.mrb[0].mxu0
      %v964 = vadd.f32 0.0, %v963
      %v965 = vpop.f32.mrb[0].mxu0
      %966 = vmatprep.mubr.f32.mxu0 0.0
      %967 = vmatmul.mubr.f32.gmra.mrb[0].mxu0 %v775
      %v968 = vpop.f32.mrb[0].mxu0
      %v969 = vadd.f32 0.0, %v968
      %v970 = vpop.f32.mrb[0].mxu0
      %971 = vmatprep.mubr.f32.mxu0 0.0
      %972 = vmatmul.mubr.f32.gmra.mrb[0].mxu0 %v778
      %v973 = vpop.f32.mrb[0].mxu0
      %v974 = vadd.f32 0.0, %v973
      %v975 = vpop.f32.mrb[0].mxu0
      %976 = vmatprep.mubr.f32.mxu0 0.0
      %977 = vmatmul.mubr.f32.gmra.mrb[0].mxu0 %v781
      %v978 = vpop.f32.mrb[0].mxu0
      %v979 = vadd.f32 0.0, %v978
      %v980 = vpop.f32.mrb[0].mxu0
      %981 = vmatprep.mubr.f32.mxu0 0.0
      %982 = vmatmul.mubr.f32.gmra.mrb[0].mxu0 %v784
      %v983 = vpop.f32.mrb[0].mxu0
      %v984 = vadd.f32 0.0, %v983
      %v985 = vpop.f32.mrb[0].mxu0
      %986 = vmatprep.mubr.f32.mxu0 0.0
      %987 = vmatmul.mubr.f32.gmra.mrb[0].mxu0 %v787
      %v988 = vpop.f32.mrb[0].mxu0
      %v989 = vadd.f32 0.0, %v988
      %v990 = vpop.f32.mrb[0].mxu0
      %991 = vmatprep.mubr.f32.mxu0 0.0
      %992 = vmatmul.mubr.f32.gmra.mrb[0].mxu0 %v790
      %v993 = vpop.f32.mrb[0].mxu0
      %v994 = vadd.f32 0.0, %v993
      %v995 = vpop.f32.mrb[0].mxu0
      %996 = vmatprep.mubr.f32.mxu0 0.0
      %997 = vmatmul.mubr.f32.gmra.mrb[0].mxu0 %v793
      %v998 = vpop.f32.mrb[0].mxu0
      %v999 = vadd.f32 0.0, %v998
      %v1000 = vpop.f32.mrb[0].mxu0
      %1001 = vmatprep.mubr.f32.mxu0 0.0
      %1002 = vmatmul.mubr.f32.gmra.mrb[0].mxu0 %v796
      %v1003 = vpop.f32.mrb[0].mxu0
      %v1004 = vadd.f32 0.0, %v1003
      %v1005 = vpop.f32.mrb[0].mxu0
      %1006 = vmatprep.mubr.f32.mxu0 0.0
      %1007 = vmatmul.mubr.f32.gmra.mrb[0].mxu0 %v799
      %v1008 = vpop.f32.mrb[0].mxu0
      %v1009 = vadd.f32 0.0, %v1008
      %v1010 = vpop.f32.mrb[0].mxu0
      %1011 = vmatprep.mubr.f32.mxu0 0.0
      %1012 = vmatmul.mubr.f32.gmra.mrb[0].mxu0 %v802
      %v1013 = vpop.f32.mrb[0].mxu0
      %v1014 = vadd.f32 0.0, %v1013
      %v1015 = vpop.f32.mrb[0].mxu0
      %1016 = vmatprep.mubr.f32.mxu0 0.0
      %1017 = vmatmul.mubr.f32.gmra.mrb[0].mxu0 %v805
      %v1018 = vpop.f32.mrb[0].mxu0
      %v1019 = vadd.f32 0.0, %v1018
      %v1020 = vpop.f32.mrb[0].mxu0
      %1021 = vmatprep.mubr.f32.mxu0 0.0
      %1022 = vmatmul.mubr.f32.gmra.mrb[0].mxu0 %v808
      %v1023 = vpop.f32.mrb[0].mxu0
      %v1024 = vadd.f32 0.0, %v1023
      %v1025 = vpop.f32.mrb[0].mxu0
      %1026 = vmatprep.mubr.f32.mxu0 0.0
      %1027 = vmatmul.mubr.f32.gmra.mrb[0].mxu0 %v811
      %v1028 = vpop.f32.mrb[0].mxu0
      %v1029 = vadd.f32 0.0, %v1028
      %v1030 = vpop.f32.mrb[0].mxu0
      %1031 = vmatprep.mubr.f32.mxu0 0.0
      %1032 = vmatmul.mubr.f32.gmra.mrb[0].mxu0 %v814
      %v1033 = vpop.f32.mrb[0].mxu0
      %v1034 = vadd.f32 0.0, %v1033
      %v1035 = vpop.f32.mrb[0].mxu0
      %1036 = vmatprep.mubr.f32.mxu0 0.0
      %1037 = vmatmul.mubr.f32.gmra.mrb[0].mxu0 %v817
      %v1038 = vpop.f32.mrb[0].mxu0
      %v1039 = vadd.f32 0.0, %v1038
      %v1040 = vpop.f32.mrb[0].mxu0
      %1041 = vmatprep.mubr.f32.mxu0 0.0
      %1042 = vmatmul.mubr.f32.gmra.mrb[0].mxu0 %v820
      %v1043 = vpop.f32.mrb[0].mxu0
      %v1044 = vadd.f32 0.0, %v1043
      %v1045 = vpop.f32.mrb[0].mxu0
      %1046 = vdwg.mxu0
      %v1047 = vsub.f32 %v889, %v695
      %v1048 = vsub.f32 %v894, %v698
      %v1049 = vsub.f32 %v899, %v703
      %v1050 = vsub.f32 %v904, %v706
      %v1051 = vsub.f32 %v909, %v695
      %v1052 = vsub.f32 %v914, %v698
      %v1053 = vsub.f32 %v919, %v703
      %v1054 = vsub.f32 %v924, %v706
      %v1055 = vsub.f32 %v929, %v695
      %v1056 = vsub.f32 %v934, %v698
      %v1057 = vsub.f32 %v939, %v703
      %v1058 = vsub.f32 %v944, %v706
      %v1059 = vsub.f32 %v949, %v695
      %v1060 = vsub.f32 %v954, %v698
      %v1061 = vsub.f32 %v959, %v703
      %v1062 = vsub.f32 %v964, %v706
      %v1063 = vsub.f32 %v969, %v695
      %v1064 = vsub.f32 %v974, %v698
      %v1065 = vsub.f32 %v979, %v703
      %v1066 = vsub.f32 %v984, %v706
      %v1067 = vsub.f32 %v989, %v695
      %v1068 = vsub.f32 %v994, %v698
      %v1069 = vsub.f32 %v999, %v703
      %v1070 = vsub.f32 %v1004, %v706
      %v1071 = vsub.f32 %v1009, %v695
      %v1072 = vsub.f32 %v1014, %v698
      %v1073 = vsub.f32 %v1019, %v703
      %v1074 = vsub.f32 %v1024, %v706
      %v1075 = vsub.f32 %v1029, %v695
      %v1076 = vsub.f32 %v1034, %v698
      %v1077 = vsub.f32 %v1039, %v703
      %v1078 = vsub.f32 %v1044, %v706
      %v1079 = vld [vmem:[%s394] sm:$0xff]
      %v1080 = vld [vmem:[%s394 + $0x8] sm:$0xff]
      %v1081 = vld [vmem:[%s394 + $0x10] sm:$0xff]
      %v1082 = vld [vmem:[%s394 + $0x18] sm:$0xff]
      %v1083 = vld [vmem:[%s394 + $0x20] sm:$0xff]
      %v1084 = vld [vmem:[%s394 + $0x28] sm:$0xff]
      %v1085 = vld [vmem:[%s394 + $0x30] sm:$0xff]
      %v1086 = vld [vmem:[%s394 + $0x38] sm:$0xff]
      %v1087 = vpack.c.bf16 %v1080, %v1079
      %v1088 = vpack.c.bf16 %v1082, %v1081
      %v1089 = vpack.c.bf16 %v1084, %v1083
      %v1090 = vpack.c.bf16 %v1086, %v1085
      %v1091 = vld [vmem:[%s4] sm:$0x3]
      %v1093 = vsel %vm640, %v1087, 0
      %v1096 = vsel %vm640, %v1088, 0
      %v1099 = vsel %vm640, %v1089, 0
      %v1102 = vsel %vm640, %v1090, 0
      %v1105 = vand.u32 %v1091, %v656
      %1107 = vmatprep.subr.bf16.mxu0 0
      %1108 = vmatpush1.bf16.msra.mxu0 %v1105
      %1109 = vmatprep.subr.bf16.mxu0 0
      %1110 = vmatpush1.bf16.msra.mxu0 0
      %1111 = vmatprep.subr.bf16.mxu0 0
      %1112 = vmatpush1.bf16.msra.mxu0 0
      %1113 = vmatprep.subr.bf16.mxu0 0
      %1114 = vmatpush1.bf16.msra.mxu0 0
      %1115 = vmatprep.subr.bf16.mxu0 0
      %1116 = vmatpush1.bf16.msra.mxu0 0
      %1117 = vmatprep.subr.bf16.mxu0 0
      %1118 = vmatpush1.bf16.msra.mxu0 0
      %1119 = vmatprep.subr.bf16.mxu0 0
      %1120 = vmatpush1.bf16.msra.mxu0 0
      %1121 = vmatprep.subr.bf16.mxu0 0
      %1122 = vmatpush1.bf16.msra.mxu0 0
      %1123 = vmatprep.subr.bf16.mxu0 0
      %1124 = vmatpush1.bf16.msra.mxu0 0
      %1125 = vmatprep.subr.bf16.mxu0 0
      %1126 = vmatpush1.bf16.msra.mxu0 0
      %1127 = vmatprep.subr.bf16.mxu0 0
      %1128 = vmatpush1.bf16.msra.mxu0 0
      %1129 = vmatprep.subr.bf16.mxu0 0
      %1130 = vmatpush1.bf16.msra.mxu0 0
      %1131 = vmatprep.subr.bf16.mxu0 0
      %1132 = vmatpush1.bf16.msra.mxu0 0
      %1133 = vmatprep.subr.bf16.mxu0 0
      %1134 = vmatpush1.bf16.msra.mxu0 0
      %1135 = vmatprep.subr.bf16.mxu0 0
      %1136 = vmatpush1.bf16.msra.mxu0 0
      %1137 = vmatprep.subr.bf16.mxu0 0
      %1138 = vmatpush1.bf16.msra.mxu0 0
      %1139 = vmatprep.mubr.bf16.mxu0 0
      %1140 = vmatmul.mubr.bf16.gmra.mrb[0].mxu0 %v1093
      %v1141 = vpop.f32.mrb[0].mxu0
      %v1142 = vadd.f32 0.0, %v1141
      %v1143 = vpop.f32.mrb[0].mxu0
      %v1144 = vpop.f32.mrb[0].mxu0
      %v1145 = vadd.f32 0.0, %v1144
      %v1146 = vpop.f32.mrb[0].mxu0
      %1147 = vmatprep.mubr.bf16.mxu0 0
      %1148 = vmatmul.mubr.bf16.gmra.mrb[0].mxu0 %v1096
      %v1149 = vpop.f32.mrb[0].mxu0
      %v1150 = vadd.f32 0.0, %v1149
      %v1151 = vpop.f32.mrb[0].mxu0
      %v1152 = vpop.f32.mrb[0].mxu0
      %v1153 = vadd.f32 0.0, %v1152
      %v1154 = vpop.f32.mrb[0].mxu0
      %1155 = vmatprep.mubr.bf16.mxu0 0
      %1156 = vmatmul.mubr.bf16.gmra.mrb[0].mxu0 %v1099
      %v1157 = vpop.f32.mrb[0].mxu0
      %v1158 = vadd.f32 0.0, %v1157
      %v1159 = vpop.f32.mrb[0].mxu0
      %v1160 = vpop.f32.mrb[0].mxu0
      %v1161 = vadd.f32 0.0, %v1160
      %v1162 = vpop.f32.mrb[0].mxu0
      %1163 = vmatprep.mubr.bf16.mxu0 0
      %1164 = vmatmul.mubr.bf16.gmra.mrb[0].mxu0 %v1102
      %v1165 = vpop.f32.mrb[0].mxu0
      %v1166 = vadd.f32 0.0, %v1165
      %v1167 = vpop.f32.mrb[0].mxu0
      %v1168 = vpop.f32.mrb[0].mxu0
      %v1169 = vadd.f32 0.0, %v1168
      %v1170 = vpop.f32.mrb[0].mxu0
      %1171 = vdwg.mxu0
      %1172 = vmatprep.subr.mxu0 0.0
      %1173 = vmatpush1.msra.mxu0 %v1142
      %1174 = vmatprep.subr.mxu0 0.0
      %1175 = vmatpush1.msra.mxu0 %v1145
      %1176 = vmatprep.subr.mxu0 0.0
      %1177 = vmatpush1.msra.mxu0 %v1150
      %1178 = vmatprep.subr.mxu0 0.0
      %1179 = vmatpush1.msra.mxu0 %v1153
      %1180 = vmatprep.subr.mxu0 0.0
      %1181 = vmatpush1.msra.mxu0 %v1158
      %1182 = vmatprep.subr.mxu0 0.0
      %1183 = vmatpush1.msra.mxu0 %v1161
      %1184 = vmatprep.subr.mxu0 0.0
      %1185 = vmatpush1.msra.mxu0 %v1166
      %1186 = vmatprep.subr.mxu0 0.0
      %1187 = vmatpush1.msra.mxu0 %v1169
      %1188 = vmatprep.subr.mxu0 0.0
      %1189 = vmatpush1.msra.mxu0 0.0
      %1190 = vmatprep.subr.mxu0 0.0
      %1191 = vmatpush1.msra.mxu0 0.0
      %1192 = vmatprep.subr.mxu0 0.0
      %1193 = vmatpush1.msra.mxu0 0.0
      %1194 = vmatprep.subr.mxu0 0.0
      %1195 = vmatpush1.msra.mxu0 0.0
      %1196 = vmatprep.subr.mxu0 0.0
      %1197 = vmatpush1.msra.mxu0 0.0
      %1198 = vmatprep.subr.mxu0 0.0
      %1199 = vmatpush1.msra.mxu0 0.0
      %1200 = vmatprep.subr.mxu0 0.0
      %1201 = vmatpush1.msra.mxu0 0.0
      %1202 = vmatprep.subr.mxu0 0.0
      %1203 = vmatpush1.msra.mxu0 0.0
      %1204 = vmatprep.subr.mxu0 0.0
      %1205 = vmatpush1.msra.mxu0 0.0
      %1206 = vmatprep.subr.mxu0 0.0
      %1207 = vmatpush1.msra.mxu0 0.0
      %1208 = vmatprep.subr.mxu0 0.0
      %1209 = vmatpush1.msra.mxu0 0.0
      %1210 = vmatprep.subr.mxu0 0.0
      %1211 = vmatpush1.msra.mxu0 0.0
      %1212 = vmatprep.subr.mxu0 0.0
      %1213 = vmatpush1.msra.mxu0 0.0
      %1214 = vmatprep.subr.mxu0 0.0
      %1215 = vmatpush1.msra.mxu0 0.0
      %1216 = vmatprep.subr.mxu0 0.0
      %1217 = vmatpush1.msra.mxu0 0.0
      %1218 = vmatprep.subr.mxu0 0.0
      %1219 = vmatpush1.msra.mxu0 0.0
      %1220 = vmatprep.subr.mxu0 0.0
      %1221 = vmatpush1.msra.mxu0 0.0
      %1222 = vmatprep.subr.mxu0 0.0
      %1223 = vmatpush1.msra.mxu0 0.0
      %1224 = vmatprep.subr.mxu0 0.0
      %1225 = vmatpush1.msra.mxu0 0.0
      %1226 = vmatprep.subr.mxu0 0.0
      %1227 = vmatpush1.msra.mxu0 0.0
      %1228 = vmatprep.subr.mxu0 0.0
      %1229 = vmatpush1.msra.mxu0 0.0
      %1230 = vmatprep.subr.mxu0 0.0
      %1231 = vmatpush1.msra.mxu0 0.0
      %1232 = vmatprep.subr.mxu0 0.0
      %1233 = vmatpush1.msra.mxu0 0.0
      %1234 = vmatprep.subr.mxu0 0.0
      %1235 = vmatpush1.msra.mxu0 0.0
      %1236 = vmatprep.mubr.f32.mxu0 0.0
      %1237 = vmatmul.mubr.f32.gmra.mrb[0].mxu0 %v727
      %v1238 = vpop.f32.mrb[0].mxu0
      %v1239 = vadd.f32 0.0, %v1238
      %v1240 = vpop.f32.mrb[0].mxu0
      %1241 = vmatprep.mubr.f32.mxu0 0.0
      %1242 = vmatmul.mubr.f32.gmra.mrb[0].mxu0 %v730
      %v1243 = vpop.f32.mrb[0].mxu0
      %v1244 = vadd.f32 0.0, %v1243
      %v1245 = vpop.f32.mrb[0].mxu0
      %1246 = vmatprep.mubr.f32.mxu0 0.0
      %1247 = vmatmul.mubr.f32.gmra.mrb[0].mxu0 %v733
      %v1248 = vpop.f32.mrb[0].mxu0
      %v1249 = vadd.f32 0.0, %v1248
      %v1250 = vpop.f32.mrb[0].mxu0
      %1251 = vmatprep.mubr.f32.mxu0 0.0
      %1252 = vmatmul.mubr.f32.gmra.mrb[0].mxu0 %v736
      %v1253 = vpop.f32.mrb[0].mxu0
      %v1254 = vadd.f32 0.0, %v1253
      %v1255 = vpop.f32.mrb[0].mxu0
      %1256 = vmatprep.mubr.f32.mxu0 0.0
      %1257 = vmatmul.mubr.f32.gmra.mrb[0].mxu0 %v739
      %v1258 = vpop.f32.mrb[0].mxu0
      %v1259 = vadd.f32 0.0, %v1258
      %v1260 = vpop.f32.mrb[0].mxu0
      %1261 = vmatprep.mubr.f32.mxu0 0.0
      %1262 = vmatmul.mubr.f32.gmra.mrb[0].mxu0 %v742
      %v1263 = vpop.f32.mrb[0].mxu0
      %v1264 = vadd.f32 0.0, %v1263
      %v1265 = vpop.f32.mrb[0].mxu0
      %1266 = vmatprep.mubr.f32.mxu0 0.0
      %1267 = vmatmul.mubr.f32.gmra.mrb[0].mxu0 %v745
      %v1268 = vpop.f32.mrb[0].mxu0
      %v1269 = vadd.f32 0.0, %v1268
      %v1270 = vpop.f32.mrb[0].mxu0
      %1271 = vmatprep.mubr.f32.mxu0 0.0
      %1272 = vmatmul.mubr.f32.gmra.mrb[0].mxu0 %v748
      %v1273 = vpop.f32.mrb[0].mxu0
      %v1274 = vadd.f32 0.0, %v1273
      %v1275 = vpop.f32.mrb[0].mxu0
      %1276 = vmatprep.mubr.f32.mxu0 0.0
      %1277 = vmatmul.mubr.f32.gmra.mrb[0].mxu0 %v751
      %v1278 = vpop.f32.mrb[0].mxu0
      %v1279 = vadd.f32 0.0, %v1278
      %v1280 = vpop.f32.mrb[0].mxu0
      %1281 = vmatprep.mubr.f32.mxu0 0.0
      %1282 = vmatmul.mubr.f32.gmra.mrb[0].mxu0 %v754
      %v1283 = vpop.f32.mrb[0].mxu0
      %v1284 = vadd.f32 0.0, %v1283
      %v1285 = vpop.f32.mrb[0].mxu0
      %1286 = vmatprep.mubr.f32.mxu0 0.0
      %1287 = vmatmul.mubr.f32.gmra.mrb[0].mxu0 %v757
      %v1288 = vpop.f32.mrb[0].mxu0
      %v1289 = vadd.f32 0.0, %v1288
      %v1290 = vpop.f32.mrb[0].mxu0
      %1291 = vmatprep.mubr.f32.mxu0 0.0
      %1292 = vmatmul.mubr.f32.gmra.mrb[0].mxu0 %v760
      %v1293 = vpop.f32.mrb[0].mxu0
      %v1294 = vadd.f32 0.0, %v1293
      %v1295 = vpop.f32.mrb[0].mxu0
      %1296 = vmatprep.mubr.f32.mxu0 0.0
      %1297 = vmatmul.mubr.f32.gmra.mrb[0].mxu0 %v763
      %v1298 = vpop.f32.mrb[0].mxu0
      %v1299 = vadd.f32 0.0, %v1298
      %v1300 = vpop.f32.mrb[0].mxu0
      %1301 = vmatprep.mubr.f32.mxu0 0.0
      %1302 = vmatmul.mubr.f32.gmra.mrb[0].mxu0 %v766
      %v1303 = vpop.f32.mrb[0].mxu0
      %v1304 = vadd.f32 0.0, %v1303
      %v1305 = vpop.f32.mrb[0].mxu0
      %1306 = vmatprep.mubr.f32.mxu0 0.0
      %1307 = vmatmul.mubr.f32.gmra.mrb[0].mxu0 %v769
      %v1308 = vpop.f32.mrb[0].mxu0
      %v1309 = vadd.f32 0.0, %v1308
      %v1310 = vpop.f32.mrb[0].mxu0
      %1311 = vmatprep.mubr.f32.mxu0 0.0
      %1312 = vmatmul.mubr.f32.gmra.mrb[0].mxu0 %v772
      %v1313 = vpop.f32.mrb[0].mxu0
      %v1314 = vadd.f32 0.0, %v1313
      %v1315 = vpop.f32.mrb[0].mxu0
      %1316 = vmatprep.mubr.f32.mxu0 0.0
      %1317 = vmatmul.mubr.f32.gmra.mrb[0].mxu0 %v775
      %v1318 = vpop.f32.mrb[0].mxu0
      %v1319 = vadd.f32 0.0, %v1318
      %v1320 = vpop.f32.mrb[0].mxu0
      %1321 = vmatprep.mubr.f32.mxu0 0.0
      %1322 = vmatmul.mubr.f32.gmra.mrb[0].mxu0 %v778
      %v1323 = vpop.f32.mrb[0].mxu0
      %v1324 = vadd.f32 0.0, %v1323
      %v1325 = vpop.f32.mrb[0].mxu0
      %1326 = vmatprep.mubr.f32.mxu0 0.0
      %1327 = vmatmul.mubr.f32.gmra.mrb[0].mxu0 %v781
      %v1328 = vpop.f32.mrb[0].mxu0
      %v1329 = vadd.f32 0.0, %v1328
      %v1330 = vpop.f32.mrb[0].mxu0
      %1331 = vmatprep.mubr.f32.mxu0 0.0
      %1332 = vmatmul.mubr.f32.gmra.mrb[0].mxu0 %v784
      %v1333 = vpop.f32.mrb[0].mxu0
      %v1334 = vadd.f32 0.0, %v1333
      %v1335 = vpop.f32.mrb[0].mxu0
      %1336 = vmatprep.mubr.f32.mxu0 0.0
      %1337 = vmatmul.mubr.f32.gmra.mrb[0].mxu0 %v787
      %v1338 = vpop.f32.mrb[0].mxu0
      %v1339 = vadd.f32 0.0, %v1338
      %v1340 = vpop.f32.mrb[0].mxu0
      %1341 = vmatprep.mubr.f32.mxu0 0.0
      %1342 = vmatmul.mubr.f32.gmra.mrb[0].mxu0 %v790
      %v1343 = vpop.f32.mrb[0].mxu0
      %v1344 = vadd.f32 0.0, %v1343
      %v1345 = vpop.f32.mrb[0].mxu0
      %1346 = vmatprep.mubr.f32.mxu0 0.0
      %1347 = vmatmul.mubr.f32.gmra.mrb[0].mxu0 %v793
      %v1348 = vpop.f32.mrb[0].mxu0
      %v1349 = vadd.f32 0.0, %v1348
      %v1350 = vpop.f32.mrb[0].mxu0
      %1351 = vmatprep.mubr.f32.mxu0 0.0
      %1352 = vmatmul.mubr.f32.gmra.mrb[0].mxu0 %v796
      %v1353 = vpop.f32.mrb[0].mxu0
      %v1354 = vadd.f32 0.0, %v1353
      %v1355 = vpop.f32.mrb[0].mxu0
      %1356 = vmatprep.mubr.f32.mxu0 0.0
      %1357 = vmatmul.mubr.f32.gmra.mrb[0].mxu0 %v799
      %v1358 = vpop.f32.mrb[0].mxu0
      %v1359 = vadd.f32 0.0, %v1358
      %v1360 = vpop.f32.mrb[0].mxu0
      %1361 = vmatprep.mubr.f32.mxu0 0.0
      %1362 = vmatmul.mubr.f32.gmra.mrb[0].mxu0 %v802
      %v1363 = vpop.f32.mrb[0].mxu0
      %v1364 = vadd.f32 0.0, %v1363
      %v1365 = vpop.f32.mrb[0].mxu0
      %1366 = vmatprep.mubr.f32.mxu0 0.0
      %1367 = vmatmul.mubr.f32.gmra.mrb[0].mxu0 %v805
      %v1368 = vpop.f32.mrb[0].mxu0
      %v1369 = vadd.f32 0.0, %v1368
      %v1370 = vpop.f32.mrb[0].mxu0
      %1371 = vmatprep.mubr.f32.mxu0 0.0
      %1372 = vmatmul.mubr.f32.gmra.mrb[0].mxu0 %v808
      %v1373 = vpop.f32.mrb[0].mxu0
      %v1374 = vadd.f32 0.0, %v1373
      %v1375 = vpop.f32.mrb[0].mxu0
      %1376 = vmatprep.mubr.f32.mxu0 0.0
      %1377 = vmatmul.mubr.f32.gmra.mrb[0].mxu0 %v811
      %v1378 = vpop.f32.mrb[0].mxu0
      %v1379 = vadd.f32 0.0, %v1378
      %v1380 = vpop.f32.mrb[0].mxu0
      %1381 = vmatprep.mubr.f32.mxu0 0.0
      %1382 = vmatmul.mubr.f32.gmra.mrb[0].mxu0 %v814
      %v1383 = vpop.f32.mrb[0].mxu0
      %v1384 = vadd.f32 0.0, %v1383
      %v1385 = vpop.f32.mrb[0].mxu0
      %1386 = vmatprep.mubr.f32.mxu0 0.0
      %1387 = vmatmul.mubr.f32.gmra.mrb[0].mxu0 %v817
      %v1388 = vpop.f32.mrb[0].mxu0
      %v1389 = vadd.f32 0.0, %v1388
      %v1390 = vpop.f32.mrb[0].mxu0
      %1391 = vmatprep.mubr.f32.mxu0 0.0
      %1392 = vmatmul.mubr.f32.gmra.mrb[0].mxu0 %v820
      %v1393 = vpop.f32.mrb[0].mxu0
      %v1394 = vadd.f32 0.0, %v1393
      %v1395 = vpop.f32.mrb[0].mxu0
      %1396 = vdwg.mxu0
      %v1397 = vadd.f32 %v1047, %v1239
      %v1398 = vadd.f32 %v1048, %v1244
      %v1399 = vadd.f32 %v1049, %v1249
      %v1400 = vadd.f32 %v1050, %v1254
      %v1401 = vadd.f32 %v1051, %v1259
      %v1402 = vadd.f32 %v1052, %v1264
      %v1403 = vadd.f32 %v1053, %v1269
      %v1404 = vadd.f32 %v1054, %v1274
      %v1405 = vadd.f32 %v1055, %v1279
      %v1406 = vadd.f32 %v1056, %v1284
      %v1407 = vadd.f32 %v1057, %v1289
      %v1408 = vadd.f32 %v1058, %v1294
      %v1409 = vadd.f32 %v1059, %v1299
      %v1410 = vadd.f32 %v1060, %v1304
      %v1411 = vadd.f32 %v1061, %v1309
      %v1412 = vadd.f32 %v1062, %v1314
      %v1413 = vadd.f32 %v1063, %v1319
      %v1414 = vadd.f32 %v1064, %v1324
      %v1415 = vadd.f32 %v1065, %v1329
      %v1416 = vadd.f32 %v1066, %v1334
      %v1417 = vadd.f32 %v1067, %v1339
      %v1418 = vadd.f32 %v1068, %v1344
      %v1419 = vadd.f32 %v1069, %v1349
      %v1420 = vadd.f32 %v1070, %v1354
      %v1421 = vadd.f32 %v1071, %v1359
      %v1422 = vadd.f32 %v1072, %v1364
      %v1423 = vadd.f32 %v1073, %v1369
      %v1424 = vadd.f32 %v1074, %v1374
      %v1425 = vadd.f32 %v1075, %v1379
      %v1426 = vadd.f32 %v1076, %v1384
      %v1427 = vadd.f32 %v1077, %v1389
      %v1428 = vadd.f32 %v1078, %v1394
      %v1429 = vld [vmem:[%s5] sm:$0x1]
      %v1431 = vlaneseq
      %v1432 = vshrl.u32 %v1431, 7
      %v1433 = vsub.s32 0, %v1432
      %v1434 = vrot.slane %v1429, %v1433
      %v1436 = vadd.f32 %v1397, %v1434
      %v1437 = vadd.f32 %v1398, %v1434
      %v1438 = vadd.f32 %v1399, %v1434
      %v1439 = vadd.f32 %v1400, %v1434
      %v1440 = vadd.f32 %v1401, %v1434
      %v1441 = vadd.f32 %v1402, %v1434
      %v1442 = vadd.f32 %v1403, %v1434
      %v1443 = vadd.f32 %v1404, %v1434
      %v1444 = vadd.f32 %v1405, %v1434
      %v1445 = vadd.f32 %v1406, %v1434
      %v1446 = vadd.f32 %v1407, %v1434
      %v1447 = vadd.f32 %v1408, %v1434
      %v1448 = vadd.f32 %v1409, %v1434
      %v1449 = vadd.f32 %v1410, %v1434
      %v1450 = vadd.f32 %v1411, %v1434
      %v1451 = vadd.f32 %v1412, %v1434
      %v1452 = vadd.f32 %v1413, %v1434
      %v1453 = vadd.f32 %v1414, %v1434
      %v1454 = vadd.f32 %v1415, %v1434
      %v1455 = vadd.f32 %v1416, %v1434
      %v1456 = vadd.f32 %v1417, %v1434
      %v1457 = vadd.f32 %v1418, %v1434
      %v1458 = vadd.f32 %v1419, %v1434
      %v1459 = vadd.f32 %v1420, %v1434
      %v1460 = vadd.f32 %v1421, %v1434
      %v1461 = vadd.f32 %v1422, %v1434
      %v1462 = vadd.f32 %v1423, %v1434
      %v1463 = vadd.f32 %v1424, %v1434
      %v1464 = vadd.f32 %v1425, %v1434
      %v1465 = vadd.f32 %v1426, %v1434
      %v1466 = vadd.f32 %v1427, %v1434
      %v1467 = vadd.f32 %v1428, %v1434
      %v1468 = vmax.f32 %v1436, 0.0
      %v1469 = vmax.f32 %v1437, 0.0
      %v1470 = vmax.f32 %v1438, 0.0
      %v1471 = vmax.f32 %v1439, 0.0
      %v1472 = vmax.f32 %v1440, 0.0
      %v1473 = vmax.f32 %v1441, 0.0
      %v1474 = vmax.f32 %v1442, 0.0
      %v1475 = vmax.f32 %v1443, 0.0
      %v1476 = vmax.f32 %v1444, 0.0
      %v1477 = vmax.f32 %v1445, 0.0
      %v1478 = vmax.f32 %v1446, 0.0
      %v1479 = vmax.f32 %v1447, 0.0
      %v1480 = vmax.f32 %v1448, 0.0
      %v1481 = vmax.f32 %v1449, 0.0
      %v1482 = vmax.f32 %v1450, 0.0
      %v1483 = vmax.f32 %v1451, 0.0
      %v1484 = vmax.f32 %v1452, 0.0
      %v1485 = vmax.f32 %v1453, 0.0
      %v1486 = vmax.f32 %v1454, 0.0
      %v1487 = vmax.f32 %v1455, 0.0
      %v1488 = vmax.f32 %v1456, 0.0
      %v1489 = vmax.f32 %v1457, 0.0
      %v1490 = vmax.f32 %v1458, 0.0
      %v1491 = vmax.f32 %v1459, 0.0
      %v1492 = vmax.f32 %v1460, 0.0
      %v1493 = vmax.f32 %v1461, 0.0
      %v1494 = vmax.f32 %v1462, 0.0
      %v1495 = vmax.f32 %v1463, 0.0
      %v1496 = vmax.f32 %v1464, 0.0
      %v1497 = vmax.f32 %v1465, 0.0
      %v1498 = vmax.f32 %v1466, 0.0
      %v1499 = vmax.f32 %v1467, 0.0
      %v1500 = vpack.c.bf16 %v1469, %v1468
      %v1501 = vpack.c.bf16 %v1471, %v1470
      %v1502 = vpack.c.bf16 %v1473, %v1472
      %v1503 = vpack.c.bf16 %v1475, %v1474
      %v1504 = vpack.c.bf16 %v1477, %v1476
      %v1505 = vpack.c.bf16 %v1479, %v1478
      %v1506 = vpack.c.bf16 %v1481, %v1480
      %v1507 = vpack.c.bf16 %v1483, %v1482
      %v1508 = vpack.c.bf16 %v1485, %v1484
      %v1509 = vpack.c.bf16 %v1487, %v1486
      %v1510 = vpack.c.bf16 %v1489, %v1488
      %v1511 = vpack.c.bf16 %v1491, %v1490
      %v1512 = vpack.c.bf16 %v1493, %v1492
      %v1513 = vpack.c.bf16 %v1495, %v1494
      %v1514 = vpack.c.bf16 %v1497, %v1496
      %v1515 = vpack.c.bf16 %v1499, %v1498
      %v1516 = vld [vmem:[%s6] sm:$0xf]
      %v1517 = vld [vmem:[%s6 + $0x4] sm:$0xf]
      %v1518 = vld [vmem:[%s6 + $0x8] sm:$0xf]
      %v1519 = vld [vmem:[%s6 + $0xc] sm:$0xf]
      %v1520 = vld [vmem:[%s7] sm:$0x1]
      %v1522 = vlaneseq
      %v1523 = vshrl.u32 %v1522, 7
      %v1524 = vsub.s32 0, %v1523
      %v1525 = vrot.slane %v1520, %v1524
      %v1531 = vunpack.c.l.b16 %v1516
      %v1532 = vunpack.c.l.b16 %v1517
      %v1533 = vunpack.c.l.b16 %v1518
      %v1534 = vunpack.c.l.b16 %v1519
      %v1535 = vpack.c.b16 %v1532, %v1531
      %v1536 = vpack.c.b16 %v1534, %v1533
      %vm1539 = vcmask 261120
      %v1541 = vsel %vm1539, %v1500, 0
      %v1544 = vsel %vm1539, %v1501, 0
      %v1547 = vsel %vm1539, %v1502, 0
      %v1550 = vsel %vm1539, %v1503, 0
      %v1553 = vsel %vm1539, %v1504, 0
      %v1556 = vsel %vm1539, %v1505, 0
      %v1559 = vsel %vm1539, %v1506, 0
      %v1562 = vsel %vm1539, %v1507, 0
      %v1565 = vsel %vm1539, %v1508, 0
      %v1568 = vsel %vm1539, %v1509, 0
      %v1571 = vsel %vm1539, %v1510, 0
      %v1574 = vsel %vm1539, %v1511, 0
      %v1577 = vsel %vm1539, %v1512, 0
      %v1580 = vsel %vm1539, %v1513, 0
      %v1583 = vsel %vm1539, %v1514, 0
      %v1586 = vsel %vm1539, %v1515, 0
      %1588 = vmatprep.subr.bf16.mxu0 0
      %1589 = vmatpush1.bf16.msra.mxu0 %v1535
      %1590 = vmatprep.subr.bf16.mxu0 0
      %1591 = vmatpush1.bf16.msra.mxu0 %v1536
      %1592 = vmatprep.subr.bf16.mxu0 0
      %1593 = vmatpush1.bf16.msra.mxu0 0
      %1594 = vmatprep.subr.bf16.mxu0 0
      %1595 = vmatpush1.bf16.msra.mxu0 0
      %1596 = vmatprep.subr.bf16.mxu0 0
      %1597 = vmatpush1.bf16.msra.mxu0 0
      %1598 = vmatprep.subr.bf16.mxu0 0
      %1599 = vmatpush1.bf16.msra.mxu0 0
      %1600 = vmatprep.subr.bf16.mxu0 0
      %1601 = vmatpush1.bf16.msra.mxu0 0
      %1602 = vmatprep.subr.bf16.mxu0 0
      %1603 = vmatpush1.bf16.msra.mxu0 0
      %1604 = vmatprep.subr.bf16.mxu0 0
      %1605 = vmatpush1.bf16.msra.mxu0 0
      %1606 = vmatprep.subr.bf16.mxu0 0
      %1607 = vmatpush1.bf16.msra.mxu0 0
      %1608 = vmatprep.subr.bf16.mxu0 0
      %1609 = vmatpush1.bf16.msra.mxu0 0
      %1610 = vmatprep.subr.bf16.mxu0 0
      %1611 = vmatpush1.bf16.msra.mxu0 0
      %1612 = vmatprep.subr.bf16.mxu0 0
      %1613 = vmatpush1.bf16.msra.mxu0 0
      %1614 = vmatprep.subr.bf16.mxu0 0
      %1615 = vmatpush1.bf16.msra.mxu0 0
      %1616 = vmatprep.subr.bf16.mxu0 0
      %1617 = vmatpush1.bf16.msra.mxu0 0
      %1618 = vmatprep.subr.bf16.mxu0 0
      %1619 = vmatpush1.bf16.msra.mxu0 0
      %1620 = vmatprep.mubr.bf16.mxu0 0
      %1621 = vmatmul.mubr.bf16.gmra.mrb[0].mxu0 %v1541
      %v1622 = vpop.f32.mrb[0].mxu0
      %v1623 = vadd.f32 %v1525, %v1622
      %v1624 = vpop.f32.mrb[0].mxu0
      %v1625 = vpop.f32.mrb[0].mxu0
      %v1626 = vadd.f32 %v1525, %v1625
      %v1627 = vpop.f32.mrb[0].mxu0
      %1628 = vmatprep.mubr.bf16.mxu0 0
      %1629 = vmatmul.mubr.bf16.gmra.mrb[0].mxu0 %v1544
      %v1630 = vpop.f32.mrb[0].mxu0
      %v1631 = vadd.f32 %v1525, %v1630
      %v1632 = vpop.f32.mrb[0].mxu0
      %v1633 = vpop.f32.mrb[0].mxu0
      %v1634 = vadd.f32 %v1525, %v1633
      %v1635 = vpop.f32.mrb[0].mxu0
      %1636 = vmatprep.mubr.bf16.mxu0 0
      %1637 = vmatmul.mubr.bf16.gmra.mrb[0].mxu0 %v1547
      %v1638 = vpop.f32.mrb[0].mxu0
      %v1639 = vadd.f32 %v1525, %v1638
      %v1640 = vpop.f32.mrb[0].mxu0
      %v1641 = vpop.f32.mrb[0].mxu0
      %v1642 = vadd.f32 %v1525, %v1641
      %v1643 = vpop.f32.mrb[0].mxu0
      %1644 = vmatprep.mubr.bf16.mxu0 0
      %1645 = vmatmul.mubr.bf16.gmra.mrb[0].mxu0 %v1550
      %v1646 = vpop.f32.mrb[0].mxu0
      %v1647 = vadd.f32 %v1525, %v1646
      %v1648 = vpop.f32.mrb[0].mxu0
      %v1649 = vpop.f32.mrb[0].mxu0
      %v1650 = vadd.f32 %v1525, %v1649
      %v1651 = vpop.f32.mrb[0].mxu0
      %1652 = vmatprep.mubr.bf16.mxu0 0
      %1653 = vmatmul.mubr.bf16.gmra.mrb[0].mxu0 %v1553
      %v1654 = vpop.f32.mrb[0].mxu0
      %v1655 = vadd.f32 %v1525, %v1654
      %v1656 = vpop.f32.mrb[0].mxu0
      %v1657 = vpop.f32.mrb[0].mxu0
      %v1658 = vadd.f32 %v1525, %v1657
      %v1659 = vpop.f32.mrb[0].mxu0
      %1660 = vmatprep.mubr.bf16.mxu0 0
      %1661 = vmatmul.mubr.bf16.gmra.mrb[0].mxu0 %v1556
      %v1662 = vpop.f32.mrb[0].mxu0
      %v1663 = vadd.f32 %v1525, %v1662
      %v1664 = vpop.f32.mrb[0].mxu0
      %v1665 = vpop.f32.mrb[0].mxu0
      %v1666 = vadd.f32 %v1525, %v1665
      %v1667 = vpop.f32.mrb[0].mxu0
      %1668 = vmatprep.mubr.bf16.mxu0 0
      %1669 = vmatmul.mubr.bf16.gmra.mrb[0].mxu0 %v1559
      %v1670 = vpop.f32.mrb[0].mxu0
      %v1671 = vadd.f32 %v1525, %v1670
      %v1672 = vpop.f32.mrb[0].mxu0
      %v1673 = vpop.f32.mrb[0].mxu0
      %v1674 = vadd.f32 %v1525, %v1673
      %v1675 = vpop.f32.mrb[0].mxu0
      %1676 = vmatprep.mubr.bf16.mxu0 0
      %1677 = vmatmul.mubr.bf16.gmra.mrb[0].mxu0 %v1562
      %v1678 = vpop.f32.mrb[0].mxu0
      %v1679 = vadd.f32 %v1525, %v1678
      %v1680 = vpop.f32.mrb[0].mxu0
      %v1681 = vpop.f32.mrb[0].mxu0
      %v1682 = vadd.f32 %v1525, %v1681
      %v1683 = vpop.f32.mrb[0].mxu0
      %1684 = vmatprep.mubr.bf16.mxu0 0
      %1685 = vmatmul.mubr.bf16.gmra.mrb[0].mxu0 %v1565
      %v1686 = vpop.f32.mrb[0].mxu0
      %v1687 = vadd.f32 %v1525, %v1686
      %v1688 = vpop.f32.mrb[0].mxu0
      %v1689 = vpop.f32.mrb[0].mxu0
      %v1690 = vadd.f32 %v1525, %v1689
      %v1691 = vpop.f32.mrb[0].mxu0
      %1692 = vmatprep.mubr.bf16.mxu0 0
      %1693 = vmatmul.mubr.bf16.gmra.mrb[0].mxu0 %v1568
      %v1694 = vpop.f32.mrb[0].mxu0
      %v1695 = vadd.f32 %v1525, %v1694
      %v1696 = vpop.f32.mrb[0].mxu0
      %v1697 = vpop.f32.mrb[0].mxu0
      %v1698 = vadd.f32 %v1525, %v1697
      %v1699 = vpop.f32.mrb[0].mxu0
      %1700 = vmatprep.mubr.bf16.mxu0 0
      %1701 = vmatmul.mubr.bf16.gmra.mrb[0].mxu0 %v1571
      %v1702 = vpop.f32.mrb[0].mxu0
      %v1703 = vadd.f32 %v1525, %v1702
      %v1704 = vpop.f32.mrb[0].mxu0
      %v1705 = vpop.f32.mrb[0].mxu0
      %v1706 = vadd.f32 %v1525, %v1705
      %v1707 = vpop.f32.mrb[0].mxu0
      %1708 = vmatprep.mubr.bf16.mxu0 0
      %1709 = vmatmul.mubr.bf16.gmra.mrb[0].mxu0 %v1574
      %v1710 = vpop.f32.mrb[0].mxu0
      %v1711 = vadd.f32 %v1525, %v1710
      %v1712 = vpop.f32.mrb[0].mxu0
      %v1713 = vpop.f32.mrb[0].mxu0
      %v1714 = vadd.f32 %v1525, %v1713
      %v1715 = vpop.f32.mrb[0].mxu0
      %1716 = vmatprep.mubr.bf16.mxu0 0
      %1717 = vmatmul.mubr.bf16.gmra.mrb[0].mxu0 %v1577
      %v1718 = vpop.f32.mrb[0].mxu0
      %v1719 = vadd.f32 %v1525, %v1718
      %v1720 = vpop.f32.mrb[0].mxu0
      %v1721 = vpop.f32.mrb[0].mxu0
      %v1722 = vadd.f32 %v1525, %v1721
      %v1723 = vpop.f32.mrb[0].mxu0
      %1724 = vmatprep.mubr.bf16.mxu0 0
      %1725 = vmatmul.mubr.bf16.gmra.mrb[0].mxu0 %v1580
      %v1726 = vpop.f32.mrb[0].mxu0
      %v1727 = vadd.f32 %v1525, %v1726
      %v1728 = vpop.f32.mrb[0].mxu0
      %v1729 = vpop.f32.mrb[0].mxu0
      %v1730 = vadd.f32 %v1525, %v1729
      %v1731 = vpop.f32.mrb[0].mxu0
      %1732 = vmatprep.mubr.bf16.mxu0 0
      %1733 = vmatmul.mubr.bf16.gmra.mrb[0].mxu0 %v1583
      %v1734 = vpop.f32.mrb[0].mxu0
      %v1735 = vadd.f32 %v1525, %v1734
      %v1736 = vpop.f32.mrb[0].mxu0
      %v1737 = vpop.f32.mrb[0].mxu0
      %v1738 = vadd.f32 %v1525, %v1737
      %v1739 = vpop.f32.mrb[0].mxu0
      %1740 = vmatprep.mubr.bf16.mxu0 0
      %1741 = vmatmul.mubr.bf16.gmra.mrb[0].mxu0 %v1586
      %v1742 = vpop.f32.mrb[0].mxu0
      %v1743 = vadd.f32 %v1525, %v1742
      %v1744 = vpop.f32.mrb[0].mxu0
      %v1745 = vpop.f32.mrb[0].mxu0
      %v1746 = vadd.f32 %v1525, %v1745
      %v1747 = vpop.f32.mrb[0].mxu0
      %1748 = vdwg.mxu0
      %v1749 = vmax.f32 %v1623, 0.0
      %v1750 = vmax.f32 %v1626, 0.0
      %v1751 = vmax.f32 %v1631, 0.0
      %v1752 = vmax.f32 %v1634, 0.0
      %v1753 = vmax.f32 %v1639, 0.0
      %v1754 = vmax.f32 %v1642, 0.0
      %v1755 = vmax.f32 %v1647, 0.0
      %v1756 = vmax.f32 %v1650, 0.0
      %v1757 = vmax.f32 %v1655, 0.0
      %v1758 = vmax.f32 %v1658, 0.0
      %v1759 = vmax.f32 %v1663, 0.0
      %v1760 = vmax.f32 %v1666, 0.0
      %v1761 = vmax.f32 %v1671, 0.0
      %v1762 = vmax.f32 %v1674, 0.0
      %v1763 = vmax.f32 %v1679, 0.0
      %v1764 = vmax.f32 %v1682, 0.0
      %v1765 = vmax.f32 %v1687, 0.0
      %v1766 = vmax.f32 %v1690, 0.0
      %v1767 = vmax.f32 %v1695, 0.0
      %v1768 = vmax.f32 %v1698, 0.0
      %v1769 = vmax.f32 %v1703, 0.0
      %v1770 = vmax.f32 %v1706, 0.0
      %v1771 = vmax.f32 %v1711, 0.0
      %v1772 = vmax.f32 %v1714, 0.0
      %v1773 = vmax.f32 %v1719, 0.0
      %v1774 = vmax.f32 %v1722, 0.0
      %v1775 = vmax.f32 %v1727, 0.0
      %v1776 = vmax.f32 %v1730, 0.0
      %v1777 = vmax.f32 %v1735, 0.0
      %v1778 = vmax.f32 %v1738, 0.0
      %v1779 = vmax.f32 %v1743, 0.0
      %v1780 = vmax.f32 %v1746, 0.0
      %v1781 = vpack.c.bf16 %v1750, %v1749
      %v1782 = vpack.c.bf16 %v1752, %v1751
      %v1783 = vpack.c.bf16 %v1754, %v1753
      %v1784 = vpack.c.bf16 %v1756, %v1755
      %v1785 = vpack.c.bf16 %v1758, %v1757
      %v1786 = vpack.c.bf16 %v1760, %v1759
      %v1787 = vpack.c.bf16 %v1762, %v1761
      %v1788 = vpack.c.bf16 %v1764, %v1763
      %v1789 = vpack.c.bf16 %v1766, %v1765
      %v1790 = vpack.c.bf16 %v1768, %v1767
      %v1791 = vpack.c.bf16 %v1770, %v1769
      %v1792 = vpack.c.bf16 %v1772, %v1771
      %v1793 = vpack.c.bf16 %v1774, %v1773
      %v1794 = vpack.c.bf16 %v1776, %v1775
      %v1795 = vpack.c.bf16 %v1778, %v1777
      %v1796 = vpack.c.bf16 %v1780, %v1779
      %v1797 = vld [vmem:[%s8] sm:$0xf]
      %v1798 = vld [vmem:[%s8 + $0x4] sm:$0xf]
      %v1799 = vld [vmem:[%s8 + $0x8] sm:$0xf]
      %v1800 = vld [vmem:[%s8 + $0xc] sm:$0xf]
      %v1801 = vld [vmem:[%s9] sm:$0x1]
      %v1803 = vlaneseq
      %v1804 = vshrl.u32 %v1803, 7
      %v1805 = vsub.s32 0, %v1804
      %v1806 = vrot.slane %v1801, %v1805
      %v1812 = vunpack.c.l.b16 %v1797
      %v1813 = vunpack.c.l.b16 %v1798
      %v1814 = vunpack.c.l.b16 %v1799
      %v1815 = vunpack.c.l.b16 %v1800
      %v1816 = vpack.c.b16 %v1813, %v1812
      %v1817 = vpack.c.b16 %v1815, %v1814
      %v1821 = vsel %vm1539, %v1781, 0
      %v1824 = vsel %vm1539, %v1782, 0
      %v1827 = vsel %vm1539, %v1783, 0
      %v1830 = vsel %vm1539, %v1784, 0
      %v1833 = vsel %vm1539, %v1785, 0
      %v1836 = vsel %vm1539, %v1786, 0
      %v1839 = vsel %vm1539, %v1787, 0
      %v1842 = vsel %vm1539, %v1788, 0
      %v1845 = vsel %vm1539, %v1789, 0
      %v1848 = vsel %vm1539, %v1790, 0
      %v1851 = vsel %vm1539, %v1791, 0
      %v1854 = vsel %vm1539, %v1792, 0
      %v1857 = vsel %vm1539, %v1793, 0
      %v1860 = vsel %vm1539, %v1794, 0
      %v1863 = vsel %vm1539, %v1795, 0
      %v1866 = vsel %vm1539, %v1796, 0
      %1868 = vmatprep.subr.bf16.mxu0 0
      %1869 = vmatpush1.bf16.msra.mxu0 %v1816
      %1870 = vmatprep.subr.bf16.mxu0 0
      %1871 = vmatpush1.bf16.msra.mxu0 %v1817
      %1872 = vmatprep.subr.bf16.mxu0 0
      %1873 = vmatpush1.bf16.msra.mxu0 0
      %1874 = vmatprep.subr.bf16.mxu0 0
      %1875 = vmatpush1.bf16.msra.mxu0 0
      %1876 = vmatprep.subr.bf16.mxu0 0
      %1877 = vmatpush1.bf16.msra.mxu0 0
      %1878 = vmatprep.subr.bf16.mxu0 0
      %1879 = vmatpush1.bf16.msra.mxu0 0
      %1880 = vmatprep.subr.bf16.mxu0 0
      %1881 = vmatpush1.bf16.msra.mxu0 0
      %1882 = vmatprep.subr.bf16.mxu0 0
      %1883 = vmatpush1.bf16.msra.mxu0 0
      %1884 = vmatprep.subr.bf16.mxu0 0
      %1885 = vmatpush1.bf16.msra.mxu0 0
      %1886 = vmatprep.subr.bf16.mxu0 0
      %1887 = vmatpush1.bf16.msra.mxu0 0
      %1888 = vmatprep.subr.bf16.mxu0 0
      %1889 = vmatpush1.bf16.msra.mxu0 0
      %1890 = vmatprep.subr.bf16.mxu0 0
      %1891 = vmatpush1.bf16.msra.mxu0 0
      %1892 = vmatprep.subr.bf16.mxu0 0
      %1893 = vmatpush1.bf16.msra.mxu0 0
      %1894 = vmatprep.subr.bf16.mxu0 0
      %1895 = vmatpush1.bf16.msra.mxu0 0
      %1896 = vmatprep.subr.bf16.mxu0 0
      %1897 = vmatpush1.bf16.msra.mxu0 0
      %1898 = vmatprep.subr.bf16.mxu0 0
      %1899 = vmatpush1.bf16.msra.mxu0 0
      %1900 = vmatprep.mubr.bf16.mxu0 0
      %1901 = vmatmul.mubr.bf16.gmra.mrb[0].mxu0 %v1821
      %v1902 = vpop.f32.mrb[0].mxu0
      %v1903 = vadd.f32 %v1806, %v1902
      %v1904 = vpop.f32.mrb[0].mxu0
      %v1905 = vpop.f32.mrb[0].mxu0
      %v1906 = vadd.f32 %v1806, %v1905
      %v1907 = vpop.f32.mrb[0].mxu0
      %1908 = vmatprep.mubr.bf16.mxu0 0
      %1909 = vmatmul.mubr.bf16.gmra.mrb[0].mxu0 %v1824
      %v1910 = vpop.f32.mrb[0].mxu0
      %v1911 = vadd.f32 %v1806, %v1910
      %v1912 = vpop.f32.mrb[0].mxu0
      %v1913 = vpop.f32.mrb[0].mxu0
      %v1914 = vadd.f32 %v1806, %v1913
      %v1915 = vpop.f32.mrb[0].mxu0
      %1916 = vmatprep.mubr.bf16.mxu0 0
      %1917 = vmatmul.mubr.bf16.gmra.mrb[0].mxu0 %v1827
      %v1918 = vpop.f32.mrb[0].mxu0
      %v1919 = vadd.f32 %v1806, %v1918
      %v1920 = vpop.f32.mrb[0].mxu0
      %v1921 = vpop.f32.mrb[0].mxu0
      %v1922 = vadd.f32 %v1806, %v1921
      %v1923 = vpop.f32.mrb[0].mxu0
      %1924 = vmatprep.mubr.bf16.mxu0 0
      %1925 = vmatmul.mubr.bf16.gmra.mrb[0].mxu0 %v1830
      %v1926 = vpop.f32.mrb[0].mxu0
      %v1927 = vadd.f32 %v1806, %v1926
      %v1928 = vpop.f32.mrb[0].mxu0
      %v1929 = vpop.f32.mrb[0].mxu0
      %v1930 = vadd.f32 %v1806, %v1929
      %v1931 = vpop.f32.mrb[0].mxu0
      %1932 = vmatprep.mubr.bf16.mxu0 0
      %1933 = vmatmul.mubr.bf16.gmra.mrb[0].mxu0 %v1833
      %v1934 = vpop.f32.mrb[0].mxu0
      %v1935 = vadd.f32 %v1806, %v1934
      %v1936 = vpop.f32.mrb[0].mxu0
      %v1937 = vpop.f32.mrb[0].mxu0
      %v1938 = vadd.f32 %v1806, %v1937
      %v1939 = vpop.f32.mrb[0].mxu0
      %1940 = vmatprep.mubr.bf16.mxu0 0
      %1941 = vmatmul.mubr.bf16.gmra.mrb[0].mxu0 %v1836
      %v1942 = vpop.f32.mrb[0].mxu0
      %v1943 = vadd.f32 %v1806, %v1942
      %v1944 = vpop.f32.mrb[0].mxu0
      %v1945 = vpop.f32.mrb[0].mxu0
      %v1946 = vadd.f32 %v1806, %v1945
      %v1947 = vpop.f32.mrb[0].mxu0
      %1948 = vmatprep.mubr.bf16.mxu0 0
      %1949 = vmatmul.mubr.bf16.gmra.mrb[0].mxu0 %v1839
      %v1950 = vpop.f32.mrb[0].mxu0
      %v1951 = vadd.f32 %v1806, %v1950
      %v1952 = vpop.f32.mrb[0].mxu0
      %v1953 = vpop.f32.mrb[0].mxu0
      %v1954 = vadd.f32 %v1806, %v1953
      %v1955 = vpop.f32.mrb[0].mxu0
      %1956 = vmatprep.mubr.bf16.mxu0 0
      %1957 = vmatmul.mubr.bf16.gmra.mrb[0].mxu0 %v1842
      %v1958 = vpop.f32.mrb[0].mxu0
      %v1959 = vadd.f32 %v1806, %v1958
      %v1960 = vpop.f32.mrb[0].mxu0
      %v1961 = vpop.f32.mrb[0].mxu0
      %v1962 = vadd.f32 %v1806, %v1961
      %v1963 = vpop.f32.mrb[0].mxu0
      %1964 = vmatprep.mubr.bf16.mxu0 0
      %1965 = vmatmul.mubr.bf16.gmra.mrb[0].mxu0 %v1845
      %v1966 = vpop.f32.mrb[0].mxu0
      %v1967 = vadd.f32 %v1806, %v1966
      %v1968 = vpop.f32.mrb[0].mxu0
      %v1969 = vpop.f32.mrb[0].mxu0
      %v1970 = vadd.f32 %v1806, %v1969
      %v1971 = vpop.f32.mrb[0].mxu0
      %1972 = vmatprep.mubr.bf16.mxu0 0
      %1973 = vmatmul.mubr.bf16.gmra.mrb[0].mxu0 %v1848
      %v1974 = vpop.f32.mrb[0].mxu0
      %v1975 = vadd.f32 %v1806, %v1974
      %v1976 = vpop.f32.mrb[0].mxu0
      %v1977 = vpop.f32.mrb[0].mxu0
      %v1978 = vadd.f32 %v1806, %v1977
      %v1979 = vpop.f32.mrb[0].mxu0
      %1980 = vmatprep.mubr.bf16.mxu0 0
      %1981 = vmatmul.mubr.bf16.gmra.mrb[0].mxu0 %v1851
      %v1982 = vpop.f32.mrb[0].mxu0
      %v1983 = vadd.f32 %v1806, %v1982
      %v1984 = vpop.f32.mrb[0].mxu0
      %v1985 = vpop.f32.mrb[0].mxu0
      %v1986 = vadd.f32 %v1806, %v1985
      %v1987 = vpop.f32.mrb[0].mxu0
      %1988 = vmatprep.mubr.bf16.mxu0 0
      %1989 = vmatmul.mubr.bf16.gmra.mrb[0].mxu0 %v1854
      %v1990 = vpop.f32.mrb[0].mxu0
      %v1991 = vadd.f32 %v1806, %v1990
      %v1992 = vpop.f32.mrb[0].mxu0
      %v1993 = vpop.f32.mrb[0].mxu0
      %v1994 = vadd.f32 %v1806, %v1993
      %v1995 = vpop.f32.mrb[0].mxu0
      %1996 = vmatprep.mubr.bf16.mxu0 0
      %1997 = vmatmul.mubr.bf16.gmra.mrb[0].mxu0 %v1857
      %v1998 = vpop.f32.mrb[0].mxu0
      %v1999 = vadd.f32 %v1806, %v1998
      %v2000 = vpop.f32.mrb[0].mxu0
      %v2001 = vpop.f32.mrb[0].mxu0
      %v2002 = vadd.f32 %v1806, %v2001
      %v2003 = vpop.f32.mrb[0].mxu0
      %2004 = vmatprep.mubr.bf16.mxu0 0
      %2005 = vmatmul.mubr.bf16.gmra.mrb[0].mxu0 %v1860
      %v2006 = vpop.f32.mrb[0].mxu0
      %v2007 = vadd.f32 %v1806, %v2006
      %v2008 = vpop.f32.mrb[0].mxu0
      %v2009 = vpop.f32.mrb[0].mxu0
      %v2010 = vadd.f32 %v1806, %v2009
      %v2011 = vpop.f32.mrb[0].mxu0
      %2012 = vmatprep.mubr.bf16.mxu0 0
      %2013 = vmatmul.mubr.bf16.gmra.mrb[0].mxu0 %v1863
      %v2014 = vpop.f32.mrb[0].mxu0
      %v2015 = vadd.f32 %v1806, %v2014
      %v2016 = vpop.f32.mrb[0].mxu0
      %v2017 = vpop.f32.mrb[0].mxu0
      %v2018 = vadd.f32 %v1806, %v2017
      %v2019 = vpop.f32.mrb[0].mxu0
      %2020 = vmatprep.mubr.bf16.mxu0 0
      %2021 = vmatmul.mubr.bf16.gmra.mrb[0].mxu0 %v1866
      %v2022 = vpop.f32.mrb[0].mxu0
      %v2023 = vadd.f32 %v1806, %v2022
      %v2024 = vpop.f32.mrb[0].mxu0
      %v2025 = vpop.f32.mrb[0].mxu0
      %v2026 = vadd.f32 %v1806, %v2025
      %v2027 = vpop.f32.mrb[0].mxu0
      %2028 = vdwg.mxu0
      %v2029 = vmax.f32 %v1903, 0.0
      %v2030 = vmax.f32 %v1906, 0.0
      %v2031 = vmax.f32 %v1911, 0.0
      %v2032 = vmax.f32 %v1914, 0.0
      %v2033 = vmax.f32 %v1919, 0.0
      %v2034 = vmax.f32 %v1922, 0.0
      %v2035 = vmax.f32 %v1927, 0.0
      %v2036 = vmax.f32 %v1930, 0.0
      %v2037 = vmax.f32 %v1935, 0.0
      %v2038 = vmax.f32 %v1938, 0.0
      %v2039 = vmax.f32 %v1943, 0.0
      %v2040 = vmax.f32 %v1946, 0.0
      %v2041 = vmax.f32 %v1951, 0.0
      %v2042 = vmax.f32 %v1954, 0.0
      %v2043 = vmax.f32 %v1959, 0.0
      %v2044 = vmax.f32 %v1962, 0.0
      %v2045 = vmax.f32 %v1967, 0.0
      %v2046 = vmax.f32 %v1970, 0.0
      %v2047 = vmax.f32 %v1975, 0.0
      %v2048 = vmax.f32 %v1978, 0.0
      %v2049 = vmax.f32 %v1983, 0.0
      %v2050 = vmax.f32 %v1986, 0.0
      %v2051 = vmax.f32 %v1991, 0.0
      %v2052 = vmax.f32 %v1994, 0.0
      %v2053 = vmax.f32 %v1999, 0.0
      %v2054 = vmax.f32 %v2002, 0.0
      %v2055 = vmax.f32 %v2007, 0.0
      %v2056 = vmax.f32 %v2010, 0.0
      %v2057 = vmax.f32 %v2015, 0.0
      %v2058 = vmax.f32 %v2018, 0.0
      %v2059 = vmax.f32 %v2023, 0.0
      %v2060 = vmax.f32 %v2026, 0.0
      %v2061 = vmax.f32 %v2029, %v2033
      %v2062 = vmax.f32 %v2030, %v2034
      %v2063 = vmax.f32 %v2031, %v2035
      %v2064 = vmax.f32 %v2032, %v2036
      %v2065 = vmax.f32 %v2061, %v2037
      %v2066 = vmax.f32 %v2062, %v2038
      %v2067 = vmax.f32 %v2063, %v2039
      %v2068 = vmax.f32 %v2064, %v2040
      %v2069 = vmax.f32 %v2065, %v2041
      %v2070 = vmax.f32 %v2066, %v2042
      %v2071 = vmax.f32 %v2067, %v2043
      %v2072 = vmax.f32 %v2068, %v2044
      %v2073 = vmax.f32 %v2069, %v2045
      %v2074 = vmax.f32 %v2070, %v2046
      %v2075 = vmax.f32 %v2071, %v2047
      %v2076 = vmax.f32 %v2072, %v2048
      %v2077 = vmax.f32 %v2073, %v2049
      %v2078 = vmax.f32 %v2074, %v2050
      %v2079 = vmax.f32 %v2075, %v2051
      %v2080 = vmax.f32 %v2076, %v2052
      %v2081 = vmax.f32 %v2077, %v2053
      %v2082 = vmax.f32 %v2078, %v2054
      %v2083 = vmax.f32 %v2079, %v2055
      %v2084 = vmax.f32 %v2080, %v2056
      %v2085 = vmax.f32 %v2081, %v2057
      %v2086 = vmax.f32 %v2082, %v2058
      %v2087 = vmax.f32 %v2083, %v2059
      %v2088 = vmax.f32 %v2084, %v2060
      %2089 = vst.msk [vmem:[%s399] sm:$0xff] %vm1539, %v2085
      %2090 = vst.msk [vmem:[%s399 + $0x8] sm:$0xff] %vm1539, %v2086
      %2091 = vst.msk [vmem:[%s399 + $0x10] sm:$0xff] %vm1539, %v2087
      %2092 = vst.msk [vmem:[%s399 + $0x18] sm:$0xff] %vm1539, %v2088
      %p2093 = scmp.lt.s32.totalorder %s21, 1
      %s2094 = scalar_select %p2093, %s21, 1
      %s2095 = smul.addr %s2094, 4
      %s2096 = smul.addr %s2095, 8
      %s2097 = scalar_lea.vmem %s10, %s2096
      // Predicated region
      $region61: #{pointnet_backbone_forward.6} parent=59 // pred_check
        %p2098 = pneg %p264
      $region62: #{pointnet_backbone_forward.6} parent=59 // pred_check_branch
        %2100 = sbr.rel (%p2098) target = $region64
      $region63: #{pointnet_backbone_forward.6} parent=59 // pred_region
        _
      $region64: #{pointnet_backbone_forward.6} parent=59 // pred_fallthru
        _
    $region60: #{pointnet_backbone_forward.6} parent=5 // pred_fallthru
      _
    %p2101 = scmp.le.s32.totalorder 2, %s16
    // Predicated region
    $region65: #{pointnet_backbone_forward.6} parent=5 // pred_check
      %p2102 = pneg %p2101
    $region66: #{pointnet_backbone_forward.6} parent=5 // pred_check_branch
      %2104 = sbr.rel (%p2102) target = $region68
    $region67: #{pointnet_backbone_forward.6} parent=5 // pred_region
      %s2105 = ssub.s32 %s16, 2
      // Predicated region
      $region69: #{pointnet_backbone_forward.6} parent=67 // pred_check
        %p2106 = pneg %p270
      $region70: #{pointnet_backbone_forward.6} parent=67 // pred_check_branch
        %2108 = sbr.rel (%p2106) target = $region72
      $region71: #{pointnet_backbone_forward.6} parent=67 // pred_region
        %p2109 = scmp.lt.s32.totalorder %s22, 1
        %s2110 = scalar_select %p2109, %s22, 1
        %s2111 = smul.addr %s2110, 4
        %s2112 = smul.addr %s2111, 8
        %s2113 = scalar_lea.vmem %s10, %s2112
      $region72: #{pointnet_backbone_forward.6} parent=67 // pred_fallthru
        _
    $region68: #{pointnet_backbone_forward.6} parent=5 // pred_fallthru
      _
  $region6: #{pointnet_backbone_forward.6} parent=0 // loop_footer
    %s20 = sadd.s32 1, %s16
  $region7: #{pointnet_backbone_forward.6} parent=0 // loop_footer_branch
    %15 = sbr.rel target = $region3
  $region8: #{pointnet_backbone_forward.6} parent=0 // loop_exit
    _

// kernel: neg.12
$region0: #{neg.12}
  #allocation0 [shape = 's32[1]{0}', space=sflag, size = 0x4, scoped, tag = 'scoped memory for neg.12']
  %s0 = inlined_call_operand.vmem [shape: f32[2,16,8], index: 0, kind: input, shape index: {}]
  %s1 = inlined_call_operand.vmem [shape: f32[2,16,8], index: 1, kind: output, shape index: {}]
  %v2 = vld [vmem:[%s0] sm:$0xff]
  %3 = xla_tuple %v2
  %4 = xla_tuple %3
  %v5 = vxor.u32 %v2, 2147483648
  %6 = xla_tuple %v5
  %7 = vst [vmem:[%s1] sm:$0xff] %v5
  %s8 = scalar_lea.vmem %s0, 8
  %v9 = vld [vmem:[%s8] sm:$0xff]
  %10 = xla_tuple %v9
  %11 = xla_tuple %10
  %v12 = vxor.u32 %v9, 2147483648
  %13 = xla_tuple %v12
  %s14 = scalar_lea.vmem %s1, 8
  %15 = vst [vmem:[%s14] sm:$0xff] %v12

// kernel: neg.14
$region0: #{neg.14}
  #allocation0 [shape = 's32[1]{0}', space=sflag, size = 0x4, scoped, tag = 'scoped memory for neg.14']
  %s0 = inlined_call_operand.vmem [shape: f32[2,32,16], index: 0, kind: input, shape index: {}]
  %s1 = inlined_call_operand.vmem [shape: f32[2,32,16], index: 1, kind: output, shape index: {}]
  %v2 = vld [vmem:[%s0] sm:$0xff]
  %3 = xla_tuple %v2
  %4 = xla_tuple %3
  %v5 = vxor.u32 %v2, 2147483648
  %6 = xla_tuple %v5
  %7 = vst [vmem:[%s1] sm:$0xff] %v5
  %s8 = scalar_lea.vmem %s0, 16
  %v9 = vld [vmem:[%s8] sm:$0xff]
  %10 = xla_tuple %v9
  %11 = xla_tuple %10
  %v12 = vxor.u32 %v9, 2147483648
  %13 = xla_tuple %v12
  %s14 = scalar_lea.vmem %s1, 16
  %15 = vst [vmem:[%s14] sm:$0xff] %v12
  %s16 = scalar_lea.vmem %s0, 8
  %v17 = vld [vmem:[%s16] sm:$0xff]
  %18 = xla_tuple %v17
  %19 = xla_tuple %18
  %v20 = vxor.u32 %v17, 2147483648
  %21 = xla_tuple %v20
  %s22 = scalar_lea.vmem %s1, 8
  %23 = vst [vmem:[%s22] sm:$0xff] %v20
  %s24 = scalar_lea.vmem %s0, 24
  %v25 = vld [vmem:[%s24] sm:$0xff]
  %26 = xla_tuple %v25
  %27 = xla_tuple %26
  %v28 = vxor.u32 %v25, 2147483648
  %29 = xla_tuple %v28
  %s30 = scalar_lea.vmem %s1, 24
  %31 = vst [vmem:[%s30] sm:$0xff] %v28

// kernel: pointnet_backbone_forward.8
$region0: #{pointnet_backbone_forward.8}
  #allocation0 [shape = 'u32[]', space=smem, size = 0x4, offset = 0x4, fixed_abs, tag = 'smem constant byte address 0x4 - core index']
  #allocation1 [shape = 'u32[144,128]{1,0:T(1,128)}', space=vmem, size = 0x12000, scoped, tag = 'internal scratch']
  %s0 = inlined_call_operand.vmem [shape: s32[2,64,1], index: 0, kind: input, shape index: {}]
  %s1 = inlined_call_operand.vmem [shape: f32[2,16,3], index: 1, kind: input, shape index: {}]
  %s2 = inlined_call_operand.vmem [shape: f32[2,16,64], index: 2, kind: input, shape index: {}]
  %s3 = inlined_call_operand.vmem [shape: bf16[3,128], index: 3, kind: input, shape index: {}]
  %s4 = inlined_call_operand.vmem [shape: bf16[64,128], index: 4, kind: input, shape index: {}]
  %s5 = inlined_call_operand.vmem [shape: bf16[64,128], index: 5, kind: input, shape index: {}]
  %s6 = inlined_call_operand.vmem [shape: f32[1,128], index: 6, kind: input, shape index: {}]
  %s7 = inlined_call_operand.vmem [shape: bf16[128,128], index: 7, kind: input, shape index: {}]
  %s8 = inlined_call_operand.vmem [shape: f32[1,128], index: 8, kind: input, shape index: {}]
  %s9 = inlined_call_operand.vmem [shape: bf16[128,128], index: 9, kind: input, shape index: {}]
  %s10 = inlined_call_operand.vmem [shape: f32[1,128], index: 10, kind: input, shape index: {}]
  %s11 = inlined_call_operand.vmem [shape: f32[2,8,128], index: 11, kind: output, shape index: {}]
  %s12 = sld [smem:[#allocation0]]
  $region77: #{pointnet_backbone_forward.8} parent=0
    _
  %s14 = ssub.s32 1, %s12
  %s15 = scalar_select 0, %s14, %s12
  loop: start=0, step=1, limit=4
  $region2: #{pointnet_backbone_forward.8} parent=0 // loop_pre_header
    _
  $region3: #{pointnet_backbone_forward.8} parent=0 // loop_header
    %s17 = sphi 0, %s21
    %p18 = scmp.ge.s32.totalorder %s17, 4
    %s27 = sphi 0, %s29
    %s30 = sphi 0, %s27
    %s31 = sphi 0, %s30
    %s47 = sphi 0, %s31
    %s53 = sphi 0, %s55
    %s56 = sphi 0, %s53
    %s57 = sphi 0, %s56
    %s73 = sphi 0, %s57
    %s79 = sphi 0, %s81
    %s82 = sphi 0, %s79
    %s83 = sphi 0, %s82
    %s99 = sphi 0, %s83
    %s103 = sphi 0, %s103
    %s105 = sphi 0, %s103
    %s106 = sphi 0, %s105
    %s120 = sphi 0, %s106
    %s124 = sphi 0, %s124
    %s126 = sphi 0, %s124
    %s127 = sphi 0, %s126
    %s141 = sphi 0, %s127
    %s145 = sphi 0, %s145
    %s147 = sphi 0, %s145
    %s148 = sphi 0, %s147
    %s162 = sphi 0, %s148
    %s166 = sphi 0, %s166
    %s168 = sphi 0, %s166
    %s169 = sphi 0, %s168
    %s183 = sphi 0, %s169
    %s187 = sphi 0, %s187
    %s189 = sphi 0, %s187
    %s190 = sphi 0, %s189
    %s204 = sphi 0, %s190
    %s208 = sphi 0, %s208
    %s210 = sphi 0, %s208
    %s211 = sphi 0, %s210
    %s225 = sphi 0, %s211
    %s229 = sphi 0, %s229
    %s231 = sphi 0, %s229
    %s232 = sphi 0, %s231
    %s246 = sphi 0, %s232
    %s250 = sphi 0, %s250
    %s252 = sphi 0, %s250
    %s253 = sphi 0, %s252
    %s267 = sphi 0, %s253
    %s273 = sphi 0, %s275
    %s276 = sphi 0, %s273
    %s277 = sphi 0, %s276
    %s293 = sphi 0, %s277
  $region4: #{pointnet_backbone_forward.8} parent=0 // loop_header_branch
    %20 = sbr.rel (%p18) target = $region8
  $region5: #{pointnet_backbone_forward.8} parent=0 // loop_body
    %s22 = ssub.s32 %s17, 1
    %s23 = ssub.s32 %s17, 2
    %s24 = sadd.s32 %s17, 1
    %s25 = ssub.s32 %s17, %s24
    %p26 = scmp.eq.s32.totalorder %s25, 0
    %s28 = sadd.s32 %s27, 1
    %s29 = scalar_select %p26, %s27, %s28
    %p32 = pneg %p26
    %p33 = scmp.eq.s32.totalorder %s17, 1
    %p34 = por %p32, %p33
    %p35 = scmp.ne.s32.totalorder %s27, %s30
    %p36 = scmp.eq.s32.totalorder %s17, 0
    %p37 = por %p35, %p36
    %p38 = scmp.ne.s32.totalorder %s27, %s30
    %p39 = scmp.eq.s32.totalorder %s22, 1
    %p40 = por %p38, %p39
    %p41 = scmp.ne.s32.totalorder %s30, %s31
    %p42 = scmp.eq.s32.totalorder %s22, 0
    %p43 = por %p41, %p42
    %p44 = scmp.ne.s32.totalorder %s30, %s31
    %p45 = scmp.eq.s32.totalorder %s23, 1
    %p46 = por %p44, %p45
    %p48 = scmp.ne.s32.totalorder %s31, %s47
    %p49 = scmp.eq.s32.totalorder %s23, 0
    %p50 = por %p48, %p49
    %s51 = ssub.s32 %s17, %s24
    %p52 = scmp.eq.s32.totalorder %s51, 0
    %s54 = sadd.s32 %s53, 1
    %s55 = scalar_select %p52, %s53, %s54
    %p58 = pneg %p52
    %p59 = scmp.eq.s32.totalorder %s17, 1
    %p60 = por %p58, %p59
    %p61 = scmp.ne.s32.totalorder %s53, %s56
    %p62 = scmp.eq.s32.totalorder %s17, 0
    %p63 = por %p61, %p62
    %p64 = scmp.ne.s32.totalorder %s53, %s56
    %p65 = scmp.eq.s32.totalorder %s22, 1
    %p66 = por %p64, %p65
    %p67 = scmp.ne.s32.totalorder %s56, %s57
    %p68 = scmp.eq.s32.totalorder %s22, 0
    %p69 = por %p67, %p68
    %p70 = scmp.ne.s32.totalorder %s56, %s57
    %p71 = scmp.eq.s32.totalorder %s23, 1
    %p72 = por %p70, %p71
    %p74 = scmp.ne.s32.totalorder %s57, %s73
    %p75 = scmp.eq.s32.totalorder %s23, 0
    %p76 = por %p74, %p75
    %s77 = ssub.s32 %s17, %s24
    %p78 = scmp.eq.s32.totalorder %s77, 0
    %s80 = sadd.s32 %s79, 1
    %s81 = scalar_select %p78, %s79, %s80
    %p84 = pneg %p78
    %p85 = scmp.eq.s32.totalorder %s17, 1
    %p86 = por %p84, %p85
    %p87 = scmp.ne.s32.totalorder %s79, %s82
    %p88 = scmp.eq.s32.totalorder %s17, 0
    %p89 = por %p87, %p88
    %p90 = scmp.ne.s32.totalorder %s79, %s82
    %p91 = scmp.eq.s32.totalorder %s22, 1
    %p92 = por %p90, %p91
    %p93 = scmp.ne.s32.totalorder %s82, %s83
    %p94 = scmp.eq.s32.totalorder %s22, 0
    %p95 = por %p93, %p94
    %p96 = scmp.ne.s32.totalorder %s82, %s83
    %p97 = scmp.eq.s32.totalorder %s23, 1
    %p98 = por %p96, %p97
    %p100 = scmp.ne.s32.totalorder %s83, %s99
    %p101 = scmp.eq.s32.totalorder %s23, 0
    %p102 = por %p100, %p101
    %s104 = sadd.s32 %s103, 1
    %p107 = scmp.eq.s32.totalorder %s17, 1
    %p108 = scmp.ne.s32.totalorder %s103, %s105
    %p109 = scmp.eq.s32.totalorder %s17, 0
    %p110 = por %p108, %p109
    %p111 = scmp.ne.s32.totalorder %s103, %s105
    %p112 = scmp.eq.s32.totalorder %s22, 1
    %p113 = por %p111, %p112
    %p114 = scmp.ne.s32.totalorder %s105, %s106
    %p115 = scmp.eq.s32.totalorder %s22, 0
    %p116 = por %p114, %p115
    %p117 = scmp.ne.s32.totalorder %s105, %s106
    %p118 = scmp.eq.s32.totalorder %s23, 1
    %p119 = por %p117, %p118
    %p121 = scmp.ne.s32.totalorder %s106, %s120
    %p122 = scmp.eq.s32.totalorder %s23, 0
    %p123 = por %p121, %p122
    %s125 = sadd.s32 %s124, 1
    %p128 = scmp.eq.s32.totalorder %s17, 1
    %p129 = scmp.ne.s32.totalorder %s124, %s126
    %p130 = scmp.eq.s32.totalorder %s17, 0
    %p131 = por %p129, %p130
    %p132 = scmp.ne.s32.totalorder %s124, %s126
    %p133 = scmp.eq.s32.totalorder %s22, 1
    %p134 = por %p132, %p133
    %p135 = scmp.ne.s32.totalorder %s126, %s127
    %p136 = scmp.eq.s32.totalorder %s22, 0
    %p137 = por %p135, %p136
    %p138 = scmp.ne.s32.totalorder %s126, %s127
    %p139 = scmp.eq.s32.totalorder %s23, 1
    %p140 = por %p138, %p139
    %p142 = scmp.ne.s32.totalorder %s127, %s141
    %p143 = scmp.eq.s32.totalorder %s23, 0
    %p144 = por %p142, %p143
    %s146 = sadd.s32 %s145, 1
    %p149 = scmp.eq.s32.totalorder %s17, 1
    %p150 = scmp.ne.s32.totalorder %s145, %s147
    %p151 = scmp.eq.s32.totalorder %s17, 0
    %p152 = por %p150, %p151
    %p153 = scmp.ne.s32.totalorder %s145, %s147
    %p154 = scmp.eq.s32.totalorder %s22, 1
    %p155 = por %p153, %p154
    %p156 = scmp.ne.s32.totalorder %s147, %s148
    %p157 = scmp.eq.s32.totalorder %s22, 0
    %p158 = por %p156, %p157
    %p159 = scmp.ne.s32.totalorder %s147, %s148
    %p160 = scmp.eq.s32.totalorder %s23, 1
    %p161 = por %p159, %p160
    %p163 = scmp.ne.s32.totalorder %s148, %s162
    %p164 = scmp.eq.s32.totalorder %s23, 0
    %p165 = por %p163, %p164
    %s167 = sadd.s32 %s166, 1
    %p170 = scmp.eq.s32.totalorder %s17, 1
    %p171 = scmp.ne.s32.totalorder %s166, %s168
    %p172 = scmp.eq.s32.totalorder %s17, 0
    %p173 = por %p171, %p172
    %p174 = scmp.ne.s32.totalorder %s166, %s168
    %p175 = scmp.eq.s32.totalorder %s22, 1
    %p176 = por %p174, %p175
    %p177 = scmp.ne.s32.totalorder %s168, %s169
    %p178 = scmp.eq.s32.totalorder %s22, 0
    %p179 = por %p177, %p178
    %p180 = scmp.ne.s32.totalorder %s168, %s169
    %p181 = scmp.eq.s32.totalorder %s23, 1
    %p182 = por %p180, %p181
    %p184 = scmp.ne.s32.totalorder %s169, %s183
    %p185 = scmp.eq.s32.totalorder %s23, 0
    %p186 = por %p184, %p185
    %s188 = sadd.s32 %s187, 1
    %p191 = scmp.eq.s32.totalorder %s17, 1
    %p192 = scmp.ne.s32.totalorder %s187, %s189
    %p193 = scmp.eq.s32.totalorder %s17, 0
    %p194 = por %p192, %p193
    %p195 = scmp.ne.s32.totalorder %s187, %s189
    %p196 = scmp.eq.s32.totalorder %s22, 1
    %p197 = por %p195, %p196
    %p198 = scmp.ne.s32.totalorder %s189, %s190
    %p199 = scmp.eq.s32.totalorder %s22, 0
    %p200 = por %p198, %p199
    %p201 = scmp.ne.s32.totalorder %s189, %s190
    %p202 = scmp.eq.s32.totalorder %s23, 1
    %p203 = por %p201, %p202
    %p205 = scmp.ne.s32.totalorder %s190, %s204
    %p206 = scmp.eq.s32.totalorder %s23, 0
    %p207 = por %p205, %p206
    %s209 = sadd.s32 %s208, 1
    %p212 = scmp.eq.s32.totalorder %s17, 1
    %p213 = scmp.ne.s32.totalorder %s208, %s210
    %p214 = scmp.eq.s32.totalorder %s17, 0
    %p215 = por %p213, %p214
    %p216 = scmp.ne.s32.totalorder %s208, %s210
    %p217 = scmp.eq.s32.totalorder %s22, 1
    %p218 = por %p216, %p217
    %p219 = scmp.ne.s32.totalorder %s210, %s211
    %p220 = scmp.eq.s32.totalorder %s22, 0
    %p221 = por %p219, %p220
    %p222 = scmp.ne.s32.totalorder %s210, %s211
    %p223 = scmp.eq.s32.totalorder %s23, 1
    %p224 = por %p222, %p223
    %p226 = scmp.ne.s32.totalorder %s211, %s225
    %p227 = scmp.eq.s32.totalorder %s23, 0
    %p228 = por %p226, %p227
    %s230 = sadd.s32 %s229, 1
    %p233 = scmp.eq.s32.totalorder %s17, 1
    %p234 = scmp.ne.s32.totalorder %s229, %s231
    %p235 = scmp.eq.s32.totalorder %s17, 0
    %p236 = por %p234, %p235
    %p237 = scmp.ne.s32.totalorder %s229, %s231
    %p238 = scmp.eq.s32.totalorder %s22, 1
    %p239 = por %p237, %p238
    %p240 = scmp.ne.s32.totalorder %s231, %s232
    %p241 = scmp.eq.s32.totalorder %s22, 0
    %p242 = por %p240, %p241
    %p243 = scmp.ne.s32.totalorder %s231, %s232
    %p244 = scmp.eq.s32.totalorder %s23, 1
    %p245 = por %p243, %p244
    %p247 = scmp.ne.s32.totalorder %s232, %s246
    %p248 = scmp.eq.s32.totalorder %s23, 0
    %p249 = por %p247, %p248
    %s251 = sadd.s32 %s250, 1
    %p254 = scmp.eq.s32.totalorder %s17, 1
    %p255 = scmp.ne.s32.totalorder %s250, %s252
    %p256 = scmp.eq.s32.totalorder %s17, 0
    %p257 = por %p255, %p256
    %p258 = scmp.ne.s32.totalorder %s250, %s252
    %p259 = scmp.eq.s32.totalorder %s22, 1
    %p260 = por %p258, %p259
    %p261 = scmp.ne.s32.totalorder %s252, %s253
    %p262 = scmp.eq.s32.totalorder %s22, 0
    %p263 = por %p261, %p262
    %p264 = scmp.ne.s32.totalorder %s252, %s253
    %p265 = scmp.eq.s32.totalorder %s23, 1
    %p266 = por %p264, %p265
    %p268 = scmp.ne.s32.totalorder %s253, %s267
    %p269 = scmp.eq.s32.totalorder %s23, 0
    %p270 = por %p268, %p269
    %s271 = ssub.s32 %s17, %s24
    %p272 = scmp.eq.s32.totalorder %s271, 0
    %s274 = sadd.s32 %s273, 1
    %s275 = scalar_select %p272, %s273, %s274
    %p278 = pneg %p272
    %p279 = scmp.eq.s32.totalorder %s17, 1
    %p280 = por %p278, %p279
    %p281 = scmp.ne.s32.totalorder %s273, %s276
    %p282 = scmp.eq.s32.totalorder %s17, 0
    %p283 = por %p281, %p282
    %p284 = scmp.ne.s32.totalorder %s273, %s276
    %p285 = scmp.eq.s32.totalorder %s22, 1
    %p286 = por %p284, %p285
    %p287 = scmp.ne.s32.totalorder %s276, %s277
    %p288 = scmp.eq.s32.totalorder %s22, 0
    %p289 = por %p287, %p288
    %p290 = scmp.ne.s32.totalorder %s276, %s277
    %p291 = scmp.eq.s32.totalorder %s23, 1
    %p292 = por %p290, %p291
    %p294 = scmp.ne.s32.totalorder %s277, %s293
    %p295 = scmp.eq.s32.totalorder %s23, 0
    %p296 = por %p294, %p295
    %p297 = scmp.le.s32.totalorder 1, %s17
    %p298 = scmp.lt.s32.totalorder %s17, 3
    %p299 = pnand %p297, %p298
    %p300 = pneg %p299
    // Predicated region
    $region9: #{pointnet_backbone_forward.8} parent=5 // pred_check
      _
    $region10: #{pointnet_backbone_forward.8} parent=5 // pred_check_branch
      %302 = sbr.rel (%p299) target = $region12
    $region11: #{pointnet_backbone_forward.8} parent=5 // pred_region
      %s303 = ssub.s32 %s17, 1
      // Predicated region
      $region13: #{pointnet_backbone_forward.8} parent=11 // pred_check
        %p304 = pneg %p116
      $region14: #{pointnet_backbone_forward.8} parent=11 // pred_check_branch
        %306 = sbr.rel (%p304) target = $region16
      $region15: #{pointnet_backbone_forward.8} parent=11 // pred_region
        _
      $region16: #{pointnet_backbone_forward.8} parent=11 // pred_fallthru
        _
      // Predicated region
      $region17: #{pointnet_backbone_forward.8} parent=11 // pred_check
        %p307 = pneg %p137
      $region18: #{pointnet_backbone_forward.8} parent=11 // pred_check_branch
        %309 = sbr.rel (%p307) target = $region20
      $region19: #{pointnet_backbone_forward.8} parent=11 // pred_region
        _
      $region20: #{pointnet_backbone_forward.8} parent=11 // pred_fallthru
        _
      // Predicated region
      $region21: #{pointnet_backbone_forward.8} parent=11 // pred_check
        %p310 = pneg %p158
      $region22: #{pointnet_backbone_forward.8} parent=11 // pred_check_branch
        %312 = sbr.rel (%p310) target = $region24
      $region23: #{pointnet_backbone_forward.8} parent=11 // pred_region
        _
      $region24: #{pointnet_backbone_forward.8} parent=11 // pred_fallthru
        _
      // Predicated region
      $region25: #{pointnet_backbone_forward.8} parent=11 // pred_check
        %p313 = pneg %p179
      $region26: #{pointnet_backbone_forward.8} parent=11 // pred_check_branch
        %315 = sbr.rel (%p313) target = $region28
      $region27: #{pointnet_backbone_forward.8} parent=11 // pred_region
        _
      $region28: #{pointnet_backbone_forward.8} parent=11 // pred_fallthru
        _
      // Predicated region
      $region29: #{pointnet_backbone_forward.8} parent=11 // pred_check
        %p316 = pneg %p200
      $region30: #{pointnet_backbone_forward.8} parent=11 // pred_check_branch
        %318 = sbr.rel (%p316) target = $region32
      $region31: #{pointnet_backbone_forward.8} parent=11 // pred_region
        _
      $region32: #{pointnet_backbone_forward.8} parent=11 // pred_fallthru
        _
      // Predicated region
      $region33: #{pointnet_backbone_forward.8} parent=11 // pred_check
        %p319 = pneg %p221
      $region34: #{pointnet_backbone_forward.8} parent=11 // pred_check_branch
        %321 = sbr.rel (%p319) target = $region36
      $region35: #{pointnet_backbone_forward.8} parent=11 // pred_region
        _
      $region36: #{pointnet_backbone_forward.8} parent=11 // pred_fallthru
        _
      // Predicated region
      $region37: #{pointnet_backbone_forward.8} parent=11 // pred_check
        %p322 = pneg %p242
      $region38: #{pointnet_backbone_forward.8} parent=11 // pred_check_branch
        %324 = sbr.rel (%p322) target = $region40
      $region39: #{pointnet_backbone_forward.8} parent=11 // pred_region
        _
      $region40: #{pointnet_backbone_forward.8} parent=11 // pred_fallthru
        _
      // Predicated region
      $region41: #{pointnet_backbone_forward.8} parent=11 // pred_check
        %p325 = pneg %p263
      $region42: #{pointnet_backbone_forward.8} parent=11 // pred_check_branch
        %327 = sbr.rel (%p325) target = $region44
      $region43: #{pointnet_backbone_forward.8} parent=11 // pred_region
        _
      $region44: #{pointnet_backbone_forward.8} parent=11 // pred_fallthru
        _
    $region12: #{pointnet_backbone_forward.8} parent=5 // pred_fallthru
      _
    %p328 = scmp.lt.s32.totalorder %s17, 2
    // Predicated region
    $region45: #{pointnet_backbone_forward.8} parent=5 // pred_check
      %p329 = pneg %p328
    $region46: #{pointnet_backbone_forward.8} parent=5 // pred_check_branch
      %331 = sbr.rel (%p329) target = $region48
    $region47: #{pointnet_backbone_forward.8} parent=5 // pred_region
      // Predicated region
      $region49: #{pointnet_backbone_forward.8} parent=47 // pred_check
        %p332 = pneg %p37
      $region50: #{pointnet_backbone_forward.8} parent=47 // pred_check_branch
        %334 = sbr.rel (%p332) target = $region52
      $region51: #{pointnet_backbone_forward.8} parent=47 // pred_region
        %p335 = scmp.lt.s32.totalorder %s17, 1
        %s336 = scalar_select %p335, %s17, 1
        %s337 = smul.addr %s336, 8
        %s338 = smul.addr %s337, 8
        %s339 = scalar_lea.vmem %s0, %s338
      $region52: #{pointnet_backbone_forward.8} parent=47 // pred_fallthru
        _
      // Predicated region
      $region53: #{pointnet_backbone_forward.8} parent=47 // pred_check
        %p340 = pneg %p63
      $region54: #{pointnet_backbone_forward.8} parent=47 // pred_check_branch
        %342 = sbr.rel (%p340) target = $region56
      $region55: #{pointnet_backbone_forward.8} parent=47 // pred_region
        %p343 = scmp.lt.s32.totalorder %s17, 1
        %s344 = scalar_select %p343, %s17, 1
        %s345 = smul.addr %s344, 2
        %s346 = smul.addr %s345, 8
        %s347 = scalar_lea.vmem %s1, %s346
      $region56: #{pointnet_backbone_forward.8} parent=47 // pred_fallthru
        _
      // Predicated region
      $region57: #{pointnet_backbone_forward.8} parent=47 // pred_check
        %p348 = pneg %p89
      $region58: #{pointnet_backbone_forward.8} parent=47 // pred_check_branch
        %350 = sbr.rel (%p348) target = $region60
      $region59: #{pointnet_backbone_forward.8} parent=47 // pred_region
        %p351 = scmp.lt.s32.totalorder %s17, 1
        %s352 = scalar_select %p351, %s17, 1
        %s353 = smul.addr %s352, 2
        %s354 = smul.addr %s353, 8
        %s355 = scalar_lea.vmem %s2, %s354
      $region60: #{pointnet_backbone_forward.8} parent=47 // pred_fallthru
        _
    $region48: #{pointnet_backbone_forward.8} parent=5 // pred_fallthru
      _
    %p356 = scmp.le.s32.totalorder 1, %s17
    %p357 = scmp.lt.s32.totalorder %s17, 3
    %p358 = pnand %p356, %p357
    %p359 = pneg %p358
    // Predicated region
    $region61: #{pointnet_backbone_forward.8} parent=5 // pred_check
      _
    $region62: #{pointnet_backbone_forward.8} parent=5 // pred_check_branch
      %361 = sbr.rel (%p358) target = $region64
    $region63: #{pointnet_backbone_forward.8} parent=5 // pred_region
      %s362 = ssub.s32 %s17, 1
      %p363 = scmp.lt.s32.totalorder %s22, 1
      %s364 = scalar_select %p363, %s22, 1
      %s365 = smul.addr %s364, 8
      %s366 = smul.addr %s365, 8
      %s367 = scalar_lea.vmem %s0, %s366
      %p368 = pneg %p43
      %p369 = pneg %p40
      %p370 = scmp.lt.s32.totalorder %s22, 1
      %s371 = scalar_select %p370, %s22, 1
      %s372 = smul.addr %s371, 2
      %s373 = smul.addr %s372, 8
      %s374 = scalar_lea.vmem %s1, %s373
      %p375 = pneg %p69
      %p376 = pneg %p66
      %p377 = scmp.lt.s32.totalorder %s22, 1
      %s378 = scalar_select %p377, %s22, 1
      %s379 = smul.addr %s378, 2
      %s380 = smul.addr %s379, 8
      %s381 = scalar_lea.vmem %s2, %s380
      %p382 = pneg %p95
      %p383 = pneg %p92
      %p384 = pneg %p116
      %p385 = pneg %p113
      %p386 = pneg %p137
      %p387 = pneg %p134
      %p388 = pneg %p158
      %p389 = pneg %p155
      %p390 = pneg %p179
      %p391 = pneg %p176
      %p392 = pneg %p200
      %p393 = pneg %p197
      %p394 = pneg %p221
      %p395 = pneg %p218
      %p396 = pneg %p242
      %p397 = pneg %p239
      %p398 = pneg %p263
      %p399 = pneg %p260
      %p400 = pneg %p289
      %p401 = pneg %p286
      %p402 = scmp.lt.s32.totalorder %s22, 1
      %s403 = scalar_select %p402, %s22, 1
      %s404 = smul.addr %s403, 8
      %s405 = scalar_lea.vmem %s11, %s404
      %p406 = scmp.lt.s32.totalorder %s22, 1
      %s407 = scalar_select %p406, %s22, 1
      %s408 = smul.addr %s407, 8
      %s409 = smul.addr %s408, 8
      %s410 = scalar_lea.vmem %s0, %s409
      %p411 = scmp.lt.s32.totalorder %s22, 1
      %s412 = scalar_select %p411, %s22, 1
      %s413 = smul.addr %s412, 2
      %s414 = smul.addr %s413, 8
      %s415 = scalar_lea.vmem %s1, %s414
      %p416 = scmp.lt.s32.totalorder %s22, 1
      %s417 = scalar_select %p416, %s22, 1
      %s418 = smul.addr %s417, 2
      %s419 = smul.addr %s418, 8
      %s420 = scalar_lea.vmem %s2, %s419
      %p421 = scmp.lt.s32.totalorder %s22, 1
      %s422 = scalar_select %p421, %s22, 1
      %s423 = smul.addr %s422, 8
      %s424 = scalar_lea.vmem %s11, %s423
      %v426 = vld [vmem:[%s410] sm:$0xff]
      %v427 = vld [vmem:[%s410 + $0x8] sm:$0xff]
      %v428 = vld [vmem:[%s410 + $0x10] sm:$0xff]
      %v429 = vld [vmem:[%s410 + $0x18] sm:$0xff]
      %v430 = vld [vmem:[%s410 + $0x20] sm:$0xff]
      %v431 = vld [vmem:[%s410 + $0x28] sm:$0xff]
      %v432 = vld [vmem:[%s410 + $0x30] sm:$0xff]
      %v433 = vld [vmem:[%s410 + $0x38] sm:$0xff]
      %v434 = vld [vmem:[%s415] sm:$0xff]
      %v435 = vld [vmem:[%s415 + $0x8] sm:$0xff]
      %v436 = vlaneseq
      %v437 = vand.u32 %v436, 127
      %438 = vset.pattern.permute.xlu0 0
      %439 = vperm.xlu0 %438, %v426
      %v440 = vpop.permute.xlu0 %439
      %441 = vset.pattern.permute.xlu0 0
      %442 = vperm.xlu0 %441, %v427
      %v443 = vpop.permute.xlu0 %442
      %444 = vset.pattern.permute.xlu0 0
      %445 = vperm.xlu0 %444, %v428
      %v446 = vpop.permute.xlu0 %445
      %447 = vset.pattern.permute.xlu0 0
      %448 = vperm.xlu0 %447, %v429
      %v449 = vpop.permute.xlu0 %448
      %450 = vset.pattern.permute.xlu0 0
      %451 = vperm.xlu0 %450, %v430
      %v452 = vpop.permute.xlu0 %451
      %453 = vset.pattern.permute.xlu0 0
      %454 = vperm.xlu0 %453, %v431
      %v455 = vpop.permute.xlu0 %454
      %456 = vset.pattern.permute.xlu0 0
      %457 = vperm.xlu0 %456, %v432
      %v458 = vpop.permute.xlu0 %457
      %459 = vset.pattern.permute.xlu0 0
      %460 = vperm.xlu0 %459, %v433
      %v461 = vpop.permute.xlu0 %460
      %vm462 = vcmp.eq.s32.totalorder %v440, %v437
      %vm463 = vcmp.eq.s32.totalorder %v443, %v437
      %vm464 = vcmp.eq.s32.totalorder %v446, %v437
      %vm465 = vcmp.eq.s32.totalorder %v449, %v437
      %vm466 = vcmp.eq.s32.totalorder %v452, %v437
      %vm467 = vcmp.eq.s32.totalorder %v455, %v437
      %vm468 = vcmp.eq.s32.totalorder %v458, %v437
      %vm469 = vcmp.eq.s32.totalorder %v461, %v437
      %v470 = vsel %vm462, 1, 0
      %v471 = vsel %vm463, 1, 0
      %v472 = vsel %vm464, 1, 0
      %v473 = vsel %vm465, 1, 0
      %v474 = vsel %vm466, 1, 0
      %v475 = vsel %vm467, 1, 0
      %v476 = vsel %vm468, 1, 0
      %v477 = vsel %vm469, 1, 0
      %v478 = vcvt.s32.f32 %v470
      %v479 = vcvt.s32.f32 %v471
      %v480 = vcvt.s32.f32 %v472
      %v481 = vcvt.s32.f32 %v473
      %v482 = vcvt.s32.f32 %v474
      %v483 = vcvt.s32.f32 %v475
      %v484 = vcvt.s32.f32 %v476
      %v485 = vcvt.s32.f32 %v477
      %v486 = vpack.c.bf16 %v435, %v434
      %v487 = vld [vmem:[%s3] sm:$0x3]
      %vm488 = vcmask 23552
      %v490 = vsel %vm488, %v486, 0
      %vm492 = vcmask 1040384
      %vm493 = vcmask 1041408
      %v494 = vsel %vm492, 4294967295, 65535
      %v495 = vsel %vm493, %v494, 0
      %v497 = vand.u32 %v487, %v495
      %499 = vmatprep.subr.bf16.mxu0 0
      %500 = vmatpush1.bf16.msra.mxu0 %v497
      %501 = vmatprep.subr.bf16.mxu0 0
      %502 = vmatpush1.bf16.msra.mxu0 0
      %503 = vmatprep.subr.bf16.mxu0 0
      %504 = vmatpush1.bf16.msra.mxu0 0
      %505 = vmatprep.subr.bf16.mxu0 0
      %506 = vmatpush1.bf16.msra.mxu0 0
      %507 = vmatprep.subr.bf16.mxu0 0
      %508 = vmatpush1.bf16.msra.mxu0 0
      %509 = vmatprep.subr.bf16.mxu0 0
      %510 = vmatpush1.bf16.msra.mxu0 0
      %511 = vmatprep.subr.bf16.mxu0 0
      %512 = vmatpush1.bf16.msra.mxu0 0
      %513 = vmatprep.subr.bf16.mxu0 0
      %514 = vmatpush1.bf16.msra.mxu0 0
      %515 = vmatprep.subr.bf16.mxu0 0
      %516 = vmatpush1.bf16.msra.mxu0 0
      %517 = vmatprep.subr.bf16.mxu0 0
      %518 = vmatpush1.bf16.msra.mxu0 0
      %519 = vmatprep.subr.bf16.mxu0 0
      %520 = vmatpush1.bf16.msra.mxu0 0
      %521 = vmatprep.subr.bf16.mxu0 0
      %522 = vmatpush1.bf16.msra.mxu0 0
      %523 = vmatprep.subr.bf16.mxu0 0
      %524 = vmatpush1.bf16.msra.mxu0 0
      %525 = vmatprep.subr.bf16.mxu0 0
      %526 = vmatpush1.bf16.msra.mxu0 0
      %527 = vmatprep.subr.bf16.mxu0 0
      %528 = vmatpush1.bf16.msra.mxu0 0
      %529 = vmatprep.subr.bf16.mxu0 0
      %530 = vmatpush1.bf16.msra.mxu0 0
      %531 = vmatprep.mubr.bf16.mxu0 0
      %532 = vmatmul.mubr.bf16.gmra.mrb[0].mxu0 %v490
      %v533 = vpop.f32.mrb[0].mxu0
      %v534 = vadd.f32 0.0, %v533
      %v535 = vpop.f32.mrb[0].mxu0
      %v536 = vpop.f32.mrb[0].mxu0
      %v537 = vadd.f32 0.0, %v536
      %v538 = vpop.f32.mrb[0].mxu0
      %539 = vdwg.mxu0
      %vm540 = vcmask 130048
      %v542 = vsel %vm540, %v478, 0
      %v545 = vsel %vm540, %v479, 0
      %v548 = vsel %vm540, %v480, 0
      %v551 = vsel %vm540, %v481, 0
      %v554 = vsel %vm540, %v482, 0
      %v557 = vsel %vm540, %v483, 0
      %v560 = vsel %vm540, %v484, 0
      %v563 = vsel %vm540, %v485, 0
      %565 = vmatprep.subr.mxu0 0.0
      %566 = vmatpush1.msra.mxu0 %v534
      %567 = vmatprep.subr.mxu0 0.0
      %568 = vmatpush1.msra.mxu0 %v537
      %569 = vmatprep.subr.mxu0 0.0
      %570 = vmatpush1.msra.mxu0 0.0
      %571 = vmatprep.subr.mxu0 0.0
      %572 = vmatpush1.msra.mxu0 0.0
      %573 = vmatprep.subr.mxu0 0.0
      %574 = vmatpush1.msra.mxu0 0.0
      %575 = vmatprep.subr.mxu0 0.0
      %576 = vmatpush1.msra.mxu0 0.0
      %577 = vmatprep.subr.mxu0 0.0
      %578 = vmatpush1.msra.mxu0 0.0
      %579 = vmatprep.subr.mxu0 0.0
      %580 = vmatpush1.msra.mxu0 0.0
      %581 = vmatprep.subr.mxu0 0.0
      %582 = vmatpush1.msra.mxu0 0.0
      %583 = vmatprep.subr.mxu0 0.0
      %584 = vmatpush1.msra.mxu0 0.0
      %585 = vmatprep.subr.mxu0 0.0
      %586 = vmatpush1.msra.mxu0 0.0
      %587 = vmatprep.subr.mxu0 0.0
      %588 = vmatpush1.msra.mxu0 0.0
      %589 = vmatprep.subr.mxu0 0.0
      %590 = vmatpush1.msra.mxu0 0.0
      %591 = vmatprep.subr.mxu0 0.0
      %592 = vmatpush1.msra.mxu0 0.0
      %593 = vmatprep.subr.mxu0 0.0
      %594 = vmatpush1.msra.mxu0 0.0
      %595 = vmatprep.subr.mxu0 0.0
      %596 = vmatpush1.msra.mxu0 0.0
      %597 = vmatprep.subr.mxu0 0.0
      %598 = vmatpush1.msra.mxu0 0.0
      %599 = vmatprep.subr.mxu0 0.0
      %600 = vmatpush1.msra.mxu0 0.0
      %601 = vmatprep.subr.mxu0 0.0
      %602 = vmatpush1.msra.mxu0 0.0
      %603 = vmatprep.subr.mxu0 0.0
      %604 = vmatpush1.msra.mxu0 0.0
      %605 = vmatprep.subr.mxu0 0.0
      %606 = vmatpush1.msra.mxu0 0.0
      %607 = vmatprep.subr.mxu0 0.0
      %608 = vmatpush1.msra.mxu0 0.0
      %609 = vmatprep.subr.mxu0 0.0
      %610 = vmatpush1.msra.mxu0 0.0
      %611 = vmatprep.subr.mxu0 0.0
      %612 = vmatpush1.msra.mxu0 0.0
      %613 = vmatprep.subr.mxu0 0.0
      %614 = vmatpush1.msra.mxu0 0.0
      %615 = vmatprep.subr.mxu0 0.0
      %616 = vmatpush1.msra.mxu0 0.0
      %617 = vmatprep.subr.mxu0 0.0
      %618 = vmatpush1.msra.mxu0 0.0
      %619 = vmatprep.subr.mxu0 0.0
      %620 = vmatpush1.msra.mxu0 0.0
      %621 = vmatprep.subr.mxu0 0.0
      %622 = vmatpush1.msra.mxu0 0.0
      %623 = vmatprep.subr.mxu0 0.0
      %624 = vmatpush1.msra.mxu0 0.0
      %625 = vmatprep.subr.mxu0 0.0
      %626 = vmatpush1.msra.mxu0 0.0
      %627 = vmatprep.subr.mxu0 0.0
      %628 = vmatpush1.msra.mxu0 0.0
      %629 = vmatprep.mubr.f32.mxu0 0.0
      %630 = vmatmul.mubr.f32.gmra.mrb[0].mxu0 %v542
      %v631 = vpop.f32.mrb[0].mxu0
      %v632 = vadd.f32 0.0, %v631
      %v633 = vpop.f32.mrb[0].mxu0
      %634 = vmatprep.mubr.f32.mxu0 0.0
      %635 = vmatmul.mubr.f32.gmra.mrb[0].mxu0 %v545
      %v636 = vpop.f32.mrb[0].mxu0
      %v637 = vadd.f32 0.0, %v636
      %v638 = vpop.f32.mrb[0].mxu0
      %639 = vmatprep.mubr.f32.mxu0 0.0
      %640 = vmatmul.mubr.f32.gmra.mrb[0].mxu0 %v548
      %v641 = vpop.f32.mrb[0].mxu0
      %v642 = vadd.f32 0.0, %v641
      %v643 = vpop.f32.mrb[0].mxu0
      %644 = vmatprep.mubr.f32.mxu0 0.0
      %645 = vmatmul.mubr.f32.gmra.mrb[0].mxu0 %v551
      %v646 = vpop.f32.mrb[0].mxu0
      %v647 = vadd.f32 0.0, %v646
      %v648 = vpop.f32.mrb[0].mxu0
      %649 = vmatprep.mubr.f32.mxu0 0.0
      %650 = vmatmul.mubr.f32.gmra.mrb[0].mxu0 %v554
      %v651 = vpop.f32.mrb[0].mxu0
      %v652 = vadd.f32 0.0, %v651
      %v653 = vpop.f32.mrb[0].mxu0
      %654 = vmatprep.mubr.f32.mxu0 0.0
      %655 = vmatmul.mubr.f32.gmra.mrb[0].mxu0 %v557
      %v656 = vpop.f32.mrb[0].mxu0
      %v657 = vadd.f32 0.0, %v656
      %v658 = vpop.f32.mrb[0].mxu0
      %659 = vmatprep.mubr.f32.mxu0 0.0
      %660 = vmatmul.mubr.f32.gmra.mrb[0].mxu0 %v560
      %v661 = vpop.f32.mrb[0].mxu0
      %v662 = vadd.f32 0.0, %v661
      %v663 = vpop.f32.mrb[0].mxu0
      %664 = vmatprep.mubr.f32.mxu0 0.0
      %665 = vmatmul.mubr.f32.gmra.mrb[0].mxu0 %v563
      %v666 = vpop.f32.mrb[0].mxu0
      %v667 = vadd.f32 0.0, %v666
      %v668 = vpop.f32.mrb[0].mxu0
      %669 = vdwg.mxu0
      %v670 = vsub.f32 %v632, %v534
      %v671 = vsub.f32 %v637, %v534
      %v672 = vsub.f32 %v642, %v534
      %v673 = vsub.f32 %v647, %v534
      %v674 = vsub.f32 %v652, %v534
      %v675 = vsub.f32 %v657, %v534
      %v676 = vsub.f32 %v662, %v534
      %v677 = vsub.f32 %v667, %v534
      %v678 = vld [vmem:[%s420] sm:$0xff]
      %v679 = vld [vmem:[%s420 + $0x8] sm:$0xff]
      %680 = vmatprep.subr.mxu0 0.0
      %681 = vmatpush1.msra.mxu0 %v678
      %682 = vmatprep.subr.mxu0 0.0
      %683 = vmatpush1.msra.mxu0 %v679
      %684 = vmatprep.subr.mxu0 0.0
      %685 = vmatpush1.msra.mxu0 0.0
      %686 = vmatprep.subr.mxu0 0.0
      %687 = vmatpush1.msra.mxu0 0.0
      %688 = vmatprep.subr.mxu0 0.0
      %689 = vmatpush1.msra.mxu0 0.0
      %690 = vmatprep.subr.mxu0 0.0
      %691 = vmatpush1.msra.mxu0 0.0
      %692 = vmatprep.subr.mxu0 0.0
      %693 = vmatpush1.msra.mxu0 0.0
      %694 = vmatprep.subr.mxu0 0.0
      %695 = vmatpush1.msra.mxu0 0.0
      %696 = vmatprep.subr.mxu0 0.0
      %697 = vmatpush1.msra.mxu0 0.0
      %698 = vmatprep.subr.mxu0 0.0
      %699 = vmatpush1.msra.mxu0 0.0
      %700 = vmatprep.subr.mxu0 0.0
      %701 = vmatpush1.msra.mxu0 0.0
      %702 = vmatprep.subr.mxu0 0.0
      %703 = vmatpush1.msra.mxu0 0.0
      %704 = vmatprep.subr.mxu0 0.0
      %705 = vmatpush1.msra.mxu0 0.0
      %706 = vmatprep.subr.mxu0 0.0
      %707 = vmatpush1.msra.mxu0 0.0
      %708 = vmatprep.subr.mxu0 0.0
      %709 = vmatpush1.msra.mxu0 0.0
      %710 = vmatprep.subr.mxu0 0.0
      %711 = vmatpush1.msra.mxu0 0.0
      %712 = vmatprep.subr.mxu0 0.0
      %713 = vmatpush1.msra.mxu0 0.0
      %714 = vmatprep.subr.mxu0 0.0
      %715 = vmatpush1.msra.mxu0 0.0
      %716 = vmatprep.subr.mxu0 0.0
      %717 = vmatpush1.msra.mxu0 0.0
      %718 = vmatprep.subr.mxu0 0.0
      %719 = vmatpush1.msra.mxu0 0.0
      %720 = vmatprep.subr.mxu0 0.0
      %721 = vmatpush1.msra.mxu0 0.0
      %722 = vmatprep.subr.mxu0 0.0
      %723 = vmatpush1.msra.mxu0 0.0
      %724 = vmatprep.subr.mxu0 0.0
      %725 = vmatpush1.msra.mxu0 0.0
      %726 = vmatprep.subr.mxu0 0.0
      %727 = vmatpush1.msra.mxu0 0.0
      %728 = vmatprep.subr.mxu0 0.0
      %729 = vmatpush1.msra.mxu0 0.0
      %730 = vmatprep.subr.mxu0 0.0
      %731 = vmatpush1.msra.mxu0 0.0
      %732 = vmatprep.subr.mxu0 0.0
      %733 = vmatpush1.msra.mxu0 0.0
      %734 = vmatprep.subr.mxu0 0.0
      %735 = vmatpush1.msra.mxu0 0.0
      %736 = vmatprep.subr.mxu0 0.0
      %737 = vmatpush1.msra.mxu0 0.0
      %738 = vmatprep.subr.mxu0 0.0
      %739 = vmatpush1.msra.mxu0 0.0
      %740 = vmatprep.subr.mxu0 0.0
      %741 = vmatpush1.msra.mxu0 0.0
      %742 = vmatprep.subr.mxu0 0.0
      %743 = vmatpush1.msra.mxu0 0.0
      %744 = vmatprep.mubr.f32.mxu0 0.0
      %745 = vmatmul.mubr.f32.gmra.mrb[0].mxu0 %v542
      %v746 = vpop.f32.mrb[0].mxu0
      %v747 = vadd.f32 0.0, %v746
      %v748 = vpop.f32.mrb[0].mxu0
      %749 = vmatprep.mubr.f32.mxu0 0.0
      %750 = vmatmul.mubr.f32.gmra.mrb[0].mxu0 %v545
      %v751 = vpop.f32.mrb[0].mxu0
      %v752 = vadd.f32 0.0, %v751
      %v753 = vpop.f32.mrb[0].mxu0
      %754 = vmatprep.mubr.f32.mxu0 0.0
      %755 = vmatmul.mubr.f32.gmra.mrb[0].mxu0 %v548
      %v756 = vpop.f32.mrb[0].mxu0
      %v757 = vadd.f32 0.0, %v756
      %v758 = vpop.f32.mrb[0].mxu0
      %759 = vmatprep.mubr.f32.mxu0 0.0
      %760 = vmatmul.mubr.f32.gmra.mrb[0].mxu0 %v551
      %v761 = vpop.f32.mrb[0].mxu0
      %v762 = vadd.f32 0.0, %v761
      %v763 = vpop.f32.mrb[0].mxu0
      %764 = vmatprep.mubr.f32.mxu0 0.0
      %765 = vmatmul.mubr.f32.gmra.mrb[0].mxu0 %v554
      %v766 = vpop.f32.mrb[0].mxu0
      %v767 = vadd.f32 0.0, %v766
      %v768 = vpop.f32.mrb[0].mxu0
      %769 = vmatprep.mubr.f32.mxu0 0.0
      %770 = vmatmul.mubr.f32.gmra.mrb[0].mxu0 %v557
      %v771 = vpop.f32.mrb[0].mxu0
      %v772 = vadd.f32 0.0, %v771
      %v773 = vpop.f32.mrb[0].mxu0
      %774 = vmatprep.mubr.f32.mxu0 0.0
      %775 = vmatmul.mubr.f32.gmra.mrb[0].mxu0 %v560
      %v776 = vpop.f32.mrb[0].mxu0
      %v777 = vadd.f32 0.0, %v776
      %v778 = vpop.f32.mrb[0].mxu0
      %779 = vmatprep.mubr.f32.mxu0 0.0
      %780 = vmatmul.mubr.f32.gmra.mrb[0].mxu0 %v563
      %v781 = vpop.f32.mrb[0].mxu0
      %v782 = vadd.f32 0.0, %v781
      %v783 = vpop.f32.mrb[0].mxu0
      %784 = vdwg.mxu0
      %v785 = vsub.f32 %v747, %v678
      %v786 = vsub.f32 %v752, %v678
      %v787 = vsub.f32 %v757, %v678
      %v788 = vsub.f32 %v762, %v678
      %v789 = vsub.f32 %v767, %v678
      %v790 = vsub.f32 %v772, %v678
      %v791 = vsub.f32 %v777, %v678
      %v792 = vsub.f32 %v782, %v678
      %v793 = vpack.c.bf16 %v786, %v785
      %v794 = vpack.c.bf16 %v788, %v787
      %v795 = vpack.c.bf16 %v790, %v789
      %v796 = vpack.c.bf16 %v792, %v791
      %v797 = vld [vmem:[%s4] sm:$0xf]
      %v798 = vld [vmem:[%s4 + $0x4] sm:$0xf]
      %v799 = vld [vmem:[%s4 + $0x8] sm:$0xf]
      %v800 = vld [vmem:[%s4 + $0xc] sm:$0xf]
      %v801 = vld [vmem:[%s4 + $0x10] sm:$0xf]
      %v802 = vld [vmem:[%s4 + $0x14] sm:$0xf]
      %v803 = vld [vmem:[%s4 + $0x18] sm:$0xf]
      %v804 = vld [vmem:[%s4 + $0x1c] sm:$0xf]
      %v813 = vunpack.c.l.b16 %v797
      %v814 = vunpack.c.l.b16 %v798
      %v815 = vunpack.c.l.b16 %v799
      %v816 = vunpack.c.l.b16 %v800
      %v817 = vunpack.c.l.b16 %v801
      %v818 = vunpack.c.l.b16 %v802
      %v819 = vunpack.c.l.b16 %v803
      %v820 = vunpack.c.l.b16 %v804
      %v821 = vpack.c.b16 %v814, %v813
      %v822 = vpack.c.b16 %v816, %v815
      %v823 = vpack.c.b16 %v818, %v817
      %v824 = vpack.c.b16 %v820, %v819
      %vm829 = vcmask 523264
      %v831 = vsel %vm829, %v793, 0
      %v834 = vsel %vm829, %v794, 0
      %v837 = vsel %vm829, %v795, 0
      %v840 = vsel %vm829, %v796, 0
      %842 = vmatprep.subr.bf16.mxu0 0
      %843 = vmatpush1.bf16.msra.mxu0 %v821
      %844 = vmatprep.subr.bf16.mxu0 0
      %845 = vmatpush1.bf16.msra.mxu0 %v822
      %846 = vmatprep.subr.bf16.mxu0 0
      %847 = vmatpush1.bf16.msra.mxu0 %v823
      %848 = vmatprep.subr.bf16.mxu0 0
      %849 = vmatpush1.bf16.msra.mxu0 %v824
      %850 = vmatprep.subr.bf16.mxu0 0
      %851 = vmatpush1.bf16.msra.mxu0 0
      %852 = vmatprep.subr.bf16.mxu0 0
      %853 = vmatpush1.bf16.msra.mxu0 0
      %854 = vmatprep.subr.bf16.mxu0 0
      %855 = vmatpush1.bf16.msra.mxu0 0
      %856 = vmatprep.subr.bf16.mxu0 0
      %857 = vmatpush1.bf16.msra.mxu0 0
      %858 = vmatprep.subr.bf16.mxu0 0
      %859 = vmatpush1.bf16.msra.mxu0 0
      %860 = vmatprep.subr.bf16.mxu0 0
      %861 = vmatpush1.bf16.msra.mxu0 0
      %862 = vmatprep.subr.bf16.mxu0 0
      %863 = vmatpush1.bf16.msra.mxu0 0
      %864 = vmatprep.subr.bf16.mxu0 0
      %865 = vmatpush1.bf16.msra.mxu0 0
      %866 = vmatprep.subr.bf16.mxu0 0
      %867 = vmatpush1.bf16.msra.mxu0 0
      %868 = vmatprep.subr.bf16.mxu0 0
      %869 = vmatpush1.bf16.msra.mxu0 0
      %870 = vmatprep.subr.bf16.mxu0 0
      %871 = vmatpush1.bf16.msra.mxu0 0
      %872 = vmatprep.subr.bf16.mxu0 0
      %873 = vmatpush1.bf16.msra.mxu0 0
      %874 = vmatprep.mubr.bf16.mxu0 0
      %875 = vmatmul.mubr.bf16.gmra.mrb[0].mxu0 %v831
      %v876 = vpop.f32.mrb[0].mxu0
      %v877 = vadd.f32 0.0, %v876
      %v878 = vpop.f32.mrb[0].mxu0
      %v879 = vpop.f32.mrb[0].mxu0
      %v880 = vadd.f32 0.0, %v879
      %v881 = vpop.f32.mrb[0].mxu0
      %882 = vmatprep.mubr.bf16.mxu0 0
      %883 = vmatmul.mubr.bf16.gmra.mrb[0].mxu0 %v834
      %v884 = vpop.f32.mrb[0].mxu0
      %v885 = vadd.f32 0.0, %v884
      %v886 = vpop.f32.mrb[0].mxu0
      %v887 = vpop.f32.mrb[0].mxu0
      %v888 = vadd.f32 0.0, %v887
      %v889 = vpop.f32.mrb[0].mxu0
      %890 = vmatprep.mubr.bf16.mxu0 0
      %891 = vmatmul.mubr.bf16.gmra.mrb[0].mxu0 %v837
      %v892 = vpop.f32.mrb[0].mxu0
      %v893 = vadd.f32 0.0, %v892
      %v894 = vpop.f32.mrb[0].mxu0
      %v895 = vpop.f32.mrb[0].mxu0
      %v896 = vadd.f32 0.0, %v895
      %v897 = vpop.f32.mrb[0].mxu0
      %898 = vmatprep.mubr.bf16.mxu0 0
      %899 = vmatmul.mubr.bf16.gmra.mrb[0].mxu0 %v840
      %v900 = vpop.f32.mrb[0].mxu0
      %v901 = vadd.f32 0.0, %v900
      %v902 = vpop.f32.mrb[0].mxu0
      %v903 = vpop.f32.mrb[0].mxu0
      %v904 = vadd.f32 0.0, %v903
      %v905 = vpop.f32.mrb[0].mxu0
      %906 = vdwg.mxu0
      %v907 = vadd.f32 %v670, %v877
      %v908 = vadd.f32 %v671, %v880
      %v909 = vadd.f32 %v672, %v885
      %v910 = vadd.f32 %v673, %v888
      %v911 = vadd.f32 %v674, %v893
      %v912 = vadd.f32 %v675, %v896
      %v913 = vadd.f32 %v676, %v901
      %v914 = vadd.f32 %v677, %v904
      %v915 = vpack.c.bf16 %v678, %v678
      %v916 = vld [vmem:[%s5] sm:$0xf]
      %v917 = vld [vmem:[%s5 + $0x4] sm:$0xf]
      %v918 = vld [vmem:[%s5 + $0x8] sm:$0xf]
      %v919 = vld [vmem:[%s5 + $0xc] sm:$0xf]
      %v920 = vld [vmem:[%s5 + $0x10] sm:$0xf]
      %v921 = vld [vmem:[%s5 + $0x14] sm:$0xf]
      %v922 = vld [vmem:[%s5 + $0x18] sm:$0xf]
      %v923 = vld [vmem:[%s5 + $0x1c] sm:$0xf]
      %v932 = vunpack.c.l.b16 %v916
      %v933 = vunpack.c.l.b16 %v917
      %v934 = vunpack.c.l.b16 %v918
      %v935 = vunpack.c.l.b16 %v919
      %v936 = vunpack.c.l.b16 %v920
      %v937 = vunpack.c.l.b16 %v921
      %v938 = vunpack.c.l.b16 %v922
      %v939 = vunpack.c.l.b16 %v923
      %v940 = vpack.c.b16 %v933, %v932
      %v941 = vpack.c.b16 %v935, %v934
      %v942 = vpack.c.b16 %v937, %v936
      %v943 = vpack.c.b16 %v939, %v938
      %v949 = vsel %vm829, %v915, 0
      %951 = vmatprep.subr.bf16.mxu0 0
      %952 = vmatpush1.bf16.msra.mxu0 %v940
      %953 = vmatprep.subr.bf16.mxu0 0
      %954 = vmatpush1.bf16.msra.mxu0 %v941
      %955 = vmatprep.subr.bf16.mxu0 0
      %956 = vmatpush1.bf16.msra.mxu0 %v942
      %957 = vmatprep.subr.bf16.mxu0 0
      %958 = vmatpush1.bf16.msra.mxu0 %v943
      %959 = vmatprep.subr.bf16.mxu0 0
      %960 = vmatpush1.bf16.msra.mxu0 0
      %961 = vmatprep.subr.bf16.mxu0 0
      %962 = vmatpush1.bf16.msra.mxu0 0
      %963 = vmatprep.subr.bf16.mxu0 0
      %964 = vmatpush1.bf16.msra.mxu0 0
      %965 = vmatprep.subr.bf16.mxu0 0
      %966 = vmatpush1.bf16.msra.mxu0 0
      %967 = vmatprep.subr.bf16.mxu0 0
      %968 = vmatpush1.bf16.msra.mxu0 0
      %969 = vmatprep.subr.bf16.mxu0 0
      %970 = vmatpush1.bf16.msra.mxu0 0
      %971 = vmatprep.subr.bf16.mxu0 0
      %972 = vmatpush1.bf16.msra.mxu0 0
      %973 = vmatprep.subr.bf16.mxu0 0
      %974 = vmatpush1.bf16.msra.mxu0 0
      %975 = vmatprep.subr.bf16.mxu0 0
      %976 = vmatpush1.bf16.msra.mxu0 0
      %977 = vmatprep.subr.bf16.mxu0 0
      %978 = vmatpush1.bf16.msra.mxu0 0
      %979 = vmatprep.subr.bf16.mxu0 0
      %980 = vmatpush1.bf16.msra.mxu0 0
      %981 = vmatprep.subr.bf16.mxu0 0
      %982 = vmatpush1.bf16.msra.mxu0 0
      %983 = vmatprep.mubr.bf16.mxu0 0
      %984 = vmatmul.mubr.bf16.gmra.mrb[0].mxu0 %v949
      %v985 = vpop.f32.mrb[0].mxu0
      %v986 = vadd.f32 0.0, %v985
      %v987 = vpop.f32.mrb[0].mxu0
      %v988 = vpop.f32.mrb[0].mxu0
      %v989 = vadd.f32 0.0, %v988
      %v990 = vpop.f32.mrb[0].mxu0
      %991 = vmatprep.mubr.bf16.mxu0 0
      %992 = vmatmul.mubr.bf16.gmra.mrb[0].mxu0 %v949
      %v993 = vpop.f32.mrb[0].mxu0
      %v994 = vadd.f32 0.0, %v993
      %v995 = vpop.f32.mrb[0].mxu0
      %v996 = vpop.f32.mrb[0].mxu0
      %v997 = vadd.f32 0.0, %v996
      %v998 = vpop.f32.mrb[0].mxu0
      %999 = vmatprep.mubr.bf16.mxu0 0
      %1000 = vmatmul.mubr.bf16.gmra.mrb[0].mxu0 %v949
      %v1001 = vpop.f32.mrb[0].mxu0
      %v1002 = vadd.f32 0.0, %v1001
      %v1003 = vpop.f32.mrb[0].mxu0
      %v1004 = vpop.f32.mrb[0].mxu0
      %v1005 = vadd.f32 0.0, %v1004
      %v1006 = vpop.f32.mrb[0].mxu0
      %1007 = vmatprep.mubr.bf16.mxu0 0
      %1008 = vmatmul.mubr.bf16.gmra.mrb[0].mxu0 %v949
      %v1009 = vpop.f32.mrb[0].mxu0
      %v1010 = vadd.f32 0.0, %v1009
      %v1011 = vpop.f32.mrb[0].mxu0
      %v1012 = vpop.f32.mrb[0].mxu0
      %v1013 = vadd.f32 0.0, %v1012
      %v1014 = vpop.f32.mrb[0].mxu0
      %1015 = vdwg.mxu0
      %v1016 = vadd.f32 %v907, %v986
      %v1017 = vadd.f32 %v908, %v989
      %v1018 = vadd.f32 %v909, %v994
      %v1019 = vadd.f32 %v910, %v997
      %v1020 = vadd.f32 %v911, %v1002
      %v1021 = vadd.f32 %v912, %v1005
      %v1022 = vadd.f32 %v913, %v1010
      %v1023 = vadd.f32 %v914, %v1013
      %v1024 = vld [vmem:[%s6] sm:$0x1]
      %v1026 = vlaneseq
      %v1027 = vshrl.u32 %v1026, 7
      %v1028 = vsub.s32 0, %v1027
      %v1029 = vrot.slane %v1024, %v1028
      %v1031 = vadd.f32 %v1016, %v1029
      %v1032 = vadd.f32 %v1017, %v1029
      %v1033 = vadd.f32 %v1018, %v1029
      %v1034 = vadd.f32 %v1019, %v1029
      %v1035 = vadd.f32 %v1020, %v1029
      %v1036 = vadd.f32 %v1021, %v1029
      %v1037 = vadd.f32 %v1022, %v1029
      %v1038 = vadd.f32 %v1023, %v1029
      %v1039 = vmax.f32 %v1031, 0.0
      %v1040 = vmax.f32 %v1032, 0.0
      %v1041 = vmax.f32 %v1033, 0.0
      %v1042 = vmax.f32 %v1034, 0.0
      %v1043 = vmax.f32 %v1035, 0.0
      %v1044 = vmax.f32 %v1036, 0.0
      %v1045 = vmax.f32 %v1037, 0.0
      %v1046 = vmax.f32 %v1038, 0.0
      %v1047 = vpack.c.bf16 %v1040, %v1039
      %v1048 = vpack.c.bf16 %v1042, %v1041
      %v1049 = vpack.c.bf16 %v1044, %v1043
      %v1050 = vpack.c.bf16 %v1046, %v1045
      %v1051 = vld [vmem:[%s7] sm:$0xf]
      %v1052 = vld [vmem:[%s7 + $0x4] sm:$0xf]
      %v1053 = vld [vmem:[%s7 + $0x8] sm:$0xf]
      %v1054 = vld [vmem:[%s7 + $0xc] sm:$0xf]
      %v1055 = vld [vmem:[%s7 + $0x10] sm:$0xf]
      %v1056 = vld [vmem:[%s7 + $0x14] sm:$0xf]
      %v1057 = vld [vmem:[%s7 + $0x18] sm:$0xf]
      %v1058 = vld [vmem:[%s7 + $0x1c] sm:$0xf]
      %v1059 = vld [vmem:[%s7 + $0x20] sm:$0xf]
      %v1060 = vld [vmem:[%s7 + $0x24] sm:$0xf]
      %v1061 = vld [vmem:[%s7 + $0x28] sm:$0xf]
      %v1062 = vld [vmem:[%s7 + $0x2c] sm:$0xf]
      %v1063 = vld [vmem:[%s7 + $0x30] sm:$0xf]
      %v1064 = vld [vmem:[%s7 + $0x34] sm:$0xf]
      %v1065 = vld [vmem:[%s7 + $0x38] sm:$0xf]
      %v1066 = vld [vmem:[%s7 + $0x3c] sm:$0xf]
      %v1067 = vld [vmem:[%s8] sm:$0x1]
      %v1069 = vlaneseq
      %v1070 = vshrl.u32 %v1069, 7
      %v1071 = vsub.s32 0, %v1070
      %v1072 = vrot.slane %v1067, %v1071
      %v1090 = vunpack.c.l.b16 %v1051
      %v1091 = vunpack.c.l.b16 %v1052
      %v1092 = vunpack.c.l.b16 %v1053
      %v1093 = vunpack.c.l.b16 %v1054
      %v1094 = vunpack.c.l.b16 %v1055
      %v1095 = vunpack.c.l.b16 %v1056
      %v1096 = vunpack.c.l.b16 %v1057
      %v1097 = vunpack.c.l.b16 %v1058
      %v1098 = vunpack.c.l.b16 %v1059
      %v1099 = vunpack.c.l.b16 %v1060
      %v1100 = vunpack.c.l.b16 %v1061
      %v1101 = vunpack.c.l.b16 %v1062
      %v1102 = vunpack.c.l.b16 %v1063
      %v1103 = vunpack.c.l.b16 %v1064
      %v1104 = vunpack.c.l.b16 %v1065
      %v1105 = vunpack.c.l.b16 %v1066
      %v1106 = vpack.c.b16 %v1091, %v1090
      %v1107 = vpack.c.b16 %v1093, %v1092
      %v1108 = vpack.c.b16 %v1095, %v1094
      %v1109 = vpack.c.b16 %v1097, %v1096
      %v1110 = vpack.c.b16 %v1099, %v1098
      %v1111 = vpack.c.b16 %v1101, %v1100
      %v1112 = vpack.c.b16 %v1103, %v1102
      %v1113 = vpack.c.b16 %v1105, %v1104
      %1122 = vmatprep.subr.bf16.mxu0 0
      %1123 = vmatpush1.bf16.msra.mxu0 %v1106
      %1124 = vmatprep.subr.bf16.mxu0 0
      %1125 = vmatpush1.bf16.msra.mxu0 %v1107
      %1126 = vmatprep.subr.bf16.mxu0 0
      %1127 = vmatpush1.bf16.msra.mxu0 %v1108
      %1128 = vmatprep.subr.bf16.mxu0 0
      %1129 = vmatpush1.bf16.msra.mxu0 %v1109
      %1130 = vmatprep.subr.bf16.mxu0 0
      %1131 = vmatpush1.bf16.msra.mxu0 %v1110
      %1132 = vmatprep.subr.bf16.mxu0 0
      %1133 = vmatpush1.bf16.msra.mxu0 %v1111
      %1134 = vmatprep.subr.bf16.mxu0 0
      %1135 = vmatpush1.bf16.msra.mxu0 %v1112
      %1136 = vmatprep.subr.bf16.mxu0 0
      %1137 = vmatpush1.bf16.msra.mxu0 %v1113
      %1138 = vmatprep.subr.bf16.mxu0 0
      %1139 = vmatpush1.bf16.msra.mxu0 0
      %1140 = vmatprep.subr.bf16.mxu0 0
      %1141 = vmatpush1.bf16.msra.mxu0 0
      %1142 = vmatprep.subr.bf16.mxu0 0
      %1143 = vmatpush1.bf16.msra.mxu0 0
      %1144 = vmatprep.subr.bf16.mxu0 0
      %1145 = vmatpush1.bf16.msra.mxu0 0
      %1146 = vmatprep.subr.bf16.mxu0 0
      %1147 = vmatpush1.bf16.msra.mxu0 0
      %1148 = vmatprep.subr.bf16.mxu0 0
      %1149 = vmatpush1.bf16.msra.mxu0 0
      %1150 = vmatprep.subr.bf16.mxu0 0
      %1151 = vmatpush1.bf16.msra.mxu0 0
      %1152 = vmatprep.subr.bf16.mxu0 0
      %1153 = vmatpush1.bf16.msra.mxu0 0
      %1154 = vmatprep.mubr.bf16.mxu0 0
      %1155 = vmatmul.mubr.bf16.gmra.mrb[0].mxu0 %v1047
      %v1156 = vpop.f32.mrb[0].mxu0
      %v1157 = vadd.f32 %v1072, %v1156
      %v1158 = vpop.f32.mrb[0].mxu0
      %v1159 = vpop.f32.mrb[0].mxu0
      %v1160 = vadd.f32 %v1072, %v1159
      %v1161 = vpop.f32.mrb[0].mxu0
      %1162 = vmatprep.mubr.bf16.mxu0 0
      %1163 = vmatmul.mubr.bf16.gmra.mrb[0].mxu0 %v1048
      %v1164 = vpop.f32.mrb[0].mxu0
      %v1165 = vadd.f32 %v1072, %v1164
      %v1166 = vpop.f32.mrb[0].mxu0
      %v1167 = vpop.f32.mrb[0].mxu0
      %v1168 = vadd.f32 %v1072, %v1167
      %v1169 = vpop.f32.mrb[0].mxu0
      %1170 = vmatprep.mubr.bf16.mxu0 0
      %1171 = vmatmul.mubr.bf16.gmra.mrb[0].mxu0 %v1049
      %v1172 = vpop.f32.mrb[0].mxu0
      %v1173 = vadd.f32 %v1072, %v1172
      %v1174 = vpop.f32.mrb[0].mxu0
      %v1175 = vpop.f32.mrb[0].mxu0
      %v1176 = vadd.f32 %v1072, %v1175
      %v1177 = vpop.f32.mrb[0].mxu0
      %1178 = vmatprep.mubr.bf16.mxu0 0
      %1179 = vmatmul.mubr.bf16.gmra.mrb[0].mxu0 %v1050
      %v1180 = vpop.f32.mrb[0].mxu0
      %v1181 = vadd.f32 %v1072, %v1180
      %v1182 = vpop.f32.mrb[0].mxu0
      %v1183 = vpop.f32.mrb[0].mxu0
      %v1184 = vadd.f32 %v1072, %v1183
      %v1185 = vpop.f32.mrb[0].mxu0
      %1186 = vdwg.mxu0
      %v1187 = vmax.f32 %v1157, 0.0
      %v1188 = vmax.f32 %v1160, 0.0
      %v1189 = vmax.f32 %v1165, 0.0
      %v1190 = vmax.f32 %v1168, 0.0
      %v1191 = vmax.f32 %v1173, 0.0
      %v1192 = vmax.f32 %v1176, 0.0
      %v1193 = vmax.f32 %v1181, 0.0
      %v1194 = vmax.f32 %v1184, 0.0
      %v1195 = vpack.c.bf16 %v1188, %v1187
      %v1196 = vpack.c.bf16 %v1190, %v1189
      %v1197 = vpack.c.bf16 %v1192, %v1191
      %v1198 = vpack.c.bf16 %v1194, %v1193
      %v1199 = vld [vmem:[%s9] sm:$0xf]
      %v1200 = vld [vmem:[%s9 + $0x4] sm:$0xf]
      %v1201 = vld [vmem:[%s9 + $0x8] sm:$0xf]
      %v1202 = vld [vmem:[%s9 + $0xc] sm:$0xf]
      %v1203 = vld [vmem:[%s9 + $0x10] sm:$0xf]
      %v1204 = vld [vmem:[%s9 + $0x14] sm:$0xf]
      %v1205 = vld [vmem:[%s9 + $0x18] sm:$0xf]
      %v1206 = vld [vmem:[%s9 + $0x1c] sm:$0xf]
      %v1207 = vld [vmem:[%s9 + $0x20] sm:$0xf]
      %v1208 = vld [vmem:[%s9 + $0x24] sm:$0xf]
      %v1209 = vld [vmem:[%s9 + $0x28] sm:$0xf]
      %v1210 = vld [vmem:[%s9 + $0x2c] sm:$0xf]
      %v1211 = vld [vmem:[%s9 + $0x30] sm:$0xf]
      %v1212 = vld [vmem:[%s9 + $0x34] sm:$0xf]
      %v1213 = vld [vmem:[%s9 + $0x38] sm:$0xf]
      %v1214 = vld [vmem:[%s9 + $0x3c] sm:$0xf]
      %v1215 = vld [vmem:[%s10] sm:$0x1]
      %v1217 = vlaneseq
      %v1218 = vshrl.u32 %v1217, 7
      %v1219 = vsub.s32 0, %v1218
      %v1220 = vrot.slane %v1215, %v1219
      %v1238 = vunpack.c.l.b16 %v1199
      %v1239 = vunpack.c.l.b16 %v1200
      %v1240 = vunpack.c.l.b16 %v1201
      %v1241 = vunpack.c.l.b16 %v1202
      %v1242 = vunpack.c.l.b16 %v1203
      %v1243 = vunpack.c.l.b16 %v1204
      %v1244 = vunpack.c.l.b16 %v1205
      %v1245 = vunpack.c.l.b16 %v1206
      %v1246 = vunpack.c.l.b16 %v1207
      %v1247 = vunpack.c.l.b16 %v1208
      %v1248 = vunpack.c.l.b16 %v1209
      %v1249 = vunpack.c.l.b16 %v1210
      %v1250 = vunpack.c.l.b16 %v1211
      %v1251 = vunpack.c.l.b16 %v1212
      %v1252 = vunpack.c.l.b16 %v1213
      %v1253 = vunpack.c.l.b16 %v1214
      %v1254 = vpack.c.b16 %v1239, %v1238
      %v1255 = vpack.c.b16 %v1241, %v1240
      %v1256 = vpack.c.b16 %v1243, %v1242
      %v1257 = vpack.c.b16 %v1245, %v1244
      %v1258 = vpack.c.b16 %v1247, %v1246
      %v1259 = vpack.c.b16 %v1249, %v1248
      %v1260 = vpack.c.b16 %v1251, %v1250
      %v1261 = vpack.c.b16 %v1253, %v1252
      %1270 = vmatprep.subr.bf16.mxu0 0
      %1271 = vmatpush1.bf16.msra.mxu0 %v1254
      %1272 = vmatprep.subr.bf16.mxu0 0
      %1273 = vmatpush1.bf16.msra.mxu0 %v1255
      %1274 = vmatprep.subr.bf16.mxu0 0
      %1275 = vmatpush1.bf16.msra.mxu0 %v1256
      %1276 = vmatprep.subr.bf16.mxu0 0
      %1277 = vmatpush1.bf16.msra.mxu0 %v1257
      %1278 = vmatprep.subr.bf16.mxu0 0
      %1279 = vmatpush1.bf16.msra.mxu0 %v1258
      %1280 = vmatprep.subr.bf16.mxu0 0
      %1281 = vmatpush1.bf16.msra.mxu0 %v1259
      %1282 = vmatprep.subr.bf16.mxu0 0
      %1283 = vmatpush1.bf16.msra.mxu0 %v1260
      %1284 = vmatprep.subr.bf16.mxu0 0
      %1285 = vmatpush1.bf16.msra.mxu0 %v1261
      %1286 = vmatprep.subr.bf16.mxu0 0
      %1287 = vmatpush1.bf16.msra.mxu0 0
      %1288 = vmatprep.subr.bf16.mxu0 0
      %1289 = vmatpush1.bf16.msra.mxu0 0
      %1290 = vmatprep.subr.bf16.mxu0 0
      %1291 = vmatpush1.bf16.msra.mxu0 0
      %1292 = vmatprep.subr.bf16.mxu0 0
      %1293 = vmatpush1.bf16.msra.mxu0 0
      %1294 = vmatprep.subr.bf16.mxu0 0
      %1295 = vmatpush1.bf16.msra.mxu0 0
      %1296 = vmatprep.subr.bf16.mxu0 0
      %1297 = vmatpush1.bf16.msra.mxu0 0
      %1298 = vmatprep.subr.bf16.mxu0 0
      %1299 = vmatpush1.bf16.msra.mxu0 0
      %1300 = vmatprep.subr.bf16.mxu0 0
      %1301 = vmatpush1.bf16.msra.mxu0 0
      %1302 = vmatprep.mubr.bf16.mxu0 0
      %1303 = vmatmul.mubr.bf16.gmra.mrb[0].mxu0 %v1195
      %v1304 = vpop.f32.mrb[0].mxu0
      %v1305 = vadd.f32 %v1220, %v1304
      %v1306 = vpop.f32.mrb[0].mxu0
      %v1307 = vpop.f32.mrb[0].mxu0
      %v1308 = vadd.f32 %v1220, %v1307
      %v1309 = vpop.f32.mrb[0].mxu0
      %1310 = vmatprep.mubr.bf16.mxu0 0
      %1311 = vmatmul.mubr.bf16.gmra.mrb[0].mxu0 %v1196
      %v1312 = vpop.f32.mrb[0].mxu0
      %v1313 = vadd.f32 %v1220, %v1312
      %v1314 = vpop.f32.mrb[0].mxu0
      %v1315 = vpop.f32.mrb[0].mxu0
      %v1316 = vadd.f32 %v1220, %v1315
      %v1317 = vpop.f32.mrb[0].mxu0
      %1318 = vmatprep.mubr.bf16.mxu0 0
      %1319 = vmatmul.mubr.bf16.gmra.mrb[0].mxu0 %v1197
      %v1320 = vpop.f32.mrb[0].mxu0
      %v1321 = vadd.f32 %v1220, %v1320
      %v1322 = vpop.f32.mrb[0].mxu0
      %v1323 = vpop.f32.mrb[0].mxu0
      %v1324 = vadd.f32 %v1220, %v1323
      %v1325 = vpop.f32.mrb[0].mxu0
      %1326 = vmatprep.mubr.bf16.mxu0 0
      %1327 = vmatmul.mubr.bf16.gmra.mrb[0].mxu0 %v1198
      %v1328 = vpop.f32.mrb[0].mxu0
      %v1329 = vadd.f32 %v1220, %v1328
      %v1330 = vpop.f32.mrb[0].mxu0
      %v1331 = vpop.f32.mrb[0].mxu0
      %v1332 = vadd.f32 %v1220, %v1331
      %v1333 = vpop.f32.mrb[0].mxu0
      %1334 = vdwg.mxu0
      %v1335 = vmax.f32 %v1305, 0.0
      %v1336 = vmax.f32 %v1308, 0.0
      %v1337 = vmax.f32 %v1313, 0.0
      %v1338 = vmax.f32 %v1316, 0.0
      %v1339 = vmax.f32 %v1321, 0.0
      %v1340 = vmax.f32 %v1324, 0.0
      %v1341 = vmax.f32 %v1329, 0.0
      %v1342 = vmax.f32 %v1332, 0.0
      %v1343 = vmax.f32 %v1335, %v1336
      %v1344 = vmax.f32 %v1343, %v1337
      %v1345 = vmax.f32 %v1344, %v1338
      %v1346 = vmax.f32 %v1345, %v1339
      %v1347 = vmax.f32 %v1346, %v1340
      %v1348 = vmax.f32 %v1347, %v1341
      %v1349 = vmax.f32 %v1348, %v1342
      %1350 = vst [vmem:[%s424] sm:$0xff] %v1349
      %p1351 = scmp.lt.s32.totalorder %s22, 1
      %s1352 = scalar_select %p1351, %s22, 1
      %s1353 = smul.addr %s1352, 8
      %s1354 = scalar_lea.vmem %s11, %s1353
      // Predicated region
      $region65: #{pointnet_backbone_forward.8} parent=63 // pred_check
        %p1355 = pneg %p286
      $region66: #{pointnet_backbone_forward.8} parent=63 // pred_check_branch
        %1357 = sbr.rel (%p1355) target = $region68
      $region67: #{pointnet_backbone_forward.8} parent=63 // pred_region
        _
      $region68: #{pointnet_backbone_forward.8} parent=63 // pred_fallthru
        _
    $region64: #{pointnet_backbone_forward.8} parent=5 // pred_fallthru
      _
    %p1358 = scmp.le.s32.totalorder 2, %s17
    // Predicated region
    $region69: #{pointnet_backbone_forward.8} parent=5 // pred_check
      %p1359 = pneg %p1358
    $region70: #{pointnet_backbone_forward.8} parent=5 // pred_check_branch
      %1361 = sbr.rel (%p1359) target = $region72
    $region71: #{pointnet_backbone_forward.8} parent=5 // pred_region
      %s1362 = ssub.s32 %s17, 2
      // Predicated region
      $region73: #{pointnet_backbone_forward.8} parent=71 // pred_check
        %p1363 = pneg %p292
      $region74: #{pointnet_backbone_forward.8} parent=71 // pred_check_branch
        %1365 = sbr.rel (%p1363) target = $region76
      $region75: #{pointnet_backbone_forward.8} parent=71 // pred_region
        %p1366 = scmp.lt.s32.totalorder %s23, 1
        %s1367 = scalar_select %p1366, %s23, 1
        %s1368 = smul.addr %s1367, 8
        %s1369 = scalar_lea.vmem %s11, %s1368
      $region76: #{pointnet_backbone_forward.8} parent=71 // pred_fallthru
        _
    $region72: #{pointnet_backbone_forward.8} parent=5 // pred_fallthru
      _
  $region6: #{pointnet_backbone_forward.8} parent=0 // loop_footer
    %s21 = sadd.s32 1, %s17
  $region7: #{pointnet_backbone_forward.8} parent=0 // loop_footer_branch
    %16 = sbr.rel target = $region3
  $region8: #{pointnet_backbone_forward.8} parent=0 // loop_exit
    _

// kernel: pointnet_backbone_forward.9
$region0: #{pointnet_backbone_forward.9}
  #allocation0 [shape = 'u32[]', space=smem, size = 0x4, offset = 0x4, fixed_abs, tag = 'smem constant byte address 0x4 - core index']
  #allocation1 [shape = 'u32[144,128]{1,0:T(1,128)}', space=vmem, size = 0x12000, scoped, tag = 'internal scratch']
  %s0 = inlined_call_operand.vmem [shape: f32[32,192], index: 0, kind: input, shape index: {}]
  %s1 = inlined_call_operand.vmem [shape: bf16[192,128], index: 1, kind: input, shape index: {}]
  %s2 = inlined_call_operand.vmem [shape: f32[1,128], index: 2, kind: input, shape index: {}]
  %s3 = inlined_call_operand.vmem [shape: bf16[128,128], index: 3, kind: input, shape index: {}]
  %s4 = inlined_call_operand.vmem [shape: f32[1,128], index: 4, kind: input, shape index: {}]
  %s5 = inlined_call_operand.vmem [shape: f32[32,128], index: 5, kind: output, shape index: {}]
  %s6 = sld [smem:[#allocation0]]
  $region53: #{pointnet_backbone_forward.9} parent=0
    _
  %s8 = ssub.s32 1, %s6
  %s9 = scalar_select 0, %s8, %s6
  loop: start=0, step=1, limit=4
  $region2: #{pointnet_backbone_forward.9} parent=0 // loop_pre_header
    _
  $region3: #{pointnet_backbone_forward.9} parent=0 // loop_header
    %s11 = sphi 0, %s15
    %p12 = scmp.ge.s32.totalorder %s11, 4
    %s21 = sphi 0, %s23
    %s24 = sphi 0, %s21
    %s25 = sphi 0, %s24
    %s41 = sphi 0, %s25
    %s45 = sphi 0, %s45
    %s47 = sphi 0, %s45
    %s48 = sphi 0, %s47
    %s62 = sphi 0, %s48
    %s66 = sphi 0, %s66
    %s68 = sphi 0, %s66
    %s69 = sphi 0, %s68
    %s83 = sphi 0, %s69
    %s87 = sphi 0, %s87
    %s89 = sphi 0, %s87
    %s90 = sphi 0, %s89
    %s104 = sphi 0, %s90
    %s108 = sphi 0, %s108
    %s110 = sphi 0, %s108
    %s111 = sphi 0, %s110
    %s125 = sphi 0, %s111
    %s131 = sphi 0, %s133
    %s134 = sphi 0, %s131
    %s135 = sphi 0, %s134
    %s151 = sphi 0, %s135
  $region4: #{pointnet_backbone_forward.9} parent=0 // loop_header_branch
    %14 = sbr.rel (%p12) target = $region8
  $region5: #{pointnet_backbone_forward.9} parent=0 // loop_body
    %s16 = ssub.s32 %s11, 1
    %s17 = ssub.s32 %s11, 2
    %s18 = sadd.s32 %s11, 1
    %s19 = ssub.s32 %s11, %s18
    %p20 = scmp.eq.s32.totalorder %s19, 0
    %s22 = sadd.s32 %s21, 1
    %s23 = scalar_select %p20, %s21, %s22
    %p26 = pneg %p20
    %p27 = scmp.eq.s32.totalorder %s11, 1
    %p28 = por %p26, %p27
    %p29 = scmp.ne.s32.totalorder %s21, %s24
    %p30 = scmp.eq.s32.totalorder %s11, 0
    %p31 = por %p29, %p30
    %p32 = scmp.ne.s32.totalorder %s21, %s24
    %p33 = scmp.eq.s32.totalorder %s16, 1
    %p34 = por %p32, %p33
    %p35 = scmp.ne.s32.totalorder %s24, %s25
    %p36 = scmp.eq.s32.totalorder %s16, 0
    %p37 = por %p35, %p36
    %p38 = scmp.ne.s32.totalorder %s24, %s25
    %p39 = scmp.eq.s32.totalorder %s17, 1
    %p40 = por %p38, %p39
    %p42 = scmp.ne.s32.totalorder %s25, %s41
    %p43 = scmp.eq.s32.totalorder %s17, 0
    %p44 = por %p42, %p43
    %s46 = sadd.s32 %s45, 1
    %p49 = scmp.eq.s32.totalorder %s11, 1
    %p50 = scmp.ne.s32.totalorder %s45, %s47
    %p51 = scmp.eq.s32.totalorder %s11, 0
    %p52 = por %p50, %p51
    %p53 = scmp.ne.s32.totalorder %s45, %s47
    %p54 = scmp.eq.s32.totalorder %s16, 1
    %p55 = por %p53, %p54
    %p56 = scmp.ne.s32.totalorder %s47, %s48
    %p57 = scmp.eq.s32.totalorder %s16, 0
    %p58 = por %p56, %p57
    %p59 = scmp.ne.s32.totalorder %s47, %s48
    %p60 = scmp.eq.s32.totalorder %s17, 1
    %p61 = por %p59, %p60
    %p63 = scmp.ne.s32.totalorder %s48, %s62
    %p64 = scmp.eq.s32.totalorder %s17, 0
    %p65 = por %p63, %p64
    %s67 = sadd.s32 %s66, 1
    %p70 = scmp.eq.s32.totalorder %s11, 1
    %p71 = scmp.ne.s32.totalorder %s66, %s68
    %p72 = scmp.eq.s32.totalorder %s11, 0
    %p73 = por %p71, %p72
    %p74 = scmp.ne.s32.totalorder %s66, %s68
    %p75 = scmp.eq.s32.totalorder %s16, 1
    %p76 = por %p74, %p75
    %p77 = scmp.ne.s32.totalorder %s68, %s69
    %p78 = scmp.eq.s32.totalorder %s16, 0
    %p79 = por %p77, %p78
    %p80 = scmp.ne.s32.totalorder %s68, %s69
    %p81 = scmp.eq.s32.totalorder %s17, 1
    %p82 = por %p80, %p81
    %p84 = scmp.ne.s32.totalorder %s69, %s83
    %p85 = scmp.eq.s32.totalorder %s17, 0
    %p86 = por %p84, %p85
    %s88 = sadd.s32 %s87, 1
    %p91 = scmp.eq.s32.totalorder %s11, 1
    %p92 = scmp.ne.s32.totalorder %s87, %s89
    %p93 = scmp.eq.s32.totalorder %s11, 0
    %p94 = por %p92, %p93
    %p95 = scmp.ne.s32.totalorder %s87, %s89
    %p96 = scmp.eq.s32.totalorder %s16, 1
    %p97 = por %p95, %p96
    %p98 = scmp.ne.s32.totalorder %s89, %s90
    %p99 = scmp.eq.s32.totalorder %s16, 0
    %p100 = por %p98, %p99
    %p101 = scmp.ne.s32.totalorder %s89, %s90
    %p102 = scmp.eq.s32.totalorder %s17, 1
    %p103 = por %p101, %p102
    %p105 = scmp.ne.s32.totalorder %s90, %s104
    %p106 = scmp.eq.s32.totalorder %s17, 0
    %p107 = por %p105, %p106
    %s109 = sadd.s32 %s108, 1
    %p112 = scmp.eq.s32.totalorder %s11, 1
    %p113 = scmp.ne.s32.totalorder %s108, %s110
    %p114 = scmp.eq.s32.totalorder %s11, 0
    %p115 = por %p113, %p114
    %p116 = scmp.ne.s32.totalorder %s108, %s110
    %p117 = scmp.eq.s32.totalorder %s16, 1
    %p118 = por %p116, %p117
    %p119 = scmp.ne.s32.totalorder %s110, %s111
    %p120 = scmp.eq.s32.totalorder %s16, 0
    %p121 = por %p119, %p120
    %p122 = scmp.ne.s32.totalorder %s110, %s111
    %p123 = scmp.eq.s32.totalorder %s17, 1
    %p124 = por %p122, %p123
    %p126 = scmp.ne.s32.totalorder %s111, %s125
    %p127 = scmp.eq.s32.totalorder %s17, 0
    %p128 = por %p126, %p127
    %s129 = ssub.s32 %s11, %s18
    %p130 = scmp.eq.s32.totalorder %s129, 0
    %s132 = sadd.s32 %s131, 1
    %s133 = scalar_select %p130, %s131, %s132
    %p136 = pneg %p130
    %p137 = scmp.eq.s32.totalorder %s11, 1
    %p138 = por %p136, %p137
    %p139 = scmp.ne.s32.totalorder %s131, %s134
    %p140 = scmp.eq.s32.totalorder %s11, 0
    %p141 = por %p139, %p140
    %p142 = scmp.ne.s32.totalorder %s131, %s134
    %p143 = scmp.eq.s32.totalorder %s16, 1
    %p144 = por %p142, %p143
    %p145 = scmp.ne.s32.totalorder %s134, %s135
    %p146 = scmp.eq.s32.totalorder %s16, 0
    %p147 = por %p145, %p146
    %p148 = scmp.ne.s32.totalorder %s134, %s135
    %p149 = scmp.eq.s32.totalorder %s17, 1
    %p150 = por %p148, %p149
    %p152 = scmp.ne.s32.totalorder %s135, %s151
    %p153 = scmp.eq.s32.totalorder %s17, 0
    %p154 = por %p152, %p153
    %p155 = scmp.le.s32.totalorder 1, %s11
    %p156 = scmp.lt.s32.totalorder %s11, 3
    %p157 = pnand %p155, %p156
    %p158 = pneg %p157
    // Predicated region
    $region9: #{pointnet_backbone_forward.9} parent=5 // pred_check
      _
    $region10: #{pointnet_backbone_forward.9} parent=5 // pred_check_branch
      %160 = sbr.rel (%p157) target = $region12
    $region11: #{pointnet_backbone_forward.9} parent=5 // pred_region
      %s161 = ssub.s32 %s11, 1
      // Predicated region
      $region13: #{pointnet_backbone_forward.9} parent=11 // pred_check
        %p162 = pneg %p58
      $region14: #{pointnet_backbone_forward.9} parent=11 // pred_check_branch
        %164 = sbr.rel (%p162) target = $region16
      $region15: #{pointnet_backbone_forward.9} parent=11 // pred_region
        _
      $region16: #{pointnet_backbone_forward.9} parent=11 // pred_fallthru
        _
      // Predicated region
      $region17: #{pointnet_backbone_forward.9} parent=11 // pred_check
        %p165 = pneg %p79
      $region18: #{pointnet_backbone_forward.9} parent=11 // pred_check_branch
        %167 = sbr.rel (%p165) target = $region20
      $region19: #{pointnet_backbone_forward.9} parent=11 // pred_region
        _
      $region20: #{pointnet_backbone_forward.9} parent=11 // pred_fallthru
        _
      // Predicated region
      $region21: #{pointnet_backbone_forward.9} parent=11 // pred_check
        %p168 = pneg %p100
      $region22: #{pointnet_backbone_forward.9} parent=11 // pred_check_branch
        %170 = sbr.rel (%p168) target = $region24
      $region23: #{pointnet_backbone_forward.9} parent=11 // pred_region
        _
      $region24: #{pointnet_backbone_forward.9} parent=11 // pred_fallthru
        _
      // Predicated region
      $region25: #{pointnet_backbone_forward.9} parent=11 // pred_check
        %p171 = pneg %p121
      $region26: #{pointnet_backbone_forward.9} parent=11 // pred_check_branch
        %173 = sbr.rel (%p171) target = $region28
      $region27: #{pointnet_backbone_forward.9} parent=11 // pred_region
        _
      $region28: #{pointnet_backbone_forward.9} parent=11 // pred_fallthru
        _
    $region12: #{pointnet_backbone_forward.9} parent=5 // pred_fallthru
      _
    %p174 = scmp.lt.s32.totalorder %s11, 2
    // Predicated region
    $region29: #{pointnet_backbone_forward.9} parent=5 // pred_check
      %p175 = pneg %p174
    $region30: #{pointnet_backbone_forward.9} parent=5 // pred_check_branch
      %177 = sbr.rel (%p175) target = $region32
    $region31: #{pointnet_backbone_forward.9} parent=5 // pred_region
      // Predicated region
      $region33: #{pointnet_backbone_forward.9} parent=31 // pred_check
        %p178 = pneg %p31
      $region34: #{pointnet_backbone_forward.9} parent=31 // pred_check_branch
        %180 = sbr.rel (%p178) target = $region36
      $region35: #{pointnet_backbone_forward.9} parent=31 // pred_region
        %s181 = smul.u32 2, %s11
        %p182 = scmp.lt.s32.totalorder %s181, 3
        %s183 = scalar_select %p182, %s181, 3
        %s184 = smul.addr %s183, 2
        %s185 = smul.addr %s184, 8
        %s186 = scalar_lea.vmem %s0, %s185
        %s187 = smul.u32 2, %s11
      $region36: #{pointnet_backbone_forward.9} parent=31 // pred_fallthru
        _
    $region32: #{pointnet_backbone_forward.9} parent=5 // pred_fallthru
      _
    %p188 = scmp.le.s32.totalorder 1, %s11
    %p189 = scmp.lt.s32.totalorder %s11, 3
    %p190 = pnand %p188, %p189
    %p191 = pneg %p190
    // Predicated region
    $region37: #{pointnet_backbone_forward.9} parent=5 // pred_check
      _
    $region38: #{pointnet_backbone_forward.9} parent=5 // pred_check_branch
      %193 = sbr.rel (%p190) target = $region40
    $region39: #{pointnet_backbone_forward.9} parent=5 // pred_region
      %s194 = ssub.s32 %s11, 1
      %s195 = smul.u32 2, %s16
      %p196 = scmp.lt.s32.totalorder %s195, 3
      %s197 = scalar_select %p196, %s195, 3
      %s198 = smul.addr %s197, 2
      %s199 = smul.addr %s198, 8
      %s200 = scalar_lea.vmem %s0, %s199
      %p201 = pneg %p37
      %p202 = pneg %p34
      %p203 = pneg %p58
      %p204 = pneg %p55
      %p205 = pneg %p79
      %p206 = pneg %p76
      %p207 = pneg %p100
      %p208 = pneg %p97
      %p209 = pneg %p121
      %p210 = pneg %p118
      %p211 = pneg %p147
      %p212 = pneg %p144
      %s213 = smul.u32 2, %s16
      %p214 = scmp.lt.s32.totalorder %s213, 3
      %s215 = scalar_select %p214, %s213, 3
      %s216 = smul.addr %s215, 8
      %s217 = scalar_lea.vmem %s5, %s216
      %s218 = smul.u32 2, %s16
      %p219 = scmp.lt.s32.totalorder %s218, 3
      %s220 = scalar_select %p219, %s218, 3
      %s221 = smul.addr %s220, 2
      %s222 = smul.addr %s221, 8
      %s223 = scalar_lea.vmem %s0, %s222
      %s224 = smul.u32 2, %s16
      %s225 = smul.u32 2, %s16
      %p226 = scmp.lt.s32.totalorder %s225, 3
      %s227 = scalar_select %p226, %s225, 3
      %s228 = smul.addr %s227, 8
      %s229 = scalar_lea.vmem %s5, %s228
      %s230 = smul.u32 2, %s16
      %v232 = vld [vmem:[%s223] sm:$0xff]
      %v233 = vld [vmem:[%s223 + $0x8] sm:$0xff]
      %v234 = vld [vmem:[%s223 + $0x10] sm:$0xff]
      %v235 = vld [vmem:[%s223 + $0x18] sm:$0xff]
      %v236 = vpack.c.bf16 %v234, %v232
      %v237 = vpack.c.bf16 %v235, %v233
      %v238 = vld [vmem:[%s1] sm:$0xf]
      %v239 = vld [vmem:[%s1 + $0x4] sm:$0xf]
      %v240 = vld [vmem:[%s1 + $0x8] sm:$0xf]
      %v241 = vld [vmem:[%s1 + $0xc] sm:$0xf]
      %v242 = vld [vmem:[%s1 + $0x10] sm:$0xf]
      %v243 = vld [vmem:[%s1 + $0x14] sm:$0xf]
      %v244 = vld [vmem:[%s1 + $0x18] sm:$0xf]
      %v245 = vld [vmem:[%s1 + $0x1c] sm:$0xf]
      %v246 = vld [vmem:[%s1 + $0x20] sm:$0xf]
      %v247 = vld [vmem:[%s1 + $0x24] sm:$0xf]
      %v248 = vld [vmem:[%s1 + $0x28] sm:$0xf]
      %v249 = vld [vmem:[%s1 + $0x2c] sm:$0xf]
      %v250 = vld [vmem:[%s1 + $0x30] sm:$0xf]
      %v251 = vld [vmem:[%s1 + $0x34] sm:$0xf]
      %v252 = vld [vmem:[%s1 + $0x38] sm:$0xf]
      %v253 = vld [vmem:[%s1 + $0x3c] sm:$0xf]
      %v254 = vld [vmem:[%s1 + $0x40] sm:$0xf]
      %v255 = vld [vmem:[%s1 + $0x44] sm:$0xf]
      %v256 = vld [vmem:[%s1 + $0x48] sm:$0xf]
      %v257 = vld [vmem:[%s1 + $0x4c] sm:$0xf]
      %v258 = vld [vmem:[%s1 + $0x50] sm:$0xf]
      %v259 = vld [vmem:[%s1 + $0x54] sm:$0xf]
      %v260 = vld [vmem:[%s1 + $0x58] sm:$0xf]
      %v261 = vld [vmem:[%s1 + $0x5c] sm:$0xf]
      %v262 = vld [vmem:[%s2] sm:$0x1]
      %v264 = vlaneseq
      %v265 = vshrl.u32 %v264, 7
      %v266 = vsub.s32 0, %v265
      %v267 = vrot.slane %v262, %v266
      %v293 = vunpack.c.l.b16 %v238
      %v294 = vunpack.c.l.b16 %v239
      %v295 = vunpack.c.l.b16 %v240
      %v296 = vunpack.c.l.b16 %v241
      %v297 = vunpack.c.l.b16 %v242
      %v298 = vunpack.c.l.b16 %v243
      %v299 = vunpack.c.l.b16 %v244
      %v300 = vunpack.c.l.b16 %v245
      %v301 = vunpack.c.l.b16 %v246
      %v302 = vunpack.c.l.b16 %v247
      %v303 = vunpack.c.l.b16 %v248
      %v304 = vunpack.c.l.b16 %v249
      %v305 = vunpack.c.l.b16 %v250
      %v306 = vunpack.c.l.b16 %v251
      %v307 = vunpack.c.l.b16 %v252
      %v308 = vunpack.c.l.b16 %v253
      %v309 = vunpack.c.l.b16 %v254
      %v310 = vunpack.c.l.b16 %v255
      %v311 = vunpack.c.l.b16 %v256
      %v312 = vunpack.c.l.b16 %v257
      %v313 = vunpack.c.l.b16 %v258
      %v314 = vunpack.c.l.b16 %v259
      %v315 = vunpack.c.l.b16 %v260
      %v316 = vunpack.c.l.b16 %v261
      %v317 = vpack.c.b16 %v294, %v293
      %v318 = vpack.c.b16 %v296, %v295
      %v319 = vpack.c.b16 %v298, %v297
      %v320 = vpack.c.b16 %v300, %v299
      %v321 = vpack.c.b16 %v302, %v301
      %v322 = vpack.c.b16 %v304, %v303
      %v323 = vpack.c.b16 %v306, %v305
      %v324 = vpack.c.b16 %v308, %v307
      %v325 = vpack.c.b16 %v310, %v309
      %v326 = vpack.c.b16 %v312, %v311
      %v327 = vpack.c.b16 %v314, %v313
      %v328 = vpack.c.b16 %v316, %v315
      %vm341 = vcmask 523264
      %v343 = vsel %vm341, %v237, 0
      %345 = vmatprep.subr.bf16.mxu0 0
      %346 = vmatpush1.bf16.msra.mxu0 %v317
      %347 = vmatprep.subr.bf16.mxu0 0
      %348 = vmatpush1.bf16.msra.mxu0 %v318
      %349 = vmatprep.subr.bf16.mxu0 0
      %350 = vmatpush1.bf16.msra.mxu0 %v319
      %351 = vmatprep.subr.bf16.mxu0 0
      %352 = vmatpush1.bf16.msra.mxu0 %v320
      %353 = vmatprep.subr.bf16.mxu0 0
      %354 = vmatpush1.bf16.msra.mxu0 %v321
      %355 = vmatprep.subr.bf16.mxu0 0
      %356 = vmatpush1.bf16.msra.mxu0 %v322
      %357 = vmatprep.subr.bf16.mxu0 0
      %358 = vmatpush1.bf16.msra.mxu0 %v323
      %359 = vmatprep.subr.bf16.mxu0 0
      %360 = vmatpush1.bf16.msra.mxu0 %v324
      %361 = vmatprep.subr.bf16.mxu0 0
      %362 = vmatpush1.bf16.msra.mxu0 %v325
      %363 = vmatprep.subr.bf16.mxu0 0
      %364 = vmatpush1.bf16.msra.mxu0 %v326
      %365 = vmatprep.subr.bf16.mxu0 0
      %366 = vmatpush1.bf16.msra.mxu0 %v327
      %367 = vmatprep.subr.bf16.mxu0 0
      %368 = vmatpush1.bf16.msra.mxu0 %v328
      %369 = vmatprep.subr.bf16.mxu0 0
      %370 = vmatpush1.bf16.msra.mxu0 0
      %371 = vmatprep.subr.bf16.mxu0 0
      %372 = vmatpush1.bf16.msra.mxu0 0
      %373 = vmatprep.subr.bf16.mxu0 0
      %374 = vmatpush1.bf16.msra.mxu0 0
      %375 = vmatprep.subr.bf16.mxu0 0
      %376 = vmatpush1.bf16.msra.mxu0 0
      %377 = vmatprep.mubr.bf16.mxu0 %v343
      %378 = vmatmul.mubr.bf16.gmra.mrb[0].mxu0 %v236
      %v379 = vpop.f32.mrb[0].mxu0
      %v380 = vadd.f32 %v267, %v379
      %v381 = vpop.f32.mrb[0].mxu0
      %v382 = vpop.f32.mrb[0].mxu0
      %v383 = vadd.f32 %v267, %v382
      %v384 = vpop.f32.mrb[0].mxu0
      %385 = vdwg.mxu0
      %v386 = vmax.f32 %v380, 0.0
      %v387 = vmax.f32 %v383, 0.0
      %v388 = vpack.c.bf16 %v387, %v386
      %v389 = vld [vmem:[%s3] sm:$0xf]
      %v390 = vld [vmem:[%s3 + $0x4] sm:$0xf]
      %v391 = vld [vmem:[%s3 + $0x8] sm:$0xf]
      %v392 = vld [vmem:[%s3 + $0xc] sm:$0xf]
      %v393 = vld [vmem:[%s3 + $0x10] sm:$0xf]
      %v394 = vld [vmem:[%s3 + $0x14] sm:$0xf]
      %v395 = vld [vmem:[%s3 + $0x18] sm:$0xf]
      %v396 = vld [vmem:[%s3 + $0x1c] sm:$0xf]
      %v397 = vld [vmem:[%s3 + $0x20] sm:$0xf]
      %v398 = vld [vmem:[%s3 + $0x24] sm:$0xf]
      %v399 = vld [vmem:[%s3 + $0x28] sm:$0xf]
      %v400 = vld [vmem:[%s3 + $0x2c] sm:$0xf]
      %v401 = vld [vmem:[%s3 + $0x30] sm:$0xf]
      %v402 = vld [vmem:[%s3 + $0x34] sm:$0xf]
      %v403 = vld [vmem:[%s3 + $0x38] sm:$0xf]
      %v404 = vld [vmem:[%s3 + $0x3c] sm:$0xf]
      %v405 = vld [vmem:[%s4] sm:$0x1]
      %v407 = vlaneseq
      %v408 = vshrl.u32 %v407, 7
      %v409 = vsub.s32 0, %v408
      %v410 = vrot.slane %v405, %v409
      %v428 = vunpack.c.l.b16 %v389
      %v429 = vunpack.c.l.b16 %v390
      %v430 = vunpack.c.l.b16 %v391
      %v431 = vunpack.c.l.b16 %v392
      %v432 = vunpack.c.l.b16 %v393
      %v433 = vunpack.c.l.b16 %v394
      %v434 = vunpack.c.l.b16 %v395
      %v435 = vunpack.c.l.b16 %v396
      %v436 = vunpack.c.l.b16 %v397
      %v437 = vunpack.c.l.b16 %v398
      %v438 = vunpack.c.l.b16 %v399
      %v439 = vunpack.c.l.b16 %v400
      %v440 = vunpack.c.l.b16 %v401
      %v441 = vunpack.c.l.b16 %v402
      %v442 = vunpack.c.l.b16 %v403
      %v443 = vunpack.c.l.b16 %v404
      %v444 = vpack.c.b16 %v429, %v428
      %v445 = vpack.c.b16 %v431, %v430
      %v446 = vpack.c.b16 %v433, %v432
      %v447 = vpack.c.b16 %v435, %v434
      %v448 = vpack.c.b16 %v437, %v436
      %v449 = vpack.c.b16 %v439, %v438
      %v450 = vpack.c.b16 %v441, %v440
      %v451 = vpack.c.b16 %v443, %v442
      %460 = vmatprep.subr.bf16.mxu0 0
      %461 = vmatpush1.bf16.msra.mxu0 %v444
      %462 = vmatprep.subr.bf16.mxu0 0
      %463 = vmatpush1.bf16.msra.mxu0 %v445
      %464 = vmatprep.subr.bf16.mxu0 0
      %465 = vmatpush1.bf16.msra.mxu0 %v446
      %466 = vmatprep.subr.bf16.mxu0 0
      %467 = vmatpush1.bf16.msra.mxu0 %v447
      %468 = vmatprep.subr.bf16.mxu0 0
      %469 = vmatpush1.bf16.msra.mxu0 %v448
      %470 = vmatprep.subr.bf16.mxu0 0
      %471 = vmatpush1.bf16.msra.mxu0 %v449
      %472 = vmatprep.subr.bf16.mxu0 0
      %473 = vmatpush1.bf16.msra.mxu0 %v450
      %474 = vmatprep.subr.bf16.mxu0 0
      %475 = vmatpush1.bf16.msra.mxu0 %v451
      %476 = vmatprep.subr.bf16.mxu0 0
      %477 = vmatpush1.bf16.msra.mxu0 0
      %478 = vmatprep.subr.bf16.mxu0 0
      %479 = vmatpush1.bf16.msra.mxu0 0
      %480 = vmatprep.subr.bf16.mxu0 0
      %481 = vmatpush1.bf16.msra.mxu0 0
      %482 = vmatprep.subr.bf16.mxu0 0
      %483 = vmatpush1.bf16.msra.mxu0 0
      %484 = vmatprep.subr.bf16.mxu0 0
      %485 = vmatpush1.bf16.msra.mxu0 0
      %486 = vmatprep.subr.bf16.mxu0 0
      %487 = vmatpush1.bf16.msra.mxu0 0
      %488 = vmatprep.subr.bf16.mxu0 0
      %489 = vmatpush1.bf16.msra.mxu0 0
      %490 = vmatprep.subr.bf16.mxu0 0
      %491 = vmatpush1.bf16.msra.mxu0 0
      %492 = vmatprep.mubr.bf16.mxu0 0
      %493 = vmatmul.mubr.bf16.gmra.mrb[0].mxu0 %v388
      %v494 = vpop.f32.mrb[0].mxu0
      %v495 = vadd.f32 %v410, %v494
      %v496 = vpop.f32.mrb[0].mxu0
      %v497 = vpop.f32.mrb[0].mxu0
      %v498 = vadd.f32 %v410, %v497
      %v499 = vpop.f32.mrb[0].mxu0
      %500 = vdwg.mxu0
      %v501 = vmax.f32 %v495, 0.0
      %v502 = vmax.f32 %v498, 0.0
      %503 = vst [vmem:[%s229] sm:$0xff] %v501
      %504 = vst [vmem:[%s229 + $0x8] sm:$0xff] %v502
      %s505 = smul.u32 2, %s16
      %p506 = scmp.lt.s32.totalorder %s505, 3
      %s507 = scalar_select %p506, %s505, 3
      %s508 = smul.addr %s507, 8
      %s509 = scalar_lea.vmem %s5, %s508
      // Predicated region
      $region41: #{pointnet_backbone_forward.9} parent=39 // pred_check
        %p510 = pneg %p144
      $region42: #{pointnet_backbone_forward.9} parent=39 // pred_check_branch
        %512 = sbr.rel (%p510) target = $region44
      $region43: #{pointnet_backbone_forward.9} parent=39 // pred_region
        %s513 = smul.u32 2, %s16
      $region44: #{pointnet_backbone_forward.9} parent=39 // pred_fallthru
        _
    $region40: #{pointnet_backbone_forward.9} parent=5 // pred_fallthru
      _
    %p514 = scmp.le.s32.totalorder 2, %s11
    // Predicated region
    $region45: #{pointnet_backbone_forward.9} parent=5 // pred_check
      %p515 = pneg %p514
    $region46: #{pointnet_backbone_forward.9} parent=5 // pred_check_branch
      %517 = sbr.rel (%p515) target = $region48
    $region47: #{pointnet_backbone_forward.9} parent=5 // pred_region
      %s518 = ssub.s32 %s11, 2
      // Predicated region
      $region49: #{pointnet_backbone_forward.9} parent=47 // pred_check
        %p519 = pneg %p150
      $region50: #{pointnet_backbone_forward.9} parent=47 // pred_check_branch
        %521 = sbr.rel (%p519) target = $region52
      $region51: #{pointnet_backbone_forward.9} parent=47 // pred_region
        %s522 = smul.u32 2, %s17
        %p523 = scmp.lt.s32.totalorder %s522, 3
        %s524 = scalar_select %p523, %s522, 3
        %s525 = smul.addr %s524, 8
        %s526 = scalar_lea.vmem %s5, %s525
      $region52: #{pointnet_backbone_forward.9} parent=47 // pred_fallthru
        _
    $region48: #{pointnet_backbone_forward.9} parent=5 // pred_fallthru
      _
  $region6: #{pointnet_backbone_forward.9} parent=0 // loop_footer
    %s15 = sadd.s32 1, %s11
  $region7: #{pointnet_backbone_forward.9} parent=0 // loop_footer_branch
    %10 = sbr.rel target = $region3
  $region8: #{pointnet_backbone_forward.9} parent=0 // loop_exit
    _

// kernel: neg.16
$region0: #{neg.16}
  #allocation0 [shape = 's32[1]{0}', space=sflag, size = 0x4, scoped, tag = 'scoped memory for neg.16']
  %s0 = inlined_call_operand.vmem [shape: f32[2,64,32], index: 0, kind: input, shape index: {}]
  %s1 = inlined_call_operand.vmem [shape: f32[2,64,32], index: 1, kind: output, shape index: {}]
  %v2 = vld [vmem:[%s0] sm:$0xff]
  %3 = xla_tuple %v2
  %4 = xla_tuple %3
  %v5 = vxor.u32 %v2, 2147483648
  %6 = xla_tuple %v5
  %7 = vst [vmem:[%s1] sm:$0xff] %v5
  %s8 = scalar_lea.vmem %s0, 32
  %v9 = vld [vmem:[%s8] sm:$0xff]
  %10 = xla_tuple %v9
  %11 = xla_tuple %10
  %v12 = vxor.u32 %v9, 2147483648
  %13 = xla_tuple %v12
  %s14 = scalar_lea.vmem %s1, 32
  %15 = vst [vmem:[%s14] sm:$0xff] %v12
  %s16 = scalar_lea.vmem %s0, 8
  %v17 = vld [vmem:[%s16] sm:$0xff]
  %18 = xla_tuple %v17
  %19 = xla_tuple %18
  %v20 = vxor.u32 %v17, 2147483648
  %21 = xla_tuple %v20
  %s22 = scalar_lea.vmem %s1, 8
  %23 = vst [vmem:[%s22] sm:$0xff] %v20
  %s24 = scalar_lea.vmem %s0, 40
  %v25 = vld [vmem:[%s24] sm:$0xff]
  %26 = xla_tuple %v25
  %27 = xla_tuple %26
  %v28 = vxor.u32 %v25, 2147483648
  %29 = xla_tuple %v28
  %s30 = scalar_lea.vmem %s1, 40
  %31 = vst [vmem:[%s30] sm:$0xff] %v28
  %s32 = scalar_lea.vmem %s0, 16
  %v33 = vld [vmem:[%s32] sm:$0xff]
  %34 = xla_tuple %v33
  %35 = xla_tuple %34
  %v36 = vxor.u32 %v33, 2147483648
  %37 = xla_tuple %v36
  %s38 = scalar_lea.vmem %s1, 16
  %39 = vst [vmem:[%s38] sm:$0xff] %v36
  %s40 = scalar_lea.vmem %s0, 48
  %v41 = vld [vmem:[%s40] sm:$0xff]
  %42 = xla_tuple %v41
  %43 = xla_tuple %42
  %v44 = vxor.u32 %v41, 2147483648
  %45 = xla_tuple %v44
  %s46 = scalar_lea.vmem %s1, 48
  %47 = vst [vmem:[%s46] sm:$0xff] %v44
  %s48 = scalar_lea.vmem %s0, 24
  %v49 = vld [vmem:[%s48] sm:$0xff]
  %50 = xla_tuple %v49
  %51 = xla_tuple %50
  %v52 = vxor.u32 %v49, 2147483648
  %53 = xla_tuple %v52
  %s54 = scalar_lea.vmem %s1, 24
  %55 = vst [vmem:[%s54] sm:$0xff] %v52
  %s56 = scalar_lea.vmem %s0, 56
  %v57 = vld [vmem:[%s56] sm:$0xff]
  %58 = xla_tuple %v57
  %59 = xla_tuple %58
  %v60 = vxor.u32 %v57, 2147483648
  %61 = xla_tuple %v60
  %s62 = scalar_lea.vmem %s1, 56
  %63 = vst [vmem:[%s62] sm:$0xff] %v60

// kernel: pointnet_backbone_forward.10
$region0: #{pointnet_backbone_forward.10}
  #allocation0 [shape = 'u32[]', space=smem, size = 0x4, offset = 0x4, fixed_abs, tag = 'smem constant byte address 0x4 - core index']
  #allocation1 [shape = 'u32[144,128]{1,0:T(1,128)}', space=vmem, size = 0x12000, scoped, tag = 'internal scratch']
  %s0 = inlined_call_operand.vmem [shape: f32[64,160], index: 0, kind: input, shape index: {}]
  %s1 = inlined_call_operand.vmem [shape: bf16[160,128], index: 1, kind: input, shape index: {}]
  %s2 = inlined_call_operand.vmem [shape: f32[1,128], index: 2, kind: input, shape index: {}]
  %s3 = inlined_call_operand.vmem [shape: bf16[128,64], index: 3, kind: input, shape index: {}]
  %s4 = inlined_call_operand.vmem [shape: f32[1,64], index: 4, kind: input, shape index: {}]
  %s5 = inlined_call_operand.vmem [shape: f32[64,64], index: 5, kind: output, shape index: {}]
  %s6 = sld [smem:[#allocation0]]
  $region53: #{pointnet_backbone_forward.10} parent=0
    _
  %s8 = ssub.s32 1, %s6
  %s9 = scalar_select 0, %s8, %s6
  loop: start=0, step=1, limit=4
  $region2: #{pointnet_backbone_forward.10} parent=0 // loop_pre_header
    _
  $region3: #{pointnet_backbone_forward.10} parent=0 // loop_header
    %s11 = sphi 0, %s15
    %p12 = scmp.ge.s32.totalorder %s11, 4
    %s21 = sphi 0, %s23
    %s24 = sphi 0, %s21
    %s25 = sphi 0, %s24
    %s41 = sphi 0, %s25
    %s45 = sphi 0, %s45
    %s47 = sphi 0, %s45
    %s48 = sphi 0, %s47
    %s62 = sphi 0, %s48
    %s66 = sphi 0, %s66
    %s68 = sphi 0, %s66
    %s69 = sphi 0, %s68
    %s83 = sphi 0, %s69
    %s87 = sphi 0, %s87
    %s89 = sphi 0, %s87
    %s90 = sphi 0, %s89
    %s104 = sphi 0, %s90
    %s108 = sphi 0, %s108
    %s110 = sphi 0, %s108
    %s111 = sphi 0, %s110
    %s125 = sphi 0, %s111
    %s131 = sphi 0, %s133
    %s134 = sphi 0, %s131
    %s135 = sphi 0, %s134
    %s151 = sphi 0, %s135
  $region4: #{pointnet_backbone_forward.10} parent=0 // loop_header_branch
    %14 = sbr.rel (%p12) target = $region8
  $region5: #{pointnet_backbone_forward.10} parent=0 // loop_body
    %s16 = ssub.s32 %s11, 1
    %s17 = ssub.s32 %s11, 2
    %s18 = sadd.s32 %s11, 1
    %s19 = ssub.s32 %s11, %s18
    %p20 = scmp.eq.s32.totalorder %s19, 0
    %s22 = sadd.s32 %s21, 1
    %s23 = scalar_select %p20, %s21, %s22
    %p26 = pneg %p20
    %p27 = scmp.eq.s32.totalorder %s11, 1
    %p28 = por %p26, %p27
    %p29 = scmp.ne.s32.totalorder %s21, %s24
    %p30 = scmp.eq.s32.totalorder %s11, 0
    %p31 = por %p29, %p30
    %p32 = scmp.ne.s32.totalorder %s21, %s24
    %p33 = scmp.eq.s32.totalorder %s16, 1
    %p34 = por %p32, %p33
    %p35 = scmp.ne.s32.totalorder %s24, %s25
    %p36 = scmp.eq.s32.totalorder %s16, 0
    %p37 = por %p35, %p36
    %p38 = scmp.ne.s32.totalorder %s24, %s25
    %p39 = scmp.eq.s32.totalorder %s17, 1
    %p40 = por %p38, %p39
    %p42 = scmp.ne.s32.totalorder %s25, %s41
    %p43 = scmp.eq.s32.totalorder %s17, 0
    %p44 = por %p42, %p43
    %s46 = sadd.s32 %s45, 1
    %p49 = scmp.eq.s32.totalorder %s11, 1
    %p50 = scmp.ne.s32.totalorder %s45, %s47
    %p51 = scmp.eq.s32.totalorder %s11, 0
    %p52 = por %p50, %p51
    %p53 = scmp.ne.s32.totalorder %s45, %s47
    %p54 = scmp.eq.s32.totalorder %s16, 1
    %p55 = por %p53, %p54
    %p56 = scmp.ne.s32.totalorder %s47, %s48
    %p57 = scmp.eq.s32.totalorder %s16, 0
    %p58 = por %p56, %p57
    %p59 = scmp.ne.s32.totalorder %s47, %s48
    %p60 = scmp.eq.s32.totalorder %s17, 1
    %p61 = por %p59, %p60
    %p63 = scmp.ne.s32.totalorder %s48, %s62
    %p64 = scmp.eq.s32.totalorder %s17, 0
    %p65 = por %p63, %p64
    %s67 = sadd.s32 %s66, 1
    %p70 = scmp.eq.s32.totalorder %s11, 1
    %p71 = scmp.ne.s32.totalorder %s66, %s68
    %p72 = scmp.eq.s32.totalorder %s11, 0
    %p73 = por %p71, %p72
    %p74 = scmp.ne.s32.totalorder %s66, %s68
    %p75 = scmp.eq.s32.totalorder %s16, 1
    %p76 = por %p74, %p75
    %p77 = scmp.ne.s32.totalorder %s68, %s69
    %p78 = scmp.eq.s32.totalorder %s16, 0
    %p79 = por %p77, %p78
    %p80 = scmp.ne.s32.totalorder %s68, %s69
    %p81 = scmp.eq.s32.totalorder %s17, 1
    %p82 = por %p80, %p81
    %p84 = scmp.ne.s32.totalorder %s69, %s83
    %p85 = scmp.eq.s32.totalorder %s17, 0
    %p86 = por %p84, %p85
    %s88 = sadd.s32 %s87, 1
    %p91 = scmp.eq.s32.totalorder %s11, 1
    %p92 = scmp.ne.s32.totalorder %s87, %s89
    %p93 = scmp.eq.s32.totalorder %s11, 0
    %p94 = por %p92, %p93
    %p95 = scmp.ne.s32.totalorder %s87, %s89
    %p96 = scmp.eq.s32.totalorder %s16, 1
    %p97 = por %p95, %p96
    %p98 = scmp.ne.s32.totalorder %s89, %s90
    %p99 = scmp.eq.s32.totalorder %s16, 0
    %p100 = por %p98, %p99
    %p101 = scmp.ne.s32.totalorder %s89, %s90
    %p102 = scmp.eq.s32.totalorder %s17, 1
    %p103 = por %p101, %p102
    %p105 = scmp.ne.s32.totalorder %s90, %s104
    %p106 = scmp.eq.s32.totalorder %s17, 0
    %p107 = por %p105, %p106
    %s109 = sadd.s32 %s108, 1
    %p112 = scmp.eq.s32.totalorder %s11, 1
    %p113 = scmp.ne.s32.totalorder %s108, %s110
    %p114 = scmp.eq.s32.totalorder %s11, 0
    %p115 = por %p113, %p114
    %p116 = scmp.ne.s32.totalorder %s108, %s110
    %p117 = scmp.eq.s32.totalorder %s16, 1
    %p118 = por %p116, %p117
    %p119 = scmp.ne.s32.totalorder %s110, %s111
    %p120 = scmp.eq.s32.totalorder %s16, 0
    %p121 = por %p119, %p120
    %p122 = scmp.ne.s32.totalorder %s110, %s111
    %p123 = scmp.eq.s32.totalorder %s17, 1
    %p124 = por %p122, %p123
    %p126 = scmp.ne.s32.totalorder %s111, %s125
    %p127 = scmp.eq.s32.totalorder %s17, 0
    %p128 = por %p126, %p127
    %s129 = ssub.s32 %s11, %s18
    %p130 = scmp.eq.s32.totalorder %s129, 0
    %s132 = sadd.s32 %s131, 1
    %s133 = scalar_select %p130, %s131, %s132
    %p136 = pneg %p130
    %p137 = scmp.eq.s32.totalorder %s11, 1
    %p138 = por %p136, %p137
    %p139 = scmp.ne.s32.totalorder %s131, %s134
    %p140 = scmp.eq.s32.totalorder %s11, 0
    %p141 = por %p139, %p140
    %p142 = scmp.ne.s32.totalorder %s131, %s134
    %p143 = scmp.eq.s32.totalorder %s16, 1
    %p144 = por %p142, %p143
    %p145 = scmp.ne.s32.totalorder %s134, %s135
    %p146 = scmp.eq.s32.totalorder %s16, 0
    %p147 = por %p145, %p146
    %p148 = scmp.ne.s32.totalorder %s134, %s135
    %p149 = scmp.eq.s32.totalorder %s17, 1
    %p150 = por %p148, %p149
    %p152 = scmp.ne.s32.totalorder %s135, %s151
    %p153 = scmp.eq.s32.totalorder %s17, 0
    %p154 = por %p152, %p153
    %p155 = scmp.le.s32.totalorder 1, %s11
    %p156 = scmp.lt.s32.totalorder %s11, 3
    %p157 = pnand %p155, %p156
    %p158 = pneg %p157
    // Predicated region
    $region9: #{pointnet_backbone_forward.10} parent=5 // pred_check
      _
    $region10: #{pointnet_backbone_forward.10} parent=5 // pred_check_branch
      %160 = sbr.rel (%p157) target = $region12
    $region11: #{pointnet_backbone_forward.10} parent=5 // pred_region
      %s161 = ssub.s32 %s11, 1
      // Predicated region
      $region13: #{pointnet_backbone_forward.10} parent=11 // pred_check
        %p162 = pneg %p58
      $region14: #{pointnet_backbone_forward.10} parent=11 // pred_check_branch
        %164 = sbr.rel (%p162) target = $region16
      $region15: #{pointnet_backbone_forward.10} parent=11 // pred_region
        _
      $region16: #{pointnet_backbone_forward.10} parent=11 // pred_fallthru
        _
      // Predicated region
      $region17: #{pointnet_backbone_forward.10} parent=11 // pred_check
        %p165 = pneg %p79
      $region18: #{pointnet_backbone_forward.10} parent=11 // pred_check_branch
        %167 = sbr.rel (%p165) target = $region20
      $region19: #{pointnet_backbone_forward.10} parent=11 // pred_region
        _
      $region20: #{pointnet_backbone_forward.10} parent=11 // pred_fallthru
        _
      // Predicated region
      $region21: #{pointnet_backbone_forward.10} parent=11 // pred_check
        %p168 = pneg %p100
      $region22: #{pointnet_backbone_forward.10} parent=11 // pred_check_branch
        %170 = sbr.rel (%p168) target = $region24
      $region23: #{pointnet_backbone_forward.10} parent=11 // pred_region
        _
      $region24: #{pointnet_backbone_forward.10} parent=11 // pred_fallthru
        _
      // Predicated region
      $region25: #{pointnet_backbone_forward.10} parent=11 // pred_check
        %p171 = pneg %p121
      $region26: #{pointnet_backbone_forward.10} parent=11 // pred_check_branch
        %173 = sbr.rel (%p171) target = $region28
      $region27: #{pointnet_backbone_forward.10} parent=11 // pred_region
        _
      $region28: #{pointnet_backbone_forward.10} parent=11 // pred_fallthru
        _
    $region12: #{pointnet_backbone_forward.10} parent=5 // pred_fallthru
      _
    %p174 = scmp.lt.s32.totalorder %s11, 2
    // Predicated region
    $region29: #{pointnet_backbone_forward.10} parent=5 // pred_check
      %p175 = pneg %p174
    $region30: #{pointnet_backbone_forward.10} parent=5 // pred_check_branch
      %177 = sbr.rel (%p175) target = $region32
    $region31: #{pointnet_backbone_forward.10} parent=5 // pred_region
      // Predicated region
      $region33: #{pointnet_backbone_forward.10} parent=31 // pred_check
        %p178 = pneg %p31
      $region34: #{pointnet_backbone_forward.10} parent=31 // pred_check_branch
        %180 = sbr.rel (%p178) target = $region36
      $region35: #{pointnet_backbone_forward.10} parent=31 // pred_region
        %s181 = smul.u32 4, %s11
        %p182 = scmp.lt.s32.totalorder %s181, 7
        %s183 = scalar_select %p182, %s181, 7
        %s184 = smul.addr %s183, 2
        %s185 = smul.addr %s184, 8
        %s186 = scalar_lea.vmem %s0, %s185
        %s187 = smul.u32 4, %s11
      $region36: #{pointnet_backbone_forward.10} parent=31 // pred_fallthru
        _
    $region32: #{pointnet_backbone_forward.10} parent=5 // pred_fallthru
      _
    %p188 = scmp.le.s32.totalorder 1, %s11
    %p189 = scmp.lt.s32.totalorder %s11, 3
    %p190 = pnand %p188, %p189
    %p191 = pneg %p190
    // Predicated region
    $region37: #{pointnet_backbone_forward.10} parent=5 // pred_check
      _
    $region38: #{pointnet_backbone_forward.10} parent=5 // pred_check_branch
      %193 = sbr.rel (%p190) target = $region40
    $region39: #{pointnet_backbone_forward.10} parent=5 // pred_region
      %s194 = ssub.s32 %s11, 1
      %s195 = smul.u32 4, %s16
      %p196 = scmp.lt.s32.totalorder %s195, 7
      %s197 = scalar_select %p196, %s195, 7
      %s198 = smul.addr %s197, 2
      %s199 = smul.addr %s198, 8
      %s200 = scalar_lea.vmem %s0, %s199
      %p201 = pneg %p37
      %p202 = pneg %p34
      %p203 = pneg %p58
      %p204 = pneg %p55
      %p205 = pneg %p79
      %p206 = pneg %p76
      %p207 = pneg %p100
      %p208 = pneg %p97
      %p209 = pneg %p121
      %p210 = pneg %p118
      %p211 = pneg %p147
      %p212 = pneg %p144
      %s213 = smul.u32 4, %s16
      %p214 = scmp.lt.s32.totalorder %s213, 7
      %s215 = scalar_select %p214, %s213, 7
      %s216 = smul.addr %s215, 8
      %s217 = scalar_lea.vmem %s5, %s216
      %s218 = smul.u32 4, %s16
      %p219 = scmp.lt.s32.totalorder %s218, 7
      %s220 = scalar_select %p219, %s218, 7
      %s221 = smul.addr %s220, 2
      %s222 = smul.addr %s221, 8
      %s223 = scalar_lea.vmem %s0, %s222
      %s224 = smul.u32 4, %s16
      %s225 = smul.u32 4, %s16
      %p226 = scmp.lt.s32.totalorder %s225, 7
      %s227 = scalar_select %p226, %s225, 7
      %s228 = smul.addr %s227, 8
      %s229 = scalar_lea.vmem %s5, %s228
      %s230 = smul.u32 4, %s16
      %v232 = vld [vmem:[%s223] sm:$0xff]
      %v233 = vld [vmem:[%s223 + $0x8] sm:$0xff]
      %v234 = vld [vmem:[%s223 + $0x10] sm:$0xff]
      %v235 = vld [vmem:[%s223 + $0x18] sm:$0xff]
      %v236 = vld [vmem:[%s223 + $0x20] sm:$0xff]
      %v237 = vld [vmem:[%s223 + $0x28] sm:$0xff]
      %v238 = vld [vmem:[%s223 + $0x30] sm:$0xff]
      %v239 = vld [vmem:[%s223 + $0x38] sm:$0xff]
      %v240 = vpack.c.bf16 %v234, %v232
      %v241 = vpack.c.bf16 %v235, %v233
      %v242 = vpack.c.bf16 %v238, %v236
      %v243 = vpack.c.bf16 %v239, %v237
      %v244 = vld [vmem:[%s1] sm:$0xf]
      %v245 = vld [vmem:[%s1 + $0x4] sm:$0xf]
      %v246 = vld [vmem:[%s1 + $0x8] sm:$0xf]
      %v247 = vld [vmem:[%s1 + $0xc] sm:$0xf]
      %v248 = vld [vmem:[%s1 + $0x10] sm:$0xf]
      %v249 = vld [vmem:[%s1 + $0x14] sm:$0xf]
      %v250 = vld [vmem:[%s1 + $0x18] sm:$0xf]
      %v251 = vld [vmem:[%s1 + $0x1c] sm:$0xf]
      %v252 = vld [vmem:[%s1 + $0x20] sm:$0xf]
      %v253 = vld [vmem:[%s1 + $0x24] sm:$0xf]
      %v254 = vld [vmem:[%s1 + $0x28] sm:$0xf]
      %v255 = vld [vmem:[%s1 + $0x2c] sm:$0xf]
      %v256 = vld [vmem:[%s1 + $0x30] sm:$0xf]
      %v257 = vld [vmem:[%s1 + $0x34] sm:$0xf]
      %v258 = vld [vmem:[%s1 + $0x38] sm:$0xf]
      %v259 = vld [vmem:[%s1 + $0x3c] sm:$0xf]
      %v260 = vld [vmem:[%s1 + $0x40] sm:$0xf]
      %v261 = vld [vmem:[%s1 + $0x44] sm:$0xf]
      %v262 = vld [vmem:[%s1 + $0x48] sm:$0xf]
      %v263 = vld [vmem:[%s1 + $0x4c] sm:$0xf]
      %v264 = vld [vmem:[%s2] sm:$0x1]
      %v266 = vlaneseq
      %v267 = vshrl.u32 %v266, 7
      %v268 = vsub.s32 0, %v267
      %v269 = vrot.slane %v264, %v268
      %v291 = vunpack.c.l.b16 %v244
      %v292 = vunpack.c.l.b16 %v245
      %v293 = vunpack.c.l.b16 %v246
      %v294 = vunpack.c.l.b16 %v247
      %v295 = vunpack.c.l.b16 %v248
      %v296 = vunpack.c.l.b16 %v249
      %v297 = vunpack.c.l.b16 %v250
      %v298 = vunpack.c.l.b16 %v251
      %v299 = vunpack.c.l.b16 %v252
      %v300 = vunpack.c.l.b16 %v253
      %v301 = vunpack.c.l.b16 %v254
      %v302 = vunpack.c.l.b16 %v255
      %v303 = vunpack.c.l.b16 %v256
      %v304 = vunpack.c.l.b16 %v257
      %v305 = vunpack.c.l.b16 %v258
      %v306 = vunpack.c.l.b16 %v259
      %v307 = vunpack.c.l.b16 %v260
      %v308 = vunpack.c.l.b16 %v261
      %v309 = vunpack.c.l.b16 %v262
      %v310 = vunpack.c.l.b16 %v263
      %v311 = vpack.c.b16 %v292, %v291
      %v312 = vpack.c.b16 %v294, %v293
      %v313 = vpack.c.b16 %v296, %v295
      %v314 = vpack.c.b16 %v298, %v297
      %v315 = vpack.c.b16 %v300, %v299
      %v316 = vpack.c.b16 %v302, %v301
      %v317 = vpack.c.b16 %v304, %v303
      %v318 = vpack.c.b16 %v306, %v305
      %v319 = vpack.c.b16 %v308, %v307
      %v320 = vpack.c.b16 %v310, %v309
      %vm331 = vcmask 261120
      %v333 = vsel %vm331, %v241, 0
      %v336 = vsel %vm331, %v243, 0
      %338 = vmatprep.subr.bf16.mxu0 0
      %339 = vmatpush1.bf16.msra.mxu0 %v311
      %340 = vmatprep.subr.bf16.mxu0 0
      %341 = vmatpush1.bf16.msra.mxu0 %v312
      %342 = vmatprep.subr.bf16.mxu0 0
      %343 = vmatpush1.bf16.msra.mxu0 %v313
      %344 = vmatprep.subr.bf16.mxu0 0
      %345 = vmatpush1.bf16.msra.mxu0 %v314
      %346 = vmatprep.subr.bf16.mxu0 0
      %347 = vmatpush1.bf16.msra.mxu0 %v315
      %348 = vmatprep.subr.bf16.mxu0 0
      %349 = vmatpush1.bf16.msra.mxu0 %v316
      %350 = vmatprep.subr.bf16.mxu0 0
      %351 = vmatpush1.bf16.msra.mxu0 %v317
      %352 = vmatprep.subr.bf16.mxu0 0
      %353 = vmatpush1.bf16.msra.mxu0 %v318
      %354 = vmatprep.subr.bf16.mxu0 0
      %355 = vmatpush1.bf16.msra.mxu0 %v319
      %356 = vmatprep.subr.bf16.mxu0 0
      %357 = vmatpush1.bf16.msra.mxu0 %v320
      %358 = vmatprep.subr.bf16.mxu0 0
      %359 = vmatpush1.bf16.msra.mxu0 0
      %360 = vmatprep.subr.bf16.mxu0 0
      %361 = vmatpush1.bf16.msra.mxu0 0
      %362 = vmatprep.subr.bf16.mxu0 0
      %363 = vmatpush1.bf16.msra.mxu0 0
      %364 = vmatprep.subr.bf16.mxu0 0
      %365 = vmatpush1.bf16.msra.mxu0 0
      %366 = vmatprep.subr.bf16.mxu0 0
      %367 = vmatpush1.bf16.msra.mxu0 0
      %368 = vmatprep.subr.bf16.mxu0 0
      %369 = vmatpush1.bf16.msra.mxu0 0
      %370 = vmatprep.mubr.bf16.mxu0 %v333
      %371 = vmatmul.mubr.bf16.gmra.mrb[0].mxu0 %v240
      %v372 = vpop.f32.mrb[0].mxu0
      %v373 = vadd.f32 %v269, %v372
      %v374 = vpop.f32.mrb[0].mxu0
      %v375 = vpop.f32.mrb[0].mxu0
      %v376 = vadd.f32 %v269, %v375
      %v377 = vpop.f32.mrb[0].mxu0
      %378 = vmatprep.mubr.bf16.mxu0 %v336
      %379 = vmatmul.mubr.bf16.gmra.mrb[0].mxu0 %v242
      %v380 = vpop.f32.mrb[0].mxu0
      %v381 = vadd.f32 %v269, %v380
      %v382 = vpop.f32.mrb[0].mxu0
      %v383 = vpop.f32.mrb[0].mxu0
      %v384 = vadd.f32 %v269, %v383
      %v385 = vpop.f32.mrb[0].mxu0
      %386 = vdwg.mxu0
      %v387 = vmax.f32 %v373, 0.0
      %v388 = vmax.f32 %v376, 0.0
      %v389 = vmax.f32 %v381, 0.0
      %v390 = vmax.f32 %v384, 0.0
      %v391 = vpack.c.bf16 %v388, %v387
      %v392 = vpack.c.bf16 %v390, %v389
      %v393 = vld [vmem:[%s3] sm:$0xf]
      %v394 = vld [vmem:[%s3 + $0x4] sm:$0xf]
      %v395 = vld [vmem:[%s3 + $0x8] sm:$0xf]
      %v396 = vld [vmem:[%s3 + $0xc] sm:$0xf]
      %v397 = vld [vmem:[%s3 + $0x10] sm:$0xf]
      %v398 = vld [vmem:[%s3 + $0x14] sm:$0xf]
      %v399 = vld [vmem:[%s3 + $0x18] sm:$0xf]
      %v400 = vld [vmem:[%s3 + $0x1c] sm:$0xf]
      %v401 = vld [vmem:[%s3 + $0x20] sm:$0xf]
      %v402 = vld [vmem:[%s3 + $0x24] sm:$0xf]
      %v403 = vld [vmem:[%s3 + $0x28] sm:$0xf]
      %v404 = vld [vmem:[%s3 + $0x2c] sm:$0xf]
      %v405 = vld [vmem:[%s3 + $0x30] sm:$0xf]
      %v406 = vld [vmem:[%s3 + $0x34] sm:$0xf]
      %v407 = vld [vmem:[%s3 + $0x38] sm:$0xf]
      %v408 = vld [vmem:[%s3 + $0x3c] sm:$0xf]
      %v409 = vld [vmem:[%s4] sm:$0x1]
      %v411 = vlaneseq
      %v412 = vshrl.u32 %v411, 7
      %v413 = vsub.s32 0, %v412
      %v414 = vrot.slane %v409, %v413
      %v432 = vunpack.c.l.b16 %v393
      %v433 = vunpack.c.l.b16 %v394
      %v434 = vunpack.c.l.b16 %v395
      %v435 = vunpack.c.l.b16 %v396
      %v436 = vunpack.c.l.b16 %v397
      %v437 = vunpack.c.l.b16 %v398
      %v438 = vunpack.c.l.b16 %v399
      %v439 = vunpack.c.l.b16 %v400
      %v440 = vunpack.c.l.b16 %v401
      %v441 = vunpack.c.l.b16 %v402
      %v442 = vunpack.c.l.b16 %v403
      %v443 = vunpack.c.l.b16 %v404
      %v444 = vunpack.c.l.b16 %v405
      %v445 = vunpack.c.l.b16 %v406
      %v446 = vunpack.c.l.b16 %v407
      %v447 = vunpack.c.l.b16 %v408
      %v448 = vpack.c.b16 %v433, %v432
      %v449 = vpack.c.b16 %v435, %v434
      %v450 = vpack.c.b16 %v437, %v436
      %v451 = vpack.c.b16 %v439, %v438
      %v452 = vpack.c.b16 %v441, %v440
      %v453 = vpack.c.b16 %v443, %v442
      %v454 = vpack.c.b16 %v445, %v444
      %v455 = vpack.c.b16 %v447, %v446
      %464 = vmatprep.subr.bf16.mxu0 0
      %465 = vmatpush1.bf16.msra.mxu0 %v448
      %466 = vmatprep.subr.bf16.mxu0 0
      %467 = vmatpush1.bf16.msra.mxu0 %v449
      %468 = vmatprep.subr.bf16.mxu0 0
      %469 = vmatpush1.bf16.msra.mxu0 %v450
      %470 = vmatprep.subr.bf16.mxu0 0
      %471 = vmatpush1.bf16.msra.mxu0 %v451
      %472 = vmatprep.subr.bf16.mxu0 0
      %473 = vmatpush1.bf16.msra.mxu0 %v452
      %474 = vmatprep.subr.bf16.mxu0 0
      %475 = vmatpush1.bf16.msra.mxu0 %v453
      %476 = vmatprep.subr.bf16.mxu0 0
      %477 = vmatpush1.bf16.msra.mxu0 %v454
      %478 = vmatprep.subr.bf16.mxu0 0
      %479 = vmatpush1.bf16.msra.mxu0 %v455
      %480 = vmatprep.subr.bf16.mxu0 0
      %481 = vmatpush1.bf16.msra.mxu0 0
      %482 = vmatprep.subr.bf16.mxu0 0
      %483 = vmatpush1.bf16.msra.mxu0 0
      %484 = vmatprep.subr.bf16.mxu0 0
      %485 = vmatpush1.bf16.msra.mxu0 0
      %486 = vmatprep.subr.bf16.mxu0 0
      %487 = vmatpush1.bf16.msra.mxu0 0
      %488 = vmatprep.subr.bf16.mxu0 0
      %489 = vmatpush1.bf16.msra.mxu0 0
      %490 = vmatprep.subr.bf16.mxu0 0
      %491 = vmatpush1.bf16.msra.mxu0 0
      %492 = vmatprep.subr.bf16.mxu0 0
      %493 = vmatpush1.bf16.msra.mxu0 0
      %494 = vmatprep.subr.bf16.mxu0 0
      %495 = vmatpush1.bf16.msra.mxu0 0
      %496 = vmatprep.mubr.bf16.mxu0 0
      %497 = vmatmul.mubr.bf16.gmra.mrb[0].mxu0 %v391
      %v498 = vpop.f32.mrb[0].mxu0
      %v499 = vadd.f32 %v414, %v498
      %v500 = vpop.f32.mrb[0].mxu0
      %v501 = vpop.f32.mrb[0].mxu0
      %v502 = vadd.f32 %v414, %v501
      %v503 = vpop.f32.mrb[0].mxu0
      %504 = vmatprep.mubr.bf16.mxu0 0
      %505 = vmatmul.mubr.bf16.gmra.mrb[0].mxu0 %v392
      %v506 = vpop.f32.mrb[0].mxu0
      %v507 = vadd.f32 %v414, %v506
      %v508 = vpop.f32.mrb[0].mxu0
      %v509 = vpop.f32.mrb[0].mxu0
      %v510 = vadd.f32 %v414, %v509
      %v511 = vpop.f32.mrb[0].mxu0
      %512 = vdwg.mxu0
      %v513 = vmax.f32 %v499, 0.0
      %v514 = vmax.f32 %v502, 0.0
      %v515 = vmax.f32 %v507, 0.0
      %v516 = vmax.f32 %v510, 0.0
      %vm517 = vcmask 523264
      %518 = vst.msk [vmem:[%s229] sm:$0xff] %vm517, %v513
      %519 = vst.msk [vmem:[%s229 + $0x8] sm:$0xff] %vm517, %v514
      %520 = vst.msk [vmem:[%s229 + $0x10] sm:$0xff] %vm517, %v515
      %521 = vst.msk [vmem:[%s229 + $0x18] sm:$0xff] %vm517, %v516
      %s522 = smul.u32 4, %s16
      %p523 = scmp.lt.s32.totalorder %s522, 7
      %s524 = scalar_select %p523, %s522, 7
      %s525 = smul.addr %s524, 8
      %s526 = scalar_lea.vmem %s5, %s525
      // Predicated region
      $region41: #{pointnet_backbone_forward.10} parent=39 // pred_check
        %p527 = pneg %p144
      $region42: #{pointnet_backbone_forward.10} parent=39 // pred_check_branch
        %529 = sbr.rel (%p527) target = $region44
      $region43: #{pointnet_backbone_forward.10} parent=39 // pred_region
        %s530 = smul.u32 4, %s16
      $region44: #{pointnet_backbone_forward.10} parent=39 // pred_fallthru
        _
    $region40: #{pointnet_backbone_forward.10} parent=5 // pred_fallthru
      _
    %p531 = scmp.le.s32.totalorder 2, %s11
    // Predicated region
    $region45: #{pointnet_backbone_forward.10} parent=5 // pred_check
      %p532 = pneg %p531
    $region46: #{pointnet_backbone_forward.10} parent=5 // pred_check_branch
      %534 = sbr.rel (%p532) target = $region48
    $region47: #{pointnet_backbone_forward.10} parent=5 // pred_region
      %s535 = ssub.s32 %s11, 2
      // Predicated region
      $region49: #{pointnet_backbone_forward.10} parent=47 // pred_check
        %p536 = pneg %p150
      $region50: #{pointnet_backbone_forward.10} parent=47 // pred_check_branch
        %538 = sbr.rel (%p536) target = $region52
      $region51: #{pointnet_backbone_forward.10} parent=47 // pred_region
        %s539 = smul.u32 4, %s17
        %p540 = scmp.lt.s32.totalorder %s539, 7
        %s541 = scalar_select %p540, %s539, 7
        %s542 = smul.addr %s541, 8
        %s543 = scalar_lea.vmem %s5, %s542
      $region52: #{pointnet_backbone_forward.10} parent=47 // pred_fallthru
        _
    $region48: #{pointnet_backbone_forward.10} parent=5 // pred_fallthru
      _
  $region6: #{pointnet_backbone_forward.10} parent=0 // loop_footer
    %s15 = sadd.s32 1, %s11
  $region7: #{pointnet_backbone_forward.10} parent=0 // loop_footer_branch
    %10 = sbr.rel target = $region3
  $region8: #{pointnet_backbone_forward.10} parent=0 // loop_exit
    _

// kernel: pointnet_backbone_forward.11
$region0: #{pointnet_backbone_forward.11}
  #allocation0 [shape = 'u32[]', space=smem, size = 0x4, offset = 0x4, fixed_abs, tag = 'smem constant byte address 0x4 - core index']
  #allocation1 [shape = 'u32[144,128]{1,0:T(1,128)}', space=vmem, size = 0x12000, scoped, tag = 'internal scratch']
  %s0 = inlined_call_operand.vmem [shape: f32[2,64,67], index: 0, kind: input, shape index: {}]
  %s1 = inlined_call_operand.vmem [shape: bf16[67,32], index: 1, kind: input, shape index: {}]
  %s2 = inlined_call_operand.vmem [shape: f32[1,32], index: 2, kind: input, shape index: {}]
  %s3 = inlined_call_operand.vmem [shape: bf16[32,32], index: 3, kind: input, shape index: {}]
  %s4 = inlined_call_operand.vmem [shape: f32[1,32], index: 4, kind: input, shape index: {}]
  %s5 = inlined_call_operand.vmem [shape: bf16[32,32], index: 5, kind: input, shape index: {}]
  %s6 = inlined_call_operand.vmem [shape: f32[32,1], index: 6, kind: input, shape index: {}]
  %s7 = inlined_call_operand.hbm [shape: f32[2,32,64], index: 7, kind: output, shape index: {}]
  %s8 = sld [smem:[#allocation0]]
  $region61: #{pointnet_backbone_forward.11} parent=0
    _
  %s10 = ssub.s32 1, %s8
  %s11 = scalar_select 0, %s10, %s8
  $region1: #{pointnet_backbone_forward.11} parent=0
    #allocation2 [shape = 'u8[32768]{0}', space=vmem, size = 0x8000, scoped, tag = 'output window, operand 0']
    #allocation3 [shape = 's32[2]{0}', space=sflag, size = 0x8, scoped, tag = 'scoped memory for pointnet_backbone_forward.11']
    %12 = vsyncpa [#allocation3], 0
    %s13 = scalar_lea.sflag [#allocation3], 1
    %14 = vsyncpa %s13, 0
    loop: start=0, step=1, limit=4
    $region2: #{pointnet_backbone_forward.11} parent=1 // loop_pre_header
      _
    $region3: #{pointnet_backbone_forward.11} parent=1 // loop_header
      %s16 = sphi 0, %s20
      %p17 = scmp.ge.s32.totalorder %s16, 4
      %s26 = sphi 0, %s28
      %s29 = sphi 0, %s26
      %s30 = sphi 0, %s29
      %s46 = sphi 0, %s30
      %s50 = sphi 0, %s50
      %s52 = sphi 0, %s50
      %s53 = sphi 0, %s52
      %s67 = sphi 0, %s53
      %s71 = sphi 0, %s71
      %s73 = sphi 0, %s71
      %s74 = sphi 0, %s73
      %s88 = sphi 0, %s74
      %s92 = sphi 0, %s92
      %s94 = sphi 0, %s92
      %s95 = sphi 0, %s94
      %s109 = sphi 0, %s95
      %s113 = sphi 0, %s113
      %s115 = sphi 0, %s113
      %s116 = sphi 0, %s115
      %s130 = sphi 0, %s116
      %s134 = sphi 0, %s134
      %s136 = sphi 0, %s134
      %s137 = sphi 0, %s136
      %s151 = sphi 0, %s137
      %s155 = sphi 0, %s155
      %s157 = sphi 0, %s155
      %s158 = sphi 0, %s157
      %s172 = sphi 0, %s158
      %s178 = sphi 0, %s180
      %s181 = sphi 0, %s178
      %s182 = sphi 0, %s181
      %s198 = sphi 0, %s182
    $region4: #{pointnet_backbone_forward.11} parent=1 // loop_header_branch
      %19 = sbr.rel (%p17) target = $region8
    $region5: #{pointnet_backbone_forward.11} parent=1 // loop_body
      %s21 = ssub.s32 %s16, 1
      %s22 = ssub.s32 %s16, 2
      %s23 = sadd.s32 %s16, 1
      %s24 = ssub.s32 %s16, %s23
      %p25 = scmp.eq.s32.totalorder %s24, 0
      %s27 = sadd.s32 %s26, 1
      %s28 = scalar_select %p25, %s26, %s27
      %p31 = pneg %p25
      %p32 = scmp.eq.s32.totalorder %s16, 1
      %p33 = por %p31, %p32
      %p34 = scmp.ne.s32.totalorder %s26, %s29
      %p35 = scmp.eq.s32.totalorder %s16, 0
      %p36 = por %p34, %p35
      %p37 = scmp.ne.s32.totalorder %s26, %s29
      %p38 = scmp.eq.s32.totalorder %s21, 1
      %p39 = por %p37, %p38
      %p40 = scmp.ne.s32.totalorder %s29, %s30
      %p41 = scmp.eq.s32.totalorder %s21, 0
      %p42 = por %p40, %p41
      %p43 = scmp.ne.s32.totalorder %s29, %s30
      %p44 = scmp.eq.s32.totalorder %s22, 1
      %p45 = por %p43, %p44
      %p47 = scmp.ne.s32.totalorder %s30, %s46
      %p48 = scmp.eq.s32.totalorder %s22, 0
      %p49 = por %p47, %p48
      %s51 = sadd.s32 %s50, 1
      %p54 = scmp.eq.s32.totalorder %s16, 1
      %p55 = scmp.ne.s32.totalorder %s50, %s52
      %p56 = scmp.eq.s32.totalorder %s16, 0
      %p57 = por %p55, %p56
      %p58 = scmp.ne.s32.totalorder %s50, %s52
      %p59 = scmp.eq.s32.totalorder %s21, 1
      %p60 = por %p58, %p59
      %p61 = scmp.ne.s32.totalorder %s52, %s53
      %p62 = scmp.eq.s32.totalorder %s21, 0
      %p63 = por %p61, %p62
      %p64 = scmp.ne.s32.totalorder %s52, %s53
      %p65 = scmp.eq.s32.totalorder %s22, 1
      %p66 = por %p64, %p65
      %p68 = scmp.ne.s32.totalorder %s53, %s67
      %p69 = scmp.eq.s32.totalorder %s22, 0
      %p70 = por %p68, %p69
      %s72 = sadd.s32 %s71, 1
      %p75 = scmp.eq.s32.totalorder %s16, 1
      %p76 = scmp.ne.s32.totalorder %s71, %s73
      %p77 = scmp.eq.s32.totalorder %s16, 0
      %p78 = por %p76, %p77
      %p79 = scmp.ne.s32.totalorder %s71, %s73
      %p80 = scmp.eq.s32.totalorder %s21, 1
      %p81 = por %p79, %p80
      %p82 = scmp.ne.s32.totalorder %s73, %s74
      %p83 = scmp.eq.s32.totalorder %s21, 0
      %p84 = por %p82, %p83
      %p85 = scmp.ne.s32.totalorder %s73, %s74
      %p86 = scmp.eq.s32.totalorder %s22, 1
      %p87 = por %p85, %p86
      %p89 = scmp.ne.s32.totalorder %s74, %s88
      %p90 = scmp.eq.s32.totalorder %s22, 0
      %p91 = por %p89, %p90
      %s93 = sadd.s32 %s92, 1
      %p96 = scmp.eq.s32.totalorder %s16, 1
      %p97 = scmp.ne.s32.totalorder %s92, %s94
      %p98 = scmp.eq.s32.totalorder %s16, 0
      %p99 = por %p97, %p98
      %p100 = scmp.ne.s32.totalorder %s92, %s94
      %p101 = scmp.eq.s32.totalorder %s21, 1
      %p102 = por %p100, %p101
      %p103 = scmp.ne.s32.totalorder %s94, %s95
      %p104 = scmp.eq.s32.totalorder %s21, 0
      %p105 = por %p103, %p104
      %p106 = scmp.ne.s32.totalorder %s94, %s95
      %p107 = scmp.eq.s32.totalorder %s22, 1
      %p108 = por %p106, %p107
      %p110 = scmp.ne.s32.totalorder %s95, %s109
      %p111 = scmp.eq.s32.totalorder %s22, 0
      %p112 = por %p110, %p111
      %s114 = sadd.s32 %s113, 1
      %p117 = scmp.eq.s32.totalorder %s16, 1
      %p118 = scmp.ne.s32.totalorder %s113, %s115
      %p119 = scmp.eq.s32.totalorder %s16, 0
      %p120 = por %p118, %p119
      %p121 = scmp.ne.s32.totalorder %s113, %s115
      %p122 = scmp.eq.s32.totalorder %s21, 1
      %p123 = por %p121, %p122
      %p124 = scmp.ne.s32.totalorder %s115, %s116
      %p125 = scmp.eq.s32.totalorder %s21, 0
      %p126 = por %p124, %p125
      %p127 = scmp.ne.s32.totalorder %s115, %s116
      %p128 = scmp.eq.s32.totalorder %s22, 1
      %p129 = por %p127, %p128
      %p131 = scmp.ne.s32.totalorder %s116, %s130
      %p132 = scmp.eq.s32.totalorder %s22, 0
      %p133 = por %p131, %p132
      %s135 = sadd.s32 %s134, 1
      %p138 = scmp.eq.s32.totalorder %s16, 1
      %p139 = scmp.ne.s32.totalorder %s134, %s136
      %p140 = scmp.eq.s32.totalorder %s16, 0
      %p141 = por %p139, %p140
      %p142 = scmp.ne.s32.totalorder %s134, %s136
      %p143 = scmp.eq.s32.totalorder %s21, 1
      %p144 = por %p142, %p143
      %p145 = scmp.ne.s32.totalorder %s136, %s137
      %p146 = scmp.eq.s32.totalorder %s21, 0
      %p147 = por %p145, %p146
      %p148 = scmp.ne.s32.totalorder %s136, %s137
      %p149 = scmp.eq.s32.totalorder %s22, 1
      %p150 = por %p148, %p149
      %p152 = scmp.ne.s32.totalorder %s137, %s151
      %p153 = scmp.eq.s32.totalorder %s22, 0
      %p154 = por %p152, %p153
      %s156 = sadd.s32 %s155, 1
      %p159 = scmp.eq.s32.totalorder %s16, 1
      %p160 = scmp.ne.s32.totalorder %s155, %s157
      %p161 = scmp.eq.s32.totalorder %s16, 0
      %p162 = por %p160, %p161
      %p163 = scmp.ne.s32.totalorder %s155, %s157
      %p164 = scmp.eq.s32.totalorder %s21, 1
      %p165 = por %p163, %p164
      %p166 = scmp.ne.s32.totalorder %s157, %s158
      %p167 = scmp.eq.s32.totalorder %s21, 0
      %p168 = por %p166, %p167
      %p169 = scmp.ne.s32.totalorder %s157, %s158
      %p170 = scmp.eq.s32.totalorder %s22, 1
      %p171 = por %p169, %p170
      %p173 = scmp.ne.s32.totalorder %s158, %s172
      %p174 = scmp.eq.s32.totalorder %s22, 0
      %p175 = por %p173, %p174
      %s176 = ssub.s32 %s16, %s23
      %p177 = scmp.eq.s32.totalorder %s176, 0
      %s179 = sadd.s32 %s178, 1
      %s180 = scalar_select %p177, %s178, %s179
      %p183 = pneg %p177
      %p184 = scmp.eq.s32.totalorder %s16, 1
      %p185 = por %p183, %p184
      %p186 = scmp.ne.s32.totalorder %s178, %s181
      %p187 = scmp.eq.s32.totalorder %s16, 0
      %p188 = por %p186, %p187
      %p189 = scmp.ne.s32.totalorder %s178, %s181
      %p190 = scmp.eq.s32.totalorder %s21, 1
      %p191 = por %p189, %p190
      %p192 = scmp.ne.s32.totalorder %s181, %s182
      %p193 = scmp.eq.s32.totalorder %s21, 0
      %p194 = por %p192, %p193
      %p195 = scmp.ne.s32.totalorder %s181, %s182
      %p196 = scmp.eq.s32.totalorder %s22, 1
      %p197 = por %p195, %p196
      %p199 = scmp.ne.s32.totalorder %s182, %s198
      %p200 = scmp.eq.s32.totalorder %s22, 0
      %p201 = por %p199, %p200
      %p202 = scmp.le.s32.totalorder 1, %s16
      %p203 = scmp.lt.s32.totalorder %s16, 3
      %p204 = pnand %p202, %p203
      %p205 = pneg %p204
      // Predicated region
      $region9: #{pointnet_backbone_forward.11} parent=5 // pred_check
        _
      $region10: #{pointnet_backbone_forward.11} parent=5 // pred_check_branch
        %207 = sbr.rel (%p204) target = $region12
      $region11: #{pointnet_backbone_forward.11} parent=5 // pred_region
        %s208 = ssub.s32 %s16, 1
        // Predicated region
        $region13: #{pointnet_backbone_forward.11} parent=11 // pred_check
          %p209 = pneg %p63
        $region14: #{pointnet_backbone_forward.11} parent=11 // pred_check_branch
          %211 = sbr.rel (%p209) target = $region16
        $region15: #{pointnet_backbone_forward.11} parent=11 // pred_region
          _
        $region16: #{pointnet_backbone_forward.11} parent=11 // pred_fallthru
          _
        // Predicated region
        $region17: #{pointnet_backbone_forward.11} parent=11 // pred_check
          %p212 = pneg %p84
        $region18: #{pointnet_backbone_forward.11} parent=11 // pred_check_branch
          %214 = sbr.rel (%p212) target = $region20
        $region19: #{pointnet_backbone_forward.11} parent=11 // pred_region
          _
        $region20: #{pointnet_backbone_forward.11} parent=11 // pred_fallthru
          _
        // Predicated region
        $region21: #{pointnet_backbone_forward.11} parent=11 // pred_check
          %p215 = pneg %p105
        $region22: #{pointnet_backbone_forward.11} parent=11 // pred_check_branch
          %217 = sbr.rel (%p215) target = $region24
        $region23: #{pointnet_backbone_forward.11} parent=11 // pred_region
          _
        $region24: #{pointnet_backbone_forward.11} parent=11 // pred_fallthru
          _
        // Predicated region
        $region25: #{pointnet_backbone_forward.11} parent=11 // pred_check
          %p218 = pneg %p126
        $region26: #{pointnet_backbone_forward.11} parent=11 // pred_check_branch
          %220 = sbr.rel (%p218) target = $region28
        $region27: #{pointnet_backbone_forward.11} parent=11 // pred_region
          _
        $region28: #{pointnet_backbone_forward.11} parent=11 // pred_fallthru
          _
        // Predicated region
        $region29: #{pointnet_backbone_forward.11} parent=11 // pred_check
          %p221 = pneg %p147
        $region30: #{pointnet_backbone_forward.11} parent=11 // pred_check_branch
          %223 = sbr.rel (%p221) target = $region32
        $region31: #{pointnet_backbone_forward.11} parent=11 // pred_region
          _
        $region32: #{pointnet_backbone_forward.11} parent=11 // pred_fallthru
          _
        // Predicated region
        $region33: #{pointnet_backbone_forward.11} parent=11 // pred_check
          %p224 = pneg %p168
        $region34: #{pointnet_backbone_forward.11} parent=11 // pred_check_branch
          %226 = sbr.rel (%p224) target = $region36
        $region35: #{pointnet_backbone_forward.11} parent=11 // pred_region
          _
        $region36: #{pointnet_backbone_forward.11} parent=11 // pred_fallthru
          _
      $region12: #{pointnet_backbone_forward.11} parent=5 // pred_fallthru
        _
      %p227 = scmp.lt.s32.totalorder %s16, 2
      // Predicated region
      $region37: #{pointnet_backbone_forward.11} parent=5 // pred_check
        %p228 = pneg %p227
      $region38: #{pointnet_backbone_forward.11} parent=5 // pred_check_branch
        %230 = sbr.rel (%p228) target = $region40
      $region39: #{pointnet_backbone_forward.11} parent=5 // pred_region
        // Predicated region
        $region41: #{pointnet_backbone_forward.11} parent=39 // pred_check
          %p231 = pneg %p36
        $region42: #{pointnet_backbone_forward.11} parent=39 // pred_check_branch
          %233 = sbr.rel (%p231) target = $region44
        $region43: #{pointnet_backbone_forward.11} parent=39 // pred_region
          %p234 = scmp.lt.s32.totalorder %s16, 1
          %s235 = scalar_select %p234, %s16, 1
          %s236 = smul.addr %s235, 8
          %s237 = smul.addr %s236, 8
          %s238 = scalar_lea.vmem %s0, %s237
        $region44: #{pointnet_backbone_forward.11} parent=39 // pred_fallthru
          _
      $region40: #{pointnet_backbone_forward.11} parent=5 // pred_fallthru
        _
      %p239 = scmp.le.s32.totalorder 1, %s16
      %p240 = scmp.lt.s32.totalorder %s16, 3
      %p241 = pnand %p239, %p240
      %p242 = pneg %p241
      // Predicated region
      $region45: #{pointnet_backbone_forward.11} parent=5 // pred_check
        _
      $region46: #{pointnet_backbone_forward.11} parent=5 // pred_check_branch
        %244 = sbr.rel (%p241) target = $region48
      $region47: #{pointnet_backbone_forward.11} parent=5 // pred_region
        %s245 = ssub.s32 %s16, 1
        %p246 = scmp.lt.s32.totalorder %s21, 1
        %s247 = scalar_select %p246, %s21, 1
        %s248 = smul.addr %s247, 8
        %s249 = smul.addr %s248, 8
        %s250 = scalar_lea.vmem %s0, %s249
        %p251 = pneg %p42
        %p252 = pneg %p39
        %p253 = pneg %p63
        %p254 = pneg %p60
        %p255 = pneg %p84
        %p256 = pneg %p81
        %p257 = pneg %p105
        %p258 = pneg %p102
        %p259 = pneg %p126
        %p260 = pneg %p123
        %p261 = pneg %p147
        %p262 = pneg %p144
        %p263 = pneg %p168
        %p264 = pneg %p165
        %p265 = pneg %p194
        %p266 = pneg %p191
        %s267 = sand.u32 %s181, 1
        %s268 = scalar_lea.sflag [#allocation3], %s267
        %s269 = sand.u32 %s181, 1
        %s270 = smul.addr %s269, 32
        %s271 = scalar_lea.vmem [#allocation2], %s270
        %p272 = scmp.lt.s32.totalorder %s21, 1
        %s273 = scalar_select %p272, %s21, 1
        %s274 = smul.addr %s273, 8
        %s275 = smul.addr %s274, 8
        %s276 = scalar_lea.vmem %s0, %s275
        %v278 = vld [vmem:[%s276] sm:$0xff]
        %v279 = vld [vmem:[%s276 + $0x8] sm:$0xff]
        %v280 = vld [vmem:[%s276 + $0x10] sm:$0xff]
        %v281 = vld [vmem:[%s276 + $0x18] sm:$0xff]
        %v282 = vld [vmem:[%s276 + $0x20] sm:$0xff]
        %v283 = vld [vmem:[%s276 + $0x28] sm:$0xff]
        %v284 = vld [vmem:[%s276 + $0x30] sm:$0xff]
        %v285 = vld [vmem:[%s276 + $0x38] sm:$0xff]
        %v286 = vpack.c.bf16 %v279, %v278
        %v287 = vpack.c.bf16 %v281, %v280
        %v288 = vpack.c.bf16 %v283, %v282
        %v289 = vpack.c.bf16 %v285, %v284
        %v290 = vld [vmem:[%s1] sm:$0xf]
        %v291 = vld [vmem:[%s1 + $0x4] sm:$0xf]
        %v292 = vld [vmem:[%s1 + $0x8] sm:$0xf]
        %v293 = vld [vmem:[%s1 + $0xc] sm:$0xf]
        %v294 = vld [vmem:[%s1 + $0x10] sm:$0xf]
        %v295 = vld [vmem:[%s1 + $0x14] sm:$0xf]
        %v296 = vld [vmem:[%s1 + $0x18] sm:$0xf]
        %v297 = vld [vmem:[%s1 + $0x1c] sm:$0xf]
        %v298 = vld [vmem:[%s1 + $0x20] sm:$0x3]
        %v299 = vld [vmem:[%s2] sm:$0x1]
        %v301 = vlaneseq
        %v302 = vshrl.u32 %v301, 7
        %v303 = vsub.s32 0, %v302
        %v304 = vrot.slane %v299, %v303
        %v315 = vunpack.c.l.b16 %v290
        %v316 = vunpack.c.l.b16 %v291
        %v317 = vunpack.c.l.b16 %v292
        %v318 = vunpack.c.l.b16 %v293
        %v319 = vunpack.c.l.b16 %v294
        %v320 = vunpack.c.l.b16 %v295
        %v321 = vunpack.c.l.b16 %v296
        %v322 = vunpack.c.l.b16 %v297
        %v323 = vunpack.c.l.b16 %v298
        %v324 = vpack.c.b16 %v316, %v315
        %v325 = vpack.c.b16 %v318, %v317
        %v326 = vpack.c.b16 %v320, %v319
        %v327 = vpack.c.b16 %v322, %v321
        %v328 = vpack.c.b16 %v323, %v323
        %vm333 = vcmask 547840
        %v335 = vsel %vm333, %v286, 0
        %v338 = vsel %vm333, %v287, 0
        %v341 = vsel %vm333, %v288, 0
        %v344 = vsel %vm333, %v289, 0
        %vm346 = vcmask 1040384
        %vm347 = vcmask 1041408
        %v348 = vsel %vm346, 4294967295, 65535
        %v349 = vsel %vm347, %v348, 0
        %v351 = vand.u32 %v328, %v349
        %353 = vmatprep.subr.bf16.mxu0 0
        %354 = vmatpush1.bf16.msra.mxu0 %v324
        %355 = vmatprep.subr.bf16.mxu0 0
        %356 = vmatpush1.bf16.msra.mxu0 %v325
        %357 = vmatprep.subr.bf16.mxu0 0
        %358 = vmatpush1.bf16.msra.mxu0 %v326
        %359 = vmatprep.subr.bf16.mxu0 0
        %360 = vmatpush1.bf16.msra.mxu0 %v327
        %361 = vmatprep.subr.bf16.mxu0 0
        %362 = vmatpush1.bf16.msra.mxu0 %v351
        %363 = vmatprep.subr.bf16.mxu0 0
        %364 = vmatpush1.bf16.msra.mxu0 0
        %365 = vmatprep.subr.bf16.mxu0 0
        %366 = vmatpush1.bf16.msra.mxu0 0
        %367 = vmatprep.subr.bf16.mxu0 0
        %368 = vmatpush1.bf16.msra.mxu0 0
        %369 = vmatprep.subr.bf16.mxu0 0
        %370 = vmatpush1.bf16.msra.mxu0 0
        %371 = vmatprep.subr.bf16.mxu0 0
        %372 = vmatpush1.bf16.msra.mxu0 0
        %373 = vmatprep.subr.bf16.mxu0 0
        %374 = vmatpush1.bf16.msra.mxu0 0
        %375 = vmatprep.subr.bf16.mxu0 0
        %376 = vmatpush1.bf16.msra.mxu0 0
        %377 = vmatprep.subr.bf16.mxu0 0
        %378 = vmatpush1.bf16.msra.mxu0 0
        %379 = vmatprep.subr.bf16.mxu0 0
        %380 = vmatpush1.bf16.msra.mxu0 0
        %381 = vmatprep.subr.bf16.mxu0 0
        %382 = vmatpush1.bf16.msra.mxu0 0
        %383 = vmatprep.subr.bf16.mxu0 0
        %384 = vmatpush1.bf16.msra.mxu0 0
        %385 = vmatprep.mubr.bf16.mxu0 0
        %386 = vmatmul.mubr.bf16.gmra.mrb[0].mxu0 %v335
        %v387 = vpop.f32.mrb[0].mxu0
        %v388 = vadd.f32 %v304, %v387
        %v389 = vpop.f32.mrb[0].mxu0
        %v390 = vpop.f32.mrb[0].mxu0
        %v391 = vadd.f32 %v304, %v390
        %v392 = vpop.f32.mrb[0].mxu0
        %393 = vmatprep.mubr.bf16.mxu0 0
        %394 = vmatmul.mubr.bf16.gmra.mrb[0].mxu0 %v338
        %v395 = vpop.f32.mrb[0].mxu0
        %v396 = vadd.f32 %v304, %v395
        %v397 = vpop.f32.mrb[0].mxu0
        %v398 = vpop.f32.mrb[0].mxu0
        %v399 = vadd.f32 %v304, %v398
        %v400 = vpop.f32.mrb[0].mxu0
        %401 = vmatprep.mubr.bf16.mxu0 0
        %402 = vmatmul.mubr.bf16.gmra.mrb[0].mxu0 %v341
        %v403 = vpop.f32.mrb[0].mxu0
        %v404 = vadd.f32 %v304, %v403
        %v405 = vpop.f32.mrb[0].mxu0
        %v406 = vpop.f32.mrb[0].mxu0
        %v407 = vadd.f32 %v304, %v406
        %v408 = vpop.f32.mrb[0].mxu0
        %409 = vmatprep.mubr.bf16.mxu0 0
        %410 = vmatmul.mubr.bf16.gmra.mrb[0].mxu0 %v344
        %v411 = vpop.f32.mrb[0].mxu0
        %v412 = vadd.f32 %v304, %v411
        %v413 = vpop.f32.mrb[0].mxu0
        %v414 = vpop.f32.mrb[0].mxu0
        %v415 = vadd.f32 %v304, %v414
        %v416 = vpop.f32.mrb[0].mxu0
        %417 = vdwg.mxu0
        %v418 = vmax.f32 %v388, 0.0
        %v419 = vmax.f32 %v391, 0.0
        %v420 = vmax.f32 %v396, 0.0
        %v421 = vmax.f32 %v399, 0.0
        %v422 = vmax.f32 %v404, 0.0
        %v423 = vmax.f32 %v407, 0.0
        %v424 = vmax.f32 %v412, 0.0
        %v425 = vmax.f32 %v415, 0.0
        %v426 = vpack.c.bf16 %v419, %v418
        %v427 = vpack.c.bf16 %v421, %v420
        %v428 = vpack.c.bf16 %v423, %v422
        %v429 = vpack.c.bf16 %v425, %v424
        %v430 = vld [vmem:[%s3] sm:$0xf]
        %v431 = vld [vmem:[%s3 + $0x4] sm:$0xf]
        %v432 = vld [vmem:[%s3 + $0x8] sm:$0xf]
        %v433 = vld [vmem:[%s3 + $0xc] sm:$0xf]
        %v434 = vld [vmem:[%s4] sm:$0x1]
        %v436 = vlaneseq
        %v437 = vshrl.u32 %v436, 7
        %v438 = vsub.s32 0, %v437
        %v439 = vrot.slane %v434, %v438
        %v445 = vunpack.c.l.b16 %v430
        %v446 = vunpack.c.l.b16 %v431
        %v447 = vunpack.c.l.b16 %v432
        %v448 = vunpack.c.l.b16 %v433
        %v449 = vpack.c.b16 %v446, %v445
        %v450 = vpack.c.b16 %v448, %v447
        %vm453 = vcmask 261120
        %v455 = vsel %vm453, %v426, 0
        %v458 = vsel %vm453, %v427, 0
        %v461 = vsel %vm453, %v428, 0
        %v464 = vsel %vm453, %v429, 0
        %466 = vmatprep.subr.bf16.mxu0 0
        %467 = vmatpush1.bf16.msra.mxu0 %v449
        %468 = vmatprep.subr.bf16.mxu0 0
        %469 = vmatpush1.bf16.msra.mxu0 %v450
        %470 = vmatprep.subr.bf16.mxu0 0
        %471 = vmatpush1.bf16.msra.mxu0 0
        %472 = vmatprep.subr.bf16.mxu0 0
        %473 = vmatpush1.bf16.msra.mxu0 0
        %474 = vmatprep.subr.bf16.mxu0 0
        %475 = vmatpush1.bf16.msra.mxu0 0
        %476 = vmatprep.subr.bf16.mxu0 0
        %477 = vmatpush1.bf16.msra.mxu0 0
        %478 = vmatprep.subr.bf16.mxu0 0
        %479 = vmatpush1.bf16.msra.mxu0 0
        %480 = vmatprep.subr.bf16.mxu0 0
        %481 = vmatpush1.bf16.msra.mxu0 0
        %482 = vmatprep.subr.bf16.mxu0 0
        %483 = vmatpush1.bf16.msra.mxu0 0
        %484 = vmatprep.subr.bf16.mxu0 0
        %485 = vmatpush1.bf16.msra.mxu0 0
        %486 = vmatprep.subr.bf16.mxu0 0
        %487 = vmatpush1.bf16.msra.mxu0 0
        %488 = vmatprep.subr.bf16.mxu0 0
        %489 = vmatpush1.bf16.msra.mxu0 0
        %490 = vmatprep.subr.bf16.mxu0 0
        %491 = vmatpush1.bf16.msra.mxu0 0
        %492 = vmatprep.subr.bf16.mxu0 0
        %493 = vmatpush1.bf16.msra.mxu0 0
        %494 = vmatprep.subr.bf16.mxu0 0
        %495 = vmatpush1.bf16.msra.mxu0 0
        %496 = vmatprep.subr.bf16.mxu0 0
        %497 = vmatpush1.bf16.msra.mxu0 0
        %498 = vmatprep.mubr.bf16.mxu0 0
        %499 = vmatmul.mubr.bf16.gmra.mrb[0].mxu0 %v455
        %v500 = vpop.f32.mrb[0].mxu0
        %v501 = vadd.f32 %v439, %v500
        %v502 = vpop.f32.mrb[0].mxu0
        %v503 = vpop.f32.mrb[0].mxu0
        %v504 = vadd.f32 %v439, %v503
        %v505 = vpop.f32.mrb[0].mxu0
        %506 = vmatprep.mubr.bf16.mxu0 0
        %507 = vmatmul.mubr.bf16.gmra.mrb[0].mxu0 %v458
        %v508 = vpop.f32.mrb[0].mxu0
        %v509 = vadd.f32 %v439, %v508
        %v510 = vpop.f32.mrb[0].mxu0
        %v511 = vpop.f32.mrb[0].mxu0
        %v512 = vadd.f32 %v439, %v511
        %v513 = vpop.f32.mrb[0].mxu0
        %514 = vmatprep.mubr.bf16.mxu0 0
        %515 = vmatmul.mubr.bf16.gmra.mrb[0].mxu0 %v461
        %v516 = vpop.f32.mrb[0].mxu0
        %v517 = vadd.f32 %v439, %v516
        %v518 = vpop.f32.mrb[0].mxu0
        %v519 = vpop.f32.mrb[0].mxu0
        %v520 = vadd.f32 %v439, %v519
        %v521 = vpop.f32.mrb[0].mxu0
        %522 = vmatprep.mubr.bf16.mxu0 0
        %523 = vmatmul.mubr.bf16.gmra.mrb[0].mxu0 %v464
        %v524 = vpop.f32.mrb[0].mxu0
        %v525 = vadd.f32 %v439, %v524
        %v526 = vpop.f32.mrb[0].mxu0
        %v527 = vpop.f32.mrb[0].mxu0
        %v528 = vadd.f32 %v439, %v527
        %v529 = vpop.f32.mrb[0].mxu0
        %530 = vdwg.mxu0
        %v531 = vmax.f32 %v501, 0.0
        %v532 = vmax.f32 %v504, 0.0
        %v533 = vmax.f32 %v509, 0.0
        %v534 = vmax.f32 %v512, 0.0
        %v535 = vmax.f32 %v517, 0.0
        %v536 = vmax.f32 %v520, 0.0
        %v537 = vmax.f32 %v525, 0.0
        %v538 = vmax.f32 %v528, 0.0
        %v539 = vld [vmem:[%s5] sm:$0xf]
        %v540 = vld [vmem:[%s5 + $0x4] sm:$0xf]
        %v541 = vld [vmem:[%s5 + $0x8] sm:$0xf]
        %v542 = vld [vmem:[%s5 + $0xc] sm:$0xf]
        %v543 = vpack.c.bf16 %v532, %v531
        %v544 = vpack.c.bf16 %v534, %v533
        %v545 = vpack.c.bf16 %v536, %v535
        %v546 = vpack.c.bf16 %v538, %v537
        %v547 = vld [vmem:[%s6] sm:$0xff]
        %v548 = vld [vmem:[%s6 + $0x8] sm:$0xff]
        %v549 = vld [vmem:[%s6 + $0x10] sm:$0xff]
        %v550 = vld [vmem:[%s6 + $0x18] sm:$0xff]
        %552 = vset.pattern.permute.xlu0 0
        %553 = vperm.xlu0 %552, %v547
        %v554 = vpop.permute.xlu0 %553
        %557 = vset.pattern.permute.xlu0 0
        %558 = vperm.xlu0 %557, %v548
        %v559 = vpop.permute.xlu0 %558
        %562 = vset.pattern.permute.xlu0 0
        %563 = vperm.xlu0 %562, %v549
        %v564 = vpop.permute.xlu0 %563
        %567 = vset.pattern.permute.xlu0 0
        %568 = vperm.xlu0 %567, %v550
        %v569 = vpop.permute.xlu0 %568
        %v575 = vunpack.c.l.b16 %v539
        %v576 = vunpack.c.l.b16 %v540
        %v577 = vunpack.c.l.b16 %v541
        %v578 = vunpack.c.l.b16 %v542
        %v579 = vpack.c.b16 %v576, %v575
        %v580 = vpack.c.b16 %v578, %v577
        %v582 = vsel %vm453, %v579, 0
        %v585 = vsel %vm453, %v580, 0
        %v588 = vsel %vm453, %v543, 0
        %v591 = vsel %vm453, %v544, 0
        %v594 = vsel %vm453, %v545, 0
        %v597 = vsel %vm453, %v546, 0
        %599 = vmatprep.subr.bf16.mxu0 0
        %600 = vmatpush1.bf16.xpose.msra.mxu0 %v588
        %601 = vmatprep.subr.bf16.mxu0 0
        %602 = vmatpush1.bf16.xpose.msra.mxu0 %v591
        %603 = vmatprep.subr.bf16.mxu0 0
        %604 = vmatpush1.bf16.xpose.msra.mxu0 %v594
        %605 = vmatprep.subr.bf16.mxu0 0
        %606 = vmatpush1.bf16.xpose.msra.mxu0 %v597
        %607 = vmatprep.subr.bf16.mxu0 0
        %608 = vmatpush1.bf16.xpose.msra.mxu0 0
        %609 = vmatprep.subr.bf16.mxu0 0
        %610 = vmatpush1.bf16.xpose.msra.mxu0 0
        %611 = vmatprep.subr.bf16.mxu0 0
        %612 = vmatpush1.bf16.xpose.msra.mxu0 0
        %613 = vmatprep.subr.bf16.mxu0 0
        %614 = vmatpush1.bf16.xpose.msra.mxu0 0
        %615 = vmatprep.subr.bf16.mxu0 0
        %616 = vmatpush1.bf16.xpose.msra.mxu0 0
        %617 = vmatprep.subr.bf16.mxu0 0
        %618 = vmatpush1.bf16.xpose.msra.mxu0 0
        %619 = vmatprep.subr.bf16.mxu0 0
        %620 = vmatpush1.bf16.xpose.msra.mxu0 0
        %621 = vmatprep.subr.bf16.mxu0 0
        %622 = vmatpush1.bf16.xpose.msra.mxu0 0
        %623 = vmatprep.subr.bf16.mxu0 0
        %624 = vmatpush1.bf16.xpose.msra.mxu0 0
        %625 = vmatprep.subr.bf16.mxu0 0
        %626 = vmatpush1.bf16.xpose.msra.mxu0 0
        %627 = vmatprep.subr.bf16.mxu0 0
        %628 = vmatpush1.bf16.xpose.msra.mxu0 0
        %629 = vmatprep.subr.bf16.mxu0 0
        %630 = vmatpush1.bf16.xpose.msra.mxu0 0
        %631 = vmatprep.mubr.bf16.mxu0 0
        %632 = vmatmul.mubr.bf16.gmra.mrb[0].mxu0 %v582
        %v633 = vpop.f32.mrb[0].mxu0
        %v634 = vadd.f32 %v554, %v633
        %v635 = vpop.f32.mrb[0].mxu0
        %v636 = vpop.f32.mrb[0].mxu0
        %v637 = vadd.f32 %v559, %v636
        %v638 = vpop.f32.mrb[0].mxu0
        %639 = vmatprep.mubr.bf16.mxu0 0
        %640 = vmatmul.mubr.bf16.gmra.mrb[0].mxu0 %v585
        %v641 = vpop.f32.mrb[0].mxu0
        %v642 = vadd.f32 %v564, %v641
        %v643 = vpop.f32.mrb[0].mxu0
        %v644 = vpop.f32.mrb[0].mxu0
        %v645 = vadd.f32 %v569, %v644
        %v646 = vpop.f32.mrb[0].mxu0
        %647 = vdwg.mxu0
        %vm648 = vcmask 523264
        %649 = vst.msk [vmem:[%s271] sm:$0xff] %vm648, %v634
        %650 = vst.msk [vmem:[%s271 + $0x8] sm:$0xff] %vm648, %v637
        %651 = vst.msk [vmem:[%s271 + $0x10] sm:$0xff] %vm648, %v642
        %652 = vst.msk [vmem:[%s271 + $0x18] sm:$0xff] %vm648, %v645
        %s653 = sand.u32 %s181, 1
        %s654 = scalar_lea.sflag [#allocation3], %s653
        %s655 = sand.u32 %s181, 1
        %s656 = smul.addr %s655, 32
        %s657 = scalar_lea.vmem [#allocation2], %s656
        // Predicated region
        $region49: #{pointnet_backbone_forward.11} parent=47 // pred_check
          %p658 = pneg %p191
        $region50: #{pointnet_backbone_forward.11} parent=47 // pred_check_branch
          %660 = sbr.rel (%p658) target = $region52
        $region51: #{pointnet_backbone_forward.11} parent=47 // pred_region
          %s662 = ssub.s32 512, 512
          %663 = vsyncadd %s654, %s662
          %s664 = smul.addr %s21, 4
          %s665 = smul.addr %s664, 128
          %s666 = scalar_lea.hbm %s7, %s665
          %s667 = sshll.u32 %s657, 4
          %s668 = int_to_ptr.vmem [resolvable:$true] %s667
          %673 = dma.vmem_to_hbm [thread:$0]  %s668, 512, %s666, %s654, 128, 128, 8
        $region52: #{pointnet_backbone_forward.11} parent=47 // pred_fallthru
          _
      $region48: #{pointnet_backbone_forward.11} parent=5 // pred_fallthru
        _
      %p674 = scmp.le.s32.totalorder 2, %s16
      // Predicated region
      $region53: #{pointnet_backbone_forward.11} parent=5 // pred_check
        %p675 = pneg %p674
      $region54: #{pointnet_backbone_forward.11} parent=5 // pred_check_branch
        %677 = sbr.rel (%p675) target = $region56
      $region55: #{pointnet_backbone_forward.11} parent=5 // pred_region
        %s678 = ssub.s32 %s16, 2
        // Predicated region
        $region57: #{pointnet_backbone_forward.11} parent=55 // pred_check
          %p679 = pneg %p197
        $region58: #{pointnet_backbone_forward.11} parent=55 // pred_check_branch
          %681 = sbr.rel (%p679) target = $region60
        $region59: #{pointnet_backbone_forward.11} parent=55 // pred_region
          %s682 = sand.u32 %s182, 1
          %s683 = scalar_lea.sflag [#allocation3], %s682
          %s684 = sand.u32 %s182, 1
          %s685 = smul.addr %s684, 32
          %s686 = scalar_lea.vmem [#allocation2], %s685
          %687 = dma.done %s683, 512
        $region60: #{pointnet_backbone_forward.11} parent=55 // pred_fallthru
          _
      $region56: #{pointnet_backbone_forward.11} parent=5 // pred_fallthru
        _
    $region6: #{pointnet_backbone_forward.11} parent=1 // loop_footer
      %s20 = sadd.s32 1, %s16
    $region7: #{pointnet_backbone_forward.11} parent=1 // loop_footer_branch
      %15 = sbr.rel target = $region3
    $region8: #{pointnet_backbone_forward.11} parent=1 // loop_exit
      _
    %688 = vsyncpa [#allocation3], 1
    %s689 = scalar_lea.sflag [#allocation3], 1
    %690 = vsyncpa %s689, 1

</llo_original>
